<compile_context>
chip_gen: v7x
topology: tpu7x:2x2x1
jax: 0.10.0
libtpu: 0.0.40
codegen_flags: <defaults>
</compile_context>

<pallas_src>
import math
from functools import partial

import jax
import jax.numpy as jnp
from jax.experimental import pallas as pl
from jax.experimental.pallas import tpu as pltpu


# ----------------------------------------------------------------------------
# Fully fused forward kernel
# ----------------------------------------------------------------------------
def _fused_kernel(num_layers, nhead, head_dim,
                  v_ref,
                  k1_ref, c1_ref, k2_ref, c2_ref,
                  k3_ref, c3_ref, k4_ref, c4_ref,
                  wq_ref, wk_ref, wv_ref, wo_ref,
                  bq_ref, bk_ref, bv_ref, bo_ref,
                  w1_ref, b1_ref, w2_ref, b2_ref,
                  g1_ref, be1_ref, g2_ref, be2_ref,
                  wout_ref, bout_ref,
                  o_ref):
    f32 = jnp.float32

    # ---- GCN stage (kron-folded): 4x relu(V @ kron(A^T, W_i) + tile(b_i, N))
    z = v_ref[...]                                                # (B, N*seq_len)
    for k_ref, c_ref in ((k1_ref, c1_ref), (k2_ref, c2_ref),
                         (k3_ref, c3_ref), (k4_ref, c4_ref)):
        z = jnp.maximum(
            jnp.dot(z, k_ref[...], preferred_element_type=f32) + c_ref[...], 0.0)
    # z == x.view(batch, -1) of the PyTorch model:  (B, E)

    scale = 1.0 / math.sqrt(head_dim)

    def layer_norm(y, g, be):
        m = jnp.mean(y, axis=-1, keepdims=True)
        var = jnp.mean((y - m) ** 2, axis=-1, keepdims=True)
        return (y - m) * jax.lax.rsqrt(var + 1e-5) * g + be

    # ---- 4x TransformerEncoderLayer (post-norm, relu, dropout = identity) --
    for l in range(num_layers):
        attn = jnp.zeros_like(z)
        for h in range(nhead):
            i = l * nhead + h
            qh = jnp.dot(z, wq_ref[i], preferred_element_type=f32) + bq_ref[i]
            kh = jnp.dot(z, wk_ref[i], preferred_element_type=f32) + bk_ref[i]
            vh = jnp.dot(z, wv_ref[i], preferred_element_type=f32) + bv_ref[i]
            s = jax.lax.dot_general(qh, kh, (((1,), (1,)), ((), ())),
                                    preferred_element_type=f32) * scale
            s = s - jnp.max(s, axis=-1, keepdims=True)
            p = jnp.exp(s)
            p = p / jnp.sum(p, axis=-1, keepdims=True)
            ctx = jnp.dot(p, vh, preferred_element_type=f32)
            # fold head context directly into the output projection (no concat)
            attn = attn + jnp.dot(ctx, wo_ref[i], preferred_element_type=f32)

        x1 = layer_norm(z + attn + bo_ref[l], g1_ref[l], be1_ref[l])

        hid = jnp.maximum(
            jnp.dot(x1.astype(jnp.bfloat16), w1_ref[l],
                    preferred_element_type=f32) + b1_ref[l], 0.0)
        ff = jnp.dot(hid.astype(jnp.bfloat16), w2_ref[l],
                     preferred_element_type=f32) + b2_ref[l]
        z = layer_norm(x1 + ff, g2_ref[l], be2_ref[l])

    # ---- final Linear -------------------------------------------------------
    o_ref[...] = (jnp.dot(z, wout_ref[...], preferred_element_type=f32)
                  + bout_ref[...])


def fused_forward(v0, kron_ws, kron_bs, enc, w_out, b_out, nhead):
    B = v0.shape[0]
    num_layers = enc["w1"].shape[0]
    d_model = enc["g1"].shape[-1]
    head_dim = d_model // nhead
    label_len = w_out.shape[1]

    args = (v0,
            kron_ws[0], kron_bs[0], kron_ws[1], kron_bs[1],
            kron_ws[2], kron_bs[2], kron_ws[3], kron_bs[3],
            enc["wq"], enc["wk"], enc["wv"], enc["wo"],
            enc["bq"], enc["bk"], enc["bv"], enc["bo"],
            enc["w1"], enc["b1"], enc["w2"], enc["b2"],
            enc["g1"], enc["be1"], enc["g2"], enc["be2"],
            w_out, b_out.reshape(1, -1))

    return pl.pallas_call(
        partial(_fused_kernel, num_layers, nhead, head_dim),
        out_shape=jax.ShapeDtypeStruct((B, label_len), jnp.float32),
        in_specs=[pl.BlockSpec(memory_space=pltpu.MemorySpace.VMEM)] * len(args),
        out_specs=pl.BlockSpec(memory_space=pltpu.MemorySpace.VMEM),
        cost_estimate=pl.CostEstimate(flops=700_000, transcendentals=100,
                                      bytes_accessed=450_000),
    )(*args)


# ----------------------------------------------------------------------------
# Glue: normalized adjacency (GCNConv semantics), params, forward
# ----------------------------------------------------------------------------
def build_norm_adj(edge_index, edge_attr, num_nodes):
    src = edge_index[0]
    dst = edge_index[1]
    A = jnp.zeros((num_nodes, num_nodes), jnp.float32).at[dst, src].add(edge_attr)
    A = A + jnp.eye(num_nodes, dtype=jnp.float32)          # self-loops, weight 1.0
    deg = jnp.sum(A, axis=1)
    dinv = jnp.where(deg > 0, 1.0 / jnp.sqrt(deg), 0.0)
    return dinv[:, None] * A * dinv[None, :]               # A_norm[dst, src]


def init_params(key, seq_len, enc_in, label_len, num_layers=4, nhead=3, dff=512):
    d_model = enc_in * seq_len // 6
    assert d_model % nhead == 0
    hd = d_model // nhead
    dims = [seq_len, seq_len // 4 * 3, seq_len // 2, seq_len // 4, seq_len // 6]

    keys = iter(jax.random.split(key, 128))

    def rnd(shape, scale=0.05):
        return scale * jax.random.normal(next(keys), shape, dtype=jnp.float32)

    gcn = [(rnd((dims[i], dims[i + 1])), rnd((dims[i + 1],))) for i in range(4)]

    # Per-layer full matrices, then packed into per-head / per-layer stacks so
    # the fused kernel can index a leading axis (no lane slicing in-kernel).
    wq_l, wk_l, wv_l, wo_l, bq_l, bk_l, bv_l, bo_l = ([] for _ in range(8))
    w1_l, b1_l, w2_l, b2_l, g1_l, be1_l, g2_l, be2_l = ([] for _ in range(8))
    for _ in range(num_layers):
        wq_l.append(rnd((d_model, d_model))); wk_l.append(rnd((d_model, d_model)))
        wv_l.append(rnd((d_model, d_model))); wo_l.append(rnd((d_model, d_model)))
        bq_l.append(rnd((d_model,))); bk_l.append(rnd((d_model,)))
        bv_l.append(rnd((d_model,))); bo_l.append(rnd((d_model,)))
        w1_l.append(rnd((d_model, dff))); b1_l.append(rnd((dff,)))
        w2_l.append(rnd((dff, d_model))); b2_l.append(rnd((d_model,)))
        g1_l.append(jnp.ones((d_model,), jnp.float32))
        be1_l.append(jnp.zeros((d_model,), jnp.float32))
        g2_l.append(jnp.ones((d_model,), jnp.float32))
        be2_l.append(jnp.zeros((d_model,), jnp.float32))

    def split_cols(w):   # (E,E) -> H x (E,HD)   (q/k/v projections, per head)
        return [w[:, h * hd:(h + 1) * hd] for h in range(nhead)]

    def split_rows(w):   # (E,E) -> H x (HD,E)   (out projection, per head)
        return [w[h * hd:(h + 1) * hd, :] for h in range(nhead)]

    enc = dict(
        wq=jnp.stack([m for w in wq_l for m in split_cols(w)]),   # (L*H, E, HD)
        wk=jnp.stack([m for w in wk_l for m in split_cols(w)]),
        wv=jnp.stack([m for w in wv_l for m in split_cols(w)]),
        wo=jnp.stack([m for w in wo_l for m in split_rows(w)]),   # (L*H, HD, E)
        bq=jnp.stack([b[h * hd:(h + 1) * hd][None, :] for b in bq_l
                      for h in range(nhead)]),                    # (L*H, 1, HD)
        bk=jnp.stack([b[h * hd:(h + 1) * hd][None, :] for b in bk_l
                      for h in range(nhead)]),
        bv=jnp.stack([b[h * hd:(h + 1) * hd][None, :] for b in bv_l
                      for h in range(nhead)]),
        bo=jnp.stack([b[None, :] for b in bo_l]),                 # (L, 1, E)
        w1=jnp.stack(w1_l).astype(jnp.bfloat16),                  # (L, E, dff) bf16
        b1=jnp.stack([b[None, :] for b in b1_l]),                 # (L, 1, dff)
        w2=jnp.stack(w2_l).astype(jnp.bfloat16),                  # (L, dff, E) bf16
        b2=jnp.stack([b[None, :] for b in b2_l]),                 # (L, 1, E)
        g1=jnp.stack([g[None, :] for g in g1_l]),
        be1=jnp.stack([b[None, :] for b in be1_l]),
        g2=jnp.stack([g[None, :] for g in g2_l]),
        be2=jnp.stack([b[None, :] for b in be2_l]),
    )

    out = (rnd((d_model, label_len)), rnd((label_len,)))
    return gcn, enc, out


@partial(jax.jit, static_argnames=("nhead",))
def forward(inputs, edge_index, edge_attr, params, nhead=3):
    gcn_params, enc, (w_out, b_out) = params
    B, _, N = inputs.shape                                  # N = enc_in (graph nodes)

    # Static-graph preprocessing (hoistable if edge_index/edge_attr are fixed):
    # fold the normalized adjacency into the GCN weights via the Kronecker
    # identity vec_row(A X W) = vec_row(X) @ kron(A^T, W).
    adj = build_norm_adj(edge_index, edge_attr, N)
    at = adj.T
    kron_ws = [jnp.kron(at, w) for (w, _) in gcn_params]    # (N*Fin, N*Fout)
    kron_bs = [jnp.tile(b, N).reshape(1, -1) for (_, b) in gcn_params]

    # inputs.permute(0,2,1) flattened per batch element: (B, N*seq_len)
    v0 = jnp.transpose(inputs, (0, 2, 1)).reshape(B, -1)

    out = fused_forward(v0, kron_ws, kron_bs, enc, w_out, b_out, nhead)
    return out.reshape(B, 1, -1)


# ----------------------------------------------------------------------------
# Pure-JAX reference (PyTorch-faithful layout), for validation in __main__
# ----------------------------------------------------------------------------
@partial(jax.jit, static_argnames=("nhead",))
def reference_forward(inputs, edge_index, edge_attr, params, nhead=3):
    gcn_params, enc, (w_out, b_out) = params
    B, _, N = inputs.shape
    adj = build_norm_adj(edge_index, edge_attr, N)

    x = jnp.transpose(inputs, (0, 2, 1))                    # (B, N, seq_len)
    for (w, b) in gcn_params:
        x = jax.nn.relu(jnp.einsum("ij,bjk,kl->bil", adj, x, w) + b)
    z = x.reshape(B, -1)                                    # (B, E)  — "unbatched" seq

    d_model = z.shape[1]
    hd = d_model // nhead
    L = enc["w1"].shape[0]

    def ln(y, g, be):
        m = y.mean(-1, keepdims=True)
        v = ((y - m) ** 2).mean(-1, keepdims=True)
        return (y - m) / jnp.sqrt(v + 1e-5) * g + be

    for l in range(L):
        attn = jnp.zeros_like(z)
        for h in range(nhead):
            i = l * nhead + h
            q = z @ enc["wq"][i] + enc["bq"][i]
            k = z @ enc["wk"][i] + enc["bk"][i]
            v = z @ enc["wv"][i] + enc["bv"][i]
            p = jax.nn.softmax((q @ k.T) / math.sqrt(hd), axis=-1)
            attn = attn + (p @ v) @ enc["wo"][i]
        x1 = ln(z + attn + enc["bo"][l], enc["g1"][l], enc["be1"][l])
        hid = jax.nn.relu(
            jnp.dot(x1.astype(jnp.bfloat16), enc["w1"][l],
                    preferred_element_type=jnp.float32) + enc["b1"][l])
        ff = jnp.dot(hid.astype(jnp.bfloat16), enc["w2"][l],
                     preferred_element_type=jnp.float32) + enc["b2"][l]
        z = ln(x1 + ff, enc["g2"][l], enc["be2"][l])

    return (z @ w_out + b_out).reshape(B, 1, -1)


if __name__ == "__main__":
    # configs: batch=2, seq_len=24, enc_in=6, label_len=12, nhead=3
    B, SEQ, ENC, LABEL = 2, 24, 6, 12

    key = jax.random.PRNGKey(0)
    k_x, k_e, k_p = jax.random.split(key, 3)

    x = jax.random.normal(k_x, (B, SEQ, ENC), dtype=jnp.float32)

    # simple bidirectional ring graph over the enc_in=6 variables
    src = jnp.array([0, 1, 2, 3, 4, 5, 1, 2, 3, 4, 5, 0], dtype=jnp.int32)
    dst = jnp.array([1, 2, 3, 4, 5, 0, 0, 1, 2, 3, 4, 5], dtype=jnp.int32)
    edge_index = jnp.stack([src, dst])                      # (2, 12)
    edge_attr = jax.random.uniform(k_e, (12,), dtype=jnp.float32) + 0.5

    params = init_params(k_p, SEQ, ENC, LABEL)

    out = forward(x, edge_index, edge_attr, params, nhead=3)
    out = jax.block_until_ready(out)
    assert out.shape == (B, 1, LABEL), out.shape
    assert bool(jnp.all(jnp.isfinite(out)))

    ref = jax.block_until_ready(
        reference_forward(x, edge_index, edge_attr, params, nhead=3))
    assert bool(jnp.allclose(out, ref, atol=5e-2, rtol=5e-2)), \
        float(jnp.max(jnp.abs(out - ref)))

    print("KERNEL_OK")
</pallas_src>

<mosaic_0001>
module attributes {stable_mosaic.version = 11 : i64} {
  func.func @_fused_kernel(%arg0: memref<2x144xf32, #tpu.memory_space<vmem>>, %arg1: memref<144x108xf32, #tpu.memory_space<vmem>>, %arg2: memref<1x108xf32, #tpu.memory_space<vmem>>, %arg3: memref<108x72xf32, #tpu.memory_space<vmem>>, %arg4: memref<1x72xf32, #tpu.memory_space<vmem>>, %arg5: memref<72x36xf32, #tpu.memory_space<vmem>>, %arg6: memref<1x36xf32, #tpu.memory_space<vmem>>, %arg7: memref<36x24xf32, #tpu.memory_space<vmem>>, %arg8: memref<1x24xf32, #tpu.memory_space<vmem>>, %arg9: memref<12x24x8xf32, #tpu.memory_space<vmem>>, %arg10: memref<12x24x8xf32, #tpu.memory_space<vmem>>, %arg11: memref<12x24x8xf32, #tpu.memory_space<vmem>>, %arg12: memref<12x8x24xf32, #tpu.memory_space<vmem>>, %arg13: memref<12x1x8xf32, #tpu.memory_space<vmem>>, %arg14: memref<12x1x8xf32, #tpu.memory_space<vmem>>, %arg15: memref<12x1x8xf32, #tpu.memory_space<vmem>>, %arg16: memref<4x1x24xf32, #tpu.memory_space<vmem>>, %arg17: memref<4x24x512xbf16, #tpu.memory_space<vmem>>, %arg18: memref<4x1x512xf32, #tpu.memory_space<vmem>>, %arg19: memref<4x512x24xbf16, #tpu.memory_space<vmem>>, %arg20: memref<4x1x24xf32, #tpu.memory_space<vmem>>, %arg21: memref<4x1x24xf32, #tpu.memory_space<vmem>>, %arg22: memref<4x1x24xf32, #tpu.memory_space<vmem>>, %arg23: memref<4x1x24xf32, #tpu.memory_space<vmem>>, %arg24: memref<4x1x24xf32, #tpu.memory_space<vmem>>, %arg25: memref<24x12xf32, #tpu.memory_space<vmem>>, %arg26: memref<1x12xf32, #tpu.memory_space<vmem>>, %arg27: memref<2x12xf32, #tpu.memory_space<vmem>>) attributes {dimension_semantics = [], scalar_prefetch = 0 : i64, scratch_operands = 0 : i64, tpu.core_type = #tpu.core_type<tc>} {
    %c0 = arith.constant 0 : index
    %c0_0 = arith.constant 0 : index
    %0 = vector.load %arg0[%c0, %c0_0] : memref<2x144xf32, #tpu.memory_space<vmem>>, vector<2x144xf32>
    %c0_1 = arith.constant 0 : index
    %c0_2 = arith.constant 0 : index
    %1 = vector.load %arg1[%c0_1, %c0_2] : memref<144x108xf32, #tpu.memory_space<vmem>>, vector<144x108xf32>
    %cst = arith.constant dense<0.000000e+00> : vector<2x108xf32>
    %2 = tpu.matmul %0, %1, %cst {dimension_numbers = #tpu.dot_dimension_numbers<[1], [0], [0], [1], [0, 0, 1, 1], [], []>} : vector<2x144xf32>, vector<144x108xf32>, vector<2x108xf32> -> vector<2x108xf32>
    %c0_3 = arith.constant 0 : index
    %c0_4 = arith.constant 0 : index
    %3 = vector.load %arg2[%c0_3, %c0_4] : memref<1x108xf32, #tpu.memory_space<vmem>>, vector<1x108xf32>
    %4 = vector.broadcast %3 : vector<1x108xf32> to vector<2x108xf32>
    %5 = arith.addf %2, %4 : vector<2x108xf32>
    %cst_5 = arith.constant 0.000000e+00 : f32
    %6 = vector.broadcast %cst_5 : f32 to vector<2x108xf32>
    %7 = arith.maximumf %5, %6 : vector<2x108xf32>
    %c0_6 = arith.constant 0 : index
    %c0_7 = arith.constant 0 : index
    %8 = vector.load %arg3[%c0_6, %c0_7] : memref<108x72xf32, #tpu.memory_space<vmem>>, vector<108x72xf32>
    %cst_8 = arith.constant dense<0.000000e+00> : vector<2x72xf32>
    %9 = tpu.matmul %7, %8, %cst_8 {dimension_numbers = #tpu.dot_dimension_numbers<[1], [0], [0], [1], [0, 0, 1, 1], [], []>} : vector<2x108xf32>, vector<108x72xf32>, vector<2x72xf32> -> vector<2x72xf32>
    %c0_9 = arith.constant 0 : index
    %c0_10 = arith.constant 0 : index
    %10 = vector.load %arg4[%c0_9, %c0_10] : memref<1x72xf32, #tpu.memory_space<vmem>>, vector<1x72xf32>
    %11 = vector.broadcast %10 : vector<1x72xf32> to vector<2x72xf32>
    %12 = arith.addf %9, %11 : vector<2x72xf32>
    %cst_11 = arith.constant 0.000000e+00 : f32
    %13 = vector.broadcast %cst_11 : f32 to vector<2x72xf32>
    %14 = arith.maximumf %12, %13 : vector<2x72xf32>
    %c0_12 = arith.constant 0 : index
    %c0_13 = arith.constant 0 : index
    %15 = vector.load %arg5[%c0_12, %c0_13] : memref<72x36xf32, #tpu.memory_space<vmem>>, vector<72x36xf32>
    %cst_14 = arith.constant dense<0.000000e+00> : vector<2x36xf32>
    %16 = tpu.matmul %14, %15, %cst_14 {dimension_numbers = #tpu.dot_dimension_numbers<[1], [0], [0], [1], [0, 0, 1, 1], [], []>} : vector<2x72xf32>, vector<72x36xf32>, vector<2x36xf32> -> vector<2x36xf32>
    %c0_15 = arith.constant 0 : index
    %c0_16 = arith.constant 0 : index
    %17 = vector.load %arg6[%c0_15, %c0_16] : memref<1x36xf32, #tpu.memory_space<vmem>>, vector<1x36xf32>
    %18 = vector.broadcast %17 : vector<1x36xf32> to vector<2x36xf32>
    %19 = arith.addf %16, %18 : vector<2x36xf32>
    %cst_17 = arith.constant 0.000000e+00 : f32
    %20 = vector.broadcast %cst_17 : f32 to vector<2x36xf32>
    %21 = arith.maximumf %19, %20 : vector<2x36xf32>
    %c0_18 = arith.constant 0 : index
    %c0_19 = arith.constant 0 : index
    %22 = vector.load %arg7[%c0_18, %c0_19] : memref<36x24xf32, #tpu.memory_space<vmem>>, vector<36x24xf32>
    %cst_20 = arith.constant dense<0.000000e+00> : vector<2x24xf32>
    %23 = tpu.matmul %21, %22, %cst_20 {dimension_numbers = #tpu.dot_dimension_numbers<[1], [0], [0], [1], [0, 0, 1, 1], [], []>} : vector<2x36xf32>, vector<36x24xf32>, vector<2x24xf32> -> vector<2x24xf32>
    %c0_21 = arith.constant 0 : index
    %c0_22 = arith.constant 0 : index
    %24 = vector.load %arg8[%c0_21, %c0_22] : memref<1x24xf32, #tpu.memory_space<vmem>>, vector<1x24xf32>
    %25 = vector.broadcast %24 : vector<1x24xf32> to vector<2x24xf32>
    %26 = arith.addf %23, %25 : vector<2x24xf32>
    %cst_23 = arith.constant 0.000000e+00 : f32
    %27 = vector.broadcast %cst_23 : f32 to vector<2x24xf32>
    %28 = arith.maximumf %26, %27 : vector<2x24xf32>
    %cst_24 = arith.constant 0.000000e+00 : f32
    %29 = vector.broadcast %cst_24 : f32 to vector<2x24xf32>
    %c0_25 = arith.constant 0 : index
    %c0_26 = arith.constant 0 : index
    %c0_27 = arith.constant 0 : index
    %30 = vector.load %arg9[%c0_25, %c0_26, %c0_27] : memref<12x24x8xf32, #tpu.memory_space<vmem>>, vector<1x24x8xf32>
    %31 = vector.shape_cast %30 : vector<1x24x8xf32> to vector<24x8xf32>
    %cst_28 = arith.constant dense<0.000000e+00> : vector<2x8xf32>
    %32 = tpu.matmul %28, %31, %cst_28 {dimension_numbers = #tpu.dot_dimension_numbers<[1], [0], [0], [1], [0, 0, 1, 1], [], []>} : vector<2x24xf32>, vector<24x8xf32>, vector<2x8xf32> -> vector<2x8xf32>
    %c0_29 = arith.constant 0 : index
    %c0_30 = arith.constant 0 : index
    %c0_31 = arith.constant 0 : index
    %33 = vector.load %arg13[%c0_29, %c0_30, %c0_31] : memref<12x1x8xf32, #tpu.memory_space<vmem>>, vector<1x1x8xf32>
    %34 = vector.shape_cast %33 : vector<1x1x8xf32> to vector<1x8xf32>
    %35 = vector.broadcast %34 : vector<1x8xf32> to vector<2x8xf32>
    %36 = arith.addf %32, %35 : vector<2x8xf32>
    %c0_32 = arith.constant 0 : index
    %c0_33 = arith.constant 0 : index
    %c0_34 = arith.constant 0 : index
    %37 = vector.load %arg10[%c0_32, %c0_33, %c0_34] : memref<12x24x8xf32, #tpu.memory_space<vmem>>, vector<1x24x8xf32>
    %38 = vector.shape_cast %37 : vector<1x24x8xf32> to vector<24x8xf32>
    %cst_35 = arith.constant dense<0.000000e+00> : vector<2x8xf32>
    %39 = tpu.matmul %28, %38, %cst_35 {dimension_numbers = #tpu.dot_dimension_numbers<[1], [0], [0], [1], [0, 0, 1, 1], [], []>} : vector<2x24xf32>, vector<24x8xf32>, vector<2x8xf32> -> vector<2x8xf32>
    %c0_36 = arith.constant 0 : index
    %c0_37 = arith.constant 0 : index
    %c0_38 = arith.constant 0 : index
    %40 = vector.load %arg14[%c0_36, %c0_37, %c0_38] : memref<12x1x8xf32, #tpu.memory_space<vmem>>, vector<1x1x8xf32>
    %41 = vector.shape_cast %40 : vector<1x1x8xf32> to vector<1x8xf32>
    %42 = vector.broadcast %41 : vector<1x8xf32> to vector<2x8xf32>
    %43 = arith.addf %39, %42 : vector<2x8xf32>
    %c0_39 = arith.constant 0 : index
    %c0_40 = arith.constant 0 : index
    %c0_41 = arith.constant 0 : index
    %44 = vector.load %arg11[%c0_39, %c0_40, %c0_41] : memref<12x24x8xf32, #tpu.memory_space<vmem>>, vector<1x24x8xf32>
    %45 = vector.shape_cast %44 : vector<1x24x8xf32> to vector<24x8xf32>
    %cst_42 = arith.constant dense<0.000000e+00> : vector<2x8xf32>
    %46 = tpu.matmul %28, %45, %cst_42 {dimension_numbers = #tpu.dot_dimension_numbers<[1], [0], [0], [1], [0, 0, 1, 1], [], []>} : vector<2x24xf32>, vector<24x8xf32>, vector<2x8xf32> -> vector<2x8xf32>
    %c0_43 = arith.constant 0 : index
    %c0_44 = arith.constant 0 : index
    %c0_45 = arith.constant 0 : index
    %47 = vector.load %arg15[%c0_43, %c0_44, %c0_45] : memref<12x1x8xf32, #tpu.memory_space<vmem>>, vector<1x1x8xf32>
    %48 = vector.shape_cast %47 : vector<1x1x8xf32> to vector<1x8xf32>
    %49 = vector.broadcast %48 : vector<1x8xf32> to vector<2x8xf32>
    %50 = arith.addf %46, %49 : vector<2x8xf32>
    %cst_46 = arith.constant dense<0.000000e+00> : vector<2x2xf32>
    %51 = tpu.matmul %36, %43, %cst_46 {dimension_numbers = #tpu.dot_dimension_numbers<[1], [1], [0], [0], [0, 0, 1, 0], [], []>} : vector<2x8xf32>, vector<2x8xf32>, vector<2x2xf32> -> vector<2x2xf32>
    %cst_47 = arith.constant 0.353553385 : f32
    %52 = vector.broadcast %cst_47 : f32 to vector<2x2xf32>
    %53 = arith.mulf %51, %52 : vector<2x2xf32>
    %cst_48 = arith.constant dense<0xFF800000> : vector<2xf32>
    %54 = vector.multi_reduction <maximumf>, %53, %cst_48 [1] : vector<2x2xf32> to vector<2xf32>
    %55 = vector.shape_cast %54 : vector<2xf32> to vector<2x1xf32>
    %56 = vector.broadcast %55 : vector<2x1xf32> to vector<2x2xf32>
    %57 = arith.subf %53, %56 : vector<2x2xf32>
    %58 = math.exp %57 : vector<2x2xf32>
    %cst_49 = arith.constant dense<0.000000e+00> : vector<2xf32>
    %59 = vector.multi_reduction <add>, %58, %cst_49 [1] : vector<2x2xf32> to vector<2xf32>
    %60 = vector.shape_cast %59 : vector<2xf32> to vector<2x1xf32>
    %61 = vector.broadcast %60 : vector<2x1xf32> to vector<2x2xf32>
    %62 = arith.divf %58, %61 : vector<2x2xf32>
    %cst_50 = arith.constant dense<0.000000e+00> : vector<2x8xf32>
    %63 = tpu.matmul %62, %50, %cst_50 {dimension_numbers = #tpu.dot_dimension_numbers<[1], [0], [0], [1], [0, 0, 1, 1], [], []>} : vector<2x2xf32>, vector<2x8xf32>, vector<2x8xf32> -> vector<2x8xf32>
    %c0_51 = arith.constant 0 : index
    %c0_52 = arith.constant 0 : index
    %c0_53 = arith.constant 0 : index
    %64 = vector.load %arg12[%c0_51, %c0_52, %c0_53] : memref<12x8x24xf32, #tpu.memory_space<vmem>>, vector<1x8x24xf32>
    %65 = vector.shape_cast %64 : vector<1x8x24xf32> to vector<8x24xf32>
    %cst_54 = arith.constant dense<0.000000e+00> : vector<2x24xf32>
    %66 = tpu.matmul %63, %65, %cst_54 {dimension_numbers = #tpu.dot_dimension_numbers<[1], [0], [0], [1], [0, 0, 1, 1], [], []>} : vector<2x8xf32>, vector<8x24xf32>, vector<2x24xf32> -> vector<2x24xf32>
    %67 = arith.addf %29, %66 : vector<2x24xf32>
    %c1 = arith.constant 1 : index
    %c0_55 = arith.constant 0 : index
    %c0_56 = arith.constant 0 : index
    %68 = vector.load %arg9[%c1, %c0_55, %c0_56] : memref<12x24x8xf32, #tpu.memory_space<vmem>>, vector<1x24x8xf32>
    %69 = vector.shape_cast %68 : vector<1x24x8xf32> to vector<24x8xf32>
    %cst_57 = arith.constant dense<0.000000e+00> : vector<2x8xf32>
    %70 = tpu.matmul %28, %69, %cst_57 {dimension_numbers = #tpu.dot_dimension_numbers<[1], [0], [0], [1], [0, 0, 1, 1], [], []>} : vector<2x24xf32>, vector<24x8xf32>, vector<2x8xf32> -> vector<2x8xf32>
    %c1_58 = arith.constant 1 : index
    %c0_59 = arith.constant 0 : index
    %c0_60 = arith.constant 0 : index
    %71 = vector.load %arg13[%c1_58, %c0_59, %c0_60] : memref<12x1x8xf32, #tpu.memory_space<vmem>>, vector<1x1x8xf32>
    %72 = vector.shape_cast %71 : vector<1x1x8xf32> to vector<1x8xf32>
    %73 = vector.broadcast %72 : vector<1x8xf32> to vector<2x8xf32>
    %74 = arith.addf %70, %73 : vector<2x8xf32>
    %c1_61 = arith.constant 1 : index
    %c0_62 = arith.constant 0 : index
    %c0_63 = arith.constant 0 : index
    %75 = vector.load %arg10[%c1_61, %c0_62, %c0_63] : memref<12x24x8xf32, #tpu.memory_space<vmem>>, vector<1x24x8xf32>
    %76 = vector.shape_cast %75 : vector<1x24x8xf32> to vector<24x8xf32>
    %cst_64 = arith.constant dense<0.000000e+00> : vector<2x8xf32>
    %77 = tpu.matmul %28, %76, %cst_64 {dimension_numbers = #tpu.dot_dimension_numbers<[1], [0], [0], [1], [0, 0, 1, 1], [], []>} : vector<2x24xf32>, vector<24x8xf32>, vector<2x8xf32> -> vector<2x8xf32>
    %c1_65 = arith.constant 1 : index
    %c0_66 = arith.constant 0 : index
    %c0_67 = arith.constant 0 : index
    %78 = vector.load %arg14[%c1_65, %c0_66, %c0_67] : memref<12x1x8xf32, #tpu.memory_space<vmem>>, vector<1x1x8xf32>
    %79 = vector.shape_cast %78 : vector<1x1x8xf32> to vector<1x8xf32>
    %80 = vector.broadcast %79 : vector<1x8xf32> to vector<2x8xf32>
    %81 = arith.addf %77, %80 : vector<2x8xf32>
    %c1_68 = arith.constant 1 : index
    %c0_69 = arith.constant 0 : index
    %c0_70 = arith.constant 0 : index
    %82 = vector.load %arg11[%c1_68, %c0_69, %c0_70] : memref<12x24x8xf32, #tpu.memory_space<vmem>>, vector<1x24x8xf32>
    %83 = vector.shape_cast %82 : vector<1x24x8xf32> to vector<24x8xf32>
    %cst_71 = arith.constant dense<0.000000e+00> : vector<2x8xf32>
    %84 = tpu.matmul %28, %83, %cst_71 {dimension_numbers = #tpu.dot_dimension_numbers<[1], [0], [0], [1], [0, 0, 1, 1], [], []>} : vector<2x24xf32>, vector<24x8xf32>, vector<2x8xf32> -> vector<2x8xf32>
    %c1_72 = arith.constant 1 : index
    %c0_73 = arith.constant 0 : index
    %c0_74 = arith.constant 0 : index
    %85 = vector.load %arg15[%c1_72, %c0_73, %c0_74] : memref<12x1x8xf32, #tpu.memory_space<vmem>>, vector<1x1x8xf32>
    %86 = vector.shape_cast %85 : vector<1x1x8xf32> to vector<1x8xf32>
    %87 = vector.broadcast %86 : vector<1x8xf32> to vector<2x8xf32>
    %88 = arith.addf %84, %87 : vector<2x8xf32>
    %cst_75 = arith.constant dense<0.000000e+00> : vector<2x2xf32>
    %89 = tpu.matmul %74, %81, %cst_75 {dimension_numbers = #tpu.dot_dimension_numbers<[1], [1], [0], [0], [0, 0, 1, 0], [], []>} : vector<2x8xf32>, vector<2x8xf32>, vector<2x2xf32> -> vector<2x2xf32>
    %cst_76 = arith.constant 0.353553385 : f32
    %90 = vector.broadcast %cst_76 : f32 to vector<2x2xf32>
    %91 = arith.mulf %89, %90 : vector<2x2xf32>
    %cst_77 = arith.constant dense<0xFF800000> : vector<2xf32>
    %92 = vector.multi_reduction <maximumf>, %91, %cst_77 [1] : vector<2x2xf32> to vector<2xf32>
    %93 = vector.shape_cast %92 : vector<2xf32> to vector<2x1xf32>
    %94 = vector.broadcast %93 : vector<2x1xf32> to vector<2x2xf32>
    %95 = arith.subf %91, %94 : vector<2x2xf32>
    %96 = math.exp %95 : vector<2x2xf32>
    %cst_78 = arith.constant dense<0.000000e+00> : vector<2xf32>
    %97 = vector.multi_reduction <add>, %96, %cst_78 [1] : vector<2x2xf32> to vector<2xf32>
    %98 = vector.shape_cast %97 : vector<2xf32> to vector<2x1xf32>
    %99 = vector.broadcast %98 : vector<2x1xf32> to vector<2x2xf32>
    %100 = arith.divf %96, %99 : vector<2x2xf32>
    %cst_79 = arith.constant dense<0.000000e+00> : vector<2x8xf32>
    %101 = tpu.matmul %100, %88, %cst_79 {dimension_numbers = #tpu.dot_dimension_numbers<[1], [0], [0], [1], [0, 0, 1, 1], [], []>} : vector<2x2xf32>, vector<2x8xf32>, vector<2x8xf32> -> vector<2x8xf32>
    %c1_80 = arith.constant 1 : index
    %c0_81 = arith.constant 0 : index
    %c0_82 = arith.constant 0 : index
    %102 = vector.load %arg12[%c1_80, %c0_81, %c0_82] : memref<12x8x24xf32, #tpu.memory_space<vmem>>, vector<1x8x24xf32>
    %103 = vector.shape_cast %102 : vector<1x8x24xf32> to vector<8x24xf32>
    %cst_83 = arith.constant dense<0.000000e+00> : vector<2x24xf32>
    %104 = tpu.matmul %101, %103, %cst_83 {dimension_numbers = #tpu.dot_dimension_numbers<[1], [0], [0], [1], [0, 0, 1, 1], [], []>} : vector<2x8xf32>, vector<8x24xf32>, vector<2x24xf32> -> vector<2x24xf32>
    %105 = arith.addf %67, %104 : vector<2x24xf32>
    %c2 = arith.constant 2 : index
    %c0_84 = arith.constant 0 : index
    %c0_85 = arith.constant 0 : index
    %106 = vector.load %arg9[%c2, %c0_84, %c0_85] : memref<12x24x8xf32, #tpu.memory_space<vmem>>, vector<1x24x8xf32>
    %107 = vector.shape_cast %106 : vector<1x24x8xf32> to vector<24x8xf32>
    %cst_86 = arith.constant dense<0.000000e+00> : vector<2x8xf32>
    %108 = tpu.matmul %28, %107, %cst_86 {dimension_numbers = #tpu.dot_dimension_numbers<[1], [0], [0], [1], [0, 0, 1, 1], [], []>} : vector<2x24xf32>, vector<24x8xf32>, vector<2x8xf32> -> vector<2x8xf32>
    %c2_87 = arith.constant 2 : index
    %c0_88 = arith.constant 0 : index
    %c0_89 = arith.constant 0 : index
    %109 = vector.load %arg13[%c2_87, %c0_88, %c0_89] : memref<12x1x8xf32, #tpu.memory_space<vmem>>, vector<1x1x8xf32>
    %110 = vector.shape_cast %109 : vector<1x1x8xf32> to vector<1x8xf32>
    %111 = vector.broadcast %110 : vector<1x8xf32> to vector<2x8xf32>
    %112 = arith.addf %108, %111 : vector<2x8xf32>
    %c2_90 = arith.constant 2 : index
    %c0_91 = arith.constant 0 : index
    %c0_92 = arith.constant 0 : index
    %113 = vector.load %arg10[%c2_90, %c0_91, %c0_92] : memref<12x24x8xf32, #tpu.memory_space<vmem>>, vector<1x24x8xf32>
    %114 = vector.shape_cast %113 : vector<1x24x8xf32> to vector<24x8xf32>
    %cst_93 = arith.constant dense<0.000000e+00> : vector<2x8xf32>
    %115 = tpu.matmul %28, %114, %cst_93 {dimension_numbers = #tpu.dot_dimension_numbers<[1], [0], [0], [1], [0, 0, 1, 1], [], []>} : vector<2x24xf32>, vector<24x8xf32>, vector<2x8xf32> -> vector<2x8xf32>
    %c2_94 = arith.constant 2 : index
    %c0_95 = arith.constant 0 : index
    %c0_96 = arith.constant 0 : index
    %116 = vector.load %arg14[%c2_94, %c0_95, %c0_96] : memref<12x1x8xf32, #tpu.memory_space<vmem>>, vector<1x1x8xf32>
    %117 = vector.shape_cast %116 : vector<1x1x8xf32> to vector<1x8xf32>
    %118 = vector.broadcast %117 : vector<1x8xf32> to vector<2x8xf32>
    %119 = arith.addf %115, %118 : vector<2x8xf32>
    %c2_97 = arith.constant 2 : index
    %c0_98 = arith.constant 0 : index
    %c0_99 = arith.constant 0 : index
    %120 = vector.load %arg11[%c2_97, %c0_98, %c0_99] : memref<12x24x8xf32, #tpu.memory_space<vmem>>, vector<1x24x8xf32>
    %121 = vector.shape_cast %120 : vector<1x24x8xf32> to vector<24x8xf32>
    %cst_100 = arith.constant dense<0.000000e+00> : vector<2x8xf32>
    %122 = tpu.matmul %28, %121, %cst_100 {dimension_numbers = #tpu.dot_dimension_numbers<[1], [0], [0], [1], [0, 0, 1, 1], [], []>} : vector<2x24xf32>, vector<24x8xf32>, vector<2x8xf32> -> vector<2x8xf32>
    %c2_101 = arith.constant 2 : index
    %c0_102 = arith.constant 0 : index
    %c0_103 = arith.constant 0 : index
    %123 = vector.load %arg15[%c2_101, %c0_102, %c0_103] : memref<12x1x8xf32, #tpu.memory_space<vmem>>, vector<1x1x8xf32>
    %124 = vector.shape_cast %123 : vector<1x1x8xf32> to vector<1x8xf32>
    %125 = vector.broadcast %124 : vector<1x8xf32> to vector<2x8xf32>
    %126 = arith.addf %122, %125 : vector<2x8xf32>
    %cst_104 = arith.constant dense<0.000000e+00> : vector<2x2xf32>
    %127 = tpu.matmul %112, %119, %cst_104 {dimension_numbers = #tpu.dot_dimension_numbers<[1], [1], [0], [0], [0, 0, 1, 0], [], []>} : vector<2x8xf32>, vector<2x8xf32>, vector<2x2xf32> -> vector<2x2xf32>
    %cst_105 = arith.constant 0.353553385 : f32
    %128 = vector.broadcast %cst_105 : f32 to vector<2x2xf32>
    %129 = arith.mulf %127, %128 : vector<2x2xf32>
    %cst_106 = arith.constant dense<0xFF800000> : vector<2xf32>
    %130 = vector.multi_reduction <maximumf>, %129, %cst_106 [1] : vector<2x2xf32> to vector<2xf32>
    %131 = vector.shape_cast %130 : vector<2xf32> to vector<2x1xf32>
    %132 = vector.broadcast %131 : vector<2x1xf32> to vector<2x2xf32>
    %133 = arith.subf %129, %132 : vector<2x2xf32>
    %134 = math.exp %133 : vector<2x2xf32>
    %cst_107 = arith.constant dense<0.000000e+00> : vector<2xf32>
    %135 = vector.multi_reduction <add>, %134, %cst_107 [1] : vector<2x2xf32> to vector<2xf32>
    %136 = vector.shape_cast %135 : vector<2xf32> to vector<2x1xf32>
    %137 = vector.broadcast %136 : vector<2x1xf32> to vector<2x2xf32>
    %138 = arith.divf %134, %137 : vector<2x2xf32>
    %cst_108 = arith.constant dense<0.000000e+00> : vector<2x8xf32>
    %139 = tpu.matmul %138, %126, %cst_108 {dimension_numbers = #tpu.dot_dimension_numbers<[1], [0], [0], [1], [0, 0, 1, 1], [], []>} : vector<2x2xf32>, vector<2x8xf32>, vector<2x8xf32> -> vector<2x8xf32>
    %c2_109 = arith.constant 2 : index
    %c0_110 = arith.constant 0 : index
    %c0_111 = arith.constant 0 : index
    %140 = vector.load %arg12[%c2_109, %c0_110, %c0_111] : memref<12x8x24xf32, #tpu.memory_space<vmem>>, vector<1x8x24xf32>
    %141 = vector.shape_cast %140 : vector<1x8x24xf32> to vector<8x24xf32>
    %cst_112 = arith.constant dense<0.000000e+00> : vector<2x24xf32>
    %142 = tpu.matmul %139, %141, %cst_112 {dimension_numbers = #tpu.dot_dimension_numbers<[1], [0], [0], [1], [0, 0, 1, 1], [], []>} : vector<2x8xf32>, vector<8x24xf32>, vector<2x24xf32> -> vector<2x24xf32>
    %143 = arith.addf %105, %142 : vector<2x24xf32>
    %144 = arith.addf %28, %143 : vector<2x24xf32>
    %c0_113 = arith.constant 0 : index
    %c0_114 = arith.constant 0 : index
    %c0_115 = arith.constant 0 : index
    %145 = vector.load %arg16[%c0_113, %c0_114, %c0_115] : memref<4x1x24xf32, #tpu.memory_space<vmem>>, vector<1x1x24xf32>
    %146 = vector.shape_cast %145 : vector<1x1x24xf32> to vector<1x24xf32>
    %147 = vector.broadcast %146 : vector<1x24xf32> to vector<2x24xf32>
    %148 = arith.addf %144, %147 : vector<2x24xf32>
    %c0_116 = arith.constant 0 : index
    %c0_117 = arith.constant 0 : index
    %c0_118 = arith.constant 0 : index
    %149 = vector.load %arg21[%c0_116, %c0_117, %c0_118] : memref<4x1x24xf32, #tpu.memory_space<vmem>>, vector<1x1x24xf32>
    %150 = vector.shape_cast %149 : vector<1x1x24xf32> to vector<1x24xf32>
    %c0_119 = arith.constant 0 : index
    %c0_120 = arith.constant 0 : index
    %c0_121 = arith.constant 0 : index
    %151 = vector.load %arg22[%c0_119, %c0_120, %c0_121] : memref<4x1x24xf32, #tpu.memory_space<vmem>>, vector<1x1x24xf32>
    %152 = vector.shape_cast %151 : vector<1x1x24xf32> to vector<1x24xf32>
    %cst_122 = arith.constant dense<0.000000e+00> : vector<2xf32>
    %153 = vector.multi_reduction <add>, %148, %cst_122 [1] : vector<2x24xf32> to vector<2xf32>
    %154 = vector.shape_cast %153 : vector<2xf32> to vector<2x1xf32>
    %cst_123 = arith.constant 2.400000e+01 : f32
    %155 = vector.broadcast %cst_123 : f32 to vector<2x1xf32>
    %156 = arith.divf %154, %155 : vector<2x1xf32>
    %157 = vector.broadcast %156 : vector<2x1xf32> to vector<2x24xf32>
    %158 = arith.subf %148, %157 : vector<2x24xf32>
    %159 = arith.mulf %158, %158 : vector<2x24xf32>
    %cst_124 = arith.constant dense<0.000000e+00> : vector<2xf32>
    %160 = vector.multi_reduction <add>, %159, %cst_124 [1] : vector<2x24xf32> to vector<2xf32>
    %161 = vector.shape_cast %160 : vector<2xf32> to vector<2x1xf32>
    %cst_125 = arith.constant 2.400000e+01 : f32
    %162 = vector.broadcast %cst_125 : f32 to vector<2x1xf32>
    %163 = arith.divf %161, %162 : vector<2x1xf32>
    %164 = vector.broadcast %156 : vector<2x1xf32> to vector<2x24xf32>
    %165 = arith.subf %148, %164 : vector<2x24xf32>
    %cst_126 = arith.constant 9.99999974E-6 : f32
    %166 = vector.broadcast %cst_126 : f32 to vector<2x1xf32>
    %167 = arith.addf %163, %166 : vector<2x1xf32>
    %168 = math.rsqrt %167 : vector<2x1xf32>
    %169 = vector.broadcast %168 : vector<2x1xf32> to vector<2x24xf32>
    %170 = arith.mulf %165, %169 : vector<2x24xf32>
    %171 = vector.broadcast %150 : vector<1x24xf32> to vector<2x24xf32>
    %172 = arith.mulf %170, %171 : vector<2x24xf32>
    %173 = vector.broadcast %152 : vector<1x24xf32> to vector<2x24xf32>
    %174 = arith.addf %172, %173 : vector<2x24xf32>
    %175 = arith.truncf %174 : vector<2x24xf32> to vector<2x24xbf16>
    %c0_127 = arith.constant 0 : index
    %c0_128 = arith.constant 0 : index
    %c0_129 = arith.constant 0 : index
    %176 = vector.load %arg17[%c0_127, %c0_128, %c0_129] : memref<4x24x512xbf16, #tpu.memory_space<vmem>>, vector<1x24x512xbf16>
    %177 = vector.shape_cast %176 : vector<1x24x512xbf16> to vector<24x512xbf16>
    %cst_130 = arith.constant dense<0.000000e+00> : vector<2x512xf32>
    %178 = tpu.matmul %175, %177, %cst_130 {dimension_numbers = #tpu.dot_dimension_numbers<[1], [0], [0], [1], [0, 0, 1, 1], [], []>} : vector<2x24xbf16>, vector<24x512xbf16>, vector<2x512xf32> -> vector<2x512xf32>
    %c0_131 = arith.constant 0 : index
    %c0_132 = arith.constant 0 : index
    %c0_133 = arith.constant 0 : index
    %179 = vector.load %arg18[%c0_131, %c0_132, %c0_133] : memref<4x1x512xf32, #tpu.memory_space<vmem>>, vector<1x1x512xf32>
    %180 = vector.shape_cast %179 : vector<1x1x512xf32> to vector<1x512xf32>
    %181 = vector.broadcast %180 : vector<1x512xf32> to vector<2x512xf32>
    %182 = arith.addf %178, %181 : vector<2x512xf32>
    %cst_134 = arith.constant 0.000000e+00 : f32
    %183 = vector.broadcast %cst_134 : f32 to vector<2x512xf32>
    %184 = arith.maximumf %182, %183 : vector<2x512xf32>
    %185 = arith.truncf %184 : vector<2x512xf32> to vector<2x512xbf16>
    %c0_135 = arith.constant 0 : index
    %c0_136 = arith.constant 0 : index
    %c0_137 = arith.constant 0 : index
    %186 = vector.load %arg19[%c0_135, %c0_136, %c0_137] : memref<4x512x24xbf16, #tpu.memory_space<vmem>>, vector<1x512x24xbf16>
    %187 = vector.shape_cast %186 : vector<1x512x24xbf16> to vector<512x24xbf16>
    %cst_138 = arith.constant dense<0.000000e+00> : vector<2x24xf32>
    %188 = tpu.matmul %185, %187, %cst_138 {dimension_numbers = #tpu.dot_dimension_numbers<[1], [0], [0], [1], [0, 0, 1, 1], [], []>} : vector<2x512xbf16>, vector<512x24xbf16>, vector<2x24xf32> -> vector<2x24xf32>
    %c0_139 = arith.constant 0 : index
    %c0_140 = arith.constant 0 : index
    %c0_141 = arith.constant 0 : index
    %189 = vector.load %arg20[%c0_139, %c0_140, %c0_141] : memref<4x1x24xf32, #tpu.memory_space<vmem>>, vector<1x1x24xf32>
    %190 = vector.shape_cast %189 : vector<1x1x24xf32> to vector<1x24xf32>
    %191 = vector.broadcast %190 : vector<1x24xf32> to vector<2x24xf32>
    %192 = arith.addf %188, %191 : vector<2x24xf32>
    %193 = arith.addf %174, %192 : vector<2x24xf32>
    %c0_142 = arith.constant 0 : index
    %c0_143 = arith.constant 0 : index
    %c0_144 = arith.constant 0 : index
    %194 = vector.load %arg23[%c0_142, %c0_143, %c0_144] : memref<4x1x24xf32, #tpu.memory_space<vmem>>, vector<1x1x24xf32>
    %195 = vector.shape_cast %194 : vector<1x1x24xf32> to vector<1x24xf32>
    %c0_145 = arith.constant 0 : index
    %c0_146 = arith.constant 0 : index
    %c0_147 = arith.constant 0 : index
    %196 = vector.load %arg24[%c0_145, %c0_146, %c0_147] : memref<4x1x24xf32, #tpu.memory_space<vmem>>, vector<1x1x24xf32>
    %197 = vector.shape_cast %196 : vector<1x1x24xf32> to vector<1x24xf32>
    %cst_148 = arith.constant dense<0.000000e+00> : vector<2xf32>
    %198 = vector.multi_reduction <add>, %193, %cst_148 [1] : vector<2x24xf32> to vector<2xf32>
    %199 = vector.shape_cast %198 : vector<2xf32> to vector<2x1xf32>
    %cst_149 = arith.constant 2.400000e+01 : f32
    %200 = vector.broadcast %cst_149 : f32 to vector<2x1xf32>
    %201 = arith.divf %199, %200 : vector<2x1xf32>
    %202 = vector.broadcast %201 : vector<2x1xf32> to vector<2x24xf32>
    %203 = arith.subf %193, %202 : vector<2x24xf32>
    %204 = arith.mulf %203, %203 : vector<2x24xf32>
    %cst_150 = arith.constant dense<0.000000e+00> : vector<2xf32>
    %205 = vector.multi_reduction <add>, %204, %cst_150 [1] : vector<2x24xf32> to vector<2xf32>
    %206 = vector.shape_cast %205 : vector<2xf32> to vector<2x1xf32>
    %cst_151 = arith.constant 2.400000e+01 : f32
    %207 = vector.broadcast %cst_151 : f32 to vector<2x1xf32>
    %208 = arith.divf %206, %207 : vector<2x1xf32>
    %209 = vector.broadcast %201 : vector<2x1xf32> to vector<2x24xf32>
    %210 = arith.subf %193, %209 : vector<2x24xf32>
    %cst_152 = arith.constant 9.99999974E-6 : f32
    %211 = vector.broadcast %cst_152 : f32 to vector<2x1xf32>
    %212 = arith.addf %208, %211 : vector<2x1xf32>
    %213 = math.rsqrt %212 : vector<2x1xf32>
    %214 = vector.broadcast %213 : vector<2x1xf32> to vector<2x24xf32>
    %215 = arith.mulf %210, %214 : vector<2x24xf32>
    %216 = vector.broadcast %195 : vector<1x24xf32> to vector<2x24xf32>
    %217 = arith.mulf %215, %216 : vector<2x24xf32>
    %218 = vector.broadcast %197 : vector<1x24xf32> to vector<2x24xf32>
    %219 = arith.addf %217, %218 : vector<2x24xf32>
    %cst_153 = arith.constant 0.000000e+00 : f32
    %220 = vector.broadcast %cst_153 : f32 to vector<2x24xf32>
    %c3 = arith.constant 3 : index
    %c0_154 = arith.constant 0 : index
    %c0_155 = arith.constant 0 : index
    %221 = vector.load %arg9[%c3, %c0_154, %c0_155] : memref<12x24x8xf32, #tpu.memory_space<vmem>>, vector<1x24x8xf32>
    %222 = vector.shape_cast %221 : vector<1x24x8xf32> to vector<24x8xf32>
    %cst_156 = arith.constant dense<0.000000e+00> : vector<2x8xf32>
    %223 = tpu.matmul %219, %222, %cst_156 {dimension_numbers = #tpu.dot_dimension_numbers<[1], [0], [0], [1], [0, 0, 1, 1], [], []>} : vector<2x24xf32>, vector<24x8xf32>, vector<2x8xf32> -> vector<2x8xf32>
    %c3_157 = arith.constant 3 : index
    %c0_158 = arith.constant 0 : index
    %c0_159 = arith.constant 0 : index
    %224 = vector.load %arg13[%c3_157, %c0_158, %c0_159] : memref<12x1x8xf32, #tpu.memory_space<vmem>>, vector<1x1x8xf32>
    %225 = vector.shape_cast %224 : vector<1x1x8xf32> to vector<1x8xf32>
    %226 = vector.broadcast %225 : vector<1x8xf32> to vector<2x8xf32>
    %227 = arith.addf %223, %226 : vector<2x8xf32>
    %c3_160 = arith.constant 3 : index
    %c0_161 = arith.constant 0 : index
    %c0_162 = arith.constant 0 : index
    %228 = vector.load %arg10[%c3_160, %c0_161, %c0_162] : memref<12x24x8xf32, #tpu.memory_space<vmem>>, vector<1x24x8xf32>
    %229 = vector.shape_cast %228 : vector<1x24x8xf32> to vector<24x8xf32>
    %cst_163 = arith.constant dense<0.000000e+00> : vector<2x8xf32>
    %230 = tpu.matmul %219, %229, %cst_163 {dimension_numbers = #tpu.dot_dimension_numbers<[1], [0], [0], [1], [0, 0, 1, 1], [], []>} : vector<2x24xf32>, vector<24x8xf32>, vector<2x8xf32> -> vector<2x8xf32>
    %c3_164 = arith.constant 3 : index
    %c0_165 = arith.constant 0 : index
    %c0_166 = arith.constant 0 : index
    %231 = vector.load %arg14[%c3_164, %c0_165, %c0_166] : memref<12x1x8xf32, #tpu.memory_space<vmem>>, vector<1x1x8xf32>
    %232 = vector.shape_cast %231 : vector<1x1x8xf32> to vector<1x8xf32>
    %233 = vector.broadcast %232 : vector<1x8xf32> to vector<2x8xf32>
    %234 = arith.addf %230, %233 : vector<2x8xf32>
    %c3_167 = arith.constant 3 : index
    %c0_168 = arith.constant 0 : index
    %c0_169 = arith.constant 0 : index
    %235 = vector.load %arg11[%c3_167, %c0_168, %c0_169] : memref<12x24x8xf32, #tpu.memory_space<vmem>>, vector<1x24x8xf32>
    %236 = vector.shape_cast %235 : vector<1x24x8xf32> to vector<24x8xf32>
    %cst_170 = arith.constant dense<0.000000e+00> : vector<2x8xf32>
    %237 = tpu.matmul %219, %236, %cst_170 {dimension_numbers = #tpu.dot_dimension_numbers<[1], [0], [0], [1], [0, 0, 1, 1], [], []>} : vector<2x24xf32>, vector<24x8xf32>, vector<2x8xf32> -> vector<2x8xf32>
    %c3_171 = arith.constant 3 : index
    %c0_172 = arith.constant 0 : index
    %c0_173 = arith.constant 0 : index
    %238 = vector.load %arg15[%c3_171, %c0_172, %c0_173] : memref<12x1x8xf32, #tpu.memory_space<vmem>>, vector<1x1x8xf32>
    %239 = vector.shape_cast %238 : vector<1x1x8xf32> to vector<1x8xf32>
    %240 = vector.broadcast %239 : vector<1x8xf32> to vector<2x8xf32>
    %241 = arith.addf %237, %240 : vector<2x8xf32>
    %cst_174 = arith.constant dense<0.000000e+00> : vector<2x2xf32>
    %242 = tpu.matmul %227, %234, %cst_174 {dimension_numbers = #tpu.dot_dimension_numbers<[1], [1], [0], [0], [0, 0, 1, 0], [], []>} : vector<2x8xf32>, vector<2x8xf32>, vector<2x2xf32> -> vector<2x2xf32>
    %cst_175 = arith.constant 0.353553385 : f32
    %243 = vector.broadcast %cst_175 : f32 to vector<2x2xf32>
    %244 = arith.mulf %242, %243 : vector<2x2xf32>
    %cst_176 = arith.constant dense<0xFF800000> : vector<2xf32>
    %245 = vector.multi_reduction <maximumf>, %244, %cst_176 [1] : vector<2x2xf32> to vector<2xf32>
    %246 = vector.shape_cast %245 : vector<2xf32> to vector<2x1xf32>
    %247 = vector.broadcast %246 : vector<2x1xf32> to vector<2x2xf32>
    %248 = arith.subf %244, %247 : vector<2x2xf32>
    %249 = math.exp %248 : vector<2x2xf32>
    %cst_177 = arith.constant dense<0.000000e+00> : vector<2xf32>
    %250 = vector.multi_reduction <add>, %249, %cst_177 [1] : vector<2x2xf32> to vector<2xf32>
    %251 = vector.shape_cast %250 : vector<2xf32> to vector<2x1xf32>
    %252 = vector.broadcast %251 : vector<2x1xf32> to vector<2x2xf32>
    %253 = arith.divf %249, %252 : vector<2x2xf32>
    %cst_178 = arith.constant dense<0.000000e+00> : vector<2x8xf32>
    %254 = tpu.matmul %253, %241, %cst_178 {dimension_numbers = #tpu.dot_dimension_numbers<[1], [0], [0], [1], [0, 0, 1, 1], [], []>} : vector<2x2xf32>, vector<2x8xf32>, vector<2x8xf32> -> vector<2x8xf32>
    %c3_179 = arith.constant 3 : index
    %c0_180 = arith.constant 0 : index
    %c0_181 = arith.constant 0 : index
    %255 = vector.load %arg12[%c3_179, %c0_180, %c0_181] : memref<12x8x24xf32, #tpu.memory_space<vmem>>, vector<1x8x24xf32>
    %256 = vector.shape_cast %255 : vector<1x8x24xf32> to vector<8x24xf32>
    %cst_182 = arith.constant dense<0.000000e+00> : vector<2x24xf32>
    %257 = tpu.matmul %254, %256, %cst_182 {dimension_numbers = #tpu.dot_dimension_numbers<[1], [0], [0], [1], [0, 0, 1, 1], [], []>} : vector<2x8xf32>, vector<8x24xf32>, vector<2x24xf32> -> vector<2x24xf32>
    %258 = arith.addf %220, %257 : vector<2x24xf32>
    %c4 = arith.constant 4 : index
    %c0_183 = arith.constant 0 : index
    %c0_184 = arith.constant 0 : index
    %259 = vector.load %arg9[%c4, %c0_183, %c0_184] : memref<12x24x8xf32, #tpu.memory_space<vmem>>, vector<1x24x8xf32>
    %260 = vector.shape_cast %259 : vector<1x24x8xf32> to vector<24x8xf32>
    %cst_185 = arith.constant dense<0.000000e+00> : vector<2x8xf32>
    %261 = tpu.matmul %219, %260, %cst_185 {dimension_numbers = #tpu.dot_dimension_numbers<[1], [0], [0], [1], [0, 0, 1, 1], [], []>} : vector<2x24xf32>, vector<24x8xf32>, vector<2x8xf32> -> vector<2x8xf32>
    %c4_186 = arith.constant 4 : index
    %c0_187 = arith.constant 0 : index
    %c0_188 = arith.constant 0 : index
    %262 = vector.load %arg13[%c4_186, %c0_187, %c0_188] : memref<12x1x8xf32, #tpu.memory_space<vmem>>, vector<1x1x8xf32>
    %263 = vector.shape_cast %262 : vector<1x1x8xf32> to vector<1x8xf32>
    %264 = vector.broadcast %263 : vector<1x8xf32> to vector<2x8xf32>
    %265 = arith.addf %261, %264 : vector<2x8xf32>
    %c4_189 = arith.constant 4 : index
    %c0_190 = arith.constant 0 : index
    %c0_191 = arith.constant 0 : index
    %266 = vector.load %arg10[%c4_189, %c0_190, %c0_191] : memref<12x24x8xf32, #tpu.memory_space<vmem>>, vector<1x24x8xf32>
    %267 = vector.shape_cast %266 : vector<1x24x8xf32> to vector<24x8xf32>
    %cst_192 = arith.constant dense<0.000000e+00> : vector<2x8xf32>
    %268 = tpu.matmul %219, %267, %cst_192 {dimension_numbers = #tpu.dot_dimension_numbers<[1], [0], [0], [1], [0, 0, 1, 1], [], []>} : vector<2x24xf32>, vector<24x8xf32>, vector<2x8xf32> -> vector<2x8xf32>
    %c4_193 = arith.constant 4 : index
    %c0_194 = arith.constant 0 : index
    %c0_195 = arith.constant 0 : index
    %269 = vector.load %arg14[%c4_193, %c0_194, %c0_195] : memref<12x1x8xf32, #tpu.memory_space<vmem>>, vector<1x1x8xf32>
    %270 = vector.shape_cast %269 : vector<1x1x8xf32> to vector<1x8xf32>
    %271 = vector.broadcast %270 : vector<1x8xf32> to vector<2x8xf32>
    %272 = arith.addf %268, %271 : vector<2x8xf32>
    %c4_196 = arith.constant 4 : index
    %c0_197 = arith.constant 0 : index
    %c0_198 = arith.constant 0 : index
    %273 = vector.load %arg11[%c4_196, %c0_197, %c0_198] : memref<12x24x8xf32, #tpu.memory_space<vmem>>, vector<1x24x8xf32>
    %274 = vector.shape_cast %273 : vector<1x24x8xf32> to vector<24x8xf32>
    %cst_199 = arith.constant dense<0.000000e+00> : vector<2x8xf32>
    %275 = tpu.matmul %219, %274, %cst_199 {dimension_numbers = #tpu.dot_dimension_numbers<[1], [0], [0], [1], [0, 0, 1, 1], [], []>} : vector<2x24xf32>, vector<24x8xf32>, vector<2x8xf32> -> vector<2x8xf32>
    %c4_200 = arith.constant 4 : index
    %c0_201 = arith.constant 0 : index
    %c0_202 = arith.constant 0 : index
    %276 = vector.load %arg15[%c4_200, %c0_201, %c0_202] : memref<12x1x8xf32, #tpu.memory_space<vmem>>, vector<1x1x8xf32>
    %277 = vector.shape_cast %276 : vector<1x1x8xf32> to vector<1x8xf32>
    %278 = vector.broadcast %277 : vector<1x8xf32> to vector<2x8xf32>
    %279 = arith.addf %275, %278 : vector<2x8xf32>
    %cst_203 = arith.constant dense<0.000000e+00> : vector<2x2xf32>
    %280 = tpu.matmul %265, %272, %cst_203 {dimension_numbers = #tpu.dot_dimension_numbers<[1], [1], [0], [0], [0, 0, 1, 0], [], []>} : vector<2x8xf32>, vector<2x8xf32>, vector<2x2xf32> -> vector<2x2xf32>
    %cst_204 = arith.constant 0.353553385 : f32
    %281 = vector.broadcast %cst_204 : f32 to vector<2x2xf32>
    %282 = arith.mulf %280, %281 : vector<2x2xf32>
    %cst_205 = arith.constant dense<0xFF800000> : vector<2xf32>
    %283 = vector.multi_reduction <maximumf>, %282, %cst_205 [1] : vector<2x2xf32> to vector<2xf32>
    %284 = vector.shape_cast %283 : vector<2xf32> to vector<2x1xf32>
    %285 = vector.broadcast %284 : vector<2x1xf32> to vector<2x2xf32>
    %286 = arith.subf %282, %285 : vector<2x2xf32>
    %287 = math.exp %286 : vector<2x2xf32>
    %cst_206 = arith.constant dense<0.000000e+00> : vector<2xf32>
    %288 = vector.multi_reduction <add>, %287, %cst_206 [1] : vector<2x2xf32> to vector<2xf32>
    %289 = vector.shape_cast %288 : vector<2xf32> to vector<2x1xf32>
    %290 = vector.broadcast %289 : vector<2x1xf32> to vector<2x2xf32>
    %291 = arith.divf %287, %290 : vector<2x2xf32>
    %cst_207 = arith.constant dense<0.000000e+00> : vector<2x8xf32>
    %292 = tpu.matmul %291, %279, %cst_207 {dimension_numbers = #tpu.dot_dimension_numbers<[1], [0], [0], [1], [0, 0, 1, 1], [], []>} : vector<2x2xf32>, vector<2x8xf32>, vector<2x8xf32> -> vector<2x8xf32>
    %c4_208 = arith.constant 4 : index
    %c0_209 = arith.constant 0 : index
    %c0_210 = arith.constant 0 : index
    %293 = vector.load %arg12[%c4_208, %c0_209, %c0_210] : memref<12x8x24xf32, #tpu.memory_space<vmem>>, vector<1x8x24xf32>
    %294 = vector.shape_cast %293 : vector<1x8x24xf32> to vector<8x24xf32>
    %cst_211 = arith.constant dense<0.000000e+00> : vector<2x24xf32>
    %295 = tpu.matmul %292, %294, %cst_211 {dimension_numbers = #tpu.dot_dimension_numbers<[1], [0], [0], [1], [0, 0, 1, 1], [], []>} : vector<2x8xf32>, vector<8x24xf32>, vector<2x24xf32> -> vector<2x24xf32>
    %296 = arith.addf %258, %295 : vector<2x24xf32>
    %c5 = arith.constant 5 : index
    %c0_212 = arith.constant 0 : index
    %c0_213 = arith.constant 0 : index
    %297 = vector.load %arg9[%c5, %c0_212, %c0_213] : memref<12x24x8xf32, #tpu.memory_space<vmem>>, vector<1x24x8xf32>
    %298 = vector.shape_cast %297 : vector<1x24x8xf32> to vector<24x8xf32>
    %cst_214 = arith.constant dense<0.000000e+00> : vector<2x8xf32>
    %299 = tpu.matmul %219, %298, %cst_214 {dimension_numbers = #tpu.dot_dimension_numbers<[1], [0], [0], [1], [0, 0, 1, 1], [], []>} : vector<2x24xf32>, vector<24x8xf32>, vector<2x8xf32> -> vector<2x8xf32>
    %c5_215 = arith.constant 5 : index
    %c0_216 = arith.constant 0 : index
    %c0_217 = arith.constant 0 : index
    %300 = vector.load %arg13[%c5_215, %c0_216, %c0_217] : memref<12x1x8xf32, #tpu.memory_space<vmem>>, vector<1x1x8xf32>
    %301 = vector.shape_cast %300 : vector<1x1x8xf32> to vector<1x8xf32>
    %302 = vector.broadcast %301 : vector<1x8xf32> to vector<2x8xf32>
    %303 = arith.addf %299, %302 : vector<2x8xf32>
    %c5_218 = arith.constant 5 : index
    %c0_219 = arith.constant 0 : index
    %c0_220 = arith.constant 0 : index
    %304 = vector.load %arg10[%c5_218, %c0_219, %c0_220] : memref<12x24x8xf32, #tpu.memory_space<vmem>>, vector<1x24x8xf32>
    %305 = vector.shape_cast %304 : vector<1x24x8xf32> to vector<24x8xf32>
    %cst_221 = arith.constant dense<0.000000e+00> : vector<2x8xf32>
    %306 = tpu.matmul %219, %305, %cst_221 {dimension_numbers = #tpu.dot_dimension_numbers<[1], [0], [0], [1], [0, 0, 1, 1], [], []>} : vector<2x24xf32>, vector<24x8xf32>, vector<2x8xf32> -> vector<2x8xf32>
    %c5_222 = arith.constant 5 : index
    %c0_223 = arith.constant 0 : index
    %c0_224 = arith.constant 0 : index
    %307 = vector.load %arg14[%c5_222, %c0_223, %c0_224] : memref<12x1x8xf32, #tpu.memory_space<vmem>>, vector<1x1x8xf32>
    %308 = vector.shape_cast %307 : vector<1x1x8xf32> to vector<1x8xf32>
    %309 = vector.broadcast %308 : vector<1x8xf32> to vector<2x8xf32>
    %310 = arith.addf %306, %309 : vector<2x8xf32>
    %c5_225 = arith.constant 5 : index
    %c0_226 = arith.constant 0 : index
    %c0_227 = arith.constant 0 : index
    %311 = vector.load %arg11[%c5_225, %c0_226, %c0_227] : memref<12x24x8xf32, #tpu.memory_space<vmem>>, vector<1x24x8xf32>
    %312 = vector.shape_cast %311 : vector<1x24x8xf32> to vector<24x8xf32>
    %cst_228 = arith.constant dense<0.000000e+00> : vector<2x8xf32>
    %313 = tpu.matmul %219, %312, %cst_228 {dimension_numbers = #tpu.dot_dimension_numbers<[1], [0], [0], [1], [0, 0, 1, 1], [], []>} : vector<2x24xf32>, vector<24x8xf32>, vector<2x8xf32> -> vector<2x8xf32>
    %c5_229 = arith.constant 5 : index
    %c0_230 = arith.constant 0 : index
    %c0_231 = arith.constant 0 : index
    %314 = vector.load %arg15[%c5_229, %c0_230, %c0_231] : memref<12x1x8xf32, #tpu.memory_space<vmem>>, vector<1x1x8xf32>
    %315 = vector.shape_cast %314 : vector<1x1x8xf32> to vector<1x8xf32>
    %316 = vector.broadcast %315 : vector<1x8xf32> to vector<2x8xf32>
    %317 = arith.addf %313, %316 : vector<2x8xf32>
    %cst_232 = arith.constant dense<0.000000e+00> : vector<2x2xf32>
    %318 = tpu.matmul %303, %310, %cst_232 {dimension_numbers = #tpu.dot_dimension_numbers<[1], [1], [0], [0], [0, 0, 1, 0], [], []>} : vector<2x8xf32>, vector<2x8xf32>, vector<2x2xf32> -> vector<2x2xf32>
    %cst_233 = arith.constant 0.353553385 : f32
    %319 = vector.broadcast %cst_233 : f32 to vector<2x2xf32>
    %320 = arith.mulf %318, %319 : vector<2x2xf32>
    %cst_234 = arith.constant dense<0xFF800000> : vector<2xf32>
    %321 = vector.multi_reduction <maximumf>, %320, %cst_234 [1] : vector<2x2xf32> to vector<2xf32>
    %322 = vector.shape_cast %321 : vector<2xf32> to vector<2x1xf32>
    %323 = vector.broadcast %322 : vector<2x1xf32> to vector<2x2xf32>
    %324 = arith.subf %320, %323 : vector<2x2xf32>
    %325 = math.exp %324 : vector<2x2xf32>
    %cst_235 = arith.constant dense<0.000000e+00> : vector<2xf32>
    %326 = vector.multi_reduction <add>, %325, %cst_235 [1] : vector<2x2xf32> to vector<2xf32>
    %327 = vector.shape_cast %326 : vector<2xf32> to vector<2x1xf32>
    %328 = vector.broadcast %327 : vector<2x1xf32> to vector<2x2xf32>
    %329 = arith.divf %325, %328 : vector<2x2xf32>
    %cst_236 = arith.constant dense<0.000000e+00> : vector<2x8xf32>
    %330 = tpu.matmul %329, %317, %cst_236 {dimension_numbers = #tpu.dot_dimension_numbers<[1], [0], [0], [1], [0, 0, 1, 1], [], []>} : vector<2x2xf32>, vector<2x8xf32>, vector<2x8xf32> -> vector<2x8xf32>
    %c5_237 = arith.constant 5 : index
    %c0_238 = arith.constant 0 : index
    %c0_239 = arith.constant 0 : index
    %331 = vector.load %arg12[%c5_237, %c0_238, %c0_239] : memref<12x8x24xf32, #tpu.memory_space<vmem>>, vector<1x8x24xf32>
    %332 = vector.shape_cast %331 : vector<1x8x24xf32> to vector<8x24xf32>
    %cst_240 = arith.constant dense<0.000000e+00> : vector<2x24xf32>
    %333 = tpu.matmul %330, %332, %cst_240 {dimension_numbers = #tpu.dot_dimension_numbers<[1], [0], [0], [1], [0, 0, 1, 1], [], []>} : vector<2x8xf32>, vector<8x24xf32>, vector<2x24xf32> -> vector<2x24xf32>
    %334 = arith.addf %296, %333 : vector<2x24xf32>
    %335 = arith.addf %219, %334 : vector<2x24xf32>
    %c1_241 = arith.constant 1 : index
    %c0_242 = arith.constant 0 : index
    %c0_243 = arith.constant 0 : index
    %336 = vector.load %arg16[%c1_241, %c0_242, %c0_243] : memref<4x1x24xf32, #tpu.memory_space<vmem>>, vector<1x1x24xf32>
    %337 = vector.shape_cast %336 : vector<1x1x24xf32> to vector<1x24xf32>
    %338 = vector.broadcast %337 : vector<1x24xf32> to vector<2x24xf32>
    %339 = arith.addf %335, %338 : vector<2x24xf32>
    %c1_244 = arith.constant 1 : index
    %c0_245 = arith.constant 0 : index
    %c0_246 = arith.constant 0 : index
    %340 = vector.load %arg21[%c1_244, %c0_245, %c0_246] : memref<4x1x24xf32, #tpu.memory_space<vmem>>, vector<1x1x24xf32>
    %341 = vector.shape_cast %340 : vector<1x1x24xf32> to vector<1x24xf32>
    %c1_247 = arith.constant 1 : index
    %c0_248 = arith.constant 0 : index
    %c0_249 = arith.constant 0 : index
    %342 = vector.load %arg22[%c1_247, %c0_248, %c0_249] : memref<4x1x24xf32, #tpu.memory_space<vmem>>, vector<1x1x24xf32>
    %343 = vector.shape_cast %342 : vector<1x1x24xf32> to vector<1x24xf32>
    %cst_250 = arith.constant dense<0.000000e+00> : vector<2xf32>
    %344 = vector.multi_reduction <add>, %339, %cst_250 [1] : vector<2x24xf32> to vector<2xf32>
    %345 = vector.shape_cast %344 : vector<2xf32> to vector<2x1xf32>
    %cst_251 = arith.constant 2.400000e+01 : f32
    %346 = vector.broadcast %cst_251 : f32 to vector<2x1xf32>
    %347 = arith.divf %345, %346 : vector<2x1xf32>
    %348 = vector.broadcast %347 : vector<2x1xf32> to vector<2x24xf32>
    %349 = arith.subf %339, %348 : vector<2x24xf32>
    %350 = arith.mulf %349, %349 : vector<2x24xf32>
    %cst_252 = arith.constant dense<0.000000e+00> : vector<2xf32>
    %351 = vector.multi_reduction <add>, %350, %cst_252 [1] : vector<2x24xf32> to vector<2xf32>
    %352 = vector.shape_cast %351 : vector<2xf32> to vector<2x1xf32>
    %cst_253 = arith.constant 2.400000e+01 : f32
    %353 = vector.broadcast %cst_253 : f32 to vector<2x1xf32>
    %354 = arith.divf %352, %353 : vector<2x1xf32>
    %355 = vector.broadcast %347 : vector<2x1xf32> to vector<2x24xf32>
    %356 = arith.subf %339, %355 : vector<2x24xf32>
    %cst_254 = arith.constant 9.99999974E-6 : f32
    %357 = vector.broadcast %cst_254 : f32 to vector<2x1xf32>
    %358 = arith.addf %354, %357 : vector<2x1xf32>
    %359 = math.rsqrt %358 : vector<2x1xf32>
    %360 = vector.broadcast %359 : vector<2x1xf32> to vector<2x24xf32>
    %361 = arith.mulf %356, %360 : vector<2x24xf32>
    %362 = vector.broadcast %341 : vector<1x24xf32> to vector<2x24xf32>
    %363 = arith.mulf %361, %362 : vector<2x24xf32>
    %364 = vector.broadcast %343 : vector<1x24xf32> to vector<2x24xf32>
    %365 = arith.addf %363, %364 : vector<2x24xf32>
    %366 = arith.truncf %365 : vector<2x24xf32> to vector<2x24xbf16>
    %c1_255 = arith.constant 1 : index
    %c0_256 = arith.constant 0 : index
    %c0_257 = arith.constant 0 : index
    %367 = vector.load %arg17[%c1_255, %c0_256, %c0_257] : memref<4x24x512xbf16, #tpu.memory_space<vmem>>, vector<1x24x512xbf16>
    %368 = vector.shape_cast %367 : vector<1x24x512xbf16> to vector<24x512xbf16>
    %cst_258 = arith.constant dense<0.000000e+00> : vector<2x512xf32>
    %369 = tpu.matmul %366, %368, %cst_258 {dimension_numbers = #tpu.dot_dimension_numbers<[1], [0], [0], [1], [0, 0, 1, 1], [], []>} : vector<2x24xbf16>, vector<24x512xbf16>, vector<2x512xf32> -> vector<2x512xf32>
    %c1_259 = arith.constant 1 : index
    %c0_260 = arith.constant 0 : index
    %c0_261 = arith.constant 0 : index
    %370 = vector.load %arg18[%c1_259, %c0_260, %c0_261] : memref<4x1x512xf32, #tpu.memory_space<vmem>>, vector<1x1x512xf32>
    %371 = vector.shape_cast %370 : vector<1x1x512xf32> to vector<1x512xf32>
    %372 = vector.broadcast %371 : vector<1x512xf32> to vector<2x512xf32>
    %373 = arith.addf %369, %372 : vector<2x512xf32>
    %cst_262 = arith.constant 0.000000e+00 : f32
    %374 = vector.broadcast %cst_262 : f32 to vector<2x512xf32>
    %375 = arith.maximumf %373, %374 : vector<2x512xf32>
    %376 = arith.truncf %375 : vector<2x512xf32> to vector<2x512xbf16>
    %c1_263 = arith.constant 1 : index
    %c0_264 = arith.constant 0 : index
    %c0_265 = arith.constant 0 : index
    %377 = vector.load %arg19[%c1_263, %c0_264, %c0_265] : memref<4x512x24xbf16, #tpu.memory_space<vmem>>, vector<1x512x24xbf16>
    %378 = vector.shape_cast %377 : vector<1x512x24xbf16> to vector<512x24xbf16>
    %cst_266 = arith.constant dense<0.000000e+00> : vector<2x24xf32>
    %379 = tpu.matmul %376, %378, %cst_266 {dimension_numbers = #tpu.dot_dimension_numbers<[1], [0], [0], [1], [0, 0, 1, 1], [], []>} : vector<2x512xbf16>, vector<512x24xbf16>, vector<2x24xf32> -> vector<2x24xf32>
    %c1_267 = arith.constant 1 : index
    %c0_268 = arith.constant 0 : index
    %c0_269 = arith.constant 0 : index
    %380 = vector.load %arg20[%c1_267, %c0_268, %c0_269] : memref<4x1x24xf32, #tpu.memory_space<vmem>>, vector<1x1x24xf32>
    %381 = vector.shape_cast %380 : vector<1x1x24xf32> to vector<1x24xf32>
    %382 = vector.broadcast %381 : vector<1x24xf32> to vector<2x24xf32>
    %383 = arith.addf %379, %382 : vector<2x24xf32>
    %384 = arith.addf %365, %383 : vector<2x24xf32>
    %c1_270 = arith.constant 1 : index
    %c0_271 = arith.constant 0 : index
    %c0_272 = arith.constant 0 : index
    %385 = vector.load %arg23[%c1_270, %c0_271, %c0_272] : memref<4x1x24xf32, #tpu.memory_space<vmem>>, vector<1x1x24xf32>
    %386 = vector.shape_cast %385 : vector<1x1x24xf32> to vector<1x24xf32>
    %c1_273 = arith.constant 1 : index
    %c0_274 = arith.constant 0 : index
    %c0_275 = arith.constant 0 : index
    %387 = vector.load %arg24[%c1_273, %c0_274, %c0_275] : memref<4x1x24xf32, #tpu.memory_space<vmem>>, vector<1x1x24xf32>
    %388 = vector.shape_cast %387 : vector<1x1x24xf32> to vector<1x24xf32>
    %cst_276 = arith.constant dense<0.000000e+00> : vector<2xf32>
    %389 = vector.multi_reduction <add>, %384, %cst_276 [1] : vector<2x24xf32> to vector<2xf32>
    %390 = vector.shape_cast %389 : vector<2xf32> to vector<2x1xf32>
    %cst_277 = arith.constant 2.400000e+01 : f32
    %391 = vector.broadcast %cst_277 : f32 to vector<2x1xf32>
    %392 = arith.divf %390, %391 : vector<2x1xf32>
    %393 = vector.broadcast %392 : vector<2x1xf32> to vector<2x24xf32>
    %394 = arith.subf %384, %393 : vector<2x24xf32>
    %395 = arith.mulf %394, %394 : vector<2x24xf32>
    %cst_278 = arith.constant dense<0.000000e+00> : vector<2xf32>
    %396 = vector.multi_reduction <add>, %395, %cst_278 [1] : vector<2x24xf32> to vector<2xf32>
    %397 = vector.shape_cast %396 : vector<2xf32> to vector<2x1xf32>
    %cst_279 = arith.constant 2.400000e+01 : f32
    %398 = vector.broadcast %cst_279 : f32 to vector<2x1xf32>
    %399 = arith.divf %397, %398 : vector<2x1xf32>
    %400 = vector.broadcast %392 : vector<2x1xf32> to vector<2x24xf32>
    %401 = arith.subf %384, %400 : vector<2x24xf32>
    %cst_280 = arith.constant 9.99999974E-6 : f32
    %402 = vector.broadcast %cst_280 : f32 to vector<2x1xf32>
    %403 = arith.addf %399, %402 : vector<2x1xf32>
    %404 = math.rsqrt %403 : vector<2x1xf32>
    %405 = vector.broadcast %404 : vector<2x1xf32> to vector<2x24xf32>
    %406 = arith.mulf %401, %405 : vector<2x24xf32>
    %407 = vector.broadcast %386 : vector<1x24xf32> to vector<2x24xf32>
    %408 = arith.mulf %406, %407 : vector<2x24xf32>
    %409 = vector.broadcast %388 : vector<1x24xf32> to vector<2x24xf32>
    %410 = arith.addf %408, %409 : vector<2x24xf32>
    %cst_281 = arith.constant 0.000000e+00 : f32
    %411 = vector.broadcast %cst_281 : f32 to vector<2x24xf32>
    %c6 = arith.constant 6 : index
    %c0_282 = arith.constant 0 : index
    %c0_283 = arith.constant 0 : index
    %412 = vector.load %arg9[%c6, %c0_282, %c0_283] : memref<12x24x8xf32, #tpu.memory_space<vmem>>, vector<1x24x8xf32>
    %413 = vector.shape_cast %412 : vector<1x24x8xf32> to vector<24x8xf32>
    %cst_284 = arith.constant dense<0.000000e+00> : vector<2x8xf32>
    %414 = tpu.matmul %410, %413, %cst_284 {dimension_numbers = #tpu.dot_dimension_numbers<[1], [0], [0], [1], [0, 0, 1, 1], [], []>} : vector<2x24xf32>, vector<24x8xf32>, vector<2x8xf32> -> vector<2x8xf32>
    %c6_285 = arith.constant 6 : index
    %c0_286 = arith.constant 0 : index
    %c0_287 = arith.constant 0 : index
    %415 = vector.load %arg13[%c6_285, %c0_286, %c0_287] : memref<12x1x8xf32, #tpu.memory_space<vmem>>, vector<1x1x8xf32>
    %416 = vector.shape_cast %415 : vector<1x1x8xf32> to vector<1x8xf32>
    %417 = vector.broadcast %416 : vector<1x8xf32> to vector<2x8xf32>
    %418 = arith.addf %414, %417 : vector<2x8xf32>
    %c6_288 = arith.constant 6 : index
    %c0_289 = arith.constant 0 : index
    %c0_290 = arith.constant 0 : index
    %419 = vector.load %arg10[%c6_288, %c0_289, %c0_290] : memref<12x24x8xf32, #tpu.memory_space<vmem>>, vector<1x24x8xf32>
    %420 = vector.shape_cast %419 : vector<1x24x8xf32> to vector<24x8xf32>
    %cst_291 = arith.constant dense<0.000000e+00> : vector<2x8xf32>
    %421 = tpu.matmul %410, %420, %cst_291 {dimension_numbers = #tpu.dot_dimension_numbers<[1], [0], [0], [1], [0, 0, 1, 1], [], []>} : vector<2x24xf32>, vector<24x8xf32>, vector<2x8xf32> -> vector<2x8xf32>
    %c6_292 = arith.constant 6 : index
    %c0_293 = arith.constant 0 : index
    %c0_294 = arith.constant 0 : index
    %422 = vector.load %arg14[%c6_292, %c0_293, %c0_294] : memref<12x1x8xf32, #tpu.memory_space<vmem>>, vector<1x1x8xf32>
    %423 = vector.shape_cast %422 : vector<1x1x8xf32> to vector<1x8xf32>
    %424 = vector.broadcast %423 : vector<1x8xf32> to vector<2x8xf32>
    %425 = arith.addf %421, %424 : vector<2x8xf32>
    %c6_295 = arith.constant 6 : index
    %c0_296 = arith.constant 0 : index
    %c0_297 = arith.constant 0 : index
    %426 = vector.load %arg11[%c6_295, %c0_296, %c0_297] : memref<12x24x8xf32, #tpu.memory_space<vmem>>, vector<1x24x8xf32>
    %427 = vector.shape_cast %426 : vector<1x24x8xf32> to vector<24x8xf32>
    %cst_298 = arith.constant dense<0.000000e+00> : vector<2x8xf32>
    %428 = tpu.matmul %410, %427, %cst_298 {dimension_numbers = #tpu.dot_dimension_numbers<[1], [0], [0], [1], [0, 0, 1, 1], [], []>} : vector<2x24xf32>, vector<24x8xf32>, vector<2x8xf32> -> vector<2x8xf32>
    %c6_299 = arith.constant 6 : index
    %c0_300 = arith.constant 0 : index
    %c0_301 = arith.constant 0 : index
    %429 = vector.load %arg15[%c6_299, %c0_300, %c0_301] : memref<12x1x8xf32, #tpu.memory_space<vmem>>, vector<1x1x8xf32>
    %430 = vector.shape_cast %429 : vector<1x1x8xf32> to vector<1x8xf32>
    %431 = vector.broadcast %430 : vector<1x8xf32> to vector<2x8xf32>
    %432 = arith.addf %428, %431 : vector<2x8xf32>
    %cst_302 = arith.constant dense<0.000000e+00> : vector<2x2xf32>
    %433 = tpu.matmul %418, %425, %cst_302 {dimension_numbers = #tpu.dot_dimension_numbers<[1], [1], [0], [0], [0, 0, 1, 0], [], []>} : vector<2x8xf32>, vector<2x8xf32>, vector<2x2xf32> -> vector<2x2xf32>
    %cst_303 = arith.constant 0.353553385 : f32
    %434 = vector.broadcast %cst_303 : f32 to vector<2x2xf32>
    %435 = arith.mulf %433, %434 : vector<2x2xf32>
    %cst_304 = arith.constant dense<0xFF800000> : vector<2xf32>
    %436 = vector.multi_reduction <maximumf>, %435, %cst_304 [1] : vector<2x2xf32> to vector<2xf32>
    %437 = vector.shape_cast %436 : vector<2xf32> to vector<2x1xf32>
    %438 = vector.broadcast %437 : vector<2x1xf32> to vector<2x2xf32>
    %439 = arith.subf %435, %438 : vector<2x2xf32>
    %440 = math.exp %439 : vector<2x2xf32>
    %cst_305 = arith.constant dense<0.000000e+00> : vector<2xf32>
    %441 = vector.multi_reduction <add>, %440, %cst_305 [1] : vector<2x2xf32> to vector<2xf32>
    %442 = vector.shape_cast %441 : vector<2xf32> to vector<2x1xf32>
    %443 = vector.broadcast %442 : vector<2x1xf32> to vector<2x2xf32>
    %444 = arith.divf %440, %443 : vector<2x2xf32>
    %cst_306 = arith.constant dense<0.000000e+00> : vector<2x8xf32>
    %445 = tpu.matmul %444, %432, %cst_306 {dimension_numbers = #tpu.dot_dimension_numbers<[1], [0], [0], [1], [0, 0, 1, 1], [], []>} : vector<2x2xf32>, vector<2x8xf32>, vector<2x8xf32> -> vector<2x8xf32>
    %c6_307 = arith.constant 6 : index
    %c0_308 = arith.constant 0 : index
    %c0_309 = arith.constant 0 : index
    %446 = vector.load %arg12[%c6_307, %c0_308, %c0_309] : memref<12x8x24xf32, #tpu.memory_space<vmem>>, vector<1x8x24xf32>
    %447 = vector.shape_cast %446 : vector<1x8x24xf32> to vector<8x24xf32>
    %cst_310 = arith.constant dense<0.000000e+00> : vector<2x24xf32>
    %448 = tpu.matmul %445, %447, %cst_310 {dimension_numbers = #tpu.dot_dimension_numbers<[1], [0], [0], [1], [0, 0, 1, 1], [], []>} : vector<2x8xf32>, vector<8x24xf32>, vector<2x24xf32> -> vector<2x24xf32>
    %449 = arith.addf %411, %448 : vector<2x24xf32>
    %c7 = arith.constant 7 : index
    %c0_311 = arith.constant 0 : index
    %c0_312 = arith.constant 0 : index
    %450 = vector.load %arg9[%c7, %c0_311, %c0_312] : memref<12x24x8xf32, #tpu.memory_space<vmem>>, vector<1x24x8xf32>
    %451 = vector.shape_cast %450 : vector<1x24x8xf32> to vector<24x8xf32>
    %cst_313 = arith.constant dense<0.000000e+00> : vector<2x8xf32>
    %452 = tpu.matmul %410, %451, %cst_313 {dimension_numbers = #tpu.dot_dimension_numbers<[1], [0], [0], [1], [0, 0, 1, 1], [], []>} : vector<2x24xf32>, vector<24x8xf32>, vector<2x8xf32> -> vector<2x8xf32>
    %c7_314 = arith.constant 7 : index
    %c0_315 = arith.constant 0 : index
    %c0_316 = arith.constant 0 : index
    %453 = vector.load %arg13[%c7_314, %c0_315, %c0_316] : memref<12x1x8xf32, #tpu.memory_space<vmem>>, vector<1x1x8xf32>
    %454 = vector.shape_cast %453 : vector<1x1x8xf32> to vector<1x8xf32>
    %455 = vector.broadcast %454 : vector<1x8xf32> to vector<2x8xf32>
    %456 = arith.addf %452, %455 : vector<2x8xf32>
    %c7_317 = arith.constant 7 : index
    %c0_318 = arith.constant 0 : index
    %c0_319 = arith.constant 0 : index
    %457 = vector.load %arg10[%c7_317, %c0_318, %c0_319] : memref<12x24x8xf32, #tpu.memory_space<vmem>>, vector<1x24x8xf32>
    %458 = vector.shape_cast %457 : vector<1x24x8xf32> to vector<24x8xf32>
    %cst_320 = arith.constant dense<0.000000e+00> : vector<2x8xf32>
    %459 = tpu.matmul %410, %458, %cst_320 {dimension_numbers = #tpu.dot_dimension_numbers<[1], [0], [0], [1], [0, 0, 1, 1], [], []>} : vector<2x24xf32>, vector<24x8xf32>, vector<2x8xf32> -> vector<2x8xf32>
    %c7_321 = arith.constant 7 : index
    %c0_322 = arith.constant 0 : index
    %c0_323 = arith.constant 0 : index
    %460 = vector.load %arg14[%c7_321, %c0_322, %c0_323] : memref<12x1x8xf32, #tpu.memory_space<vmem>>, vector<1x1x8xf32>
    %461 = vector.shape_cast %460 : vector<1x1x8xf32> to vector<1x8xf32>
    %462 = vector.broadcast %461 : vector<1x8xf32> to vector<2x8xf32>
    %463 = arith.addf %459, %462 : vector<2x8xf32>
    %c7_324 = arith.constant 7 : index
    %c0_325 = arith.constant 0 : index
    %c0_326 = arith.constant 0 : index
    %464 = vector.load %arg11[%c7_324, %c0_325, %c0_326] : memref<12x24x8xf32, #tpu.memory_space<vmem>>, vector<1x24x8xf32>
    %465 = vector.shape_cast %464 : vector<1x24x8xf32> to vector<24x8xf32>
    %cst_327 = arith.constant dense<0.000000e+00> : vector<2x8xf32>
    %466 = tpu.matmul %410, %465, %cst_327 {dimension_numbers = #tpu.dot_dimension_numbers<[1], [0], [0], [1], [0, 0, 1, 1], [], []>} : vector<2x24xf32>, vector<24x8xf32>, vector<2x8xf32> -> vector<2x8xf32>
    %c7_328 = arith.constant 7 : index
    %c0_329 = arith.constant 0 : index
    %c0_330 = arith.constant 0 : index
    %467 = vector.load %arg15[%c7_328, %c0_329, %c0_330] : memref<12x1x8xf32, #tpu.memory_space<vmem>>, vector<1x1x8xf32>
    %468 = vector.shape_cast %467 : vector<1x1x8xf32> to vector<1x8xf32>
    %469 = vector.broadcast %468 : vector<1x8xf32> to vector<2x8xf32>
    %470 = arith.addf %466, %469 : vector<2x8xf32>
    %cst_331 = arith.constant dense<0.000000e+00> : vector<2x2xf32>
    %471 = tpu.matmul %456, %463, %cst_331 {dimension_numbers = #tpu.dot_dimension_numbers<[1], [1], [0], [0], [0, 0, 1, 0], [], []>} : vector<2x8xf32>, vector<2x8xf32>, vector<2x2xf32> -> vector<2x2xf32>
    %cst_332 = arith.constant 0.353553385 : f32
    %472 = vector.broadcast %cst_332 : f32 to vector<2x2xf32>
    %473 = arith.mulf %471, %472 : vector<2x2xf32>
    %cst_333 = arith.constant dense<0xFF800000> : vector<2xf32>
    %474 = vector.multi_reduction <maximumf>, %473, %cst_333 [1] : vector<2x2xf32> to vector<2xf32>
    %475 = vector.shape_cast %474 : vector<2xf32> to vector<2x1xf32>
    %476 = vector.broadcast %475 : vector<2x1xf32> to vector<2x2xf32>
    %477 = arith.subf %473, %476 : vector<2x2xf32>
    %478 = math.exp %477 : vector<2x2xf32>
    %cst_334 = arith.constant dense<0.000000e+00> : vector<2xf32>
    %479 = vector.multi_reduction <add>, %478, %cst_334 [1] : vector<2x2xf32> to vector<2xf32>
    %480 = vector.shape_cast %479 : vector<2xf32> to vector<2x1xf32>
    %481 = vector.broadcast %480 : vector<2x1xf32> to vector<2x2xf32>
    %482 = arith.divf %478, %481 : vector<2x2xf32>
    %cst_335 = arith.constant dense<0.000000e+00> : vector<2x8xf32>
    %483 = tpu.matmul %482, %470, %cst_335 {dimension_numbers = #tpu.dot_dimension_numbers<[1], [0], [0], [1], [0, 0, 1, 1], [], []>} : vector<2x2xf32>, vector<2x8xf32>, vector<2x8xf32> -> vector<2x8xf32>
    %c7_336 = arith.constant 7 : index
    %c0_337 = arith.constant 0 : index
    %c0_338 = arith.constant 0 : index
    %484 = vector.load %arg12[%c7_336, %c0_337, %c0_338] : memref<12x8x24xf32, #tpu.memory_space<vmem>>, vector<1x8x24xf32>
    %485 = vector.shape_cast %484 : vector<1x8x24xf32> to vector<8x24xf32>
    %cst_339 = arith.constant dense<0.000000e+00> : vector<2x24xf32>
    %486 = tpu.matmul %483, %485, %cst_339 {dimension_numbers = #tpu.dot_dimension_numbers<[1], [0], [0], [1], [0, 0, 1, 1], [], []>} : vector<2x8xf32>, vector<8x24xf32>, vector<2x24xf32> -> vector<2x24xf32>
    %487 = arith.addf %449, %486 : vector<2x24xf32>
    %c8 = arith.constant 8 : index
    %c0_340 = arith.constant 0 : index
    %c0_341 = arith.constant 0 : index
    %488 = vector.load %arg9[%c8, %c0_340, %c0_341] : memref<12x24x8xf32, #tpu.memory_space<vmem>>, vector<1x24x8xf32>
    %489 = vector.shape_cast %488 : vector<1x24x8xf32> to vector<24x8xf32>
    %cst_342 = arith.constant dense<0.000000e+00> : vector<2x8xf32>
    %490 = tpu.matmul %410, %489, %cst_342 {dimension_numbers = #tpu.dot_dimension_numbers<[1], [0], [0], [1], [0, 0, 1, 1], [], []>} : vector<2x24xf32>, vector<24x8xf32>, vector<2x8xf32> -> vector<2x8xf32>
    %c8_343 = arith.constant 8 : index
    %c0_344 = arith.constant 0 : index
    %c0_345 = arith.constant 0 : index
    %491 = vector.load %arg13[%c8_343, %c0_344, %c0_345] : memref<12x1x8xf32, #tpu.memory_space<vmem>>, vector<1x1x8xf32>
    %492 = vector.shape_cast %491 : vector<1x1x8xf32> to vector<1x8xf32>
    %493 = vector.broadcast %492 : vector<1x8xf32> to vector<2x8xf32>
    %494 = arith.addf %490, %493 : vector<2x8xf32>
    %c8_346 = arith.constant 8 : index
    %c0_347 = arith.constant 0 : index
    %c0_348 = arith.constant 0 : index
    %495 = vector.load %arg10[%c8_346, %c0_347, %c0_348] : memref<12x24x8xf32, #tpu.memory_space<vmem>>, vector<1x24x8xf32>
    %496 = vector.shape_cast %495 : vector<1x24x8xf32> to vector<24x8xf32>
    %cst_349 = arith.constant dense<0.000000e+00> : vector<2x8xf32>
    %497 = tpu.matmul %410, %496, %cst_349 {dimension_numbers = #tpu.dot_dimension_numbers<[1], [0], [0], [1], [0, 0, 1, 1], [], []>} : vector<2x24xf32>, vector<24x8xf32>, vector<2x8xf32> -> vector<2x8xf32>
    %c8_350 = arith.constant 8 : index
    %c0_351 = arith.constant 0 : index
    %c0_352 = arith.constant 0 : index
    %498 = vector.load %arg14[%c8_350, %c0_351, %c0_352] : memref<12x1x8xf32, #tpu.memory_space<vmem>>, vector<1x1x8xf32>
    %499 = vector.shape_cast %498 : vector<1x1x8xf32> to vector<1x8xf32>
    %500 = vector.broadcast %499 : vector<1x8xf32> to vector<2x8xf32>
    %501 = arith.addf %497, %500 : vector<2x8xf32>
    %c8_353 = arith.constant 8 : index
    %c0_354 = arith.constant 0 : index
    %c0_355 = arith.constant 0 : index
    %502 = vector.load %arg11[%c8_353, %c0_354, %c0_355] : memref<12x24x8xf32, #tpu.memory_space<vmem>>, vector<1x24x8xf32>
    %503 = vector.shape_cast %502 : vector<1x24x8xf32> to vector<24x8xf32>
    %cst_356 = arith.constant dense<0.000000e+00> : vector<2x8xf32>
    %504 = tpu.matmul %410, %503, %cst_356 {dimension_numbers = #tpu.dot_dimension_numbers<[1], [0], [0], [1], [0, 0, 1, 1], [], []>} : vector<2x24xf32>, vector<24x8xf32>, vector<2x8xf32> -> vector<2x8xf32>
    %c8_357 = arith.constant 8 : index
    %c0_358 = arith.constant 0 : index
    %c0_359 = arith.constant 0 : index
    %505 = vector.load %arg15[%c8_357, %c0_358, %c0_359] : memref<12x1x8xf32, #tpu.memory_space<vmem>>, vector<1x1x8xf32>
    %506 = vector.shape_cast %505 : vector<1x1x8xf32> to vector<1x8xf32>
    %507 = vector.broadcast %506 : vector<1x8xf32> to vector<2x8xf32>
    %508 = arith.addf %504, %507 : vector<2x8xf32>
    %cst_360 = arith.constant dense<0.000000e+00> : vector<2x2xf32>
    %509 = tpu.matmul %494, %501, %cst_360 {dimension_numbers = #tpu.dot_dimension_numbers<[1], [1], [0], [0], [0, 0, 1, 0], [], []>} : vector<2x8xf32>, vector<2x8xf32>, vector<2x2xf32> -> vector<2x2xf32>
    %cst_361 = arith.constant 0.353553385 : f32
    %510 = vector.broadcast %cst_361 : f32 to vector<2x2xf32>
    %511 = arith.mulf %509, %510 : vector<2x2xf32>
    %cst_362 = arith.constant dense<0xFF800000> : vector<2xf32>
    %512 = vector.multi_reduction <maximumf>, %511, %cst_362 [1] : vector<2x2xf32> to vector<2xf32>
    %513 = vector.shape_cast %512 : vector<2xf32> to vector<2x1xf32>
    %514 = vector.broadcast %513 : vector<2x1xf32> to vector<2x2xf32>
    %515 = arith.subf %511, %514 : vector<2x2xf32>
    %516 = math.exp %515 : vector<2x2xf32>
    %cst_363 = arith.constant dense<0.000000e+00> : vector<2xf32>
    %517 = vector.multi_reduction <add>, %516, %cst_363 [1] : vector<2x2xf32> to vector<2xf32>
    %518 = vector.shape_cast %517 : vector<2xf32> to vector<2x1xf32>
    %519 = vector.broadcast %518 : vector<2x1xf32> to vector<2x2xf32>
    %520 = arith.divf %516, %519 : vector<2x2xf32>
    %cst_364 = arith.constant dense<0.000000e+00> : vector<2x8xf32>
    %521 = tpu.matmul %520, %508, %cst_364 {dimension_numbers = #tpu.dot_dimension_numbers<[1], [0], [0], [1], [0, 0, 1, 1], [], []>} : vector<2x2xf32>, vector<2x8xf32>, vector<2x8xf32> -> vector<2x8xf32>
    %c8_365 = arith.constant 8 : index
    %c0_366 = arith.constant 0 : index
    %c0_367 = arith.constant 0 : index
    %522 = vector.load %arg12[%c8_365, %c0_366, %c0_367] : memref<12x8x24xf32, #tpu.memory_space<vmem>>, vector<1x8x24xf32>
    %523 = vector.shape_cast %522 : vector<1x8x24xf32> to vector<8x24xf32>
    %cst_368 = arith.constant dense<0.000000e+00> : vector<2x24xf32>
    %524 = tpu.matmul %521, %523, %cst_368 {dimension_numbers = #tpu.dot_dimension_numbers<[1], [0], [0], [1], [0, 0, 1, 1], [], []>} : vector<2x8xf32>, vector<8x24xf32>, vector<2x24xf32> -> vector<2x24xf32>
    %525 = arith.addf %487, %524 : vector<2x24xf32>
    %526 = arith.addf %410, %525 : vector<2x24xf32>
    %c2_369 = arith.constant 2 : index
    %c0_370 = arith.constant 0 : index
    %c0_371 = arith.constant 0 : index
    %527 = vector.load %arg16[%c2_369, %c0_370, %c0_371] : memref<4x1x24xf32, #tpu.memory_space<vmem>>, vector<1x1x24xf32>
    %528 = vector.shape_cast %527 : vector<1x1x24xf32> to vector<1x24xf32>
    %529 = vector.broadcast %528 : vector<1x24xf32> to vector<2x24xf32>
    %530 = arith.addf %526, %529 : vector<2x24xf32>
    %c2_372 = arith.constant 2 : index
    %c0_373 = arith.constant 0 : index
    %c0_374 = arith.constant 0 : index
    %531 = vector.load %arg21[%c2_372, %c0_373, %c0_374] : memref<4x1x24xf32, #tpu.memory_space<vmem>>, vector<1x1x24xf32>
    %532 = vector.shape_cast %531 : vector<1x1x24xf32> to vector<1x24xf32>
    %c2_375 = arith.constant 2 : index
    %c0_376 = arith.constant 0 : index
    %c0_377 = arith.constant 0 : index
    %533 = vector.load %arg22[%c2_375, %c0_376, %c0_377] : memref<4x1x24xf32, #tpu.memory_space<vmem>>, vector<1x1x24xf32>
    %534 = vector.shape_cast %533 : vector<1x1x24xf32> to vector<1x24xf32>
    %cst_378 = arith.constant dense<0.000000e+00> : vector<2xf32>
    %535 = vector.multi_reduction <add>, %530, %cst_378 [1] : vector<2x24xf32> to vector<2xf32>
    %536 = vector.shape_cast %535 : vector<2xf32> to vector<2x1xf32>
    %cst_379 = arith.constant 2.400000e+01 : f32
    %537 = vector.broadcast %cst_379 : f32 to vector<2x1xf32>
    %538 = arith.divf %536, %537 : vector<2x1xf32>
    %539 = vector.broadcast %538 : vector<2x1xf32> to vector<2x24xf32>
    %540 = arith.subf %530, %539 : vector<2x24xf32>
    %541 = arith.mulf %540, %540 : vector<2x24xf32>
    %cst_380 = arith.constant dense<0.000000e+00> : vector<2xf32>
    %542 = vector.multi_reduction <add>, %541, %cst_380 [1] : vector<2x24xf32> to vector<2xf32>
    %543 = vector.shape_cast %542 : vector<2xf32> to vector<2x1xf32>
    %cst_381 = arith.constant 2.400000e+01 : f32
    %544 = vector.broadcast %cst_381 : f32 to vector<2x1xf32>
    %545 = arith.divf %543, %544 : vector<2x1xf32>
    %546 = vector.broadcast %538 : vector<2x1xf32> to vector<2x24xf32>
    %547 = arith.subf %530, %546 : vector<2x24xf32>
    %cst_382 = arith.constant 9.99999974E-6 : f32
    %548 = vector.broadcast %cst_382 : f32 to vector<2x1xf32>
    %549 = arith.addf %545, %548 : vector<2x1xf32>
    %550 = math.rsqrt %549 : vector<2x1xf32>
    %551 = vector.broadcast %550 : vector<2x1xf32> to vector<2x24xf32>
    %552 = arith.mulf %547, %551 : vector<2x24xf32>
    %553 = vector.broadcast %532 : vector<1x24xf32> to vector<2x24xf32>
    %554 = arith.mulf %552, %553 : vector<2x24xf32>
    %555 = vector.broadcast %534 : vector<1x24xf32> to vector<2x24xf32>
    %556 = arith.addf %554, %555 : vector<2x24xf32>
    %557 = arith.truncf %556 : vector<2x24xf32> to vector<2x24xbf16>
    %c2_383 = arith.constant 2 : index
    %c0_384 = arith.constant 0 : index
    %c0_385 = arith.constant 0 : index
    %558 = vector.load %arg17[%c2_383, %c0_384, %c0_385] : memref<4x24x512xbf16, #tpu.memory_space<vmem>>, vector<1x24x512xbf16>
    %559 = vector.shape_cast %558 : vector<1x24x512xbf16> to vector<24x512xbf16>
    %cst_386 = arith.constant dense<0.000000e+00> : vector<2x512xf32>
    %560 = tpu.matmul %557, %559, %cst_386 {dimension_numbers = #tpu.dot_dimension_numbers<[1], [0], [0], [1], [0, 0, 1, 1], [], []>} : vector<2x24xbf16>, vector<24x512xbf16>, vector<2x512xf32> -> vector<2x512xf32>
    %c2_387 = arith.constant 2 : index
    %c0_388 = arith.constant 0 : index
    %c0_389 = arith.constant 0 : index
    %561 = vector.load %arg18[%c2_387, %c0_388, %c0_389] : memref<4x1x512xf32, #tpu.memory_space<vmem>>, vector<1x1x512xf32>
    %562 = vector.shape_cast %561 : vector<1x1x512xf32> to vector<1x512xf32>
    %563 = vector.broadcast %562 : vector<1x512xf32> to vector<2x512xf32>
    %564 = arith.addf %560, %563 : vector<2x512xf32>
    %cst_390 = arith.constant 0.000000e+00 : f32
    %565 = vector.broadcast %cst_390 : f32 to vector<2x512xf32>
    %566 = arith.maximumf %564, %565 : vector<2x512xf32>
    %567 = arith.truncf %566 : vector<2x512xf32> to vector<2x512xbf16>
    %c2_391 = arith.constant 2 : index
    %c0_392 = arith.constant 0 : index
    %c0_393 = arith.constant 0 : index
    %568 = vector.load %arg19[%c2_391, %c0_392, %c0_393] : memref<4x512x24xbf16, #tpu.memory_space<vmem>>, vector<1x512x24xbf16>
    %569 = vector.shape_cast %568 : vector<1x512x24xbf16> to vector<512x24xbf16>
    %cst_394 = arith.constant dense<0.000000e+00> : vector<2x24xf32>
    %570 = tpu.matmul %567, %569, %cst_394 {dimension_numbers = #tpu.dot_dimension_numbers<[1], [0], [0], [1], [0, 0, 1, 1], [], []>} : vector<2x512xbf16>, vector<512x24xbf16>, vector<2x24xf32> -> vector<2x24xf32>
    %c2_395 = arith.constant 2 : index
    %c0_396 = arith.constant 0 : index
    %c0_397 = arith.constant 0 : index
    %571 = vector.load %arg20[%c2_395, %c0_396, %c0_397] : memref<4x1x24xf32, #tpu.memory_space<vmem>>, vector<1x1x24xf32>
    %572 = vector.shape_cast %571 : vector<1x1x24xf32> to vector<1x24xf32>
    %573 = vector.broadcast %572 : vector<1x24xf32> to vector<2x24xf32>
    %574 = arith.addf %570, %573 : vector<2x24xf32>
    %575 = arith.addf %556, %574 : vector<2x24xf32>
    %c2_398 = arith.constant 2 : index
    %c0_399 = arith.constant 0 : index
    %c0_400 = arith.constant 0 : index
    %576 = vector.load %arg23[%c2_398, %c0_399, %c0_400] : memref<4x1x24xf32, #tpu.memory_space<vmem>>, vector<1x1x24xf32>
    %577 = vector.shape_cast %576 : vector<1x1x24xf32> to vector<1x24xf32>
    %c2_401 = arith.constant 2 : index
    %c0_402 = arith.constant 0 : index
    %c0_403 = arith.constant 0 : index
    %578 = vector.load %arg24[%c2_401, %c0_402, %c0_403] : memref<4x1x24xf32, #tpu.memory_space<vmem>>, vector<1x1x24xf32>
    %579 = vector.shape_cast %578 : vector<1x1x24xf32> to vector<1x24xf32>
    %cst_404 = arith.constant dense<0.000000e+00> : vector<2xf32>
    %580 = vector.multi_reduction <add>, %575, %cst_404 [1] : vector<2x24xf32> to vector<2xf32>
    %581 = vector.shape_cast %580 : vector<2xf32> to vector<2x1xf32>
    %cst_405 = arith.constant 2.400000e+01 : f32
    %582 = vector.broadcast %cst_405 : f32 to vector<2x1xf32>
    %583 = arith.divf %581, %582 : vector<2x1xf32>
    %584 = vector.broadcast %583 : vector<2x1xf32> to vector<2x24xf32>
    %585 = arith.subf %575, %584 : vector<2x24xf32>
    %586 = arith.mulf %585, %585 : vector<2x24xf32>
    %cst_406 = arith.constant dense<0.000000e+00> : vector<2xf32>
    %587 = vector.multi_reduction <add>, %586, %cst_406 [1] : vector<2x24xf32> to vector<2xf32>
    %588 = vector.shape_cast %587 : vector<2xf32> to vector<2x1xf32>
    %cst_407 = arith.constant 2.400000e+01 : f32
    %589 = vector.broadcast %cst_407 : f32 to vector<2x1xf32>
    %590 = arith.divf %588, %589 : vector<2x1xf32>
    %591 = vector.broadcast %583 : vector<2x1xf32> to vector<2x24xf32>
    %592 = arith.subf %575, %591 : vector<2x24xf32>
    %cst_408 = arith.constant 9.99999974E-6 : f32
    %593 = vector.broadcast %cst_408 : f32 to vector<2x1xf32>
    %594 = arith.addf %590, %593 : vector<2x1xf32>
    %595 = math.rsqrt %594 : vector<2x1xf32>
    %596 = vector.broadcast %595 : vector<2x1xf32> to vector<2x24xf32>
    %597 = arith.mulf %592, %596 : vector<2x24xf32>
    %598 = vector.broadcast %577 : vector<1x24xf32> to vector<2x24xf32>
    %599 = arith.mulf %597, %598 : vector<2x24xf32>
    %600 = vector.broadcast %579 : vector<1x24xf32> to vector<2x24xf32>
    %601 = arith.addf %599, %600 : vector<2x24xf32>
    %cst_409 = arith.constant 0.000000e+00 : f32
    %602 = vector.broadcast %cst_409 : f32 to vector<2x24xf32>
    %c9 = arith.constant 9 : index
    %c0_410 = arith.constant 0 : index
    %c0_411 = arith.constant 0 : index
    %603 = vector.load %arg9[%c9, %c0_410, %c0_411] : memref<12x24x8xf32, #tpu.memory_space<vmem>>, vector<1x24x8xf32>
    %604 = vector.shape_cast %603 : vector<1x24x8xf32> to vector<24x8xf32>
    %cst_412 = arith.constant dense<0.000000e+00> : vector<2x8xf32>
    %605 = tpu.matmul %601, %604, %cst_412 {dimension_numbers = #tpu.dot_dimension_numbers<[1], [0], [0], [1], [0, 0, 1, 1], [], []>} : vector<2x24xf32>, vector<24x8xf32>, vector<2x8xf32> -> vector<2x8xf32>
    %c9_413 = arith.constant 9 : index
    %c0_414 = arith.constant 0 : index
    %c0_415 = arith.constant 0 : index
    %606 = vector.load %arg13[%c9_413, %c0_414, %c0_415] : memref<12x1x8xf32, #tpu.memory_space<vmem>>, vector<1x1x8xf32>
    %607 = vector.shape_cast %606 : vector<1x1x8xf32> to vector<1x8xf32>
    %608 = vector.broadcast %607 : vector<1x8xf32> to vector<2x8xf32>
    %609 = arith.addf %605, %608 : vector<2x8xf32>
    %c9_416 = arith.constant 9 : index
    %c0_417 = arith.constant 0 : index
    %c0_418 = arith.constant 0 : index
    %610 = vector.load %arg10[%c9_416, %c0_417, %c0_418] : memref<12x24x8xf32, #tpu.memory_space<vmem>>, vector<1x24x8xf32>
    %611 = vector.shape_cast %610 : vector<1x24x8xf32> to vector<24x8xf32>
    %cst_419 = arith.constant dense<0.000000e+00> : vector<2x8xf32>
    %612 = tpu.matmul %601, %611, %cst_419 {dimension_numbers = #tpu.dot_dimension_numbers<[1], [0], [0], [1], [0, 0, 1, 1], [], []>} : vector<2x24xf32>, vector<24x8xf32>, vector<2x8xf32> -> vector<2x8xf32>
    %c9_420 = arith.constant 9 : index
    %c0_421 = arith.constant 0 : index
    %c0_422 = arith.constant 0 : index
    %613 = vector.load %arg14[%c9_420, %c0_421, %c0_422] : memref<12x1x8xf32, #tpu.memory_space<vmem>>, vector<1x1x8xf32>
    %614 = vector.shape_cast %613 : vector<1x1x8xf32> to vector<1x8xf32>
    %615 = vector.broadcast %614 : vector<1x8xf32> to vector<2x8xf32>
    %616 = arith.addf %612, %615 : vector<2x8xf32>
    %c9_423 = arith.constant 9 : index
    %c0_424 = arith.constant 0 : index
    %c0_425 = arith.constant 0 : index
    %617 = vector.load %arg11[%c9_423, %c0_424, %c0_425] : memref<12x24x8xf32, #tpu.memory_space<vmem>>, vector<1x24x8xf32>
    %618 = vector.shape_cast %617 : vector<1x24x8xf32> to vector<24x8xf32>
    %cst_426 = arith.constant dense<0.000000e+00> : vector<2x8xf32>
    %619 = tpu.matmul %601, %618, %cst_426 {dimension_numbers = #tpu.dot_dimension_numbers<[1], [0], [0], [1], [0, 0, 1, 1], [], []>} : vector<2x24xf32>, vector<24x8xf32>, vector<2x8xf32> -> vector<2x8xf32>
    %c9_427 = arith.constant 9 : index
    %c0_428 = arith.constant 0 : index
    %c0_429 = arith.constant 0 : index
    %620 = vector.load %arg15[%c9_427, %c0_428, %c0_429] : memref<12x1x8xf32, #tpu.memory_space<vmem>>, vector<1x1x8xf32>
    %621 = vector.shape_cast %620 : vector<1x1x8xf32> to vector<1x8xf32>
    %622 = vector.broadcast %621 : vector<1x8xf32> to vector<2x8xf32>
    %623 = arith.addf %619, %622 : vector<2x8xf32>
    %cst_430 = arith.constant dense<0.000000e+00> : vector<2x2xf32>
    %624 = tpu.matmul %609, %616, %cst_430 {dimension_numbers = #tpu.dot_dimension_numbers<[1], [1], [0], [0], [0, 0, 1, 0], [], []>} : vector<2x8xf32>, vector<2x8xf32>, vector<2x2xf32> -> vector<2x2xf32>
    %cst_431 = arith.constant 0.353553385 : f32
    %625 = vector.broadcast %cst_431 : f32 to vector<2x2xf32>
    %626 = arith.mulf %624, %625 : vector<2x2xf32>
    %cst_432 = arith.constant dense<0xFF800000> : vector<2xf32>
    %627 = vector.multi_reduction <maximumf>, %626, %cst_432 [1] : vector<2x2xf32> to vector<2xf32>
    %628 = vector.shape_cast %627 : vector<2xf32> to vector<2x1xf32>
    %629 = vector.broadcast %628 : vector<2x1xf32> to vector<2x2xf32>
    %630 = arith.subf %626, %629 : vector<2x2xf32>
    %631 = math.exp %630 : vector<2x2xf32>
    %cst_433 = arith.constant dense<0.000000e+00> : vector<2xf32>
    %632 = vector.multi_reduction <add>, %631, %cst_433 [1] : vector<2x2xf32> to vector<2xf32>
    %633 = vector.shape_cast %632 : vector<2xf32> to vector<2x1xf32>
    %634 = vector.broadcast %633 : vector<2x1xf32> to vector<2x2xf32>
    %635 = arith.divf %631, %634 : vector<2x2xf32>
    %cst_434 = arith.constant dense<0.000000e+00> : vector<2x8xf32>
    %636 = tpu.matmul %635, %623, %cst_434 {dimension_numbers = #tpu.dot_dimension_numbers<[1], [0], [0], [1], [0, 0, 1, 1], [], []>} : vector<2x2xf32>, vector<2x8xf32>, vector<2x8xf32> -> vector<2x8xf32>
    %c9_435 = arith.constant 9 : index
    %c0_436 = arith.constant 0 : index
    %c0_437 = arith.constant 0 : index
    %637 = vector.load %arg12[%c9_435, %c0_436, %c0_437] : memref<12x8x24xf32, #tpu.memory_space<vmem>>, vector<1x8x24xf32>
    %638 = vector.shape_cast %637 : vector<1x8x24xf32> to vector<8x24xf32>
    %cst_438 = arith.constant dense<0.000000e+00> : vector<2x24xf32>
    %639 = tpu.matmul %636, %638, %cst_438 {dimension_numbers = #tpu.dot_dimension_numbers<[1], [0], [0], [1], [0, 0, 1, 1], [], []>} : vector<2x8xf32>, vector<8x24xf32>, vector<2x24xf32> -> vector<2x24xf32>
    %640 = arith.addf %602, %639 : vector<2x24xf32>
    %c10 = arith.constant 10 : index
    %c0_439 = arith.constant 0 : index
    %c0_440 = arith.constant 0 : index
    %641 = vector.load %arg9[%c10, %c0_439, %c0_440] : memref<12x24x8xf32, #tpu.memory_space<vmem>>, vector<1x24x8xf32>
    %642 = vector.shape_cast %641 : vector<1x24x8xf32> to vector<24x8xf32>
    %cst_441 = arith.constant dense<0.000000e+00> : vector<2x8xf32>
    %643 = tpu.matmul %601, %642, %cst_441 {dimension_numbers = #tpu.dot_dimension_numbers<[1], [0], [0], [1], [0, 0, 1, 1], [], []>} : vector<2x24xf32>, vector<24x8xf32>, vector<2x8xf32> -> vector<2x8xf32>
    %c10_442 = arith.constant 10 : index
    %c0_443 = arith.constant 0 : index
    %c0_444 = arith.constant 0 : index
    %644 = vector.load %arg13[%c10_442, %c0_443, %c0_444] : memref<12x1x8xf32, #tpu.memory_space<vmem>>, vector<1x1x8xf32>
    %645 = vector.shape_cast %644 : vector<1x1x8xf32> to vector<1x8xf32>
    %646 = vector.broadcast %645 : vector<1x8xf32> to vector<2x8xf32>
    %647 = arith.addf %643, %646 : vector<2x8xf32>
    %c10_445 = arith.constant 10 : index
    %c0_446 = arith.constant 0 : index
    %c0_447 = arith.constant 0 : index
    %648 = vector.load %arg10[%c10_445, %c0_446, %c0_447] : memref<12x24x8xf32, #tpu.memory_space<vmem>>, vector<1x24x8xf32>
    %649 = vector.shape_cast %648 : vector<1x24x8xf32> to vector<24x8xf32>
    %cst_448 = arith.constant dense<0.000000e+00> : vector<2x8xf32>
    %650 = tpu.matmul %601, %649, %cst_448 {dimension_numbers = #tpu.dot_dimension_numbers<[1], [0], [0], [1], [0, 0, 1, 1], [], []>} : vector<2x24xf32>, vector<24x8xf32>, vector<2x8xf32> -> vector<2x8xf32>
    %c10_449 = arith.constant 10 : index
    %c0_450 = arith.constant 0 : index
    %c0_451 = arith.constant 0 : index
    %651 = vector.load %arg14[%c10_449, %c0_450, %c0_451] : memref<12x1x8xf32, #tpu.memory_space<vmem>>, vector<1x1x8xf32>
    %652 = vector.shape_cast %651 : vector<1x1x8xf32> to vector<1x8xf32>
    %653 = vector.broadcast %652 : vector<1x8xf32> to vector<2x8xf32>
    %654 = arith.addf %650, %653 : vector<2x8xf32>
    %c10_452 = arith.constant 10 : index
    %c0_453 = arith.constant 0 : index
    %c0_454 = arith.constant 0 : index
    %655 = vector.load %arg11[%c10_452, %c0_453, %c0_454] : memref<12x24x8xf32, #tpu.memory_space<vmem>>, vector<1x24x8xf32>
    %656 = vector.shape_cast %655 : vector<1x24x8xf32> to vector<24x8xf32>
    %cst_455 = arith.constant dense<0.000000e+00> : vector<2x8xf32>
    %657 = tpu.matmul %601, %656, %cst_455 {dimension_numbers = #tpu.dot_dimension_numbers<[1], [0], [0], [1], [0, 0, 1, 1], [], []>} : vector<2x24xf32>, vector<24x8xf32>, vector<2x8xf32> -> vector<2x8xf32>
    %c10_456 = arith.constant 10 : index
    %c0_457 = arith.constant 0 : index
    %c0_458 = arith.constant 0 : index
    %658 = vector.load %arg15[%c10_456, %c0_457, %c0_458] : memref<12x1x8xf32, #tpu.memory_space<vmem>>, vector<1x1x8xf32>
    %659 = vector.shape_cast %658 : vector<1x1x8xf32> to vector<1x8xf32>
    %660 = vector.broadcast %659 : vector<1x8xf32> to vector<2x8xf32>
    %661 = arith.addf %657, %660 : vector<2x8xf32>
    %cst_459 = arith.constant dense<0.000000e+00> : vector<2x2xf32>
    %662 = tpu.matmul %647, %654, %cst_459 {dimension_numbers = #tpu.dot_dimension_numbers<[1], [1], [0], [0], [0, 0, 1, 0], [], []>} : vector<2x8xf32>, vector<2x8xf32>, vector<2x2xf32> -> vector<2x2xf32>
    %cst_460 = arith.constant 0.353553385 : f32
    %663 = vector.broadcast %cst_460 : f32 to vector<2x2xf32>
    %664 = arith.mulf %662, %663 : vector<2x2xf32>
    %cst_461 = arith.constant dense<0xFF800000> : vector<2xf32>
    %665 = vector.multi_reduction <maximumf>, %664, %cst_461 [1] : vector<2x2xf32> to vector<2xf32>
    %666 = vector.shape_cast %665 : vector<2xf32> to vector<2x1xf32>
    %667 = vector.broadcast %666 : vector<2x1xf32> to vector<2x2xf32>
    %668 = arith.subf %664, %667 : vector<2x2xf32>
    %669 = math.exp %668 : vector<2x2xf32>
    %cst_462 = arith.constant dense<0.000000e+00> : vector<2xf32>
    %670 = vector.multi_reduction <add>, %669, %cst_462 [1] : vector<2x2xf32> to vector<2xf32>
    %671 = vector.shape_cast %670 : vector<2xf32> to vector<2x1xf32>
    %672 = vector.broadcast %671 : vector<2x1xf32> to vector<2x2xf32>
    %673 = arith.divf %669, %672 : vector<2x2xf32>
    %cst_463 = arith.constant dense<0.000000e+00> : vector<2x8xf32>
    %674 = tpu.matmul %673, %661, %cst_463 {dimension_numbers = #tpu.dot_dimension_numbers<[1], [0], [0], [1], [0, 0, 1, 1], [], []>} : vector<2x2xf32>, vector<2x8xf32>, vector<2x8xf32> -> vector<2x8xf32>
    %c10_464 = arith.constant 10 : index
    %c0_465 = arith.constant 0 : index
    %c0_466 = arith.constant 0 : index
    %675 = vector.load %arg12[%c10_464, %c0_465, %c0_466] : memref<12x8x24xf32, #tpu.memory_space<vmem>>, vector<1x8x24xf32>
    %676 = vector.shape_cast %675 : vector<1x8x24xf32> to vector<8x24xf32>
    %cst_467 = arith.constant dense<0.000000e+00> : vector<2x24xf32>
    %677 = tpu.matmul %674, %676, %cst_467 {dimension_numbers = #tpu.dot_dimension_numbers<[1], [0], [0], [1], [0, 0, 1, 1], [], []>} : vector<2x8xf32>, vector<8x24xf32>, vector<2x24xf32> -> vector<2x24xf32>
    %678 = arith.addf %640, %677 : vector<2x24xf32>
    %c11 = arith.constant 11 : index
    %c0_468 = arith.constant 0 : index
    %c0_469 = arith.constant 0 : index
    %679 = vector.load %arg9[%c11, %c0_468, %c0_469] : memref<12x24x8xf32, #tpu.memory_space<vmem>>, vector<1x24x8xf32>
    %680 = vector.shape_cast %679 : vector<1x24x8xf32> to vector<24x8xf32>
    %cst_470 = arith.constant dense<0.000000e+00> : vector<2x8xf32>
    %681 = tpu.matmul %601, %680, %cst_470 {dimension_numbers = #tpu.dot_dimension_numbers<[1], [0], [0], [1], [0, 0, 1, 1], [], []>} : vector<2x24xf32>, vector<24x8xf32>, vector<2x8xf32> -> vector<2x8xf32>
    %c11_471 = arith.constant 11 : index
    %c0_472 = arith.constant 0 : index
    %c0_473 = arith.constant 0 : index
    %682 = vector.load %arg13[%c11_471, %c0_472, %c0_473] : memref<12x1x8xf32, #tpu.memory_space<vmem>>, vector<1x1x8xf32>
    %683 = vector.shape_cast %682 : vector<1x1x8xf32> to vector<1x8xf32>
    %684 = vector.broadcast %683 : vector<1x8xf32> to vector<2x8xf32>
    %685 = arith.addf %681, %684 : vector<2x8xf32>
    %c11_474 = arith.constant 11 : index
    %c0_475 = arith.constant 0 : index
    %c0_476 = arith.constant 0 : index
    %686 = vector.load %arg10[%c11_474, %c0_475, %c0_476] : memref<12x24x8xf32, #tpu.memory_space<vmem>>, vector<1x24x8xf32>
    %687 = vector.shape_cast %686 : vector<1x24x8xf32> to vector<24x8xf32>
    %cst_477 = arith.constant dense<0.000000e+00> : vector<2x8xf32>
    %688 = tpu.matmul %601, %687, %cst_477 {dimension_numbers = #tpu.dot_dimension_numbers<[1], [0], [0], [1], [0, 0, 1, 1], [], []>} : vector<2x24xf32>, vector<24x8xf32>, vector<2x8xf32> -> vector<2x8xf32>
    %c11_478 = arith.constant 11 : index
    %c0_479 = arith.constant 0 : index
    %c0_480 = arith.constant 0 : index
    %689 = vector.load %arg14[%c11_478, %c0_479, %c0_480] : memref<12x1x8xf32, #tpu.memory_space<vmem>>, vector<1x1x8xf32>
    %690 = vector.shape_cast %689 : vector<1x1x8xf32> to vector<1x8xf32>
    %691 = vector.broadcast %690 : vector<1x8xf32> to vector<2x8xf32>
    %692 = arith.addf %688, %691 : vector<2x8xf32>
    %c11_481 = arith.constant 11 : index
    %c0_482 = arith.constant 0 : index
    %c0_483 = arith.constant 0 : index
    %693 = vector.load %arg11[%c11_481, %c0_482, %c0_483] : memref<12x24x8xf32, #tpu.memory_space<vmem>>, vector<1x24x8xf32>
    %694 = vector.shape_cast %693 : vector<1x24x8xf32> to vector<24x8xf32>
    %cst_484 = arith.constant dense<0.000000e+00> : vector<2x8xf32>
    %695 = tpu.matmul %601, %694, %cst_484 {dimension_numbers = #tpu.dot_dimension_numbers<[1], [0], [0], [1], [0, 0, 1, 1], [], []>} : vector<2x24xf32>, vector<24x8xf32>, vector<2x8xf32> -> vector<2x8xf32>
    %c11_485 = arith.constant 11 : index
    %c0_486 = arith.constant 0 : index
    %c0_487 = arith.constant 0 : index
    %696 = vector.load %arg15[%c11_485, %c0_486, %c0_487] : memref<12x1x8xf32, #tpu.memory_space<vmem>>, vector<1x1x8xf32>
    %697 = vector.shape_cast %696 : vector<1x1x8xf32> to vector<1x8xf32>
    %698 = vector.broadcast %697 : vector<1x8xf32> to vector<2x8xf32>
    %699 = arith.addf %695, %698 : vector<2x8xf32>
    %cst_488 = arith.constant dense<0.000000e+00> : vector<2x2xf32>
    %700 = tpu.matmul %685, %692, %cst_488 {dimension_numbers = #tpu.dot_dimension_numbers<[1], [1], [0], [0], [0, 0, 1, 0], [], []>} : vector<2x8xf32>, vector<2x8xf32>, vector<2x2xf32> -> vector<2x2xf32>
    %cst_489 = arith.constant 0.353553385 : f32
    %701 = vector.broadcast %cst_489 : f32 to vector<2x2xf32>
    %702 = arith.mulf %700, %701 : vector<2x2xf32>
    %cst_490 = arith.constant dense<0xFF800000> : vector<2xf32>
    %703 = vector.multi_reduction <maximumf>, %702, %cst_490 [1] : vector<2x2xf32> to vector<2xf32>
    %704 = vector.shape_cast %703 : vector<2xf32> to vector<2x1xf32>
    %705 = vector.broadcast %704 : vector<2x1xf32> to vector<2x2xf32>
    %706 = arith.subf %702, %705 : vector<2x2xf32>
    %707 = math.exp %706 : vector<2x2xf32>
    %cst_491 = arith.constant dense<0.000000e+00> : vector<2xf32>
    %708 = vector.multi_reduction <add>, %707, %cst_491 [1] : vector<2x2xf32> to vector<2xf32>
    %709 = vector.shape_cast %708 : vector<2xf32> to vector<2x1xf32>
    %710 = vector.broadcast %709 : vector<2x1xf32> to vector<2x2xf32>
    %711 = arith.divf %707, %710 : vector<2x2xf32>
    %cst_492 = arith.constant dense<0.000000e+00> : vector<2x8xf32>
    %712 = tpu.matmul %711, %699, %cst_492 {dimension_numbers = #tpu.dot_dimension_numbers<[1], [0], [0], [1], [0, 0, 1, 1], [], []>} : vector<2x2xf32>, vector<2x8xf32>, vector<2x8xf32> -> vector<2x8xf32>
    %c11_493 = arith.constant 11 : index
    %c0_494 = arith.constant 0 : index
    %c0_495 = arith.constant 0 : index
    %713 = vector.load %arg12[%c11_493, %c0_494, %c0_495] : memref<12x8x24xf32, #tpu.memory_space<vmem>>, vector<1x8x24xf32>
    %714 = vector.shape_cast %713 : vector<1x8x24xf32> to vector<8x24xf32>
    %cst_496 = arith.constant dense<0.000000e+00> : vector<2x24xf32>
    %715 = tpu.matmul %712, %714, %cst_496 {dimension_numbers = #tpu.dot_dimension_numbers<[1], [0], [0], [1], [0, 0, 1, 1], [], []>} : vector<2x8xf32>, vector<8x24xf32>, vector<2x24xf32> -> vector<2x24xf32>
    %716 = arith.addf %678, %715 : vector<2x24xf32>
    %717 = arith.addf %601, %716 : vector<2x24xf32>
    %c3_497 = arith.constant 3 : index
    %c0_498 = arith.constant 0 : index
    %c0_499 = arith.constant 0 : index
    %718 = vector.load %arg16[%c3_497, %c0_498, %c0_499] : memref<4x1x24xf32, #tpu.memory_space<vmem>>, vector<1x1x24xf32>
    %719 = vector.shape_cast %718 : vector<1x1x24xf32> to vector<1x24xf32>
    %720 = vector.broadcast %719 : vector<1x24xf32> to vector<2x24xf32>
    %721 = arith.addf %717, %720 : vector<2x24xf32>
    %c3_500 = arith.constant 3 : index
    %c0_501 = arith.constant 0 : index
    %c0_502 = arith.constant 0 : index
    %722 = vector.load %arg21[%c3_500, %c0_501, %c0_502] : memref<4x1x24xf32, #tpu.memory_space<vmem>>, vector<1x1x24xf32>
    %723 = vector.shape_cast %722 : vector<1x1x24xf32> to vector<1x24xf32>
    %c3_503 = arith.constant 3 : index
    %c0_504 = arith.constant 0 : index
    %c0_505 = arith.constant 0 : index
    %724 = vector.load %arg22[%c3_503, %c0_504, %c0_505] : memref<4x1x24xf32, #tpu.memory_space<vmem>>, vector<1x1x24xf32>
    %725 = vector.shape_cast %724 : vector<1x1x24xf32> to vector<1x24xf32>
    %cst_506 = arith.constant dense<0.000000e+00> : vector<2xf32>
    %726 = vector.multi_reduction <add>, %721, %cst_506 [1] : vector<2x24xf32> to vector<2xf32>
    %727 = vector.shape_cast %726 : vector<2xf32> to vector<2x1xf32>
    %cst_507 = arith.constant 2.400000e+01 : f32
    %728 = vector.broadcast %cst_507 : f32 to vector<2x1xf32>
    %729 = arith.divf %727, %728 : vector<2x1xf32>
    %730 = vector.broadcast %729 : vector<2x1xf32> to vector<2x24xf32>
    %731 = arith.subf %721, %730 : vector<2x24xf32>
    %732 = arith.mulf %731, %731 : vector<2x24xf32>
    %cst_508 = arith.constant dense<0.000000e+00> : vector<2xf32>
    %733 = vector.multi_reduction <add>, %732, %cst_508 [1] : vector<2x24xf32> to vector<2xf32>
    %734 = vector.shape_cast %733 : vector<2xf32> to vector<2x1xf32>
    %cst_509 = arith.constant 2.400000e+01 : f32
    %735 = vector.broadcast %cst_509 : f32 to vector<2x1xf32>
    %736 = arith.divf %734, %735 : vector<2x1xf32>
    %737 = vector.broadcast %729 : vector<2x1xf32> to vector<2x24xf32>
    %738 = arith.subf %721, %737 : vector<2x24xf32>
    %cst_510 = arith.constant 9.99999974E-6 : f32
    %739 = vector.broadcast %cst_510 : f32 to vector<2x1xf32>
    %740 = arith.addf %736, %739 : vector<2x1xf32>
    %741 = math.rsqrt %740 : vector<2x1xf32>
    %742 = vector.broadcast %741 : vector<2x1xf32> to vector<2x24xf32>
    %743 = arith.mulf %738, %742 : vector<2x24xf32>
    %744 = vector.broadcast %723 : vector<1x24xf32> to vector<2x24xf32>
    %745 = arith.mulf %743, %744 : vector<2x24xf32>
    %746 = vector.broadcast %725 : vector<1x24xf32> to vector<2x24xf32>
    %747 = arith.addf %745, %746 : vector<2x24xf32>
    %748 = arith.truncf %747 : vector<2x24xf32> to vector<2x24xbf16>
    %c3_511 = arith.constant 3 : index
    %c0_512 = arith.constant 0 : index
    %c0_513 = arith.constant 0 : index
    %749 = vector.load %arg17[%c3_511, %c0_512, %c0_513] : memref<4x24x512xbf16, #tpu.memory_space<vmem>>, vector<1x24x512xbf16>
    %750 = vector.shape_cast %749 : vector<1x24x512xbf16> to vector<24x512xbf16>
    %cst_514 = arith.constant dense<0.000000e+00> : vector<2x512xf32>
    %751 = tpu.matmul %748, %750, %cst_514 {dimension_numbers = #tpu.dot_dimension_numbers<[1], [0], [0], [1], [0, 0, 1, 1], [], []>} : vector<2x24xbf16>, vector<24x512xbf16>, vector<2x512xf32> -> vector<2x512xf32>
    %c3_515 = arith.constant 3 : index
    %c0_516 = arith.constant 0 : index
    %c0_517 = arith.constant 0 : index
    %752 = vector.load %arg18[%c3_515, %c0_516, %c0_517] : memref<4x1x512xf32, #tpu.memory_space<vmem>>, vector<1x1x512xf32>
    %753 = vector.shape_cast %752 : vector<1x1x512xf32> to vector<1x512xf32>
    %754 = vector.broadcast %753 : vector<1x512xf32> to vector<2x512xf32>
    %755 = arith.addf %751, %754 : vector<2x512xf32>
    %cst_518 = arith.constant 0.000000e+00 : f32
    %756 = vector.broadcast %cst_518 : f32 to vector<2x512xf32>
    %757 = arith.maximumf %755, %756 : vector<2x512xf32>
    %758 = arith.truncf %757 : vector<2x512xf32> to vector<2x512xbf16>
    %c3_519 = arith.constant 3 : index
    %c0_520 = arith.constant 0 : index
    %c0_521 = arith.constant 0 : index
    %759 = vector.load %arg19[%c3_519, %c0_520, %c0_521] : memref<4x512x24xbf16, #tpu.memory_space<vmem>>, vector<1x512x24xbf16>
    %760 = vector.shape_cast %759 : vector<1x512x24xbf16> to vector<512x24xbf16>
    %cst_522 = arith.constant dense<0.000000e+00> : vector<2x24xf32>
    %761 = tpu.matmul %758, %760, %cst_522 {dimension_numbers = #tpu.dot_dimension_numbers<[1], [0], [0], [1], [0, 0, 1, 1], [], []>} : vector<2x512xbf16>, vector<512x24xbf16>, vector<2x24xf32> -> vector<2x24xf32>
    %c3_523 = arith.constant 3 : index
    %c0_524 = arith.constant 0 : index
    %c0_525 = arith.constant 0 : index
    %762 = vector.load %arg20[%c3_523, %c0_524, %c0_525] : memref<4x1x24xf32, #tpu.memory_space<vmem>>, vector<1x1x24xf32>
    %763 = vector.shape_cast %762 : vector<1x1x24xf32> to vector<1x24xf32>
    %764 = vector.broadcast %763 : vector<1x24xf32> to vector<2x24xf32>
    %765 = arith.addf %761, %764 : vector<2x24xf32>
    %766 = arith.addf %747, %765 : vector<2x24xf32>
    %c3_526 = arith.constant 3 : index
    %c0_527 = arith.constant 0 : index
    %c0_528 = arith.constant 0 : index
    %767 = vector.load %arg23[%c3_526, %c0_527, %c0_528] : memref<4x1x24xf32, #tpu.memory_space<vmem>>, vector<1x1x24xf32>
    %768 = vector.shape_cast %767 : vector<1x1x24xf32> to vector<1x24xf32>
    %c3_529 = arith.constant 3 : index
    %c0_530 = arith.constant 0 : index
    %c0_531 = arith.constant 0 : index
    %769 = vector.load %arg24[%c3_529, %c0_530, %c0_531] : memref<4x1x24xf32, #tpu.memory_space<vmem>>, vector<1x1x24xf32>
    %770 = vector.shape_cast %769 : vector<1x1x24xf32> to vector<1x24xf32>
    %cst_532 = arith.constant dense<0.000000e+00> : vector<2xf32>
    %771 = vector.multi_reduction <add>, %766, %cst_532 [1] : vector<2x24xf32> to vector<2xf32>
    %772 = vector.shape_cast %771 : vector<2xf32> to vector<2x1xf32>
    %cst_533 = arith.constant 2.400000e+01 : f32
    %773 = vector.broadcast %cst_533 : f32 to vector<2x1xf32>
    %774 = arith.divf %772, %773 : vector<2x1xf32>
    %775 = vector.broadcast %774 : vector<2x1xf32> to vector<2x24xf32>
    %776 = arith.subf %766, %775 : vector<2x24xf32>
    %777 = arith.mulf %776, %776 : vector<2x24xf32>
    %cst_534 = arith.constant dense<0.000000e+00> : vector<2xf32>
    %778 = vector.multi_reduction <add>, %777, %cst_534 [1] : vector<2x24xf32> to vector<2xf32>
    %779 = vector.shape_cast %778 : vector<2xf32> to vector<2x1xf32>
    %cst_535 = arith.constant 2.400000e+01 : f32
    %780 = vector.broadcast %cst_535 : f32 to vector<2x1xf32>
    %781 = arith.divf %779, %780 : vector<2x1xf32>
    %782 = vector.broadcast %774 : vector<2x1xf32> to vector<2x24xf32>
    %783 = arith.subf %766, %782 : vector<2x24xf32>
    %cst_536 = arith.constant 9.99999974E-6 : f32
    %784 = vector.broadcast %cst_536 : f32 to vector<2x1xf32>
    %785 = arith.addf %781, %784 : vector<2x1xf32>
    %786 = math.rsqrt %785 : vector<2x1xf32>
    %787 = vector.broadcast %786 : vector<2x1xf32> to vector<2x24xf32>
    %788 = arith.mulf %783, %787 : vector<2x24xf32>
    %789 = vector.broadcast %768 : vector<1x24xf32> to vector<2x24xf32>
    %790 = arith.mulf %788, %789 : vector<2x24xf32>
    %791 = vector.broadcast %770 : vector<1x24xf32> to vector<2x24xf32>
    %792 = arith.addf %790, %791 : vector<2x24xf32>
    %c0_537 = arith.constant 0 : index
    %c0_538 = arith.constant 0 : index
    %793 = vector.load %arg25[%c0_537, %c0_538] : memref<24x12xf32, #tpu.memory_space<vmem>>, vector<24x12xf32>
    %cst_539 = arith.constant dense<0.000000e+00> : vector<2x12xf32>
    %794 = tpu.matmul %792, %793, %cst_539 {dimension_numbers = #tpu.dot_dimension_numbers<[1], [0], [0], [1], [0, 0, 1, 1], [], []>} : vector<2x24xf32>, vector<24x12xf32>, vector<2x12xf32> -> vector<2x12xf32>
    %c0_540 = arith.constant 0 : index
    %c0_541 = arith.constant 0 : index
    %795 = vector.load %arg26[%c0_540, %c0_541] : memref<1x12xf32, #tpu.memory_space<vmem>>, vector<1x12xf32>
    %796 = vector.broadcast %795 : vector<1x12xf32> to vector<2x12xf32>
    %797 = arith.addf %794, %796 : vector<2x12xf32>
    %c0_542 = arith.constant 0 : index
    %c0_543 = arith.constant 0 : index
    %798 = vector.load %arg27[%c0_542, %c0_543] : memref<2x12xf32, #tpu.memory_space<vmem>>, vector<2x12xf32>
    tpu.vector_store %arg27[%c0_542, %c0_543], %797 {strides = array<i32>} : memref<2x12xf32, #tpu.memory_space<vmem>>, vector<2x12xf32>,
    return
  }
}

</mosaic_0001>

<llo_original>
// kernel: tile.23
$region0: #{tile.23}
  #allocation0 [shape = 's32[1]{0}', space=sflag, size = 0x4, scoped, tag = 'scoped memory for tile.23']
  %s0 = inlined_call_operand.vmem [shape: f32[18], index: 0, kind: input, shape index: {}]
  %s1 = inlined_call_operand.vmem [shape: f32[6,18], index: 1, kind: output, shape index: {}]
  // Predicated region
  $region2: #{tile.23} parent=0 // pred_check
    _
  $region3: #{tile.23} parent=0 // pred_check_branch
    %3 = sbr.rel (0) target = $region5
  $region4: #{tile.23} parent=0 // pred_region
    _
  $region5: #{tile.23} parent=0 // pred_fallthru
    _
  %v4 = vld [vmem:[%s0] ss:$0 sm:$0xff]
  %5 = vst [vmem:[%s1] sm:$0xff] %v4

// kernel: tile.28
$region0: #{tile.28}
  #allocation0 [shape = 's32[1]{0}', space=sflag, size = 0x4, scoped, tag = 'scoped memory for tile.28']
  %s0 = inlined_call_operand.vmem [shape: f32[12], index: 0, kind: input, shape index: {}]
  %s1 = inlined_call_operand.vmem [shape: f32[6,12], index: 1, kind: output, shape index: {}]
  // Predicated region
  $region2: #{tile.28} parent=0 // pred_check
    _
  $region3: #{tile.28} parent=0 // pred_check_branch
    %3 = sbr.rel (0) target = $region5
  $region4: #{tile.28} parent=0 // pred_region
    _
  $region5: #{tile.28} parent=0 // pred_fallthru
    _
  %v4 = vld [vmem:[%s0] ss:$0 sm:$0xff]
  %5 = vst [vmem:[%s1] sm:$0xff] %v4

// kernel: tile.24
$region0: #{tile.24}
  %s0 = inlined_call_operand.vmem [shape: f32[6,18], index: 0, kind: input, shape index: {}]
  %s1 = inlined_call_operand.vmem [shape: f32[1,108], index: 1, kind: output, shape index: {}]
  $region1: #{tile.24} parent=0
    #allocation0 [shape = 'u8[4096]{0}', space=vmem, size = 0x1000, scoped, tag = 'scoped mem for output reshape']
    %v2 = vld [vmem:[%s0] sm:$0x1]
    %vm3 = vcmask 146432
    %4 = vst.msk [vmem:[#allocation0] sm:$0x1] %vm3, %v2
    %s5 = scalar_lea.vmem %s0, 5
    %v6 = vld [vmem:[%s5] sm:$0x1]
    %7 = vrot.lane.b32.xlu0 %v6, 90
    %v8 = vpop.permute.xlu0 %7
    %vm9 = vcmask 884432
    %10 = vst.msk [vmem:[#allocation0] sm:$0x1] %vm9, %v8
    %s11 = scalar_lea.vmem %s0, 4
    %v12 = vld [vmem:[%s11] sm:$0x1]
    %13 = vrot.lane.b32.xlu0 %v12, 72
    %v14 = vpop.permute.xlu0 %13
    %vm15 = vcmask 736832
    %16 = vst.msk [vmem:[#allocation0] sm:$0x1] %vm15, %v14
    %s17 = scalar_lea.vmem %s0, 3
    %v18 = vld [vmem:[%s17] sm:$0x1]
    %19 = vrot.lane.b32.xlu0 %v18, 54
    %v20 = vpop.permute.xlu0 %19
    %vm21 = vcmask 589232
    %22 = vst.msk [vmem:[#allocation0] sm:$0x1] %vm21, %v20
    %s23 = scalar_lea.vmem %s0, 2
    %v24 = vld [vmem:[%s23] sm:$0x1]
    %25 = vrot.lane.b32.xlu0 %v24, 36
    %v26 = vpop.permute.xlu0 %25
    %vm27 = vcmask 441632
    %28 = vst.msk [vmem:[#allocation0] sm:$0x1] %vm27, %v26
    %s29 = scalar_lea.vmem %s0, 1
    %v30 = vld [vmem:[%s29] sm:$0x1]
    %31 = vrot.lane.b32.xlu0 %v30, 18
    %v32 = vpop.permute.xlu0 %31
    %vm33 = vcmask 294032
    %34 = vst.msk [vmem:[#allocation0] sm:$0x1] %vm33, %v32
    %s36 = sshllo.u32 0, 1
    %v38 = vld [vmem:[#allocation0] sm:%s36]
    %s39 = sshllo.u32 0, 1
    %40 = vst [vmem:[%s1] sm:%s39] %v38

// kernel: tile.33
$region0: #{tile.33}
  #allocation0 [shape = 's32[1]{0}', space=sflag, size = 0x4, scoped, tag = 'scoped memory for tile.33']
  %s0 = inlined_call_operand.vmem [shape: f32[6], index: 0, kind: input, shape index: {}]
  %s1 = inlined_call_operand.vmem [shape: f32[6,6], index: 1, kind: output, shape index: {}]
  // Predicated region
  $region2: #{tile.33} parent=0 // pred_check
    _
  $region3: #{tile.33} parent=0 // pred_check_branch
    %3 = sbr.rel (0) target = $region5
  $region4: #{tile.33} parent=0 // pred_region
    _
  $region5: #{tile.33} parent=0 // pred_fallthru
    _
  %v4 = vld [vmem:[%s0] ss:$0 sm:$0xff]
  %5 = vst [vmem:[%s1] sm:$0xff] %v4

// kernel: tile.29
$region0: #{tile.29}
  %s0 = inlined_call_operand.vmem [shape: f32[6,12], index: 0, kind: input, shape index: {}]
  %s1 = inlined_call_operand.vmem [shape: f32[1,72], index: 1, kind: output, shape index: {}]
  $region1: #{tile.29} parent=0
    #allocation0 [shape = 'u8[4096]{0}', space=vmem, size = 0x1000, scoped, tag = 'scoped mem for output reshape']
    %v2 = vld [vmem:[%s0] sm:$0x1]
    %vm3 = vcmask 97280
    %4 = vst.msk [vmem:[#allocation0] sm:$0x1] %vm3, %v2
    %s5 = scalar_lea.vmem %s0, 5
    %v6 = vld [vmem:[%s5] sm:$0x1]
    %7 = vrot.lane.b32.xlu0 %v6, 60
    %v8 = vpop.permute.xlu0 %7
    %vm9 = vcmask 589280
    %10 = vst.msk [vmem:[#allocation0] sm:$0x1] %vm9, %v8
    %s11 = scalar_lea.vmem %s0, 4
    %v12 = vld [vmem:[%s11] sm:$0x1]
    %13 = vrot.lane.b32.xlu0 %v12, 48
    %v14 = vpop.permute.xlu0 %13
    %vm15 = vcmask 490880
    %16 = vst.msk [vmem:[#allocation0] sm:$0x1] %vm15, %v14
    %s17 = scalar_lea.vmem %s0, 3
    %v18 = vld [vmem:[%s17] sm:$0x1]
    %19 = vrot.lane.b32.xlu0 %v18, 36
    %v20 = vpop.permute.xlu0 %19
    %vm21 = vcmask 392480
    %22 = vst.msk [vmem:[#allocation0] sm:$0x1] %vm21, %v20
    %s23 = scalar_lea.vmem %s0, 2
    %v24 = vld [vmem:[%s23] sm:$0x1]
    %25 = vrot.lane.b32.xlu0 %v24, 24
    %v26 = vpop.permute.xlu0 %25
    %vm27 = vcmask 294080
    %28 = vst.msk [vmem:[#allocation0] sm:$0x1] %vm27, %v26
    %s29 = scalar_lea.vmem %s0, 1
    %v30 = vld [vmem:[%s29] sm:$0x1]
    %31 = vrot.lane.b32.xlu0 %v30, 12
    %v32 = vpop.permute.xlu0 %31
    %vm33 = vcmask 195680
    %34 = vst.msk [vmem:[#allocation0] sm:$0x1] %vm33, %v32
    %s36 = sshllo.u32 0, 1
    %v38 = vld [vmem:[#allocation0] sm:%s36]
    %s39 = sshllo.u32 0, 1
    %40 = vst [vmem:[%s1] sm:%s39] %v38

// kernel: tile.34
$region0: #{tile.34}
  %s0 = inlined_call_operand.vmem [shape: f32[6,6], index: 0, kind: input, shape index: {}]
  %s1 = inlined_call_operand.vmem [shape: f32[1,36], index: 1, kind: output, shape index: {}]
  $region1: #{tile.34} parent=0
    #allocation0 [shape = 'u8[4096]{0}', space=vmem, size = 0x1000, scoped, tag = 'scoped mem for output reshape']
    %v2 = vld [vmem:[%s0] sm:$0x1]
    %vm3 = vcmask 48128
    %4 = vst.msk [vmem:[#allocation0] sm:$0x1] %vm3, %v2
    %s5 = scalar_lea.vmem %s0, 5
    %v6 = vld [vmem:[%s5] sm:$0x1]
    %7 = vrot.lane.b32.xlu0 %v6, 30
    %v8 = vpop.permute.xlu0 %7
    %vm9 = vcmask 294128
    %10 = vst.msk [vmem:[#allocation0] sm:$0x1] %vm9, %v8
    %s11 = scalar_lea.vmem %s0, 4
    %v12 = vld [vmem:[%s11] sm:$0x1]
    %13 = vrot.lane.b32.xlu0 %v12, 24
    %v14 = vpop.permute.xlu0 %13
    %vm15 = vcmask 244928
    %16 = vst.msk [vmem:[#allocation0] sm:$0x1] %vm15, %v14
    %s17 = scalar_lea.vmem %s0, 3
    %v18 = vld [vmem:[%s17] sm:$0x1]
    %19 = vrot.lane.b32.xlu0 %v18, 18
    %v20 = vpop.permute.xlu0 %19
    %vm21 = vcmask 195728
    %22 = vst.msk [vmem:[#allocation0] sm:$0x1] %vm21, %v20
    %s23 = scalar_lea.vmem %s0, 2
    %v24 = vld [vmem:[%s23] sm:$0x1]
    %25 = vrot.lane.b32.xlu0 %v24, 12
    %v26 = vpop.permute.xlu0 %25
    %vm27 = vcmask 146528
    %28 = vst.msk [vmem:[#allocation0] sm:$0x1] %vm27, %v26
    %s29 = scalar_lea.vmem %s0, 1
    %v30 = vld [vmem:[%s29] sm:$0x1]
    %31 = vrot.lane.b32.xlu0 %v30, 6
    %v32 = vpop.permute.xlu0 %31
    %vm33 = vcmask 97328
    %34 = vst.msk [vmem:[#allocation0] sm:$0x1] %vm33, %v32
    %s36 = sshllo.u32 0, 1
    %v38 = vld [vmem:[#allocation0] sm:%s36]
    %s39 = sshllo.u32 0, 1
    %40 = vst [vmem:[%s1] sm:%s39] %v38

// kernel: tile.38
$region0: #{tile.38}
  #allocation0 [shape = 's32[1]{0}', space=sflag, size = 0x4, scoped, tag = 'scoped memory for tile.38']
  %s0 = inlined_call_operand.vmem [shape: f32[4], index: 0, kind: input, shape index: {}]
  %s1 = inlined_call_operand.vmem [shape: f32[6,4], index: 1, kind: output, shape index: {}]
  // Predicated region
  $region2: #{tile.38} parent=0 // pred_check
    _
  $region3: #{tile.38} parent=0 // pred_check_branch
    %3 = sbr.rel (0) target = $region5
  $region4: #{tile.38} parent=0 // pred_region
    _
  $region5: #{tile.38} parent=0 // pred_fallthru
    _
  %v4 = vld [vmem:[%s0] ss:$0 sm:$0xff]
  %5 = vst [vmem:[%s1] sm:$0xff] %v4

// kernel: tile.39
$region0: #{tile.39}
  %s0 = inlined_call_operand.vmem [shape: f32[6,4], index: 0, kind: input, shape index: {}]
  %s1 = inlined_call_operand.vmem [shape: f32[1,24], index: 1, kind: output, shape index: {}]
  $region1: #{tile.39} parent=0
    #allocation0 [shape = 'u8[4096]{0}', space=vmem, size = 0x1000, scoped, tag = 'scoped mem for output reshape']
    %v2 = vld [vmem:[%s0] sm:$0x1]
    %vm3 = vcmask 31744
    %4 = vst.msk [vmem:[#allocation0] sm:$0x1] %vm3, %v2
    %s5 = scalar_lea.vmem %s0, 5
    %v6 = vld [vmem:[%s5] sm:$0x1]
    %7 = vrot.lane.b32.xlu0 %v6, 20
    %v8 = vpop.permute.xlu0 %7
    %vm9 = vcmask 195744
    %10 = vst.msk [vmem:[#allocation0] sm:$0x1] %vm9, %v8
    %s11 = scalar_lea.vmem %s0, 4
    %v12 = vld [vmem:[%s11] sm:$0x1]
    %13 = vrot.lane.b32.xlu0 %v12, 16
    %v14 = vpop.permute.xlu0 %13
    %vm15 = vcmask 162944
    %16 = vst.msk [vmem:[#allocation0] sm:$0x1] %vm15, %v14
    %s17 = scalar_lea.vmem %s0, 3
    %v18 = vld [vmem:[%s17] sm:$0x1]
    %19 = vrot.lane.b32.xlu0 %v18, 12
    %v20 = vpop.permute.xlu0 %19
    %vm21 = vcmask 130144
    %22 = vst.msk [vmem:[#allocation0] sm:$0x1] %vm21, %v20
    %s23 = scalar_lea.vmem %s0, 2
    %v24 = vld [vmem:[%s23] sm:$0x1]
    %25 = vrot.lane.b32.xlu0 %v24, 8
    %v26 = vpop.permute.xlu0 %25
    %vm27 = vcmask 97344
    %28 = vst.msk [vmem:[#allocation0] sm:$0x1] %vm27, %v26
    %s29 = scalar_lea.vmem %s0, 1
    %v30 = vld [vmem:[%s29] sm:$0x1]
    %31 = vrot.lane.b32.xlu0 %v30, 4
    %v32 = vpop.permute.xlu0 %31
    %vm33 = vcmask 64544
    %34 = vst.msk [vmem:[#allocation0] sm:$0x1] %vm33, %v32
    %s36 = sshllo.u32 0, 1
    %v38 = vld [vmem:[#allocation0] sm:%s36]
    %s39 = sshllo.u32 0, 1
    %40 = vst [vmem:[%s1] sm:%s39] %v38

// kernel: forward.1
$region0: #{forward.1}
  #allocation0 [shape = 'u32[]', space=smem, size = 0x4, offset = 0x4, fixed_abs, tag = 'smem constant byte address 0x4 - core index']
  #allocation1 [shape = 'u32[144,128]{1,0:T(1,128)}', space=vmem, size = 0x12000, scoped, tag = 'internal scratch']
  %s0 = inlined_call_operand.vmem [shape: f32[2,144], index: 0, kind: input, shape index: {}]
  %s1 = inlined_call_operand.vmem [shape: f32[144,108], index: 1, kind: input, shape index: {}]
  %s2 = inlined_call_operand.vmem [shape: f32[1,108], index: 2, kind: input, shape index: {}]
  %s3 = inlined_call_operand.vmem [shape: f32[108,72], index: 3, kind: input, shape index: {}]
  %s4 = inlined_call_operand.vmem [shape: f32[1,72], index: 4, kind: input, shape index: {}]
  %s5 = inlined_call_operand.vmem [shape: f32[72,36], index: 5, kind: input, shape index: {}]
  %s6 = inlined_call_operand.vmem [shape: f32[1,36], index: 6, kind: input, shape index: {}]
  %s7 = inlined_call_operand.vmem [shape: f32[36,24], index: 7, kind: input, shape index: {}]
  %s8 = inlined_call_operand.vmem [shape: f32[1,24], index: 8, kind: input, shape index: {}]
  %s9 = inlined_call_operand.vmem [shape: f32[12,24,8], index: 9, kind: input, shape index: {}]
  %s10 = inlined_call_operand.vmem [shape: f32[12,24,8], index: 10, kind: input, shape index: {}]
  %s11 = inlined_call_operand.vmem [shape: f32[12,24,8], index: 11, kind: input, shape index: {}]
  %s12 = inlined_call_operand.vmem [shape: f32[12,8,24], index: 12, kind: input, shape index: {}]
  %s13 = inlined_call_operand.vmem [shape: f32[12,1,8], index: 13, kind: input, shape index: {}]
  %s14 = inlined_call_operand.vmem [shape: f32[12,1,8], index: 14, kind: input, shape index: {}]
  %s15 = inlined_call_operand.vmem [shape: f32[12,1,8], index: 15, kind: input, shape index: {}]
  %s16 = inlined_call_operand.vmem [shape: f32[4,1,24], index: 16, kind: input, shape index: {}]
  %s17 = inlined_call_operand.vmem [shape: bf16[4,24,512], index: 17, kind: input, shape index: {}]
  %s18 = inlined_call_operand.vmem [shape: f32[4,1,512], index: 18, kind: input, shape index: {}]
  %s19 = inlined_call_operand.vmem [shape: bf16[4,512,24], index: 19, kind: input, shape index: {}]
  %s20 = inlined_call_operand.vmem [shape: f32[4,1,24], index: 20, kind: input, shape index: {}]
  %s21 = inlined_call_operand.vmem [shape: f32[4,1,24], index: 21, kind: input, shape index: {}]
  %s22 = inlined_call_operand.vmem [shape: f32[4,1,24], index: 22, kind: input, shape index: {}]
  %s23 = inlined_call_operand.vmem [shape: f32[4,1,24], index: 23, kind: input, shape index: {}]
  %s24 = inlined_call_operand.vmem [shape: f32[4,1,24], index: 24, kind: input, shape index: {}]
  %s25 = inlined_call_operand.vmem [shape: f32[24,12], index: 25, kind: input, shape index: {}]
  %s26 = inlined_call_operand.vmem [shape: f32[1,12], index: 26, kind: input, shape index: {}]
  %s27 = inlined_call_operand.hbm [shape: f32[2,12], index: 27, kind: output, shape index: {}]
  %s28 = sld [smem:[#allocation0]]
  $region118: #{forward.1} parent=0
    _
  %s30 = ssub.s32 1, %s28
  %s31 = scalar_select 0, %s30, %s28
  $region1: #{forward.1} parent=0
    #allocation2 [shape = 'u8[1024]{0}', space=vmem, size = 0x400, scoped, tag = 'output window, operand 0, single buffered']
    #allocation3 [shape = 's32[1]{0}', space=sflag, size = 0x4, scoped, tag = 'scoped memory for forward.1']
    %32 = vsyncpa [#allocation3], 0
    // Predicated region
    $region2: #{forward.1} parent=1 // pred_check
      _
    $region3: #{forward.1} parent=1 // pred_check_branch
      %34 = sbr.rel (0) target = $region5
    $region4: #{forward.1} parent=1 // pred_region
      _
    $region5: #{forward.1} parent=1 // pred_fallthru
      _
    // Predicated region
    $region6: #{forward.1} parent=1 // pred_check
      _
    $region7: #{forward.1} parent=1 // pred_check_branch
      %36 = sbr.rel (0) target = $region9
    $region8: #{forward.1} parent=1 // pred_region
      _
    $region9: #{forward.1} parent=1 // pred_fallthru
      _
    // Predicated region
    $region10: #{forward.1} parent=1 // pred_check
      _
    $region11: #{forward.1} parent=1 // pred_check_branch
      %38 = sbr.rel (0) target = $region13
    $region12: #{forward.1} parent=1 // pred_region
      _
    $region13: #{forward.1} parent=1 // pred_fallthru
      _
    // Predicated region
    $region14: #{forward.1} parent=1 // pred_check
      _
    $region15: #{forward.1} parent=1 // pred_check_branch
      %40 = sbr.rel (0) target = $region17
    $region16: #{forward.1} parent=1 // pred_region
      _
    $region17: #{forward.1} parent=1 // pred_fallthru
      _
    // Predicated region
    $region18: #{forward.1} parent=1 // pred_check
      _
    $region19: #{forward.1} parent=1 // pred_check_branch
      %42 = sbr.rel (0) target = $region21
    $region20: #{forward.1} parent=1 // pred_region
      _
    $region21: #{forward.1} parent=1 // pred_fallthru
      _
    // Predicated region
    $region22: #{forward.1} parent=1 // pred_check
      _
    $region23: #{forward.1} parent=1 // pred_check_branch
      %44 = sbr.rel (0) target = $region25
    $region24: #{forward.1} parent=1 // pred_region
      _
    $region25: #{forward.1} parent=1 // pred_fallthru
      _
    // Predicated region
    $region26: #{forward.1} parent=1 // pred_check
      _
    $region27: #{forward.1} parent=1 // pred_check_branch
      %46 = sbr.rel (0) target = $region29
    $region28: #{forward.1} parent=1 // pred_region
      _
    $region29: #{forward.1} parent=1 // pred_fallthru
      _
    // Predicated region
    $region30: #{forward.1} parent=1 // pred_check
      _
    $region31: #{forward.1} parent=1 // pred_check_branch
      %48 = sbr.rel (0) target = $region33
    $region32: #{forward.1} parent=1 // pred_region
      _
    $region33: #{forward.1} parent=1 // pred_fallthru
      _
    // Predicated region
    $region34: #{forward.1} parent=1 // pred_check
      _
    $region35: #{forward.1} parent=1 // pred_check_branch
      %50 = sbr.rel (0) target = $region37
    $region36: #{forward.1} parent=1 // pred_region
      _
    $region37: #{forward.1} parent=1 // pred_fallthru
      _
    // Predicated region
    $region38: #{forward.1} parent=1 // pred_check
      _
    $region39: #{forward.1} parent=1 // pred_check_branch
      %52 = sbr.rel (0) target = $region41
    $region40: #{forward.1} parent=1 // pred_region
      _
    $region41: #{forward.1} parent=1 // pred_fallthru
      _
    // Predicated region
    $region42: #{forward.1} parent=1 // pred_check
      _
    $region43: #{forward.1} parent=1 // pred_check_branch
      %54 = sbr.rel (0) target = $region45
    $region44: #{forward.1} parent=1 // pred_region
      _
    $region45: #{forward.1} parent=1 // pred_fallthru
      _
    // Predicated region
    $region46: #{forward.1} parent=1 // pred_check
      _
    $region47: #{forward.1} parent=1 // pred_check_branch
      %56 = sbr.rel (0) target = $region49
    $region48: #{forward.1} parent=1 // pred_region
      _
    $region49: #{forward.1} parent=1 // pred_fallthru
      _
    // Predicated region
    $region50: #{forward.1} parent=1 // pred_check
      _
    $region51: #{forward.1} parent=1 // pred_check_branch
      %58 = sbr.rel (0) target = $region53
    $region52: #{forward.1} parent=1 // pred_region
      _
    $region53: #{forward.1} parent=1 // pred_fallthru
      _
    // Predicated region
    $region54: #{forward.1} parent=1 // pred_check
      _
    $region55: #{forward.1} parent=1 // pred_check_branch
      %60 = sbr.rel (0) target = $region57
    $region56: #{forward.1} parent=1 // pred_region
      _
    $region57: #{forward.1} parent=1 // pred_fallthru
      _
    // Predicated region
    $region58: #{forward.1} parent=1 // pred_check
      _
    $region59: #{forward.1} parent=1 // pred_check_branch
      %62 = sbr.rel (0) target = $region61
    $region60: #{forward.1} parent=1 // pred_region
      _
    $region61: #{forward.1} parent=1 // pred_fallthru
      _
    // Predicated region
    $region62: #{forward.1} parent=1 // pred_check
      _
    $region63: #{forward.1} parent=1 // pred_check_branch
      %64 = sbr.rel (0) target = $region65
    $region64: #{forward.1} parent=1 // pred_region
      _
    $region65: #{forward.1} parent=1 // pred_fallthru
      _
    // Predicated region
    $region66: #{forward.1} parent=1 // pred_check
      _
    $region67: #{forward.1} parent=1 // pred_check_branch
      %66 = sbr.rel (0) target = $region69
    $region68: #{forward.1} parent=1 // pred_region
      _
    $region69: #{forward.1} parent=1 // pred_fallthru
      _
    // Predicated region
    $region70: #{forward.1} parent=1 // pred_check
      _
    $region71: #{forward.1} parent=1 // pred_check_branch
      %68 = sbr.rel (0) target = $region73
    $region72: #{forward.1} parent=1 // pred_region
      _
    $region73: #{forward.1} parent=1 // pred_fallthru
      _
    // Predicated region
    $region74: #{forward.1} parent=1 // pred_check
      _
    $region75: #{forward.1} parent=1 // pred_check_branch
      %70 = sbr.rel (0) target = $region77
    $region76: #{forward.1} parent=1 // pred_region
      _
    $region77: #{forward.1} parent=1 // pred_fallthru
      _
    // Predicated region
    $region78: #{forward.1} parent=1 // pred_check
      _
    $region79: #{forward.1} parent=1 // pred_check_branch
      %72 = sbr.rel (0) target = $region81
    $region80: #{forward.1} parent=1 // pred_region
      _
    $region81: #{forward.1} parent=1 // pred_fallthru
      _
    // Predicated region
    $region82: #{forward.1} parent=1 // pred_check
      _
    $region83: #{forward.1} parent=1 // pred_check_branch
      %74 = sbr.rel (0) target = $region85
    $region84: #{forward.1} parent=1 // pred_region
      _
    $region85: #{forward.1} parent=1 // pred_fallthru
      _
    // Predicated region
    $region86: #{forward.1} parent=1 // pred_check
      _
    $region87: #{forward.1} parent=1 // pred_check_branch
      %76 = sbr.rel (0) target = $region89
    $region88: #{forward.1} parent=1 // pred_region
      _
    $region89: #{forward.1} parent=1 // pred_fallthru
      _
    // Predicated region
    $region90: #{forward.1} parent=1 // pred_check
      _
    $region91: #{forward.1} parent=1 // pred_check_branch
      %78 = sbr.rel (0) target = $region93
    $region92: #{forward.1} parent=1 // pred_region
      _
    $region93: #{forward.1} parent=1 // pred_fallthru
      _
    // Predicated region
    $region94: #{forward.1} parent=1 // pred_check
      _
    $region95: #{forward.1} parent=1 // pred_check_branch
      %80 = sbr.rel (0) target = $region97
    $region96: #{forward.1} parent=1 // pred_region
      _
    $region97: #{forward.1} parent=1 // pred_fallthru
      _
    // Predicated region
    $region98: #{forward.1} parent=1 // pred_check
      _
    $region99: #{forward.1} parent=1 // pred_check_branch
      %82 = sbr.rel (0) target = $region101
    $region100: #{forward.1} parent=1 // pred_region
      _
    $region101: #{forward.1} parent=1 // pred_fallthru
      _
    // Predicated region
    $region102: #{forward.1} parent=1 // pred_check
      _
    $region103: #{forward.1} parent=1 // pred_check_branch
      %84 = sbr.rel (0) target = $region105
    $region104: #{forward.1} parent=1 // pred_region
      _
    $region105: #{forward.1} parent=1 // pred_fallthru
      _
    // Predicated region
    $region106: #{forward.1} parent=1 // pred_check
      _
    $region107: #{forward.1} parent=1 // pred_check_branch
      %86 = sbr.rel (0) target = $region109
    $region108: #{forward.1} parent=1 // pred_region
      _
    $region109: #{forward.1} parent=1 // pred_fallthru
      _
    %v88 = vld [vmem:[%s0] sm:$0xf]
    %v89 = vld [vmem:[%s1] sm:$0xff]
    %v90 = vld [vmem:[%s1 + $0x8] sm:$0xff]
    %v91 = vld [vmem:[%s1 + $0x10] sm:$0xff]
    %v92 = vld [vmem:[%s1 + $0x18] sm:$0xff]
    %v93 = vld [vmem:[%s1 + $0x20] sm:$0xff]
    %v94 = vld [vmem:[%s1 + $0x28] sm:$0xff]
    %v95 = vld [vmem:[%s1 + $0x30] sm:$0xff]
    %v96 = vld [vmem:[%s1 + $0x38] sm:$0xff]
    %v97 = vld [vmem:[%s1 + $0x40] sm:$0xff]
    %v98 = vld [vmem:[%s1 + $0x48] sm:$0xff]
    %v99 = vld [vmem:[%s1 + $0x50] sm:$0xff]
    %v100 = vld [vmem:[%s1 + $0x58] sm:$0xff]
    %v101 = vld [vmem:[%s1 + $0x60] sm:$0xff]
    %v102 = vld [vmem:[%s1 + $0x68] sm:$0xff]
    %v103 = vld [vmem:[%s1 + $0x70] sm:$0xff]
    %v104 = vld [vmem:[%s1 + $0x78] sm:$0xff]
    %v105 = vld [vmem:[%s1 + $0x80] sm:$0xff]
    %v106 = vld [vmem:[%s1 + $0x88] sm:$0xff]
    %v107 = vld [vmem:[%s2] sm:$0x1]
    %v109 = vlaneseq
    %v110 = vshrl.u32 %v109, 7
    %v111 = vsub.s32 0, %v110
    %v112 = vrot.slane %v107, %v111
    %v116 = vunpack.c.l.s4 1983009808
    %v117 = vunpack.c.0.s8 %v116
    %v118 = vlaneseq
    %v119 = vshrl.u32 %v118, 7
    %v120 = vsub.s32 %v117, %v119
    %v121 = vrot.slane %v88, %v120
    %v122 = vcombine.high %v121, %v121
    %vm124 = vcmask 130048
    %v125 = vsel %vm124, %v122, 0
    %127 = vmatprep.subr.mxu0 0.0
    %128 = vmatpush1.msra.mxu0 %v89
    %129 = vmatprep.subr.mxu0 0.0
    %130 = vmatpush1.msra.mxu0 %v90
    %131 = vmatprep.subr.mxu0 0.0
    %132 = vmatpush1.msra.mxu0 %v91
    %133 = vmatprep.subr.mxu0 0.0
    %134 = vmatpush1.msra.mxu0 %v92
    %135 = vmatprep.subr.mxu0 0.0
    %136 = vmatpush1.msra.mxu0 %v93
    %137 = vmatprep.subr.mxu0 0.0
    %138 = vmatpush1.msra.mxu0 %v94
    %139 = vmatprep.subr.mxu0 0.0
    %140 = vmatpush1.msra.mxu0 %v95
    %141 = vmatprep.subr.mxu0 0.0
    %142 = vmatpush1.msra.mxu0 %v96
    %143 = vmatprep.subr.mxu0 0.0
    %144 = vmatpush1.msra.mxu0 %v97
    %145 = vmatprep.subr.mxu0 0.0
    %146 = vmatpush1.msra.mxu0 %v98
    %147 = vmatprep.subr.mxu0 0.0
    %148 = vmatpush1.msra.mxu0 %v99
    %149 = vmatprep.subr.mxu0 0.0
    %150 = vmatpush1.msra.mxu0 %v100
    %151 = vmatprep.subr.mxu0 0.0
    %152 = vmatpush1.msra.mxu0 %v101
    %153 = vmatprep.subr.mxu0 0.0
    %154 = vmatpush1.msra.mxu0 %v102
    %155 = vmatprep.subr.mxu0 0.0
    %156 = vmatpush1.msra.mxu0 %v103
    %157 = vmatprep.subr.mxu0 0.0
    %158 = vmatpush1.msra.mxu0 %v104
    %159 = vmatprep.subr.mxu0 0.0
    %160 = vmatpush1.msra.mxu0 %v105
    %161 = vmatprep.subr.mxu0 0.0
    %162 = vmatpush1.msra.mxu0 %v106
    %163 = vmatprep.subr.mxu0 0.0
    %164 = vmatpush1.msra.mxu0 0.0
    %165 = vmatprep.subr.mxu0 0.0
    %166 = vmatpush1.msra.mxu0 0.0
    %167 = vmatprep.subr.mxu0 0.0
    %168 = vmatpush1.msra.mxu0 0.0
    %169 = vmatprep.subr.mxu0 0.0
    %170 = vmatpush1.msra.mxu0 0.0
    %171 = vmatprep.subr.mxu0 0.0
    %172 = vmatpush1.msra.mxu0 0.0
    %173 = vmatprep.subr.mxu0 0.0
    %174 = vmatpush1.msra.mxu0 0.0
    %175 = vmatprep.subr.mxu0 0.0
    %176 = vmatpush1.msra.mxu0 0.0
    %177 = vmatprep.subr.mxu0 0.0
    %178 = vmatpush1.msra.mxu0 0.0
    %179 = vmatprep.subr.mxu0 0.0
    %180 = vmatpush1.msra.mxu0 0.0
    %181 = vmatprep.subr.mxu0 0.0
    %182 = vmatpush1.msra.mxu0 0.0
    %183 = vmatprep.subr.mxu0 0.0
    %184 = vmatpush1.msra.mxu0 0.0
    %185 = vmatprep.subr.mxu0 0.0
    %186 = vmatpush1.msra.mxu0 0.0
    %187 = vmatprep.subr.mxu0 0.0
    %188 = vmatpush1.msra.mxu0 0.0
    %189 = vmatprep.subr.mxu0 0.0
    %190 = vmatpush1.msra.mxu0 0.0
    %191 = vmatprep.mubr.f32.mxu0 %v125
    %192 = vmatmul.mubr.f32.gmra.mrb[0].mxu0 %v121
    %v193 = vpop.f32.mrb[0].mxu0
    %v194 = vadd.f32 %v112, %v193
    %v195 = vpop.f32.mrb[0].mxu0
    %196 = vdwg.mxu0
    %v197 = vmax.f32 %v194, 0.0
    %v198 = vld [vmem:[%s3] sm:$0xff]
    %v199 = vld [vmem:[%s3 + $0x8] sm:$0xff]
    %v200 = vld [vmem:[%s3 + $0x10] sm:$0xff]
    %v201 = vld [vmem:[%s3 + $0x18] sm:$0xff]
    %v202 = vld [vmem:[%s3 + $0x20] sm:$0xff]
    %v203 = vld [vmem:[%s3 + $0x28] sm:$0xff]
    %v204 = vld [vmem:[%s3 + $0x30] sm:$0xff]
    %v205 = vld [vmem:[%s3 + $0x38] sm:$0xff]
    %v206 = vld [vmem:[%s3 + $0x40] sm:$0xff]
    %v207 = vld [vmem:[%s3 + $0x48] sm:$0xff]
    %v208 = vld [vmem:[%s3 + $0x50] sm:$0xff]
    %v209 = vld [vmem:[%s3 + $0x58] sm:$0xff]
    %v210 = vld [vmem:[%s3 + $0x60] sm:$0xff]
    %v211 = vld [vmem:[%s3 + $0x68] sm:$0xf]
    %v212 = vld [vmem:[%s4] sm:$0x1]
    %v214 = vlaneseq
    %v215 = vshrl.u32 %v214, 7
    %v216 = vsub.s32 0, %v215
    %v217 = vrot.slane %v212, %v216
    %vm219 = vcmask 883712
    %v221 = vsel %vm219, %v197, 0
    %vm223 = vcmask 1043456
    %v225 = vsel %vm223, %v211, 0
    %227 = vmatprep.subr.mxu0 0.0
    %228 = vmatpush1.msra.mxu0 %v198
    %229 = vmatprep.subr.mxu0 0.0
    %230 = vmatpush1.msra.mxu0 %v199
    %231 = vmatprep.subr.mxu0 0.0
    %232 = vmatpush1.msra.mxu0 %v200
    %233 = vmatprep.subr.mxu0 0.0
    %234 = vmatpush1.msra.mxu0 %v201
    %235 = vmatprep.subr.mxu0 0.0
    %236 = vmatpush1.msra.mxu0 %v202
    %237 = vmatprep.subr.mxu0 0.0
    %238 = vmatpush1.msra.mxu0 %v203
    %239 = vmatprep.subr.mxu0 0.0
    %240 = vmatpush1.msra.mxu0 %v204
    %241 = vmatprep.subr.mxu0 0.0
    %242 = vmatpush1.msra.mxu0 %v205
    %243 = vmatprep.subr.mxu0 0.0
    %244 = vmatpush1.msra.mxu0 %v206
    %245 = vmatprep.subr.mxu0 0.0
    %246 = vmatpush1.msra.mxu0 %v207
    %247 = vmatprep.subr.mxu0 0.0
    %248 = vmatpush1.msra.mxu0 %v208
    %249 = vmatprep.subr.mxu0 0.0
    %250 = vmatpush1.msra.mxu0 %v209
    %251 = vmatprep.subr.mxu0 0.0
    %252 = vmatpush1.msra.mxu0 %v210
    %253 = vmatprep.subr.mxu0 0.0
    %254 = vmatpush1.msra.mxu0 %v225
    %255 = vmatprep.subr.mxu0 0.0
    %256 = vmatpush1.msra.mxu0 0.0
    %257 = vmatprep.subr.mxu0 0.0
    %258 = vmatpush1.msra.mxu0 0.0
    %259 = vmatprep.subr.mxu0 0.0
    %260 = vmatpush1.msra.mxu0 0.0
    %261 = vmatprep.subr.mxu0 0.0
    %262 = vmatpush1.msra.mxu0 0.0
    %263 = vmatprep.subr.mxu0 0.0
    %264 = vmatpush1.msra.mxu0 0.0
    %265 = vmatprep.subr.mxu0 0.0
    %266 = vmatpush1.msra.mxu0 0.0
    %267 = vmatprep.subr.mxu0 0.0
    %268 = vmatpush1.msra.mxu0 0.0
    %269 = vmatprep.subr.mxu0 0.0
    %270 = vmatpush1.msra.mxu0 0.0
    %271 = vmatprep.subr.mxu0 0.0
    %272 = vmatpush1.msra.mxu0 0.0
    %273 = vmatprep.subr.mxu0 0.0
    %274 = vmatpush1.msra.mxu0 0.0
    %275 = vmatprep.subr.mxu0 0.0
    %276 = vmatpush1.msra.mxu0 0.0
    %277 = vmatprep.subr.mxu0 0.0
    %278 = vmatpush1.msra.mxu0 0.0
    %279 = vmatprep.subr.mxu0 0.0
    %280 = vmatpush1.msra.mxu0 0.0
    %281 = vmatprep.subr.mxu0 0.0
    %282 = vmatpush1.msra.mxu0 0.0
    %283 = vmatprep.subr.mxu0 0.0
    %284 = vmatpush1.msra.mxu0 0.0
    %285 = vmatprep.subr.mxu0 0.0
    %286 = vmatpush1.msra.mxu0 0.0
    %287 = vmatprep.subr.mxu0 0.0
    %288 = vmatpush1.msra.mxu0 0.0
    %289 = vmatprep.subr.mxu0 0.0
    %290 = vmatpush1.msra.mxu0 0.0
    %291 = vmatprep.mubr.f32.mxu0 0.0
    %292 = vmatmul.mubr.f32.gmra.mrb[0].mxu0 %v221
    %v293 = vpop.f32.mrb[0].mxu0
    %v294 = vadd.f32 %v217, %v293
    %v295 = vpop.f32.mrb[0].mxu0
    %296 = vdwg.mxu0
    %v297 = vmax.f32 %v294, 0.0
    %v298 = vld [vmem:[%s5] sm:$0xff]
    %v299 = vld [vmem:[%s5 + $0x8] sm:$0xff]
    %v300 = vld [vmem:[%s5 + $0x10] sm:$0xff]
    %v301 = vld [vmem:[%s5 + $0x18] sm:$0xff]
    %v302 = vld [vmem:[%s5 + $0x20] sm:$0xff]
    %v303 = vld [vmem:[%s5 + $0x28] sm:$0xff]
    %v304 = vld [vmem:[%s5 + $0x30] sm:$0xff]
    %v305 = vld [vmem:[%s5 + $0x38] sm:$0xff]
    %v306 = vld [vmem:[%s5 + $0x40] sm:$0xff]
    %v307 = vld [vmem:[%s6] sm:$0x1]
    %v309 = vlaneseq
    %v310 = vshrl.u32 %v309, 7
    %v311 = vsub.s32 0, %v310
    %v312 = vrot.slane %v307, %v311
    %vm314 = vcmask 588800
    %v316 = vsel %vm314, %v297, 0
    %318 = vmatprep.subr.mxu0 0.0
    %319 = vmatpush1.msra.mxu0 %v298
    %320 = vmatprep.subr.mxu0 0.0
    %321 = vmatpush1.msra.mxu0 %v299
    %322 = vmatprep.subr.mxu0 0.0
    %323 = vmatpush1.msra.mxu0 %v300
    %324 = vmatprep.subr.mxu0 0.0
    %325 = vmatpush1.msra.mxu0 %v301
    %326 = vmatprep.subr.mxu0 0.0
    %327 = vmatpush1.msra.mxu0 %v302
    %328 = vmatprep.subr.mxu0 0.0
    %329 = vmatpush1.msra.mxu0 %v303
    %330 = vmatprep.subr.mxu0 0.0
    %331 = vmatpush1.msra.mxu0 %v304
    %332 = vmatprep.subr.mxu0 0.0
    %333 = vmatpush1.msra.mxu0 %v305
    %334 = vmatprep.subr.mxu0 0.0
    %335 = vmatpush1.msra.mxu0 %v306
    %336 = vmatprep.subr.mxu0 0.0
    %337 = vmatpush1.msra.mxu0 0.0
    %338 = vmatprep.subr.mxu0 0.0
    %339 = vmatpush1.msra.mxu0 0.0
    %340 = vmatprep.subr.mxu0 0.0
    %341 = vmatpush1.msra.mxu0 0.0
    %342 = vmatprep.subr.mxu0 0.0
    %343 = vmatpush1.msra.mxu0 0.0
    %344 = vmatprep.subr.mxu0 0.0
    %345 = vmatpush1.msra.mxu0 0.0
    %346 = vmatprep.subr.mxu0 0.0
    %347 = vmatpush1.msra.mxu0 0.0
    %348 = vmatprep.subr.mxu0 0.0
    %349 = vmatpush1.msra.mxu0 0.0
    %350 = vmatprep.subr.mxu0 0.0
    %351 = vmatpush1.msra.mxu0 0.0
    %352 = vmatprep.subr.mxu0 0.0
    %353 = vmatpush1.msra.mxu0 0.0
    %354 = vmatprep.subr.mxu0 0.0
    %355 = vmatpush1.msra.mxu0 0.0
    %356 = vmatprep.subr.mxu0 0.0
    %357 = vmatpush1.msra.mxu0 0.0
    %358 = vmatprep.subr.mxu0 0.0
    %359 = vmatpush1.msra.mxu0 0.0
    %360 = vmatprep.subr.mxu0 0.0
    %361 = vmatpush1.msra.mxu0 0.0
    %362 = vmatprep.subr.mxu0 0.0
    %363 = vmatpush1.msra.mxu0 0.0
    %364 = vmatprep.subr.mxu0 0.0
    %365 = vmatpush1.msra.mxu0 0.0
    %366 = vmatprep.subr.mxu0 0.0
    %367 = vmatpush1.msra.mxu0 0.0
    %368 = vmatprep.subr.mxu0 0.0
    %369 = vmatpush1.msra.mxu0 0.0
    %370 = vmatprep.subr.mxu0 0.0
    %371 = vmatpush1.msra.mxu0 0.0
    %372 = vmatprep.subr.mxu0 0.0
    %373 = vmatpush1.msra.mxu0 0.0
    %374 = vmatprep.subr.mxu0 0.0
    %375 = vmatpush1.msra.mxu0 0.0
    %376 = vmatprep.subr.mxu0 0.0
    %377 = vmatpush1.msra.mxu0 0.0
    %378 = vmatprep.subr.mxu0 0.0
    %379 = vmatpush1.msra.mxu0 0.0
    %380 = vmatprep.subr.mxu0 0.0
    %381 = vmatpush1.msra.mxu0 0.0
    %382 = vmatprep.mubr.f32.mxu0 0.0
    %383 = vmatmul.mubr.f32.gmra.mrb[0].mxu0 %v316
    %v384 = vpop.f32.mrb[0].mxu0
    %v385 = vadd.f32 %v312, %v384
    %v386 = vpop.f32.mrb[0].mxu0
    %387 = vdwg.mxu0
    %v388 = vmax.f32 %v385, 0.0
    %v389 = vld [vmem:[%s7] sm:$0xff]
    %v390 = vld [vmem:[%s7 + $0x8] sm:$0xff]
    %v391 = vld [vmem:[%s7 + $0x10] sm:$0xff]
    %v392 = vld [vmem:[%s7 + $0x18] sm:$0xff]
    %v393 = vld [vmem:[%s7 + $0x20] sm:$0xf]
    %v394 = vld [vmem:[%s8] sm:$0x1]
    %v396 = vlaneseq
    %v397 = vshrl.u32 %v396, 7
    %v398 = vsub.s32 0, %v397
    %v399 = vrot.slane %v394, %v398
    %vm401 = vcmask 293888
    %v403 = vsel %vm401, %v388, 0
    %v406 = vsel %vm223, %v393, 0
    %408 = vmatprep.subr.mxu0 0.0
    %409 = vmatpush1.msra.mxu0 %v389
    %410 = vmatprep.subr.mxu0 0.0
    %411 = vmatpush1.msra.mxu0 %v390
    %412 = vmatprep.subr.mxu0 0.0
    %413 = vmatpush1.msra.mxu0 %v391
    %414 = vmatprep.subr.mxu0 0.0
    %415 = vmatpush1.msra.mxu0 %v392
    %416 = vmatprep.subr.mxu0 0.0
    %417 = vmatpush1.msra.mxu0 %v406
    %418 = vmatprep.subr.mxu0 0.0
    %419 = vmatpush1.msra.mxu0 0.0
    %420 = vmatprep.subr.mxu0 0.0
    %421 = vmatpush1.msra.mxu0 0.0
    %422 = vmatprep.subr.mxu0 0.0
    %423 = vmatpush1.msra.mxu0 0.0
    %424 = vmatprep.subr.mxu0 0.0
    %425 = vmatpush1.msra.mxu0 0.0
    %426 = vmatprep.subr.mxu0 0.0
    %427 = vmatpush1.msra.mxu0 0.0
    %428 = vmatprep.subr.mxu0 0.0
    %429 = vmatpush1.msra.mxu0 0.0
    %430 = vmatprep.subr.mxu0 0.0
    %431 = vmatpush1.msra.mxu0 0.0
    %432 = vmatprep.subr.mxu0 0.0
    %433 = vmatpush1.msra.mxu0 0.0
    %434 = vmatprep.subr.mxu0 0.0
    %435 = vmatpush1.msra.mxu0 0.0
    %436 = vmatprep.subr.mxu0 0.0
    %437 = vmatpush1.msra.mxu0 0.0
    %438 = vmatprep.subr.mxu0 0.0
    %439 = vmatpush1.msra.mxu0 0.0
    %440 = vmatprep.subr.mxu0 0.0
    %441 = vmatpush1.msra.mxu0 0.0
    %442 = vmatprep.subr.mxu0 0.0
    %443 = vmatpush1.msra.mxu0 0.0
    %444 = vmatprep.subr.mxu0 0.0
    %445 = vmatpush1.msra.mxu0 0.0
    %446 = vmatprep.subr.mxu0 0.0
    %447 = vmatpush1.msra.mxu0 0.0
    %448 = vmatprep.subr.mxu0 0.0
    %449 = vmatpush1.msra.mxu0 0.0
    %450 = vmatprep.subr.mxu0 0.0
    %451 = vmatpush1.msra.mxu0 0.0
    %452 = vmatprep.subr.mxu0 0.0
    %453 = vmatpush1.msra.mxu0 0.0
    %454 = vmatprep.subr.mxu0 0.0
    %455 = vmatpush1.msra.mxu0 0.0
    %456 = vmatprep.subr.mxu0 0.0
    %457 = vmatpush1.msra.mxu0 0.0
    %458 = vmatprep.subr.mxu0 0.0
    %459 = vmatpush1.msra.mxu0 0.0
    %460 = vmatprep.subr.mxu0 0.0
    %461 = vmatpush1.msra.mxu0 0.0
    %462 = vmatprep.subr.mxu0 0.0
    %463 = vmatpush1.msra.mxu0 0.0
    %464 = vmatprep.subr.mxu0 0.0
    %465 = vmatpush1.msra.mxu0 0.0
    %466 = vmatprep.subr.mxu0 0.0
    %467 = vmatpush1.msra.mxu0 0.0
    %468 = vmatprep.subr.mxu0 0.0
    %469 = vmatpush1.msra.mxu0 0.0
    %470 = vmatprep.subr.mxu0 0.0
    %471 = vmatpush1.msra.mxu0 0.0
    %472 = vmatprep.mubr.f32.mxu0 0.0
    %473 = vmatmul.mubr.f32.gmra.mrb[0].mxu0 %v403
    %v474 = vpop.f32.mrb[0].mxu0
    %v475 = vadd.f32 %v399, %v474
    %v476 = vpop.f32.mrb[0].mxu0
    %477 = vdwg.mxu0
    %v478 = vmax.f32 %v475, 0.0
    %v479 = vld [vmem:[%s9] sm:$0xff]
    %v480 = vld [vmem:[%s9 + $0x8] sm:$0xff]
    %v481 = vld [vmem:[%s9 + $0x10] sm:$0xff]
    %v482 = vld [vmem:[%s13] sm:$0x1]
    %v484 = vlaneseq
    %v485 = vshrl.u32 %v484, 7
    %v486 = vsub.s32 0, %v485
    %v487 = vrot.slane %v482, %v486
    %vm489 = vcmask 195584
    %v491 = vsel %vm489, %v478, 0
    %493 = vmatprep.subr.mxu0 0.0
    %494 = vmatpush1.msra.mxu0 %v479
    %495 = vmatprep.subr.mxu0 0.0
    %496 = vmatpush1.msra.mxu0 %v480
    %497 = vmatprep.subr.mxu0 0.0
    %498 = vmatpush1.msra.mxu0 %v481
    %499 = vmatprep.subr.mxu0 0.0
    %500 = vmatpush1.msra.mxu0 0.0
    %501 = vmatprep.subr.mxu0 0.0
    %502 = vmatpush1.msra.mxu0 0.0
    %503 = vmatprep.subr.mxu0 0.0
    %504 = vmatpush1.msra.mxu0 0.0
    %505 = vmatprep.subr.mxu0 0.0
    %506 = vmatpush1.msra.mxu0 0.0
    %507 = vmatprep.subr.mxu0 0.0
    %508 = vmatpush1.msra.mxu0 0.0
    %509 = vmatprep.subr.mxu0 0.0
    %510 = vmatpush1.msra.mxu0 0.0
    %511 = vmatprep.subr.mxu0 0.0
    %512 = vmatpush1.msra.mxu0 0.0
    %513 = vmatprep.subr.mxu0 0.0
    %514 = vmatpush1.msra.mxu0 0.0
    %515 = vmatprep.subr.mxu0 0.0
    %516 = vmatpush1.msra.mxu0 0.0
    %517 = vmatprep.subr.mxu0 0.0
    %518 = vmatpush1.msra.mxu0 0.0
    %519 = vmatprep.subr.mxu0 0.0
    %520 = vmatpush1.msra.mxu0 0.0
    %521 = vmatprep.subr.mxu0 0.0
    %522 = vmatpush1.msra.mxu0 0.0
    %523 = vmatprep.subr.mxu0 0.0
    %524 = vmatpush1.msra.mxu0 0.0
    %525 = vmatprep.subr.mxu0 0.0
    %526 = vmatpush1.msra.mxu0 0.0
    %527 = vmatprep.subr.mxu0 0.0
    %528 = vmatpush1.msra.mxu0 0.0
    %529 = vmatprep.subr.mxu0 0.0
    %530 = vmatpush1.msra.mxu0 0.0
    %531 = vmatprep.subr.mxu0 0.0
    %532 = vmatpush1.msra.mxu0 0.0
    %533 = vmatprep.subr.mxu0 0.0
    %534 = vmatpush1.msra.mxu0 0.0
    %535 = vmatprep.subr.mxu0 0.0
    %536 = vmatpush1.msra.mxu0 0.0
    %537 = vmatprep.subr.mxu0 0.0
    %538 = vmatpush1.msra.mxu0 0.0
    %539 = vmatprep.subr.mxu0 0.0
    %540 = vmatpush1.msra.mxu0 0.0
    %541 = vmatprep.subr.mxu0 0.0
    %542 = vmatpush1.msra.mxu0 0.0
    %543 = vmatprep.subr.mxu0 0.0
    %544 = vmatpush1.msra.mxu0 0.0
    %545 = vmatprep.subr.mxu0 0.0
    %546 = vmatpush1.msra.mxu0 0.0
    %547 = vmatprep.subr.mxu0 0.0
    %548 = vmatpush1.msra.mxu0 0.0
    %549 = vmatprep.subr.mxu0 0.0
    %550 = vmatpush1.msra.mxu0 0.0
    %551 = vmatprep.subr.mxu0 0.0
    %552 = vmatpush1.msra.mxu0 0.0
    %553 = vmatprep.subr.mxu0 0.0
    %554 = vmatpush1.msra.mxu0 0.0
    %555 = vmatprep.subr.mxu0 0.0
    %556 = vmatpush1.msra.mxu0 0.0
    %557 = vmatprep.mubr.f32.mxu0 0.0
    %558 = vmatmul.mubr.f32.gmra.mrb[0].mxu0 %v491
    %v559 = vpop.f32.mrb[0].mxu0
    %v560 = vadd.f32 %v487, %v559
    %v561 = vpop.f32.mrb[0].mxu0
    %562 = vdwg.mxu0
    %v563 = vld [vmem:[%s10] sm:$0xff]
    %v564 = vld [vmem:[%s10 + $0x8] sm:$0xff]
    %v565 = vld [vmem:[%s10 + $0x10] sm:$0xff]
    %v566 = vld [vmem:[%s14] sm:$0x1]
    %v568 = vlaneseq
    %v569 = vshrl.u32 %v568, 7
    %v570 = vsub.s32 0, %v569
    %v571 = vrot.slane %v566, %v570
    %573 = vmatprep.subr.mxu0 0.0
    %574 = vmatpush1.msra.mxu0 %v563
    %575 = vmatprep.subr.mxu0 0.0
    %576 = vmatpush1.msra.mxu0 %v564
    %577 = vmatprep.subr.mxu0 0.0
    %578 = vmatpush1.msra.mxu0 %v565
    %579 = vmatprep.subr.mxu0 0.0
    %580 = vmatpush1.msra.mxu0 0.0
    %581 = vmatprep.subr.mxu0 0.0
    %582 = vmatpush1.msra.mxu0 0.0
    %583 = vmatprep.subr.mxu0 0.0
    %584 = vmatpush1.msra.mxu0 0.0
    %585 = vmatprep.subr.mxu0 0.0
    %586 = vmatpush1.msra.mxu0 0.0
    %587 = vmatprep.subr.mxu0 0.0
    %588 = vmatpush1.msra.mxu0 0.0
    %589 = vmatprep.subr.mxu0 0.0
    %590 = vmatpush1.msra.mxu0 0.0
    %591 = vmatprep.subr.mxu0 0.0
    %592 = vmatpush1.msra.mxu0 0.0
    %593 = vmatprep.subr.mxu0 0.0
    %594 = vmatpush1.msra.mxu0 0.0
    %595 = vmatprep.subr.mxu0 0.0
    %596 = vmatpush1.msra.mxu0 0.0
    %597 = vmatprep.subr.mxu0 0.0
    %598 = vmatpush1.msra.mxu0 0.0
    %599 = vmatprep.subr.mxu0 0.0
    %600 = vmatpush1.msra.mxu0 0.0
    %601 = vmatprep.subr.mxu0 0.0
    %602 = vmatpush1.msra.mxu0 0.0
    %603 = vmatprep.subr.mxu0 0.0
    %604 = vmatpush1.msra.mxu0 0.0
    %605 = vmatprep.subr.mxu0 0.0
    %606 = vmatpush1.msra.mxu0 0.0
    %607 = vmatprep.subr.mxu0 0.0
    %608 = vmatpush1.msra.mxu0 0.0
    %609 = vmatprep.subr.mxu0 0.0
    %610 = vmatpush1.msra.mxu0 0.0
    %611 = vmatprep.subr.mxu0 0.0
    %612 = vmatpush1.msra.mxu0 0.0
    %613 = vmatprep.subr.mxu0 0.0
    %614 = vmatpush1.msra.mxu0 0.0
    %615 = vmatprep.subr.mxu0 0.0
    %616 = vmatpush1.msra.mxu0 0.0
    %617 = vmatprep.subr.mxu0 0.0
    %618 = vmatpush1.msra.mxu0 0.0
    %619 = vmatprep.subr.mxu0 0.0
    %620 = vmatpush1.msra.mxu0 0.0
    %621 = vmatprep.subr.mxu0 0.0
    %622 = vmatpush1.msra.mxu0 0.0
    %623 = vmatprep.subr.mxu0 0.0
    %624 = vmatpush1.msra.mxu0 0.0
    %625 = vmatprep.subr.mxu0 0.0
    %626 = vmatpush1.msra.mxu0 0.0
    %627 = vmatprep.subr.mxu0 0.0
    %628 = vmatpush1.msra.mxu0 0.0
    %629 = vmatprep.subr.mxu0 0.0
    %630 = vmatpush1.msra.mxu0 0.0
    %631 = vmatprep.subr.mxu0 0.0
    %632 = vmatpush1.msra.mxu0 0.0
    %633 = vmatprep.subr.mxu0 0.0
    %634 = vmatpush1.msra.mxu0 0.0
    %635 = vmatprep.subr.mxu0 0.0
    %636 = vmatpush1.msra.mxu0 0.0
    %637 = vmatprep.mubr.f32.mxu0 0.0
    %638 = vmatmul.mubr.f32.gmra.mrb[0].mxu0 %v491
    %v639 = vpop.f32.mrb[0].mxu0
    %v640 = vadd.f32 %v571, %v639
    %v641 = vpop.f32.mrb[0].mxu0
    %642 = vdwg.mxu0
    %v643 = vld [vmem:[%s11] sm:$0xff]
    %v644 = vld [vmem:[%s11 + $0x8] sm:$0xff]
    %v645 = vld [vmem:[%s11 + $0x10] sm:$0xff]
    %v646 = vld [vmem:[%s15] sm:$0x1]
    %v648 = vlaneseq
    %v649 = vshrl.u32 %v648, 7
    %v650 = vsub.s32 0, %v649
    %v651 = vrot.slane %v646, %v650
    %653 = vmatprep.subr.mxu0 0.0
    %654 = vmatpush1.msra.mxu0 %v643
    %655 = vmatprep.subr.mxu0 0.0
    %656 = vmatpush1.msra.mxu0 %v644
    %657 = vmatprep.subr.mxu0 0.0
    %658 = vmatpush1.msra.mxu0 %v645
    %659 = vmatprep.subr.mxu0 0.0
    %660 = vmatpush1.msra.mxu0 0.0
    %661 = vmatprep.subr.mxu0 0.0
    %662 = vmatpush1.msra.mxu0 0.0
    %663 = vmatprep.subr.mxu0 0.0
    %664 = vmatpush1.msra.mxu0 0.0
    %665 = vmatprep.subr.mxu0 0.0
    %666 = vmatpush1.msra.mxu0 0.0
    %667 = vmatprep.subr.mxu0 0.0
    %668 = vmatpush1.msra.mxu0 0.0
    %669 = vmatprep.subr.mxu0 0.0
    %670 = vmatpush1.msra.mxu0 0.0
    %671 = vmatprep.subr.mxu0 0.0
    %672 = vmatpush1.msra.mxu0 0.0
    %673 = vmatprep.subr.mxu0 0.0
    %674 = vmatpush1.msra.mxu0 0.0
    %675 = vmatprep.subr.mxu0 0.0
    %676 = vmatpush1.msra.mxu0 0.0
    %677 = vmatprep.subr.mxu0 0.0
    %678 = vmatpush1.msra.mxu0 0.0
    %679 = vmatprep.subr.mxu0 0.0
    %680 = vmatpush1.msra.mxu0 0.0
    %681 = vmatprep.subr.mxu0 0.0
    %682 = vmatpush1.msra.mxu0 0.0
    %683 = vmatprep.subr.mxu0 0.0
    %684 = vmatpush1.msra.mxu0 0.0
    %685 = vmatprep.subr.mxu0 0.0
    %686 = vmatpush1.msra.mxu0 0.0
    %687 = vmatprep.subr.mxu0 0.0
    %688 = vmatpush1.msra.mxu0 0.0
    %689 = vmatprep.subr.mxu0 0.0
    %690 = vmatpush1.msra.mxu0 0.0
    %691 = vmatprep.subr.mxu0 0.0
    %692 = vmatpush1.msra.mxu0 0.0
    %693 = vmatprep.subr.mxu0 0.0
    %694 = vmatpush1.msra.mxu0 0.0
    %695 = vmatprep.subr.mxu0 0.0
    %696 = vmatpush1.msra.mxu0 0.0
    %697 = vmatprep.subr.mxu0 0.0
    %698 = vmatpush1.msra.mxu0 0.0
    %699 = vmatprep.subr.mxu0 0.0
    %700 = vmatpush1.msra.mxu0 0.0
    %701 = vmatprep.subr.mxu0 0.0
    %702 = vmatpush1.msra.mxu0 0.0
    %703 = vmatprep.subr.mxu0 0.0
    %704 = vmatpush1.msra.mxu0 0.0
    %705 = vmatprep.subr.mxu0 0.0
    %706 = vmatpush1.msra.mxu0 0.0
    %707 = vmatprep.subr.mxu0 0.0
    %708 = vmatpush1.msra.mxu0 0.0
    %709 = vmatprep.subr.mxu0 0.0
    %710 = vmatpush1.msra.mxu0 0.0
    %711 = vmatprep.subr.mxu0 0.0
    %712 = vmatpush1.msra.mxu0 0.0
    %713 = vmatprep.subr.mxu0 0.0
    %714 = vmatpush1.msra.mxu0 0.0
    %715 = vmatprep.subr.mxu0 0.0
    %716 = vmatpush1.msra.mxu0 0.0
    %717 = vmatprep.mubr.f32.mxu0 0.0
    %718 = vmatmul.mubr.f32.gmra.mrb[0].mxu0 %v491
    %v719 = vpop.f32.mrb[0].mxu0
    %v720 = vadd.f32 %v651, %v719
    %v721 = vpop.f32.mrb[0].mxu0
    %722 = vdwg.mxu0
    %vm723 = vcmask 64512
    %v725 = vsel %vm723, %v560, 0
    %v728 = vsel %vm723, %v640, 0
    %730 = vmatprep.subr.mxu0 0.0
    %731 = vmatpush1.xpose.msra.mxu0 %v728
    %732 = vmatprep.subr.mxu0 0.0
    %733 = vmatpush1.xpose.msra.mxu0 0.0
    %734 = vmatprep.subr.mxu0 0.0
    %735 = vmatpush1.xpose.msra.mxu0 0.0
    %736 = vmatprep.subr.mxu0 0.0
    %737 = vmatpush1.xpose.msra.mxu0 0.0
    %738 = vmatprep.subr.mxu0 0.0
    %739 = vmatpush1.xpose.msra.mxu0 0.0
    %740 = vmatprep.subr.mxu0 0.0
    %741 = vmatpush1.xpose.msra.mxu0 0.0
    %742 = vmatprep.subr.mxu0 0.0
    %743 = vmatpush1.xpose.msra.mxu0 0.0
    %744 = vmatprep.subr.mxu0 0.0
    %745 = vmatpush1.xpose.msra.mxu0 0.0
    %746 = vmatprep.subr.mxu0 0.0
    %747 = vmatpush1.xpose.msra.mxu0 0.0
    %748 = vmatprep.subr.mxu0 0.0
    %749 = vmatpush1.xpose.msra.mxu0 0.0
    %750 = vmatprep.subr.mxu0 0.0
    %751 = vmatpush1.xpose.msra.mxu0 0.0
    %752 = vmatprep.subr.mxu0 0.0
    %753 = vmatpush1.xpose.msra.mxu0 0.0
    %754 = vmatprep.subr.mxu0 0.0
    %755 = vmatpush1.xpose.msra.mxu0 0.0
    %756 = vmatprep.subr.mxu0 0.0
    %757 = vmatpush1.xpose.msra.mxu0 0.0
    %758 = vmatprep.subr.mxu0 0.0
    %759 = vmatpush1.xpose.msra.mxu0 0.0
    %760 = vmatprep.subr.mxu0 0.0
    %761 = vmatpush1.xpose.msra.mxu0 0.0
    %762 = vmatprep.subr.mxu0 0.0
    %763 = vmatpush1.xpose.msra.mxu0 0.0
    %764 = vmatprep.subr.mxu0 0.0
    %765 = vmatpush1.xpose.msra.mxu0 0.0
    %766 = vmatprep.subr.mxu0 0.0
    %767 = vmatpush1.xpose.msra.mxu0 0.0
    %768 = vmatprep.subr.mxu0 0.0
    %769 = vmatpush1.xpose.msra.mxu0 0.0
    %770 = vmatprep.subr.mxu0 0.0
    %771 = vmatpush1.xpose.msra.mxu0 0.0
    %772 = vmatprep.subr.mxu0 0.0
    %773 = vmatpush1.xpose.msra.mxu0 0.0
    %774 = vmatprep.subr.mxu0 0.0
    %775 = vmatpush1.xpose.msra.mxu0 0.0
    %776 = vmatprep.subr.mxu0 0.0
    %777 = vmatpush1.xpose.msra.mxu0 0.0
    %778 = vmatprep.subr.mxu0 0.0
    %779 = vmatpush1.xpose.msra.mxu0 0.0
    %780 = vmatprep.subr.mxu0 0.0
    %781 = vmatpush1.xpose.msra.mxu0 0.0
    %782 = vmatprep.subr.mxu0 0.0
    %783 = vmatpush1.xpose.msra.mxu0 0.0
    %784 = vmatprep.subr.mxu0 0.0
    %785 = vmatpush1.xpose.msra.mxu0 0.0
    %786 = vmatprep.subr.mxu0 0.0
    %787 = vmatpush1.xpose.msra.mxu0 0.0
    %788 = vmatprep.subr.mxu0 0.0
    %789 = vmatpush1.xpose.msra.mxu0 0.0
    %790 = vmatprep.subr.mxu0 0.0
    %791 = vmatpush1.xpose.msra.mxu0 0.0
    %792 = vmatprep.subr.mxu0 0.0
    %793 = vmatpush1.xpose.msra.mxu0 0.0
    %794 = vmatprep.mubr.f32.mxu0 0.0
    %795 = vmatmul.mubr.f32.gmra.mrb[0].mxu0 %v725
    %v796 = vpop.f32.mrb[0].mxu0
    %v797 = vadd.f32 0.0, %v796
    %v798 = vpop.f32.mrb[0].mxu0
    %799 = vdwg.mxu0
    %v800 = vmul.f32 %v797, 0.35355338
    %vm801 = vcmask 9216
    %v802 = vsel %vm801, %v800, -inf
    %803 = vmax.xlane.f32.xlu0 %v802
    %v804 = vpop.xlane.xlu0 %803
    %v805 = vsub.f32 %v800, %v804
    %v806 = vmul.f32 %v805, 1.442695
    %v807 = vpow.pop %v806
    %v808 = vsel %vm801, %v807, 0.0
    %809 = vadd.xlane.f32.xlu0 %v808
    %v810 = vpop.xlane.xlu0 %809
    %v811 = vrcp.pop %v810
    %v812 = vmul.f32 %v807, %v811
    %vm813 = vcmask 15360
    %v815 = vsel %vm813, %v812, 0
    %vm817 = vcmask 1041408
    %v819 = vsel %vm817, %v720, 0
    %821 = vmatprep.subr.mxu0 0.0
    %822 = vmatpush1.msra.mxu0 %v819
    %823 = vmatprep.subr.mxu0 0.0
    %824 = vmatpush1.msra.mxu0 0.0
    %825 = vmatprep.subr.mxu0 0.0
    %826 = vmatpush1.msra.mxu0 0.0
    %827 = vmatprep.subr.mxu0 0.0
    %828 = vmatpush1.msra.mxu0 0.0
    %829 = vmatprep.subr.mxu0 0.0
    %830 = vmatpush1.msra.mxu0 0.0
    %831 = vmatprep.subr.mxu0 0.0
    %832 = vmatpush1.msra.mxu0 0.0
    %833 = vmatprep.subr.mxu0 0.0
    %834 = vmatpush1.msra.mxu0 0.0
    %835 = vmatprep.subr.mxu0 0.0
    %836 = vmatpush1.msra.mxu0 0.0
    %837 = vmatprep.subr.mxu0 0.0
    %838 = vmatpush1.msra.mxu0 0.0
    %839 = vmatprep.subr.mxu0 0.0
    %840 = vmatpush1.msra.mxu0 0.0
    %841 = vmatprep.subr.mxu0 0.0
    %842 = vmatpush1.msra.mxu0 0.0
    %843 = vmatprep.subr.mxu0 0.0
    %844 = vmatpush1.msra.mxu0 0.0
    %845 = vmatprep.subr.mxu0 0.0
    %846 = vmatpush1.msra.mxu0 0.0
    %847 = vmatprep.subr.mxu0 0.0
    %848 = vmatpush1.msra.mxu0 0.0
    %849 = vmatprep.subr.mxu0 0.0
    %850 = vmatpush1.msra.mxu0 0.0
    %851 = vmatprep.subr.mxu0 0.0
    %852 = vmatpush1.msra.mxu0 0.0
    %853 = vmatprep.subr.mxu0 0.0
    %854 = vmatpush1.msra.mxu0 0.0
    %855 = vmatprep.subr.mxu0 0.0
    %856 = vmatpush1.msra.mxu0 0.0
    %857 = vmatprep.subr.mxu0 0.0
    %858 = vmatpush1.msra.mxu0 0.0
    %859 = vmatprep.subr.mxu0 0.0
    %860 = vmatpush1.msra.mxu0 0.0
    %861 = vmatprep.subr.mxu0 0.0
    %862 = vmatpush1.msra.mxu0 0.0
    %863 = vmatprep.subr.mxu0 0.0
    %864 = vmatpush1.msra.mxu0 0.0
    %865 = vmatprep.subr.mxu0 0.0
    %866 = vmatpush1.msra.mxu0 0.0
    %867 = vmatprep.subr.mxu0 0.0
    %868 = vmatpush1.msra.mxu0 0.0
    %869 = vmatprep.subr.mxu0 0.0
    %870 = vmatpush1.msra.mxu0 0.0
    %871 = vmatprep.subr.mxu0 0.0
    %872 = vmatpush1.msra.mxu0 0.0
    %873 = vmatprep.subr.mxu0 0.0
    %874 = vmatpush1.msra.mxu0 0.0
    %875 = vmatprep.subr.mxu0 0.0
    %876 = vmatpush1.msra.mxu0 0.0
    %877 = vmatprep.subr.mxu0 0.0
    %878 = vmatpush1.msra.mxu0 0.0
    %879 = vmatprep.subr.mxu0 0.0
    %880 = vmatpush1.msra.mxu0 0.0
    %881 = vmatprep.subr.mxu0 0.0
    %882 = vmatpush1.msra.mxu0 0.0
    %883 = vmatprep.subr.mxu0 0.0
    %884 = vmatpush1.msra.mxu0 0.0
    %885 = vmatprep.mubr.f32.mxu0 0.0
    %886 = vmatmul.mubr.f32.gmra.mrb[0].mxu0 %v815
    %v887 = vpop.f32.mrb[0].mxu0
    %v888 = vadd.f32 0.0, %v887
    %v889 = vpop.f32.mrb[0].mxu0
    %890 = vdwg.mxu0
    %v891 = vld [vmem:[%s12] sm:$0xff]
    %s892 = scalar_lea.vmem %s9, 24
    %v893 = vld [vmem:[%s892] sm:$0xff]
    %v894 = vld [vmem:[%s892 + $0x8] sm:$0xff]
    %v895 = vld [vmem:[%s892 + $0x10] sm:$0xff]
    %s896 = scalar_lea.vmem %s13, 1
    %v897 = vld [vmem:[%s896] sm:$0x1]
    %v899 = vlaneseq
    %v900 = vshrl.u32 %v899, 7
    %v901 = vsub.s32 0, %v900
    %v902 = vrot.slane %v897, %v901
    %904 = vmatprep.subr.mxu0 0.0
    %905 = vmatpush1.msra.mxu0 %v893
    %906 = vmatprep.subr.mxu0 0.0
    %907 = vmatpush1.msra.mxu0 %v894
    %908 = vmatprep.subr.mxu0 0.0
    %909 = vmatpush1.msra.mxu0 %v895
    %910 = vmatprep.subr.mxu0 0.0
    %911 = vmatpush1.msra.mxu0 0.0
    %912 = vmatprep.subr.mxu0 0.0
    %913 = vmatpush1.msra.mxu0 0.0
    %914 = vmatprep.subr.mxu0 0.0
    %915 = vmatpush1.msra.mxu0 0.0
    %916 = vmatprep.subr.mxu0 0.0
    %917 = vmatpush1.msra.mxu0 0.0
    %918 = vmatprep.subr.mxu0 0.0
    %919 = vmatpush1.msra.mxu0 0.0
    %920 = vmatprep.subr.mxu0 0.0
    %921 = vmatpush1.msra.mxu0 0.0
    %922 = vmatprep.subr.mxu0 0.0
    %923 = vmatpush1.msra.mxu0 0.0
    %924 = vmatprep.subr.mxu0 0.0
    %925 = vmatpush1.msra.mxu0 0.0
    %926 = vmatprep.subr.mxu0 0.0
    %927 = vmatpush1.msra.mxu0 0.0
    %928 = vmatprep.subr.mxu0 0.0
    %929 = vmatpush1.msra.mxu0 0.0
    %930 = vmatprep.subr.mxu0 0.0
    %931 = vmatpush1.msra.mxu0 0.0
    %932 = vmatprep.subr.mxu0 0.0
    %933 = vmatpush1.msra.mxu0 0.0
    %934 = vmatprep.subr.mxu0 0.0
    %935 = vmatpush1.msra.mxu0 0.0
    %936 = vmatprep.subr.mxu0 0.0
    %937 = vmatpush1.msra.mxu0 0.0
    %938 = vmatprep.subr.mxu0 0.0
    %939 = vmatpush1.msra.mxu0 0.0
    %940 = vmatprep.subr.mxu0 0.0
    %941 = vmatpush1.msra.mxu0 0.0
    %942 = vmatprep.subr.mxu0 0.0
    %943 = vmatpush1.msra.mxu0 0.0
    %944 = vmatprep.subr.mxu0 0.0
    %945 = vmatpush1.msra.mxu0 0.0
    %946 = vmatprep.subr.mxu0 0.0
    %947 = vmatpush1.msra.mxu0 0.0
    %948 = vmatprep.subr.mxu0 0.0
    %949 = vmatpush1.msra.mxu0 0.0
    %950 = vmatprep.subr.mxu0 0.0
    %951 = vmatpush1.msra.mxu0 0.0
    %952 = vmatprep.subr.mxu0 0.0
    %953 = vmatpush1.msra.mxu0 0.0
    %954 = vmatprep.subr.mxu0 0.0
    %955 = vmatpush1.msra.mxu0 0.0
    %956 = vmatprep.subr.mxu0 0.0
    %957 = vmatpush1.msra.mxu0 0.0
    %958 = vmatprep.subr.mxu0 0.0
    %959 = vmatpush1.msra.mxu0 0.0
    %960 = vmatprep.subr.mxu0 0.0
    %961 = vmatpush1.msra.mxu0 0.0
    %962 = vmatprep.subr.mxu0 0.0
    %963 = vmatpush1.msra.mxu0 0.0
    %964 = vmatprep.subr.mxu0 0.0
    %965 = vmatpush1.msra.mxu0 0.0
    %966 = vmatprep.subr.mxu0 0.0
    %967 = vmatpush1.msra.mxu0 0.0
    %968 = vmatprep.mubr.f32.mxu0 0.0
    %969 = vmatmul.mubr.f32.gmra.mrb[0].mxu0 %v491
    %v970 = vpop.f32.mrb[0].mxu0
    %v971 = vadd.f32 %v902, %v970
    %v972 = vpop.f32.mrb[0].mxu0
    %973 = vdwg.mxu0
    %s974 = scalar_lea.vmem %s10, 24
    %v975 = vld [vmem:[%s974] sm:$0xff]
    %v976 = vld [vmem:[%s974 + $0x8] sm:$0xff]
    %v977 = vld [vmem:[%s974 + $0x10] sm:$0xff]
    %s978 = scalar_lea.vmem %s14, 1
    %v979 = vld [vmem:[%s978] sm:$0x1]
    %v981 = vlaneseq
    %v982 = vshrl.u32 %v981, 7
    %v983 = vsub.s32 0, %v982
    %v984 = vrot.slane %v979, %v983
    %986 = vmatprep.subr.mxu0 0.0
    %987 = vmatpush1.msra.mxu0 %v975
    %988 = vmatprep.subr.mxu0 0.0
    %989 = vmatpush1.msra.mxu0 %v976
    %990 = vmatprep.subr.mxu0 0.0
    %991 = vmatpush1.msra.mxu0 %v977
    %992 = vmatprep.subr.mxu0 0.0
    %993 = vmatpush1.msra.mxu0 0.0
    %994 = vmatprep.subr.mxu0 0.0
    %995 = vmatpush1.msra.mxu0 0.0
    %996 = vmatprep.subr.mxu0 0.0
    %997 = vmatpush1.msra.mxu0 0.0
    %998 = vmatprep.subr.mxu0 0.0
    %999 = vmatpush1.msra.mxu0 0.0
    %1000 = vmatprep.subr.mxu0 0.0
    %1001 = vmatpush1.msra.mxu0 0.0
    %1002 = vmatprep.subr.mxu0 0.0
    %1003 = vmatpush1.msra.mxu0 0.0
    %1004 = vmatprep.subr.mxu0 0.0
    %1005 = vmatpush1.msra.mxu0 0.0
    %1006 = vmatprep.subr.mxu0 0.0
    %1007 = vmatpush1.msra.mxu0 0.0
    %1008 = vmatprep.subr.mxu0 0.0
    %1009 = vmatpush1.msra.mxu0 0.0
    %1010 = vmatprep.subr.mxu0 0.0
    %1011 = vmatpush1.msra.mxu0 0.0
    %1012 = vmatprep.subr.mxu0 0.0
    %1013 = vmatpush1.msra.mxu0 0.0
    %1014 = vmatprep.subr.mxu0 0.0
    %1015 = vmatpush1.msra.mxu0 0.0
    %1016 = vmatprep.subr.mxu0 0.0
    %1017 = vmatpush1.msra.mxu0 0.0
    %1018 = vmatprep.subr.mxu0 0.0
    %1019 = vmatpush1.msra.mxu0 0.0
    %1020 = vmatprep.subr.mxu0 0.0
    %1021 = vmatpush1.msra.mxu0 0.0
    %1022 = vmatprep.subr.mxu0 0.0
    %1023 = vmatpush1.msra.mxu0 0.0
    %1024 = vmatprep.subr.mxu0 0.0
    %1025 = vmatpush1.msra.mxu0 0.0
    %1026 = vmatprep.subr.mxu0 0.0
    %1027 = vmatpush1.msra.mxu0 0.0
    %1028 = vmatprep.subr.mxu0 0.0
    %1029 = vmatpush1.msra.mxu0 0.0
    %1030 = vmatprep.subr.mxu0 0.0
    %1031 = vmatpush1.msra.mxu0 0.0
    %1032 = vmatprep.subr.mxu0 0.0
    %1033 = vmatpush1.msra.mxu0 0.0
    %1034 = vmatprep.subr.mxu0 0.0
    %1035 = vmatpush1.msra.mxu0 0.0
    %1036 = vmatprep.subr.mxu0 0.0
    %1037 = vmatpush1.msra.mxu0 0.0
    %1038 = vmatprep.subr.mxu0 0.0
    %1039 = vmatpush1.msra.mxu0 0.0
    %1040 = vmatprep.subr.mxu0 0.0
    %1041 = vmatpush1.msra.mxu0 0.0
    %1042 = vmatprep.subr.mxu0 0.0
    %1043 = vmatpush1.msra.mxu0 0.0
    %1044 = vmatprep.subr.mxu0 0.0
    %1045 = vmatpush1.msra.mxu0 0.0
    %1046 = vmatprep.subr.mxu0 0.0
    %1047 = vmatpush1.msra.mxu0 0.0
    %1048 = vmatprep.subr.mxu0 0.0
    %1049 = vmatpush1.msra.mxu0 0.0
    %1050 = vmatprep.mubr.f32.mxu0 0.0
    %1051 = vmatmul.mubr.f32.gmra.mrb[0].mxu0 %v491
    %v1052 = vpop.f32.mrb[0].mxu0
    %v1053 = vadd.f32 %v984, %v1052
    %v1054 = vpop.f32.mrb[0].mxu0
    %1055 = vdwg.mxu0
    %s1056 = scalar_lea.vmem %s11, 24
    %v1057 = vld [vmem:[%s1056] sm:$0xff]
    %v1058 = vld [vmem:[%s1056 + $0x8] sm:$0xff]
    %v1059 = vld [vmem:[%s1056 + $0x10] sm:$0xff]
    %s1060 = scalar_lea.vmem %s15, 1
    %v1061 = vld [vmem:[%s1060] sm:$0x1]
    %v1063 = vlaneseq
    %v1064 = vshrl.u32 %v1063, 7
    %v1065 = vsub.s32 0, %v1064
    %v1066 = vrot.slane %v1061, %v1065
    %1068 = vmatprep.subr.mxu0 0.0
    %1069 = vmatpush1.msra.mxu0 %v1057
    %1070 = vmatprep.subr.mxu0 0.0
    %1071 = vmatpush1.msra.mxu0 %v1058
    %1072 = vmatprep.subr.mxu0 0.0
    %1073 = vmatpush1.msra.mxu0 %v1059
    %1074 = vmatprep.subr.mxu0 0.0
    %1075 = vmatpush1.msra.mxu0 0.0
    %1076 = vmatprep.subr.mxu0 0.0
    %1077 = vmatpush1.msra.mxu0 0.0
    %1078 = vmatprep.subr.mxu0 0.0
    %1079 = vmatpush1.msra.mxu0 0.0
    %1080 = vmatprep.subr.mxu0 0.0
    %1081 = vmatpush1.msra.mxu0 0.0
    %1082 = vmatprep.subr.mxu0 0.0
    %1083 = vmatpush1.msra.mxu0 0.0
    %1084 = vmatprep.subr.mxu0 0.0
    %1085 = vmatpush1.msra.mxu0 0.0
    %1086 = vmatprep.subr.mxu0 0.0
    %1087 = vmatpush1.msra.mxu0 0.0
    %1088 = vmatprep.subr.mxu0 0.0
    %1089 = vmatpush1.msra.mxu0 0.0
    %1090 = vmatprep.subr.mxu0 0.0
    %1091 = vmatpush1.msra.mxu0 0.0
    %1092 = vmatprep.subr.mxu0 0.0
    %1093 = vmatpush1.msra.mxu0 0.0
    %1094 = vmatprep.subr.mxu0 0.0
    %1095 = vmatpush1.msra.mxu0 0.0
    %1096 = vmatprep.subr.mxu0 0.0
    %1097 = vmatpush1.msra.mxu0 0.0
    %1098 = vmatprep.subr.mxu0 0.0
    %1099 = vmatpush1.msra.mxu0 0.0
    %1100 = vmatprep.subr.mxu0 0.0
    %1101 = vmatpush1.msra.mxu0 0.0
    %1102 = vmatprep.subr.mxu0 0.0
    %1103 = vmatpush1.msra.mxu0 0.0
    %1104 = vmatprep.subr.mxu0 0.0
    %1105 = vmatpush1.msra.mxu0 0.0
    %1106 = vmatprep.subr.mxu0 0.0
    %1107 = vmatpush1.msra.mxu0 0.0
    %1108 = vmatprep.subr.mxu0 0.0
    %1109 = vmatpush1.msra.mxu0 0.0
    %1110 = vmatprep.subr.mxu0 0.0
    %1111 = vmatpush1.msra.mxu0 0.0
    %1112 = vmatprep.subr.mxu0 0.0
    %1113 = vmatpush1.msra.mxu0 0.0
    %1114 = vmatprep.subr.mxu0 0.0
    %1115 = vmatpush1.msra.mxu0 0.0
    %1116 = vmatprep.subr.mxu0 0.0
    %1117 = vmatpush1.msra.mxu0 0.0
    %1118 = vmatprep.subr.mxu0 0.0
    %1119 = vmatpush1.msra.mxu0 0.0
    %1120 = vmatprep.subr.mxu0 0.0
    %1121 = vmatpush1.msra.mxu0 0.0
    %1122 = vmatprep.subr.mxu0 0.0
    %1123 = vmatpush1.msra.mxu0 0.0
    %1124 = vmatprep.subr.mxu0 0.0
    %1125 = vmatpush1.msra.mxu0 0.0
    %1126 = vmatprep.subr.mxu0 0.0
    %1127 = vmatpush1.msra.mxu0 0.0
    %1128 = vmatprep.subr.mxu0 0.0
    %1129 = vmatpush1.msra.mxu0 0.0
    %1130 = vmatprep.subr.mxu0 0.0
    %1131 = vmatpush1.msra.mxu0 0.0
    %1132 = vmatprep.mubr.f32.mxu0 0.0
    %1133 = vmatmul.mubr.f32.gmra.mrb[0].mxu0 %v491
    %v1134 = vpop.f32.mrb[0].mxu0
    %v1135 = vadd.f32 %v1066, %v1134
    %v1136 = vpop.f32.mrb[0].mxu0
    %1137 = vdwg.mxu0
    %v1139 = vsel %vm723, %v971, 0
    %v1142 = vsel %vm723, %v1053, 0
    %1144 = vmatprep.subr.mxu0 0.0
    %1145 = vmatpush1.xpose.msra.mxu0 %v1142
    %1146 = vmatprep.subr.mxu0 0.0
    %1147 = vmatpush1.xpose.msra.mxu0 0.0
    %1148 = vmatprep.subr.mxu0 0.0
    %1149 = vmatpush1.xpose.msra.mxu0 0.0
    %1150 = vmatprep.subr.mxu0 0.0
    %1151 = vmatpush1.xpose.msra.mxu0 0.0
    %1152 = vmatprep.subr.mxu0 0.0
    %1153 = vmatpush1.xpose.msra.mxu0 0.0
    %1154 = vmatprep.subr.mxu0 0.0
    %1155 = vmatpush1.xpose.msra.mxu0 0.0
    %1156 = vmatprep.subr.mxu0 0.0
    %1157 = vmatpush1.xpose.msra.mxu0 0.0
    %1158 = vmatprep.subr.mxu0 0.0
    %1159 = vmatpush1.xpose.msra.mxu0 0.0
    %1160 = vmatprep.subr.mxu0 0.0
    %1161 = vmatpush1.xpose.msra.mxu0 0.0
    %1162 = vmatprep.subr.mxu0 0.0
    %1163 = vmatpush1.xpose.msra.mxu0 0.0
    %1164 = vmatprep.subr.mxu0 0.0
    %1165 = vmatpush1.xpose.msra.mxu0 0.0
    %1166 = vmatprep.subr.mxu0 0.0
    %1167 = vmatpush1.xpose.msra.mxu0 0.0
    %1168 = vmatprep.subr.mxu0 0.0
    %1169 = vmatpush1.xpose.msra.mxu0 0.0
    %1170 = vmatprep.subr.mxu0 0.0
    %1171 = vmatpush1.xpose.msra.mxu0 0.0
    %1172 = vmatprep.subr.mxu0 0.0
    %1173 = vmatpush1.xpose.msra.mxu0 0.0
    %1174 = vmatprep.subr.mxu0 0.0
    %1175 = vmatpush1.xpose.msra.mxu0 0.0
    %1176 = vmatprep.subr.mxu0 0.0
    %1177 = vmatpush1.xpose.msra.mxu0 0.0
    %1178 = vmatprep.subr.mxu0 0.0
    %1179 = vmatpush1.xpose.msra.mxu0 0.0
    %1180 = vmatprep.subr.mxu0 0.0
    %1181 = vmatpush1.xpose.msra.mxu0 0.0
    %1182 = vmatprep.subr.mxu0 0.0
    %1183 = vmatpush1.xpose.msra.mxu0 0.0
    %1184 = vmatprep.subr.mxu0 0.0
    %1185 = vmatpush1.xpose.msra.mxu0 0.0
    %1186 = vmatprep.subr.mxu0 0.0
    %1187 = vmatpush1.xpose.msra.mxu0 0.0
    %1188 = vmatprep.subr.mxu0 0.0
    %1189 = vmatpush1.xpose.msra.mxu0 0.0
    %1190 = vmatprep.subr.mxu0 0.0
    %1191 = vmatpush1.xpose.msra.mxu0 0.0
    %1192 = vmatprep.subr.mxu0 0.0
    %1193 = vmatpush1.xpose.msra.mxu0 0.0
    %1194 = vmatprep.subr.mxu0 0.0
    %1195 = vmatpush1.xpose.msra.mxu0 0.0
    %1196 = vmatprep.subr.mxu0 0.0
    %1197 = vmatpush1.xpose.msra.mxu0 0.0
    %1198 = vmatprep.subr.mxu0 0.0
    %1199 = vmatpush1.xpose.msra.mxu0 0.0
    %1200 = vmatprep.subr.mxu0 0.0
    %1201 = vmatpush1.xpose.msra.mxu0 0.0
    %1202 = vmatprep.subr.mxu0 0.0
    %1203 = vmatpush1.xpose.msra.mxu0 0.0
    %1204 = vmatprep.subr.mxu0 0.0
    %1205 = vmatpush1.xpose.msra.mxu0 0.0
    %1206 = vmatprep.subr.mxu0 0.0
    %1207 = vmatpush1.xpose.msra.mxu0 0.0
    %1208 = vmatprep.mubr.f32.mxu0 0.0
    %1209 = vmatmul.mubr.f32.gmra.mrb[0].mxu0 %v1139
    %v1210 = vpop.f32.mrb[0].mxu0
    %v1211 = vadd.f32 0.0, %v1210
    %v1212 = vpop.f32.mrb[0].mxu0
    %1213 = vdwg.mxu0
    %v1214 = vmul.f32 %v1211, 0.35355338
    %v1215 = vsel %vm801, %v1214, -inf
    %1216 = vmax.xlane.f32.xlu0 %v1215
    %v1217 = vpop.xlane.xlu0 %1216
    %v1218 = vsub.f32 %v1214, %v1217
    %v1219 = vmul.f32 %v1218, 1.442695
    %v1220 = vpow.pop %v1219
    %v1221 = vsel %vm801, %v1220, 0.0
    %1222 = vadd.xlane.f32.xlu0 %v1221
    %v1223 = vpop.xlane.xlu0 %1222
    %v1224 = vrcp.pop %v1223
    %v1225 = vmul.f32 %v1220, %v1224
    %v1227 = vsel %vm813, %v1225, 0
    %v1230 = vsel %vm817, %v1135, 0
    %1232 = vmatprep.subr.mxu0 0.0
    %1233 = vmatpush1.msra.mxu0 %v1230
    %1234 = vmatprep.subr.mxu0 0.0
    %1235 = vmatpush1.msra.mxu0 0.0
    %1236 = vmatprep.subr.mxu0 0.0
    %1237 = vmatpush1.msra.mxu0 0.0
    %1238 = vmatprep.subr.mxu0 0.0
    %1239 = vmatpush1.msra.mxu0 0.0
    %1240 = vmatprep.subr.mxu0 0.0
    %1241 = vmatpush1.msra.mxu0 0.0
    %1242 = vmatprep.subr.mxu0 0.0
    %1243 = vmatpush1.msra.mxu0 0.0
    %1244 = vmatprep.subr.mxu0 0.0
    %1245 = vmatpush1.msra.mxu0 0.0
    %1246 = vmatprep.subr.mxu0 0.0
    %1247 = vmatpush1.msra.mxu0 0.0
    %1248 = vmatprep.subr.mxu0 0.0
    %1249 = vmatpush1.msra.mxu0 0.0
    %1250 = vmatprep.subr.mxu0 0.0
    %1251 = vmatpush1.msra.mxu0 0.0
    %1252 = vmatprep.subr.mxu0 0.0
    %1253 = vmatpush1.msra.mxu0 0.0
    %1254 = vmatprep.subr.mxu0 0.0
    %1255 = vmatpush1.msra.mxu0 0.0
    %1256 = vmatprep.subr.mxu0 0.0
    %1257 = vmatpush1.msra.mxu0 0.0
    %1258 = vmatprep.subr.mxu0 0.0
    %1259 = vmatpush1.msra.mxu0 0.0
    %1260 = vmatprep.subr.mxu0 0.0
    %1261 = vmatpush1.msra.mxu0 0.0
    %1262 = vmatprep.subr.mxu0 0.0
    %1263 = vmatpush1.msra.mxu0 0.0
    %1264 = vmatprep.subr.mxu0 0.0
    %1265 = vmatpush1.msra.mxu0 0.0
    %1266 = vmatprep.subr.mxu0 0.0
    %1267 = vmatpush1.msra.mxu0 0.0
    %1268 = vmatprep.subr.mxu0 0.0
    %1269 = vmatpush1.msra.mxu0 0.0
    %1270 = vmatprep.subr.mxu0 0.0
    %1271 = vmatpush1.msra.mxu0 0.0
    %1272 = vmatprep.subr.mxu0 0.0
    %1273 = vmatpush1.msra.mxu0 0.0
    %1274 = vmatprep.subr.mxu0 0.0
    %1275 = vmatpush1.msra.mxu0 0.0
    %1276 = vmatprep.subr.mxu0 0.0
    %1277 = vmatpush1.msra.mxu0 0.0
    %1278 = vmatprep.subr.mxu0 0.0
    %1279 = vmatpush1.msra.mxu0 0.0
    %1280 = vmatprep.subr.mxu0 0.0
    %1281 = vmatpush1.msra.mxu0 0.0
    %1282 = vmatprep.subr.mxu0 0.0
    %1283 = vmatpush1.msra.mxu0 0.0
    %1284 = vmatprep.subr.mxu0 0.0
    %1285 = vmatpush1.msra.mxu0 0.0
    %1286 = vmatprep.subr.mxu0 0.0
    %1287 = vmatpush1.msra.mxu0 0.0
    %1288 = vmatprep.subr.mxu0 0.0
    %1289 = vmatpush1.msra.mxu0 0.0
    %1290 = vmatprep.subr.mxu0 0.0
    %1291 = vmatpush1.msra.mxu0 0.0
    %1292 = vmatprep.subr.mxu0 0.0
    %1293 = vmatpush1.msra.mxu0 0.0
    %1294 = vmatprep.subr.mxu0 0.0
    %1295 = vmatpush1.msra.mxu0 0.0
    %1296 = vmatprep.mubr.f32.mxu0 0.0
    %1297 = vmatmul.mubr.f32.gmra.mrb[0].mxu0 %v1227
    %v1298 = vpop.f32.mrb[0].mxu0
    %v1299 = vadd.f32 0.0, %v1298
    %v1300 = vpop.f32.mrb[0].mxu0
    %1301 = vdwg.mxu0
    %s1302 = scalar_lea.vmem %s12, 8
    %v1303 = vld [vmem:[%s1302] sm:$0xff]
    %v1305 = vsel %vm723, %v1299, 0
    %1307 = vmatprep.subr.mxu0 0.0
    %1308 = vmatpush1.msra.mxu0 %v1303
    %1309 = vmatprep.subr.mxu0 0.0
    %1310 = vmatpush1.msra.mxu0 0.0
    %1311 = vmatprep.subr.mxu0 0.0
    %1312 = vmatpush1.msra.mxu0 0.0
    %1313 = vmatprep.subr.mxu0 0.0
    %1314 = vmatpush1.msra.mxu0 0.0
    %1315 = vmatprep.subr.mxu0 0.0
    %1316 = vmatpush1.msra.mxu0 0.0
    %1317 = vmatprep.subr.mxu0 0.0
    %1318 = vmatpush1.msra.mxu0 0.0
    %1319 = vmatprep.subr.mxu0 0.0
    %1320 = vmatpush1.msra.mxu0 0.0
    %1321 = vmatprep.subr.mxu0 0.0
    %1322 = vmatpush1.msra.mxu0 0.0
    %1323 = vmatprep.subr.mxu0 0.0
    %1324 = vmatpush1.msra.mxu0 0.0
    %1325 = vmatprep.subr.mxu0 0.0
    %1326 = vmatpush1.msra.mxu0 0.0
    %1327 = vmatprep.subr.mxu0 0.0
    %1328 = vmatpush1.msra.mxu0 0.0
    %1329 = vmatprep.subr.mxu0 0.0
    %1330 = vmatpush1.msra.mxu0 0.0
    %1331 = vmatprep.subr.mxu0 0.0
    %1332 = vmatpush1.msra.mxu0 0.0
    %1333 = vmatprep.subr.mxu0 0.0
    %1334 = vmatpush1.msra.mxu0 0.0
    %1335 = vmatprep.subr.mxu0 0.0
    %1336 = vmatpush1.msra.mxu0 0.0
    %1337 = vmatprep.subr.mxu0 0.0
    %1338 = vmatpush1.msra.mxu0 0.0
    %1339 = vmatprep.subr.mxu0 0.0
    %1340 = vmatpush1.msra.mxu0 0.0
    %1341 = vmatprep.subr.mxu0 0.0
    %1342 = vmatpush1.msra.mxu0 0.0
    %1343 = vmatprep.subr.mxu0 0.0
    %1344 = vmatpush1.msra.mxu0 0.0
    %1345 = vmatprep.subr.mxu0 0.0
    %1346 = vmatpush1.msra.mxu0 0.0
    %1347 = vmatprep.subr.mxu0 0.0
    %1348 = vmatpush1.msra.mxu0 0.0
    %1349 = vmatprep.subr.mxu0 0.0
    %1350 = vmatpush1.msra.mxu0 0.0
    %1351 = vmatprep.subr.mxu0 0.0
    %1352 = vmatpush1.msra.mxu0 0.0
    %1353 = vmatprep.subr.mxu0 0.0
    %1354 = vmatpush1.msra.mxu0 0.0
    %1355 = vmatprep.subr.mxu0 0.0
    %1356 = vmatpush1.msra.mxu0 0.0
    %1357 = vmatprep.subr.mxu0 0.0
    %1358 = vmatpush1.msra.mxu0 0.0
    %1359 = vmatprep.subr.mxu0 0.0
    %1360 = vmatpush1.msra.mxu0 0.0
    %1361 = vmatprep.subr.mxu0 0.0
    %1362 = vmatpush1.msra.mxu0 0.0
    %1363 = vmatprep.subr.mxu0 0.0
    %1364 = vmatpush1.msra.mxu0 0.0
    %1365 = vmatprep.subr.mxu0 0.0
    %1366 = vmatpush1.msra.mxu0 0.0
    %1367 = vmatprep.subr.mxu0 0.0
    %1368 = vmatpush1.msra.mxu0 0.0
    %1369 = vmatprep.subr.mxu0 0.0
    %1370 = vmatpush1.msra.mxu0 0.0
    %1371 = vmatprep.mubr.f32.mxu0 0.0
    %1372 = vmatmul.mubr.f32.gmra.mrb[0].mxu0 %v1305
    %v1373 = vpop.f32.mrb[0].mxu0
    %v1374 = vadd.f32 0.0, %v1373
    %v1375 = vpop.f32.mrb[0].mxu0
    %1376 = vdwg.mxu0
    %v1378 = vsel %vm723, %v888, 0
    %1380 = vmatprep.subr.mxu0 0.0
    %1381 = vmatpush1.msra.mxu0 %v891
    %1382 = vmatprep.subr.mxu0 0.0
    %1383 = vmatpush1.msra.mxu0 0.0
    %1384 = vmatprep.subr.mxu0 0.0
    %1385 = vmatpush1.msra.mxu0 0.0
    %1386 = vmatprep.subr.mxu0 0.0
    %1387 = vmatpush1.msra.mxu0 0.0
    %1388 = vmatprep.subr.mxu0 0.0
    %1389 = vmatpush1.msra.mxu0 0.0
    %1390 = vmatprep.subr.mxu0 0.0
    %1391 = vmatpush1.msra.mxu0 0.0
    %1392 = vmatprep.subr.mxu0 0.0
    %1393 = vmatpush1.msra.mxu0 0.0
    %1394 = vmatprep.subr.mxu0 0.0
    %1395 = vmatpush1.msra.mxu0 0.0
    %1396 = vmatprep.subr.mxu0 0.0
    %1397 = vmatpush1.msra.mxu0 0.0
    %1398 = vmatprep.subr.mxu0 0.0
    %1399 = vmatpush1.msra.mxu0 0.0
    %1400 = vmatprep.subr.mxu0 0.0
    %1401 = vmatpush1.msra.mxu0 0.0
    %1402 = vmatprep.subr.mxu0 0.0
    %1403 = vmatpush1.msra.mxu0 0.0
    %1404 = vmatprep.subr.mxu0 0.0
    %1405 = vmatpush1.msra.mxu0 0.0
    %1406 = vmatprep.subr.mxu0 0.0
    %1407 = vmatpush1.msra.mxu0 0.0
    %1408 = vmatprep.subr.mxu0 0.0
    %1409 = vmatpush1.msra.mxu0 0.0
    %1410 = vmatprep.subr.mxu0 0.0
    %1411 = vmatpush1.msra.mxu0 0.0
    %1412 = vmatprep.subr.mxu0 0.0
    %1413 = vmatpush1.msra.mxu0 0.0
    %1414 = vmatprep.subr.mxu0 0.0
    %1415 = vmatpush1.msra.mxu0 0.0
    %1416 = vmatprep.subr.mxu0 0.0
    %1417 = vmatpush1.msra.mxu0 0.0
    %1418 = vmatprep.subr.mxu0 0.0
    %1419 = vmatpush1.msra.mxu0 0.0
    %1420 = vmatprep.subr.mxu0 0.0
    %1421 = vmatpush1.msra.mxu0 0.0
    %1422 = vmatprep.subr.mxu0 0.0
    %1423 = vmatpush1.msra.mxu0 0.0
    %1424 = vmatprep.subr.mxu0 0.0
    %1425 = vmatpush1.msra.mxu0 0.0
    %1426 = vmatprep.subr.mxu0 0.0
    %1427 = vmatpush1.msra.mxu0 0.0
    %1428 = vmatprep.subr.mxu0 0.0
    %1429 = vmatpush1.msra.mxu0 0.0
    %1430 = vmatprep.subr.mxu0 0.0
    %1431 = vmatpush1.msra.mxu0 0.0
    %1432 = vmatprep.subr.mxu0 0.0
    %1433 = vmatpush1.msra.mxu0 0.0
    %1434 = vmatprep.subr.mxu0 0.0
    %1435 = vmatpush1.msra.mxu0 0.0
    %1436 = vmatprep.subr.mxu0 0.0
    %1437 = vmatpush1.msra.mxu0 0.0
    %1438 = vmatprep.subr.mxu0 0.0
    %1439 = vmatpush1.msra.mxu0 0.0
    %1440 = vmatprep.subr.mxu0 0.0
    %1441 = vmatpush1.msra.mxu0 0.0
    %1442 = vmatprep.subr.mxu0 0.0
    %1443 = vmatpush1.msra.mxu0 0.0
    %1444 = vmatprep.mubr.f32.mxu0 0.0
    %1445 = vmatmul.mubr.f32.gmra.mrb[0].mxu0 %v1378
    %v1446 = vpop.f32.mrb[0].mxu0
    %v1447 = vadd.f32 %v1374, %v1446
    %v1448 = vpop.f32.mrb[0].mxu0
    %1449 = vdwg.mxu0
    %s1450 = scalar_lea.vmem %s9, 48
    %v1451 = vld [vmem:[%s1450] sm:$0xff]
    %v1452 = vld [vmem:[%s1450 + $0x8] sm:$0xff]
    %v1453 = vld [vmem:[%s1450 + $0x10] sm:$0xff]
    %s1454 = scalar_lea.vmem %s13, 2
    %v1455 = vld [vmem:[%s1454] sm:$0x1]
    %v1457 = vlaneseq
    %v1458 = vshrl.u32 %v1457, 7
    %v1459 = vsub.s32 0, %v1458
    %v1460 = vrot.slane %v1455, %v1459
    %1462 = vmatprep.subr.mxu0 0.0
    %1463 = vmatpush1.msra.mxu0 %v1451
    %1464 = vmatprep.subr.mxu0 0.0
    %1465 = vmatpush1.msra.mxu0 %v1452
    %1466 = vmatprep.subr.mxu0 0.0
    %1467 = vmatpush1.msra.mxu0 %v1453
    %1468 = vmatprep.subr.mxu0 0.0
    %1469 = vmatpush1.msra.mxu0 0.0
    %1470 = vmatprep.subr.mxu0 0.0
    %1471 = vmatpush1.msra.mxu0 0.0
    %1472 = vmatprep.subr.mxu0 0.0
    %1473 = vmatpush1.msra.mxu0 0.0
    %1474 = vmatprep.subr.mxu0 0.0
    %1475 = vmatpush1.msra.mxu0 0.0
    %1476 = vmatprep.subr.mxu0 0.0
    %1477 = vmatpush1.msra.mxu0 0.0
    %1478 = vmatprep.subr.mxu0 0.0
    %1479 = vmatpush1.msra.mxu0 0.0
    %1480 = vmatprep.subr.mxu0 0.0
    %1481 = vmatpush1.msra.mxu0 0.0
    %1482 = vmatprep.subr.mxu0 0.0
    %1483 = vmatpush1.msra.mxu0 0.0
    %1484 = vmatprep.subr.mxu0 0.0
    %1485 = vmatpush1.msra.mxu0 0.0
    %1486 = vmatprep.subr.mxu0 0.0
    %1487 = vmatpush1.msra.mxu0 0.0
    %1488 = vmatprep.subr.mxu0 0.0
    %1489 = vmatpush1.msra.mxu0 0.0
    %1490 = vmatprep.subr.mxu0 0.0
    %1491 = vmatpush1.msra.mxu0 0.0
    %1492 = vmatprep.subr.mxu0 0.0
    %1493 = vmatpush1.msra.mxu0 0.0
    %1494 = vmatprep.subr.mxu0 0.0
    %1495 = vmatpush1.msra.mxu0 0.0
    %1496 = vmatprep.subr.mxu0 0.0
    %1497 = vmatpush1.msra.mxu0 0.0
    %1498 = vmatprep.subr.mxu0 0.0
    %1499 = vmatpush1.msra.mxu0 0.0
    %1500 = vmatprep.subr.mxu0 0.0
    %1501 = vmatpush1.msra.mxu0 0.0
    %1502 = vmatprep.subr.mxu0 0.0
    %1503 = vmatpush1.msra.mxu0 0.0
    %1504 = vmatprep.subr.mxu0 0.0
    %1505 = vmatpush1.msra.mxu0 0.0
    %1506 = vmatprep.subr.mxu0 0.0
    %1507 = vmatpush1.msra.mxu0 0.0
    %1508 = vmatprep.subr.mxu0 0.0
    %1509 = vmatpush1.msra.mxu0 0.0
    %1510 = vmatprep.subr.mxu0 0.0
    %1511 = vmatpush1.msra.mxu0 0.0
    %1512 = vmatprep.subr.mxu0 0.0
    %1513 = vmatpush1.msra.mxu0 0.0
    %1514 = vmatprep.subr.mxu0 0.0
    %1515 = vmatpush1.msra.mxu0 0.0
    %1516 = vmatprep.subr.mxu0 0.0
    %1517 = vmatpush1.msra.mxu0 0.0
    %1518 = vmatprep.subr.mxu0 0.0
    %1519 = vmatpush1.msra.mxu0 0.0
    %1520 = vmatprep.subr.mxu0 0.0
    %1521 = vmatpush1.msra.mxu0 0.0
    %1522 = vmatprep.subr.mxu0 0.0
    %1523 = vmatpush1.msra.mxu0 0.0
    %1524 = vmatprep.subr.mxu0 0.0
    %1525 = vmatpush1.msra.mxu0 0.0
    %1526 = vmatprep.mubr.f32.mxu0 0.0
    %1527 = vmatmul.mubr.f32.gmra.mrb[0].mxu0 %v491
    %v1528 = vpop.f32.mrb[0].mxu0
    %v1529 = vadd.f32 %v1460, %v1528
    %v1530 = vpop.f32.mrb[0].mxu0
    %1531 = vdwg.mxu0
    %s1532 = scalar_lea.vmem %s10, 48
    %v1533 = vld [vmem:[%s1532] sm:$0xff]
    %v1534 = vld [vmem:[%s1532 + $0x8] sm:$0xff]
    %v1535 = vld [vmem:[%s1532 + $0x10] sm:$0xff]
    %s1536 = scalar_lea.vmem %s14, 2
    %v1537 = vld [vmem:[%s1536] sm:$0x1]
    %v1539 = vlaneseq
    %v1540 = vshrl.u32 %v1539, 7
    %v1541 = vsub.s32 0, %v1540
    %v1542 = vrot.slane %v1537, %v1541
    %1544 = vmatprep.subr.mxu0 0.0
    %1545 = vmatpush1.msra.mxu0 %v1533
    %1546 = vmatprep.subr.mxu0 0.0
    %1547 = vmatpush1.msra.mxu0 %v1534
    %1548 = vmatprep.subr.mxu0 0.0
    %1549 = vmatpush1.msra.mxu0 %v1535
    %1550 = vmatprep.subr.mxu0 0.0
    %1551 = vmatpush1.msra.mxu0 0.0
    %1552 = vmatprep.subr.mxu0 0.0
    %1553 = vmatpush1.msra.mxu0 0.0
    %1554 = vmatprep.subr.mxu0 0.0
    %1555 = vmatpush1.msra.mxu0 0.0
    %1556 = vmatprep.subr.mxu0 0.0
    %1557 = vmatpush1.msra.mxu0 0.0
    %1558 = vmatprep.subr.mxu0 0.0
    %1559 = vmatpush1.msra.mxu0 0.0
    %1560 = vmatprep.subr.mxu0 0.0
    %1561 = vmatpush1.msra.mxu0 0.0
    %1562 = vmatprep.subr.mxu0 0.0
    %1563 = vmatpush1.msra.mxu0 0.0
    %1564 = vmatprep.subr.mxu0 0.0
    %1565 = vmatpush1.msra.mxu0 0.0
    %1566 = vmatprep.subr.mxu0 0.0
    %1567 = vmatpush1.msra.mxu0 0.0
    %1568 = vmatprep.subr.mxu0 0.0
    %1569 = vmatpush1.msra.mxu0 0.0
    %1570 = vmatprep.subr.mxu0 0.0
    %1571 = vmatpush1.msra.mxu0 0.0
    %1572 = vmatprep.subr.mxu0 0.0
    %1573 = vmatpush1.msra.mxu0 0.0
    %1574 = vmatprep.subr.mxu0 0.0
    %1575 = vmatpush1.msra.mxu0 0.0
    %1576 = vmatprep.subr.mxu0 0.0
    %1577 = vmatpush1.msra.mxu0 0.0
    %1578 = vmatprep.subr.mxu0 0.0
    %1579 = vmatpush1.msra.mxu0 0.0
    %1580 = vmatprep.subr.mxu0 0.0
    %1581 = vmatpush1.msra.mxu0 0.0
    %1582 = vmatprep.subr.mxu0 0.0
    %1583 = vmatpush1.msra.mxu0 0.0
    %1584 = vmatprep.subr.mxu0 0.0
    %1585 = vmatpush1.msra.mxu0 0.0
    %1586 = vmatprep.subr.mxu0 0.0
    %1587 = vmatpush1.msra.mxu0 0.0
    %1588 = vmatprep.subr.mxu0 0.0
    %1589 = vmatpush1.msra.mxu0 0.0
    %1590 = vmatprep.subr.mxu0 0.0
    %1591 = vmatpush1.msra.mxu0 0.0
    %1592 = vmatprep.subr.mxu0 0.0
    %1593 = vmatpush1.msra.mxu0 0.0
    %1594 = vmatprep.subr.mxu0 0.0
    %1595 = vmatpush1.msra.mxu0 0.0
    %1596 = vmatprep.subr.mxu0 0.0
    %1597 = vmatpush1.msra.mxu0 0.0
    %1598 = vmatprep.subr.mxu0 0.0
    %1599 = vmatpush1.msra.mxu0 0.0
    %1600 = vmatprep.subr.mxu0 0.0
    %1601 = vmatpush1.msra.mxu0 0.0
    %1602 = vmatprep.subr.mxu0 0.0
    %1603 = vmatpush1.msra.mxu0 0.0
    %1604 = vmatprep.subr.mxu0 0.0
    %1605 = vmatpush1.msra.mxu0 0.0
    %1606 = vmatprep.subr.mxu0 0.0
    %1607 = vmatpush1.msra.mxu0 0.0
    %1608 = vmatprep.mubr.f32.mxu0 0.0
    %1609 = vmatmul.mubr.f32.gmra.mrb[0].mxu0 %v491
    %v1610 = vpop.f32.mrb[0].mxu0
    %v1611 = vadd.f32 %v1542, %v1610
    %v1612 = vpop.f32.mrb[0].mxu0
    %1613 = vdwg.mxu0
    %s1614 = scalar_lea.vmem %s11, 48
    %v1615 = vld [vmem:[%s1614] sm:$0xff]
    %v1616 = vld [vmem:[%s1614 + $0x8] sm:$0xff]
    %v1617 = vld [vmem:[%s1614 + $0x10] sm:$0xff]
    %s1618 = scalar_lea.vmem %s15, 2
    %v1619 = vld [vmem:[%s1618] sm:$0x1]
    %v1621 = vlaneseq
    %v1622 = vshrl.u32 %v1621, 7
    %v1623 = vsub.s32 0, %v1622
    %v1624 = vrot.slane %v1619, %v1623
    %1626 = vmatprep.subr.mxu0 0.0
    %1627 = vmatpush1.msra.mxu0 %v1615
    %1628 = vmatprep.subr.mxu0 0.0
    %1629 = vmatpush1.msra.mxu0 %v1616
    %1630 = vmatprep.subr.mxu0 0.0
    %1631 = vmatpush1.msra.mxu0 %v1617
    %1632 = vmatprep.subr.mxu0 0.0
    %1633 = vmatpush1.msra.mxu0 0.0
    %1634 = vmatprep.subr.mxu0 0.0
    %1635 = vmatpush1.msra.mxu0 0.0
    %1636 = vmatprep.subr.mxu0 0.0
    %1637 = vmatpush1.msra.mxu0 0.0
    %1638 = vmatprep.subr.mxu0 0.0
    %1639 = vmatpush1.msra.mxu0 0.0
    %1640 = vmatprep.subr.mxu0 0.0
    %1641 = vmatpush1.msra.mxu0 0.0
    %1642 = vmatprep.subr.mxu0 0.0
    %1643 = vmatpush1.msra.mxu0 0.0
    %1644 = vmatprep.subr.mxu0 0.0
    %1645 = vmatpush1.msra.mxu0 0.0
    %1646 = vmatprep.subr.mxu0 0.0
    %1647 = vmatpush1.msra.mxu0 0.0
    %1648 = vmatprep.subr.mxu0 0.0
    %1649 = vmatpush1.msra.mxu0 0.0
    %1650 = vmatprep.subr.mxu0 0.0
    %1651 = vmatpush1.msra.mxu0 0.0
    %1652 = vmatprep.subr.mxu0 0.0
    %1653 = vmatpush1.msra.mxu0 0.0
    %1654 = vmatprep.subr.mxu0 0.0
    %1655 = vmatpush1.msra.mxu0 0.0
    %1656 = vmatprep.subr.mxu0 0.0
    %1657 = vmatpush1.msra.mxu0 0.0
    %1658 = vmatprep.subr.mxu0 0.0
    %1659 = vmatpush1.msra.mxu0 0.0
    %1660 = vmatprep.subr.mxu0 0.0
    %1661 = vmatpush1.msra.mxu0 0.0
    %1662 = vmatprep.subr.mxu0 0.0
    %1663 = vmatpush1.msra.mxu0 0.0
    %1664 = vmatprep.subr.mxu0 0.0
    %1665 = vmatpush1.msra.mxu0 0.0
    %1666 = vmatprep.subr.mxu0 0.0
    %1667 = vmatpush1.msra.mxu0 0.0
    %1668 = vmatprep.subr.mxu0 0.0
    %1669 = vmatpush1.msra.mxu0 0.0
    %1670 = vmatprep.subr.mxu0 0.0
    %1671 = vmatpush1.msra.mxu0 0.0
    %1672 = vmatprep.subr.mxu0 0.0
    %1673 = vmatpush1.msra.mxu0 0.0
    %1674 = vmatprep.subr.mxu0 0.0
    %1675 = vmatpush1.msra.mxu0 0.0
    %1676 = vmatprep.subr.mxu0 0.0
    %1677 = vmatpush1.msra.mxu0 0.0
    %1678 = vmatprep.subr.mxu0 0.0
    %1679 = vmatpush1.msra.mxu0 0.0
    %1680 = vmatprep.subr.mxu0 0.0
    %1681 = vmatpush1.msra.mxu0 0.0
    %1682 = vmatprep.subr.mxu0 0.0
    %1683 = vmatpush1.msra.mxu0 0.0
    %1684 = vmatprep.subr.mxu0 0.0
    %1685 = vmatpush1.msra.mxu0 0.0
    %1686 = vmatprep.subr.mxu0 0.0
    %1687 = vmatpush1.msra.mxu0 0.0
    %1688 = vmatprep.subr.mxu0 0.0
    %1689 = vmatpush1.msra.mxu0 0.0
    %1690 = vmatprep.mubr.f32.mxu0 0.0
    %1691 = vmatmul.mubr.f32.gmra.mrb[0].mxu0 %v491
    %v1692 = vpop.f32.mrb[0].mxu0
    %v1693 = vadd.f32 %v1624, %v1692
    %v1694 = vpop.f32.mrb[0].mxu0
    %1695 = vdwg.mxu0
    %v1697 = vsel %vm723, %v1529, 0
    %v1700 = vsel %vm723, %v1611, 0
    %1702 = vmatprep.subr.mxu0 0.0
    %1703 = vmatpush1.xpose.msra.mxu0 %v1700
    %1704 = vmatprep.subr.mxu0 0.0
    %1705 = vmatpush1.xpose.msra.mxu0 0.0
    %1706 = vmatprep.subr.mxu0 0.0
    %1707 = vmatpush1.xpose.msra.mxu0 0.0
    %1708 = vmatprep.subr.mxu0 0.0
    %1709 = vmatpush1.xpose.msra.mxu0 0.0
    %1710 = vmatprep.subr.mxu0 0.0
    %1711 = vmatpush1.xpose.msra.mxu0 0.0
    %1712 = vmatprep.subr.mxu0 0.0
    %1713 = vmatpush1.xpose.msra.mxu0 0.0
    %1714 = vmatprep.subr.mxu0 0.0
    %1715 = vmatpush1.xpose.msra.mxu0 0.0
    %1716 = vmatprep.subr.mxu0 0.0
    %1717 = vmatpush1.xpose.msra.mxu0 0.0
    %1718 = vmatprep.subr.mxu0 0.0
    %1719 = vmatpush1.xpose.msra.mxu0 0.0
    %1720 = vmatprep.subr.mxu0 0.0
    %1721 = vmatpush1.xpose.msra.mxu0 0.0
    %1722 = vmatprep.subr.mxu0 0.0
    %1723 = vmatpush1.xpose.msra.mxu0 0.0
    %1724 = vmatprep.subr.mxu0 0.0
    %1725 = vmatpush1.xpose.msra.mxu0 0.0
    %1726 = vmatprep.subr.mxu0 0.0
    %1727 = vmatpush1.xpose.msra.mxu0 0.0
    %1728 = vmatprep.subr.mxu0 0.0
    %1729 = vmatpush1.xpose.msra.mxu0 0.0
    %1730 = vmatprep.subr.mxu0 0.0
    %1731 = vmatpush1.xpose.msra.mxu0 0.0
    %1732 = vmatprep.subr.mxu0 0.0
    %1733 = vmatpush1.xpose.msra.mxu0 0.0
    %1734 = vmatprep.subr.mxu0 0.0
    %1735 = vmatpush1.xpose.msra.mxu0 0.0
    %1736 = vmatprep.subr.mxu0 0.0
    %1737 = vmatpush1.xpose.msra.mxu0 0.0
    %1738 = vmatprep.subr.mxu0 0.0
    %1739 = vmatpush1.xpose.msra.mxu0 0.0
    %1740 = vmatprep.subr.mxu0 0.0
    %1741 = vmatpush1.xpose.msra.mxu0 0.0
    %1742 = vmatprep.subr.mxu0 0.0
    %1743 = vmatpush1.xpose.msra.mxu0 0.0
    %1744 = vmatprep.subr.mxu0 0.0
    %1745 = vmatpush1.xpose.msra.mxu0 0.0
    %1746 = vmatprep.subr.mxu0 0.0
    %1747 = vmatpush1.xpose.msra.mxu0 0.0
    %1748 = vmatprep.subr.mxu0 0.0
    %1749 = vmatpush1.xpose.msra.mxu0 0.0
    %1750 = vmatprep.subr.mxu0 0.0
    %1751 = vmatpush1.xpose.msra.mxu0 0.0
    %1752 = vmatprep.subr.mxu0 0.0
    %1753 = vmatpush1.xpose.msra.mxu0 0.0
    %1754 = vmatprep.subr.mxu0 0.0
    %1755 = vmatpush1.xpose.msra.mxu0 0.0
    %1756 = vmatprep.subr.mxu0 0.0
    %1757 = vmatpush1.xpose.msra.mxu0 0.0
    %1758 = vmatprep.subr.mxu0 0.0
    %1759 = vmatpush1.xpose.msra.mxu0 0.0
    %1760 = vmatprep.subr.mxu0 0.0
    %1761 = vmatpush1.xpose.msra.mxu0 0.0
    %1762 = vmatprep.subr.mxu0 0.0
    %1763 = vmatpush1.xpose.msra.mxu0 0.0
    %1764 = vmatprep.subr.mxu0 0.0
    %1765 = vmatpush1.xpose.msra.mxu0 0.0
    %1766 = vmatprep.mubr.f32.mxu0 0.0
    %1767 = vmatmul.mubr.f32.gmra.mrb[0].mxu0 %v1697
    %v1768 = vpop.f32.mrb[0].mxu0
    %v1769 = vadd.f32 0.0, %v1768
    %v1770 = vpop.f32.mrb[0].mxu0
    %1771 = vdwg.mxu0
    %v1772 = vmul.f32 %v1769, 0.35355338
    %v1773 = vsel %vm801, %v1772, -inf
    %1774 = vmax.xlane.f32.xlu0 %v1773
    %v1775 = vpop.xlane.xlu0 %1774
    %v1776 = vsub.f32 %v1772, %v1775
    %v1777 = vmul.f32 %v1776, 1.442695
    %v1778 = vpow.pop %v1777
    %v1779 = vsel %vm801, %v1778, 0.0
    %1780 = vadd.xlane.f32.xlu0 %v1779
    %v1781 = vpop.xlane.xlu0 %1780
    %v1782 = vrcp.pop %v1781
    %v1783 = vmul.f32 %v1778, %v1782
    %v1785 = vsel %vm813, %v1783, 0
    %v1788 = vsel %vm817, %v1693, 0
    %1790 = vmatprep.subr.mxu0 0.0
    %1791 = vmatpush1.msra.mxu0 %v1788
    %1792 = vmatprep.subr.mxu0 0.0
    %1793 = vmatpush1.msra.mxu0 0.0
    %1794 = vmatprep.subr.mxu0 0.0
    %1795 = vmatpush1.msra.mxu0 0.0
    %1796 = vmatprep.subr.mxu0 0.0
    %1797 = vmatpush1.msra.mxu0 0.0
    %1798 = vmatprep.subr.mxu0 0.0
    %1799 = vmatpush1.msra.mxu0 0.0
    %1800 = vmatprep.subr.mxu0 0.0
    %1801 = vmatpush1.msra.mxu0 0.0
    %1802 = vmatprep.subr.mxu0 0.0
    %1803 = vmatpush1.msra.mxu0 0.0
    %1804 = vmatprep.subr.mxu0 0.0
    %1805 = vmatpush1.msra.mxu0 0.0
    %1806 = vmatprep.subr.mxu0 0.0
    %1807 = vmatpush1.msra.mxu0 0.0
    %1808 = vmatprep.subr.mxu0 0.0
    %1809 = vmatpush1.msra.mxu0 0.0
    %1810 = vmatprep.subr.mxu0 0.0
    %1811 = vmatpush1.msra.mxu0 0.0
    %1812 = vmatprep.subr.mxu0 0.0
    %1813 = vmatpush1.msra.mxu0 0.0
    %1814 = vmatprep.subr.mxu0 0.0
    %1815 = vmatpush1.msra.mxu0 0.0
    %1816 = vmatprep.subr.mxu0 0.0
    %1817 = vmatpush1.msra.mxu0 0.0
    %1818 = vmatprep.subr.mxu0 0.0
    %1819 = vmatpush1.msra.mxu0 0.0
    %1820 = vmatprep.subr.mxu0 0.0
    %1821 = vmatpush1.msra.mxu0 0.0
    %1822 = vmatprep.subr.mxu0 0.0
    %1823 = vmatpush1.msra.mxu0 0.0
    %1824 = vmatprep.subr.mxu0 0.0
    %1825 = vmatpush1.msra.mxu0 0.0
    %1826 = vmatprep.subr.mxu0 0.0
    %1827 = vmatpush1.msra.mxu0 0.0
    %1828 = vmatprep.subr.mxu0 0.0
    %1829 = vmatpush1.msra.mxu0 0.0
    %1830 = vmatprep.subr.mxu0 0.0
    %1831 = vmatpush1.msra.mxu0 0.0
    %1832 = vmatprep.subr.mxu0 0.0
    %1833 = vmatpush1.msra.mxu0 0.0
    %1834 = vmatprep.subr.mxu0 0.0
    %1835 = vmatpush1.msra.mxu0 0.0
    %1836 = vmatprep.subr.mxu0 0.0
    %1837 = vmatpush1.msra.mxu0 0.0
    %1838 = vmatprep.subr.mxu0 0.0
    %1839 = vmatpush1.msra.mxu0 0.0
    %1840 = vmatprep.subr.mxu0 0.0
    %1841 = vmatpush1.msra.mxu0 0.0
    %1842 = vmatprep.subr.mxu0 0.0
    %1843 = vmatpush1.msra.mxu0 0.0
    %1844 = vmatprep.subr.mxu0 0.0
    %1845 = vmatpush1.msra.mxu0 0.0
    %1846 = vmatprep.subr.mxu0 0.0
    %1847 = vmatpush1.msra.mxu0 0.0
    %1848 = vmatprep.subr.mxu0 0.0
    %1849 = vmatpush1.msra.mxu0 0.0
    %1850 = vmatprep.subr.mxu0 0.0
    %1851 = vmatpush1.msra.mxu0 0.0
    %1852 = vmatprep.subr.mxu0 0.0
    %1853 = vmatpush1.msra.mxu0 0.0
    %1854 = vmatprep.mubr.f32.mxu0 0.0
    %1855 = vmatmul.mubr.f32.gmra.mrb[0].mxu0 %v1785
    %v1856 = vpop.f32.mrb[0].mxu0
    %v1857 = vadd.f32 0.0, %v1856
    %v1858 = vpop.f32.mrb[0].mxu0
    %1859 = vdwg.mxu0
    %s1860 = scalar_lea.vmem %s12, 16
    %v1861 = vld [vmem:[%s1860] sm:$0xff]
    %v1863 = vsel %vm723, %v1857, 0
    %1865 = vmatprep.subr.mxu0 0.0
    %1866 = vmatpush1.msra.mxu0 %v1861
    %1867 = vmatprep.subr.mxu0 0.0
    %1868 = vmatpush1.msra.mxu0 0.0
    %1869 = vmatprep.subr.mxu0 0.0
    %1870 = vmatpush1.msra.mxu0 0.0
    %1871 = vmatprep.subr.mxu0 0.0
    %1872 = vmatpush1.msra.mxu0 0.0
    %1873 = vmatprep.subr.mxu0 0.0
    %1874 = vmatpush1.msra.mxu0 0.0
    %1875 = vmatprep.subr.mxu0 0.0
    %1876 = vmatpush1.msra.mxu0 0.0
    %1877 = vmatprep.subr.mxu0 0.0
    %1878 = vmatpush1.msra.mxu0 0.0
    %1879 = vmatprep.subr.mxu0 0.0
    %1880 = vmatpush1.msra.mxu0 0.0
    %1881 = vmatprep.subr.mxu0 0.0
    %1882 = vmatpush1.msra.mxu0 0.0
    %1883 = vmatprep.subr.mxu0 0.0
    %1884 = vmatpush1.msra.mxu0 0.0
    %1885 = vmatprep.subr.mxu0 0.0
    %1886 = vmatpush1.msra.mxu0 0.0
    %1887 = vmatprep.subr.mxu0 0.0
    %1888 = vmatpush1.msra.mxu0 0.0
    %1889 = vmatprep.subr.mxu0 0.0
    %1890 = vmatpush1.msra.mxu0 0.0
    %1891 = vmatprep.subr.mxu0 0.0
    %1892 = vmatpush1.msra.mxu0 0.0
    %1893 = vmatprep.subr.mxu0 0.0
    %1894 = vmatpush1.msra.mxu0 0.0
    %1895 = vmatprep.subr.mxu0 0.0
    %1896 = vmatpush1.msra.mxu0 0.0
    %1897 = vmatprep.subr.mxu0 0.0
    %1898 = vmatpush1.msra.mxu0 0.0
    %1899 = vmatprep.subr.mxu0 0.0
    %1900 = vmatpush1.msra.mxu0 0.0
    %1901 = vmatprep.subr.mxu0 0.0
    %1902 = vmatpush1.msra.mxu0 0.0
    %1903 = vmatprep.subr.mxu0 0.0
    %1904 = vmatpush1.msra.mxu0 0.0
    %1905 = vmatprep.subr.mxu0 0.0
    %1906 = vmatpush1.msra.mxu0 0.0
    %1907 = vmatprep.subr.mxu0 0.0
    %1908 = vmatpush1.msra.mxu0 0.0
    %1909 = vmatprep.subr.mxu0 0.0
    %1910 = vmatpush1.msra.mxu0 0.0
    %1911 = vmatprep.subr.mxu0 0.0
    %1912 = vmatpush1.msra.mxu0 0.0
    %1913 = vmatprep.subr.mxu0 0.0
    %1914 = vmatpush1.msra.mxu0 0.0
    %1915 = vmatprep.subr.mxu0 0.0
    %1916 = vmatpush1.msra.mxu0 0.0
    %1917 = vmatprep.subr.mxu0 0.0
    %1918 = vmatpush1.msra.mxu0 0.0
    %1919 = vmatprep.subr.mxu0 0.0
    %1920 = vmatpush1.msra.mxu0 0.0
    %1921 = vmatprep.subr.mxu0 0.0
    %1922 = vmatpush1.msra.mxu0 0.0
    %1923 = vmatprep.subr.mxu0 0.0
    %1924 = vmatpush1.msra.mxu0 0.0
    %1925 = vmatprep.subr.mxu0 0.0
    %1926 = vmatpush1.msra.mxu0 0.0
    %1927 = vmatprep.subr.mxu0 0.0
    %1928 = vmatpush1.msra.mxu0 0.0
    %1929 = vmatprep.mubr.f32.mxu0 0.0
    %1930 = vmatmul.mubr.f32.gmra.mrb[0].mxu0 %v1863
    %v1931 = vpop.f32.mrb[0].mxu0
    %v1932 = vadd.f32 0.0, %v1931
    %v1933 = vpop.f32.mrb[0].mxu0
    %1934 = vdwg.mxu0
    %v1935 = vadd.f32 %v1447, %v1932
    %v1936 = vadd.f32 %v478, %v1935
    %v1937 = vld [vmem:[%s16] sm:$0x1]
    %v1939 = vlaneseq
    %v1940 = vshrl.u32 %v1939, 7
    %v1941 = vsub.s32 0, %v1940
    %v1942 = vrot.slane %v1937, %v1941
    %v1944 = vadd.f32 %v1936, %v1942
    %v1945 = vld [vmem:[%s21] sm:$0x1]
    %v1946 = vld [vmem:[%s22] sm:$0x1]
    %vm1947 = vcmask 189440
    %v1948 = vsel %vm1947, %v1944, 0.0
    %1949 = vadd.xlane.f32.xlu0 %v1948
    %v1950 = vpop.xlane.xlu0 %1949
    %v1951 = vrcp.pop 24.0
    %v1952 = vmul.f32 %v1950, %v1951
    %v1953 = vsub.f32 %v1944, %v1952
    %v1954 = vmul.f32 %v1953, %v1953
    %v1955 = vsel %vm1947, %v1954, 0.0
    %1956 = vadd.xlane.f32.xlu0 %v1955
    %v1957 = vpop.xlane.xlu0 %1956
    %v1958 = vmul.f32 %v1957, %v1951
    %v1959 = vadd.f32 %v1958, 1e-05
    %v1960 = vrsqrt.pop %v1959
    %v1961 = vmul.f32 %v1953, %v1960
    %v1963 = vlaneseq
    %v1964 = vshrl.u32 %v1963, 7
    %v1965 = vsub.s32 0, %v1964
    %v1966 = vrot.slane %v1945, %v1965
    %v1968 = vmul.f32 %v1961, %v1966
    %v1970 = vlaneseq
    %v1971 = vshrl.u32 %v1970, 7
    %v1972 = vsub.s32 0, %v1971
    %v1973 = vrot.slane %v1946, %v1972
    %v1975 = vadd.f32 %v1968, %v1973
    %v1976 = vpack.c.bf16 %v1975, %v1975
    %v1977 = vld [vmem:[%s17] sm:$0xff]
    %v1978 = vld [vmem:[%s17 + $0x8] sm:$0xff]
    %v1979 = vld [vmem:[%s17 + $0x10] sm:$0xff]
    %v1980 = vld [vmem:[%s17 + $0x18] sm:$0xff]
    %v1981 = vld [vmem:[%s17 + $0x20] sm:$0xff]
    %v1982 = vld [vmem:[%s17 + $0x28] sm:$0xff]
    %v1983 = vld [vmem:[%s18] sm:$0xf]
    %v1985 = vlaneseq
    %v1986 = vshrl.u32 %v1985, 7
    %v1987 = vsub.s32 0, %v1986
    %v1988 = vrot.slane %v1983, %v1987
    %v1989 = vlaneseq
    %v1990 = vshrl.u32 %v1989, 7
    %v1991 = vsub.s32 1, %v1990
    %v1992 = vrot.slane %v1983, %v1991
    %v1993 = vlaneseq
    %v1994 = vshrl.u32 %v1993, 7
    %v1995 = vsub.s32 2, %v1994
    %v1996 = vrot.slane %v1983, %v1995
    %v1997 = vlaneseq
    %v1998 = vshrl.u32 %v1997, 7
    %v1999 = vsub.s32 3, %v1998
    %v2000 = vrot.slane %v1983, %v1999
    %v2011 = vunpack.c.l.b16 %v1977
    %v2012 = vunpack.c.h.b16 %v1977
    %v2013 = vunpack.c.l.b16 %v1978
    %v2014 = vunpack.c.h.b16 %v1978
    %v2015 = vunpack.c.l.b16 %v1979
    %v2016 = vunpack.c.h.b16 %v1979
    %v2017 = vunpack.c.l.b16 %v1980
    %v2018 = vunpack.c.h.b16 %v1980
    %v2019 = vunpack.c.l.b16 %v1981
    %v2020 = vunpack.c.h.b16 %v1981
    %v2021 = vunpack.c.l.b16 %v1982
    %v2022 = vunpack.c.h.b16 %v1982
    %v2023 = vpack.c.b16 %v2015, %v2011
    %v2024 = vpack.c.b16 %v2016, %v2012
    %v2025 = vpack.c.b16 %v2017, %v2013
    %v2026 = vpack.c.b16 %v2018, %v2014
    %v2027 = vpack.c.b16 %v2019, %v2019
    %v2028 = vpack.c.b16 %v2020, %v2020
    %v2029 = vpack.c.b16 %v2021, %v2021
    %v2030 = vpack.c.b16 %v2022, %v2022
    %v2036 = vsel %vm489, %v1976, 0
    %v2039 = vsel %vm223, %v2027, 0
    %v2042 = vsel %vm223, %v2028, 0
    %v2045 = vsel %vm223, %v2029, 0
    %v2048 = vsel %vm223, %v2030, 0
    %2050 = vmatprep.subr.bf16.mxu0 %v2024
    %2051 = vmatpush1.bf16.msra.mxu0 %v2023
    %2052 = vmatprep.subr.bf16.mxu0 %v2042
    %2053 = vmatpush1.bf16.msra.mxu0 %v2039
    %2054 = vmatprep.subr.bf16.mxu0 0
    %2055 = vmatpush1.bf16.msra.mxu0 0
    %2056 = vmatprep.subr.bf16.mxu0 0
    %2057 = vmatpush1.bf16.msra.mxu0 0
    %2058 = vmatprep.subr.bf16.mxu0 0
    %2059 = vmatpush1.bf16.msra.mxu0 0
    %2060 = vmatprep.subr.bf16.mxu0 0
    %2061 = vmatpush1.bf16.msra.mxu0 0
    %2062 = vmatprep.subr.bf16.mxu0 0
    %2063 = vmatpush1.bf16.msra.mxu0 0
    %2064 = vmatprep.subr.bf16.mxu0 0
    %2065 = vmatpush1.bf16.msra.mxu0 0
    %2066 = vmatprep.subr.bf16.mxu0 0
    %2067 = vmatpush1.bf16.msra.mxu0 0
    %2068 = vmatprep.subr.bf16.mxu0 0
    %2069 = vmatpush1.bf16.msra.mxu0 0
    %2070 = vmatprep.subr.bf16.mxu0 0
    %2071 = vmatpush1.bf16.msra.mxu0 0
    %2072 = vmatprep.subr.bf16.mxu0 0
    %2073 = vmatpush1.bf16.msra.mxu0 0
    %2074 = vmatprep.subr.bf16.mxu0 0
    %2075 = vmatpush1.bf16.msra.mxu0 0
    %2076 = vmatprep.subr.bf16.mxu0 0
    %2077 = vmatpush1.bf16.msra.mxu0 0
    %2078 = vmatprep.subr.bf16.mxu0 0
    %2079 = vmatpush1.bf16.msra.mxu0 0
    %2080 = vmatprep.subr.bf16.mxu0 0
    %2081 = vmatpush1.bf16.msra.mxu0 0
    %2082 = vmatprep.mubr.bf16.mxu0 0
    %2083 = vmatmul.mubr.bf16.gmra.mrb[0].mxu0 %v2036
    %v2084 = vpop.f32.mrb[0].mxu0
    %v2085 = vadd.f32 %v1988, %v2084
    %v2086 = vpop.f32.mrb[0].mxu0
    %v2087 = vadd.f32 %v1992, %v2086
    %v2088 = vpop.f32.mrb[0].mxu0
    %v2089 = vpop.f32.mrb[0].mxu0
    %2090 = vdwg.mxu0
    %2091 = vmatprep.subr.bf16.mxu0 %v2026
    %2092 = vmatpush1.bf16.msra.mxu0 %v2025
    %2093 = vmatprep.subr.bf16.mxu0 %v2048
    %2094 = vmatpush1.bf16.msra.mxu0 %v2045
    %2095 = vmatprep.subr.bf16.mxu0 0
    %2096 = vmatpush1.bf16.msra.mxu0 0
    %2097 = vmatprep.subr.bf16.mxu0 0
    %2098 = vmatpush1.bf16.msra.mxu0 0
    %2099 = vmatprep.subr.bf16.mxu0 0
    %2100 = vmatpush1.bf16.msra.mxu0 0
    %2101 = vmatprep.subr.bf16.mxu0 0
    %2102 = vmatpush1.bf16.msra.mxu0 0
    %2103 = vmatprep.subr.bf16.mxu0 0
    %2104 = vmatpush1.bf16.msra.mxu0 0
    %2105 = vmatprep.subr.bf16.mxu0 0
    %2106 = vmatpush1.bf16.msra.mxu0 0
    %2107 = vmatprep.subr.bf16.mxu0 0
    %2108 = vmatpush1.bf16.msra.mxu0 0
    %2109 = vmatprep.subr.bf16.mxu0 0
    %2110 = vmatpush1.bf16.msra.mxu0 0
    %2111 = vmatprep.subr.bf16.mxu0 0
    %2112 = vmatpush1.bf16.msra.mxu0 0
    %2113 = vmatprep.subr.bf16.mxu0 0
    %2114 = vmatpush1.bf16.msra.mxu0 0
    %2115 = vmatprep.subr.bf16.mxu0 0
    %2116 = vmatpush1.bf16.msra.mxu0 0
    %2117 = vmatprep.subr.bf16.mxu0 0
    %2118 = vmatpush1.bf16.msra.mxu0 0
    %2119 = vmatprep.subr.bf16.mxu0 0
    %2120 = vmatpush1.bf16.msra.mxu0 0
    %2121 = vmatprep.subr.bf16.mxu0 0
    %2122 = vmatpush1.bf16.msra.mxu0 0
    %2123 = vmatprep.mubr.bf16.mxu0 0
    %2124 = vmatmul.mubr.bf16.gmra.mrb[0].mxu0 %v2036
    %v2125 = vpop.f32.mrb[0].mxu0
    %v2126 = vadd.f32 %v1996, %v2125
    %v2127 = vpop.f32.mrb[0].mxu0
    %v2128 = vadd.f32 %v2000, %v2127
    %v2129 = vpop.f32.mrb[0].mxu0
    %v2130 = vpop.f32.mrb[0].mxu0
    %2131 = vdwg.mxu0
    %v2132 = vmax.f32 %v2085, 0.0
    %v2133 = vmax.f32 %v2087, 0.0
    %v2134 = vmax.f32 %v2126, 0.0
    %v2135 = vmax.f32 %v2128, 0.0
    %v2136 = vpack.c.bf16 %v2132, %v2132
    %v2137 = vpack.c.bf16 %v2133, %v2133
    %v2138 = vpack.c.bf16 %v2134, %v2134
    %v2139 = vpack.c.bf16 %v2135, %v2135
    %v2140 = vld [vmem:[%s19] sm:$0xf]
    %v2141 = vld [vmem:[%s19 + $0x4] sm:$0xf]
    %v2142 = vld [vmem:[%s19 + $0x8] sm:$0xf]
    %v2143 = vld [vmem:[%s19 + $0xc] sm:$0xf]
    %v2144 = vld [vmem:[%s19 + $0x10] sm:$0xf]
    %v2145 = vld [vmem:[%s19 + $0x14] sm:$0xf]
    %v2146 = vld [vmem:[%s19 + $0x18] sm:$0xf]
    %v2147 = vld [vmem:[%s19 + $0x1c] sm:$0xf]
    %v2148 = vld [vmem:[%s19 + $0x20] sm:$0xf]
    %v2149 = vld [vmem:[%s19 + $0x24] sm:$0xf]
    %v2150 = vld [vmem:[%s19 + $0x28] sm:$0xf]
    %v2151 = vld [vmem:[%s19 + $0x2c] sm:$0xf]
    %v2152 = vld [vmem:[%s19 + $0x30] sm:$0xf]
    %v2153 = vld [vmem:[%s19 + $0x34] sm:$0xf]
    %v2154 = vld [vmem:[%s19 + $0x38] sm:$0xf]
    %v2155 = vld [vmem:[%s19 + $0x3c] sm:$0xf]
    %v2156 = vld [vmem:[%s19 + $0x40] sm:$0xf]
    %v2157 = vld [vmem:[%s19 + $0x44] sm:$0xf]
    %v2158 = vld [vmem:[%s19 + $0x48] sm:$0xf]
    %v2159 = vld [vmem:[%s19 + $0x4c] sm:$0xf]
    %v2160 = vld [vmem:[%s19 + $0x50] sm:$0xf]
    %v2161 = vld [vmem:[%s19 + $0x54] sm:$0xf]
    %v2162 = vld [vmem:[%s19 + $0x58] sm:$0xf]
    %v2163 = vld [vmem:[%s19 + $0x5c] sm:$0xf]
    %v2164 = vld [vmem:[%s19 + $0x60] sm:$0xf]
    %v2165 = vld [vmem:[%s19 + $0x64] sm:$0xf]
    %v2166 = vld [vmem:[%s19 + $0x68] sm:$0xf]
    %v2167 = vld [vmem:[%s19 + $0x6c] sm:$0xf]
    %v2168 = vld [vmem:[%s19 + $0x70] sm:$0xf]
    %v2169 = vld [vmem:[%s19 + $0x74] sm:$0xf]
    %v2170 = vld [vmem:[%s19 + $0x78] sm:$0xf]
    %v2171 = vld [vmem:[%s19 + $0x7c] sm:$0xf]
    %v2172 = vld [vmem:[%s19 + $0x80] sm:$0xf]
    %v2173 = vld [vmem:[%s19 + $0x84] sm:$0xf]
    %v2174 = vld [vmem:[%s19 + $0x88] sm:$0xf]
    %v2175 = vld [vmem:[%s19 + $0x8c] sm:$0xf]
    %v2176 = vld [vmem:[%s19 + $0x90] sm:$0xf]
    %v2177 = vld [vmem:[%s19 + $0x94] sm:$0xf]
    %v2178 = vld [vmem:[%s19 + $0x98] sm:$0xf]
    %v2179 = vld [vmem:[%s19 + $0x9c] sm:$0xf]
    %v2180 = vld [vmem:[%s19 + $0xa0] sm:$0xf]
    %v2181 = vld [vmem:[%s19 + $0xa4] sm:$0xf]
    %v2182 = vld [vmem:[%s19 + $0xa8] sm:$0xf]
    %v2183 = vld [vmem:[%s19 + $0xac] sm:$0xf]
    %v2184 = vld [vmem:[%s19 + $0xb0] sm:$0xf]
    %v2185 = vld [vmem:[%s19 + $0xb4] sm:$0xf]
    %v2186 = vld [vmem:[%s19 + $0xb8] sm:$0xf]
    %v2187 = vld [vmem:[%s19 + $0xbc] sm:$0xf]
    %v2188 = vld [vmem:[%s19 + $0xc0] sm:$0xf]
    %v2189 = vld [vmem:[%s19 + $0xc4] sm:$0xf]
    %v2190 = vld [vmem:[%s19 + $0xc8] sm:$0xf]
    %v2191 = vld [vmem:[%s19 + $0xcc] sm:$0xf]
    %v2192 = vld [vmem:[%s19 + $0xd0] sm:$0xf]
    %v2193 = vld [vmem:[%s19 + $0xd4] sm:$0xf]
    %v2194 = vld [vmem:[%s19 + $0xd8] sm:$0xf]
    %v2195 = vld [vmem:[%s19 + $0xdc] sm:$0xf]
    %v2196 = vld [vmem:[%s19 + $0xe0] sm:$0xf]
    %v2197 = vld [vmem:[%s19 + $0xe4] sm:$0xf]
    %v2198 = vld [vmem:[%s19 + $0xe8] sm:$0xf]
    %v2199 = vld [vmem:[%s19 + $0xec] sm:$0xf]
    %v2200 = vld [vmem:[%s19 + $0xf0] sm:$0xf]
    %v2201 = vld [vmem:[%s19 + $0xf4] sm:$0xf]
    %v2202 = vld [vmem:[%s19 + $0xf8] sm:$0xf]
    %v2203 = vld [vmem:[%s19 + $0xfc] sm:$0xf]
    %v2204 = vld [vmem:[%s20] sm:$0x1]
    %v2206 = vlaneseq
    %v2207 = vshrl.u32 %v2206, 7
    %v2208 = vsub.s32 0, %v2207
    %v2209 = vrot.slane %v2204, %v2208
    %v2275 = vunpack.c.l.b16 %v2140
    %v2276 = vunpack.c.l.b16 %v2141
    %v2277 = vunpack.c.l.b16 %v2142
    %v2278 = vunpack.c.l.b16 %v2143
    %v2279 = vunpack.c.l.b16 %v2144
    %v2280 = vunpack.c.l.b16 %v2145
    %v2281 = vunpack.c.l.b16 %v2146
    %v2282 = vunpack.c.l.b16 %v2147
    %v2283 = vunpack.c.l.b16 %v2148
    %v2284 = vunpack.c.l.b16 %v2149
    %v2285 = vunpack.c.l.b16 %v2150
    %v2286 = vunpack.c.l.b16 %v2151
    %v2287 = vunpack.c.l.b16 %v2152
    %v2288 = vunpack.c.l.b16 %v2153
    %v2289 = vunpack.c.l.b16 %v2154
    %v2290 = vunpack.c.l.b16 %v2155
    %v2291 = vunpack.c.l.b16 %v2156
    %v2292 = vunpack.c.l.b16 %v2157
    %v2293 = vunpack.c.l.b16 %v2158
    %v2294 = vunpack.c.l.b16 %v2159
    %v2295 = vunpack.c.l.b16 %v2160
    %v2296 = vunpack.c.l.b16 %v2161
    %v2297 = vunpack.c.l.b16 %v2162
    %v2298 = vunpack.c.l.b16 %v2163
    %v2299 = vunpack.c.l.b16 %v2164
    %v2300 = vunpack.c.l.b16 %v2165
    %v2301 = vunpack.c.l.b16 %v2166
    %v2302 = vunpack.c.l.b16 %v2167
    %v2303 = vunpack.c.l.b16 %v2168
    %v2304 = vunpack.c.l.b16 %v2169
    %v2305 = vunpack.c.l.b16 %v2170
    %v2306 = vunpack.c.l.b16 %v2171
    %v2307 = vunpack.c.l.b16 %v2172
    %v2308 = vunpack.c.l.b16 %v2173
    %v2309 = vunpack.c.l.b16 %v2174
    %v2310 = vunpack.c.l.b16 %v2175
    %v2311 = vunpack.c.l.b16 %v2176
    %v2312 = vunpack.c.l.b16 %v2177
    %v2313 = vunpack.c.l.b16 %v2178
    %v2314 = vunpack.c.l.b16 %v2179
    %v2315 = vunpack.c.l.b16 %v2180
    %v2316 = vunpack.c.l.b16 %v2181
    %v2317 = vunpack.c.l.b16 %v2182
    %v2318 = vunpack.c.l.b16 %v2183
    %v2319 = vunpack.c.l.b16 %v2184
    %v2320 = vunpack.c.l.b16 %v2185
    %v2321 = vunpack.c.l.b16 %v2186
    %v2322 = vunpack.c.l.b16 %v2187
    %v2323 = vunpack.c.l.b16 %v2188
    %v2324 = vunpack.c.l.b16 %v2189
    %v2325 = vunpack.c.l.b16 %v2190
    %v2326 = vunpack.c.l.b16 %v2191
    %v2327 = vunpack.c.l.b16 %v2192
    %v2328 = vunpack.c.l.b16 %v2193
    %v2329 = vunpack.c.l.b16 %v2194
    %v2330 = vunpack.c.l.b16 %v2195
    %v2331 = vunpack.c.l.b16 %v2196
    %v2332 = vunpack.c.l.b16 %v2197
    %v2333 = vunpack.c.l.b16 %v2198
    %v2334 = vunpack.c.l.b16 %v2199
    %v2335 = vunpack.c.l.b16 %v2200
    %v2336 = vunpack.c.l.b16 %v2201
    %v2337 = vunpack.c.l.b16 %v2202
    %v2338 = vunpack.c.l.b16 %v2203
    %v2339 = vpack.c.b16 %v2276, %v2275
    %v2340 = vpack.c.b16 %v2278, %v2277
    %v2341 = vpack.c.b16 %v2280, %v2279
    %v2342 = vpack.c.b16 %v2282, %v2281
    %v2343 = vpack.c.b16 %v2284, %v2283
    %v2344 = vpack.c.b16 %v2286, %v2285
    %v2345 = vpack.c.b16 %v2288, %v2287
    %v2346 = vpack.c.b16 %v2290, %v2289
    %v2347 = vpack.c.b16 %v2292, %v2291
    %v2348 = vpack.c.b16 %v2294, %v2293
    %v2349 = vpack.c.b16 %v2296, %v2295
    %v2350 = vpack.c.b16 %v2298, %v2297
    %v2351 = vpack.c.b16 %v2300, %v2299
    %v2352 = vpack.c.b16 %v2302, %v2301
    %v2353 = vpack.c.b16 %v2304, %v2303
    %v2354 = vpack.c.b16 %v2306, %v2305
    %v2355 = vpack.c.b16 %v2308, %v2307
    %v2356 = vpack.c.b16 %v2310, %v2309
    %v2357 = vpack.c.b16 %v2312, %v2311
    %v2358 = vpack.c.b16 %v2314, %v2313
    %v2359 = vpack.c.b16 %v2316, %v2315
    %v2360 = vpack.c.b16 %v2318, %v2317
    %v2361 = vpack.c.b16 %v2320, %v2319
    %v2362 = vpack.c.b16 %v2322, %v2321
    %v2363 = vpack.c.b16 %v2324, %v2323
    %v2364 = vpack.c.b16 %v2326, %v2325
    %v2365 = vpack.c.b16 %v2328, %v2327
    %v2366 = vpack.c.b16 %v2330, %v2329
    %v2367 = vpack.c.b16 %v2332, %v2331
    %v2368 = vpack.c.b16 %v2334, %v2333
    %v2369 = vpack.c.b16 %v2336, %v2335
    %v2370 = vpack.c.b16 %v2338, %v2337
    %2403 = vmatprep.subr.bf16.mxu0 0
    %2404 = vmatpush1.bf16.msra.mxu0 %v2339
    %2405 = vmatprep.subr.bf16.mxu0 0
    %2406 = vmatpush1.bf16.msra.mxu0 %v2340
    %2407 = vmatprep.subr.bf16.mxu0 0
    %2408 = vmatpush1.bf16.msra.mxu0 %v2341
    %2409 = vmatprep.subr.bf16.mxu0 0
    %2410 = vmatpush1.bf16.msra.mxu0 %v2342
    %2411 = vmatprep.subr.bf16.mxu0 0
    %2412 = vmatpush1.bf16.msra.mxu0 %v2343
    %2413 = vmatprep.subr.bf16.mxu0 0
    %2414 = vmatpush1.bf16.msra.mxu0 %v2344
    %2415 = vmatprep.subr.bf16.mxu0 0
    %2416 = vmatpush1.bf16.msra.mxu0 %v2345
    %2417 = vmatprep.subr.bf16.mxu0 0
    %2418 = vmatpush1.bf16.msra.mxu0 %v2346
    %2419 = vmatprep.subr.bf16.mxu0 0
    %2420 = vmatpush1.bf16.msra.mxu0 %v2347
    %2421 = vmatprep.subr.bf16.mxu0 0
    %2422 = vmatpush1.bf16.msra.mxu0 %v2348
    %2423 = vmatprep.subr.bf16.mxu0 0
    %2424 = vmatpush1.bf16.msra.mxu0 %v2349
    %2425 = vmatprep.subr.bf16.mxu0 0
    %2426 = vmatpush1.bf16.msra.mxu0 %v2350
    %2427 = vmatprep.subr.bf16.mxu0 0
    %2428 = vmatpush1.bf16.msra.mxu0 %v2351
    %2429 = vmatprep.subr.bf16.mxu0 0
    %2430 = vmatpush1.bf16.msra.mxu0 %v2352
    %2431 = vmatprep.subr.bf16.mxu0 0
    %2432 = vmatpush1.bf16.msra.mxu0 %v2353
    %2433 = vmatprep.subr.bf16.mxu0 0
    %2434 = vmatpush1.bf16.msra.mxu0 %v2354
    %2435 = vmatprep.mubr.bf16.mxu0 %v2137
    %2436 = vmatmul.mubr.bf16.gmra.mrb[0].mxu0 %v2136
    %v2437 = vpop.f32.mrb[0].mxu0
    %v2438 = vadd.f32 %v2209, %v2437
    %v2439 = vpop.f32.mrb[0].mxu0
    %v2440 = vpop.f32.mrb[0].mxu0
    %v2441 = vpop.f32.mrb[0].mxu0
    %2442 = vdwg.mxu0
    %2443 = vmatprep.subr.bf16.mxu0 0
    %2444 = vmatpush1.bf16.msra.mxu0 %v2355
    %2445 = vmatprep.subr.bf16.mxu0 0
    %2446 = vmatpush1.bf16.msra.mxu0 %v2356
    %2447 = vmatprep.subr.bf16.mxu0 0
    %2448 = vmatpush1.bf16.msra.mxu0 %v2357
    %2449 = vmatprep.subr.bf16.mxu0 0
    %2450 = vmatpush1.bf16.msra.mxu0 %v2358
    %2451 = vmatprep.subr.bf16.mxu0 0
    %2452 = vmatpush1.bf16.msra.mxu0 %v2359
    %2453 = vmatprep.subr.bf16.mxu0 0
    %2454 = vmatpush1.bf16.msra.mxu0 %v2360
    %2455 = vmatprep.subr.bf16.mxu0 0
    %2456 = vmatpush1.bf16.msra.mxu0 %v2361
    %2457 = vmatprep.subr.bf16.mxu0 0
    %2458 = vmatpush1.bf16.msra.mxu0 %v2362
    %2459 = vmatprep.subr.bf16.mxu0 0
    %2460 = vmatpush1.bf16.msra.mxu0 %v2363
    %2461 = vmatprep.subr.bf16.mxu0 0
    %2462 = vmatpush1.bf16.msra.mxu0 %v2364
    %2463 = vmatprep.subr.bf16.mxu0 0
    %2464 = vmatpush1.bf16.msra.mxu0 %v2365
    %2465 = vmatprep.subr.bf16.mxu0 0
    %2466 = vmatpush1.bf16.msra.mxu0 %v2366
    %2467 = vmatprep.subr.bf16.mxu0 0
    %2468 = vmatpush1.bf16.msra.mxu0 %v2367
    %2469 = vmatprep.subr.bf16.mxu0 0
    %2470 = vmatpush1.bf16.msra.mxu0 %v2368
    %2471 = vmatprep.subr.bf16.mxu0 0
    %2472 = vmatpush1.bf16.msra.mxu0 %v2369
    %2473 = vmatprep.subr.bf16.mxu0 0
    %2474 = vmatpush1.bf16.msra.mxu0 %v2370
    %2475 = vmatprep.mubr.bf16.mxu0 %v2139
    %2476 = vmatmul.mubr.bf16.gmra.mrb[0].mxu0 %v2138
    %v2477 = vpop.f32.mrb[0].mxu0
    %v2478 = vadd.f32 %v2438, %v2477
    %v2479 = vpop.f32.mrb[0].mxu0
    %v2480 = vpop.f32.mrb[0].mxu0
    %v2481 = vpop.f32.mrb[0].mxu0
    %2482 = vdwg.mxu0
    %v2483 = vadd.f32 %v1975, %v2478
    %v2484 = vld [vmem:[%s23] sm:$0x1]
    %v2485 = vld [vmem:[%s24] sm:$0x1]
    %v2486 = vsel %vm1947, %v2483, 0.0
    %2487 = vadd.xlane.f32.xlu0 %v2486
    %v2488 = vpop.xlane.xlu0 %2487
    %v2489 = vmul.f32 %v2488, %v1951
    %v2490 = vsub.f32 %v2483, %v2489
    %v2491 = vmul.f32 %v2490, %v2490
    %v2492 = vsel %vm1947, %v2491, 0.0
    %2493 = vadd.xlane.f32.xlu0 %v2492
    %v2494 = vpop.xlane.xlu0 %2493
    %v2495 = vmul.f32 %v2494, %v1951
    %v2496 = vadd.f32 %v2495, 1e-05
    %v2497 = vrsqrt.pop %v2496
    %v2498 = vmul.f32 %v2490, %v2497
    %v2500 = vlaneseq
    %v2501 = vshrl.u32 %v2500, 7
    %v2502 = vsub.s32 0, %v2501
    %v2503 = vrot.slane %v2484, %v2502
    %v2505 = vmul.f32 %v2498, %v2503
    %v2507 = vlaneseq
    %v2508 = vshrl.u32 %v2507, 7
    %v2509 = vsub.s32 0, %v2508
    %v2510 = vrot.slane %v2485, %v2509
    %v2512 = vadd.f32 %v2505, %v2510
    %s2513 = scalar_lea.vmem %s9, 72
    %v2514 = vld [vmem:[%s2513] sm:$0xff]
    %v2515 = vld [vmem:[%s2513 + $0x8] sm:$0xff]
    %v2516 = vld [vmem:[%s2513 + $0x10] sm:$0xff]
    %s2517 = scalar_lea.vmem %s13, 3
    %v2518 = vld [vmem:[%s2517] sm:$0x1]
    %v2520 = vlaneseq
    %v2521 = vshrl.u32 %v2520, 7
    %v2522 = vsub.s32 0, %v2521
    %v2523 = vrot.slane %v2518, %v2522
    %v2526 = vsel %vm489, %v2512, 0
    %2528 = vmatprep.subr.mxu0 0.0
    %2529 = vmatpush1.msra.mxu0 %v2514
    %2530 = vmatprep.subr.mxu0 0.0
    %2531 = vmatpush1.msra.mxu0 %v2515
    %2532 = vmatprep.subr.mxu0 0.0
    %2533 = vmatpush1.msra.mxu0 %v2516
    %2534 = vmatprep.subr.mxu0 0.0
    %2535 = vmatpush1.msra.mxu0 0.0
    %2536 = vmatprep.subr.mxu0 0.0
    %2537 = vmatpush1.msra.mxu0 0.0
    %2538 = vmatprep.subr.mxu0 0.0
    %2539 = vmatpush1.msra.mxu0 0.0
    %2540 = vmatprep.subr.mxu0 0.0
    %2541 = vmatpush1.msra.mxu0 0.0
    %2542 = vmatprep.subr.mxu0 0.0
    %2543 = vmatpush1.msra.mxu0 0.0
    %2544 = vmatprep.subr.mxu0 0.0
    %2545 = vmatpush1.msra.mxu0 0.0
    %2546 = vmatprep.subr.mxu0 0.0
    %2547 = vmatpush1.msra.mxu0 0.0
    %2548 = vmatprep.subr.mxu0 0.0
    %2549 = vmatpush1.msra.mxu0 0.0
    %2550 = vmatprep.subr.mxu0 0.0
    %2551 = vmatpush1.msra.mxu0 0.0
    %2552 = vmatprep.subr.mxu0 0.0
    %2553 = vmatpush1.msra.mxu0 0.0
    %2554 = vmatprep.subr.mxu0 0.0
    %2555 = vmatpush1.msra.mxu0 0.0
    %2556 = vmatprep.subr.mxu0 0.0
    %2557 = vmatpush1.msra.mxu0 0.0
    %2558 = vmatprep.subr.mxu0 0.0
    %2559 = vmatpush1.msra.mxu0 0.0
    %2560 = vmatprep.subr.mxu0 0.0
    %2561 = vmatpush1.msra.mxu0 0.0
    %2562 = vmatprep.subr.mxu0 0.0
    %2563 = vmatpush1.msra.mxu0 0.0
    %2564 = vmatprep.subr.mxu0 0.0
    %2565 = vmatpush1.msra.mxu0 0.0
    %2566 = vmatprep.subr.mxu0 0.0
    %2567 = vmatpush1.msra.mxu0 0.0
    %2568 = vmatprep.subr.mxu0 0.0
    %2569 = vmatpush1.msra.mxu0 0.0
    %2570 = vmatprep.subr.mxu0 0.0
    %2571 = vmatpush1.msra.mxu0 0.0
    %2572 = vmatprep.subr.mxu0 0.0
    %2573 = vmatpush1.msra.mxu0 0.0
    %2574 = vmatprep.subr.mxu0 0.0
    %2575 = vmatpush1.msra.mxu0 0.0
    %2576 = vmatprep.subr.mxu0 0.0
    %2577 = vmatpush1.msra.mxu0 0.0
    %2578 = vmatprep.subr.mxu0 0.0
    %2579 = vmatpush1.msra.mxu0 0.0
    %2580 = vmatprep.subr.mxu0 0.0
    %2581 = vmatpush1.msra.mxu0 0.0
    %2582 = vmatprep.subr.mxu0 0.0
    %2583 = vmatpush1.msra.mxu0 0.0
    %2584 = vmatprep.subr.mxu0 0.0
    %2585 = vmatpush1.msra.mxu0 0.0
    %2586 = vmatprep.subr.mxu0 0.0
    %2587 = vmatpush1.msra.mxu0 0.0
    %2588 = vmatprep.subr.mxu0 0.0
    %2589 = vmatpush1.msra.mxu0 0.0
    %2590 = vmatprep.subr.mxu0 0.0
    %2591 = vmatpush1.msra.mxu0 0.0
    %2592 = vmatprep.mubr.f32.mxu0 0.0
    %2593 = vmatmul.mubr.f32.gmra.mrb[0].mxu0 %v2526
    %v2594 = vpop.f32.mrb[0].mxu0
    %v2595 = vadd.f32 %v2523, %v2594
    %v2596 = vpop.f32.mrb[0].mxu0
    %2597 = vdwg.mxu0
    %s2598 = scalar_lea.vmem %s10, 72
    %v2599 = vld [vmem:[%s2598] sm:$0xff]
    %v2600 = vld [vmem:[%s2598 + $0x8] sm:$0xff]
    %v2601 = vld [vmem:[%s2598 + $0x10] sm:$0xff]
    %s2602 = scalar_lea.vmem %s14, 3
    %v2603 = vld [vmem:[%s2602] sm:$0x1]
    %v2605 = vlaneseq
    %v2606 = vshrl.u32 %v2605, 7
    %v2607 = vsub.s32 0, %v2606
    %v2608 = vrot.slane %v2603, %v2607
    %2610 = vmatprep.subr.mxu0 0.0
    %2611 = vmatpush1.msra.mxu0 %v2599
    %2612 = vmatprep.subr.mxu0 0.0
    %2613 = vmatpush1.msra.mxu0 %v2600
    %2614 = vmatprep.subr.mxu0 0.0
    %2615 = vmatpush1.msra.mxu0 %v2601
    %2616 = vmatprep.subr.mxu0 0.0
    %2617 = vmatpush1.msra.mxu0 0.0
    %2618 = vmatprep.subr.mxu0 0.0
    %2619 = vmatpush1.msra.mxu0 0.0
    %2620 = vmatprep.subr.mxu0 0.0
    %2621 = vmatpush1.msra.mxu0 0.0
    %2622 = vmatprep.subr.mxu0 0.0
    %2623 = vmatpush1.msra.mxu0 0.0
    %2624 = vmatprep.subr.mxu0 0.0
    %2625 = vmatpush1.msra.mxu0 0.0
    %2626 = vmatprep.subr.mxu0 0.0
    %2627 = vmatpush1.msra.mxu0 0.0
    %2628 = vmatprep.subr.mxu0 0.0
    %2629 = vmatpush1.msra.mxu0 0.0
    %2630 = vmatprep.subr.mxu0 0.0
    %2631 = vmatpush1.msra.mxu0 0.0
    %2632 = vmatprep.subr.mxu0 0.0
    %2633 = vmatpush1.msra.mxu0 0.0
    %2634 = vmatprep.subr.mxu0 0.0
    %2635 = vmatpush1.msra.mxu0 0.0
    %2636 = vmatprep.subr.mxu0 0.0
    %2637 = vmatpush1.msra.mxu0 0.0
    %2638 = vmatprep.subr.mxu0 0.0
    %2639 = vmatpush1.msra.mxu0 0.0
    %2640 = vmatprep.subr.mxu0 0.0
    %2641 = vmatpush1.msra.mxu0 0.0
    %2642 = vmatprep.subr.mxu0 0.0
    %2643 = vmatpush1.msra.mxu0 0.0
    %2644 = vmatprep.subr.mxu0 0.0
    %2645 = vmatpush1.msra.mxu0 0.0
    %2646 = vmatprep.subr.mxu0 0.0
    %2647 = vmatpush1.msra.mxu0 0.0
    %2648 = vmatprep.subr.mxu0 0.0
    %2649 = vmatpush1.msra.mxu0 0.0
    %2650 = vmatprep.subr.mxu0 0.0
    %2651 = vmatpush1.msra.mxu0 0.0
    %2652 = vmatprep.subr.mxu0 0.0
    %2653 = vmatpush1.msra.mxu0 0.0
    %2654 = vmatprep.subr.mxu0 0.0
    %2655 = vmatpush1.msra.mxu0 0.0
    %2656 = vmatprep.subr.mxu0 0.0
    %2657 = vmatpush1.msra.mxu0 0.0
    %2658 = vmatprep.subr.mxu0 0.0
    %2659 = vmatpush1.msra.mxu0 0.0
    %2660 = vmatprep.subr.mxu0 0.0
    %2661 = vmatpush1.msra.mxu0 0.0
    %2662 = vmatprep.subr.mxu0 0.0
    %2663 = vmatpush1.msra.mxu0 0.0
    %2664 = vmatprep.subr.mxu0 0.0
    %2665 = vmatpush1.msra.mxu0 0.0
    %2666 = vmatprep.subr.mxu0 0.0
    %2667 = vmatpush1.msra.mxu0 0.0
    %2668 = vmatprep.subr.mxu0 0.0
    %2669 = vmatpush1.msra.mxu0 0.0
    %2670 = vmatprep.subr.mxu0 0.0
    %2671 = vmatpush1.msra.mxu0 0.0
    %2672 = vmatprep.subr.mxu0 0.0
    %2673 = vmatpush1.msra.mxu0 0.0
    %2674 = vmatprep.mubr.f32.mxu0 0.0
    %2675 = vmatmul.mubr.f32.gmra.mrb[0].mxu0 %v2526
    %v2676 = vpop.f32.mrb[0].mxu0
    %v2677 = vadd.f32 %v2608, %v2676
    %v2678 = vpop.f32.mrb[0].mxu0
    %2679 = vdwg.mxu0
    %s2680 = scalar_lea.vmem %s11, 72
    %v2681 = vld [vmem:[%s2680] sm:$0xff]
    %v2682 = vld [vmem:[%s2680 + $0x8] sm:$0xff]
    %v2683 = vld [vmem:[%s2680 + $0x10] sm:$0xff]
    %s2684 = scalar_lea.vmem %s15, 3
    %v2685 = vld [vmem:[%s2684] sm:$0x1]
    %v2687 = vlaneseq
    %v2688 = vshrl.u32 %v2687, 7
    %v2689 = vsub.s32 0, %v2688
    %v2690 = vrot.slane %v2685, %v2689
    %2692 = vmatprep.subr.mxu0 0.0
    %2693 = vmatpush1.msra.mxu0 %v2681
    %2694 = vmatprep.subr.mxu0 0.0
    %2695 = vmatpush1.msra.mxu0 %v2682
    %2696 = vmatprep.subr.mxu0 0.0
    %2697 = vmatpush1.msra.mxu0 %v2683
    %2698 = vmatprep.subr.mxu0 0.0
    %2699 = vmatpush1.msra.mxu0 0.0
    %2700 = vmatprep.subr.mxu0 0.0
    %2701 = vmatpush1.msra.mxu0 0.0
    %2702 = vmatprep.subr.mxu0 0.0
    %2703 = vmatpush1.msra.mxu0 0.0
    %2704 = vmatprep.subr.mxu0 0.0
    %2705 = vmatpush1.msra.mxu0 0.0
    %2706 = vmatprep.subr.mxu0 0.0
    %2707 = vmatpush1.msra.mxu0 0.0
    %2708 = vmatprep.subr.mxu0 0.0
    %2709 = vmatpush1.msra.mxu0 0.0
    %2710 = vmatprep.subr.mxu0 0.0
    %2711 = vmatpush1.msra.mxu0 0.0
    %2712 = vmatprep.subr.mxu0 0.0
    %2713 = vmatpush1.msra.mxu0 0.0
    %2714 = vmatprep.subr.mxu0 0.0
    %2715 = vmatpush1.msra.mxu0 0.0
    %2716 = vmatprep.subr.mxu0 0.0
    %2717 = vmatpush1.msra.mxu0 0.0
    %2718 = vmatprep.subr.mxu0 0.0
    %2719 = vmatpush1.msra.mxu0 0.0
    %2720 = vmatprep.subr.mxu0 0.0
    %2721 = vmatpush1.msra.mxu0 0.0
    %2722 = vmatprep.subr.mxu0 0.0
    %2723 = vmatpush1.msra.mxu0 0.0
    %2724 = vmatprep.subr.mxu0 0.0
    %2725 = vmatpush1.msra.mxu0 0.0
    %2726 = vmatprep.subr.mxu0 0.0
    %2727 = vmatpush1.msra.mxu0 0.0
    %2728 = vmatprep.subr.mxu0 0.0
    %2729 = vmatpush1.msra.mxu0 0.0
    %2730 = vmatprep.subr.mxu0 0.0
    %2731 = vmatpush1.msra.mxu0 0.0
    %2732 = vmatprep.subr.mxu0 0.0
    %2733 = vmatpush1.msra.mxu0 0.0
    %2734 = vmatprep.subr.mxu0 0.0
    %2735 = vmatpush1.msra.mxu0 0.0
    %2736 = vmatprep.subr.mxu0 0.0
    %2737 = vmatpush1.msra.mxu0 0.0
    %2738 = vmatprep.subr.mxu0 0.0
    %2739 = vmatpush1.msra.mxu0 0.0
    %2740 = vmatprep.subr.mxu0 0.0
    %2741 = vmatpush1.msra.mxu0 0.0
    %2742 = vmatprep.subr.mxu0 0.0
    %2743 = vmatpush1.msra.mxu0 0.0
    %2744 = vmatprep.subr.mxu0 0.0
    %2745 = vmatpush1.msra.mxu0 0.0
    %2746 = vmatprep.subr.mxu0 0.0
    %2747 = vmatpush1.msra.mxu0 0.0
    %2748 = vmatprep.subr.mxu0 0.0
    %2749 = vmatpush1.msra.mxu0 0.0
    %2750 = vmatprep.subr.mxu0 0.0
    %2751 = vmatpush1.msra.mxu0 0.0
    %2752 = vmatprep.subr.mxu0 0.0
    %2753 = vmatpush1.msra.mxu0 0.0
    %2754 = vmatprep.subr.mxu0 0.0
    %2755 = vmatpush1.msra.mxu0 0.0
    %2756 = vmatprep.mubr.f32.mxu0 0.0
    %2757 = vmatmul.mubr.f32.gmra.mrb[0].mxu0 %v2526
    %v2758 = vpop.f32.mrb[0].mxu0
    %v2759 = vadd.f32 %v2690, %v2758
    %v2760 = vpop.f32.mrb[0].mxu0
    %2761 = vdwg.mxu0
    %v2763 = vsel %vm723, %v2595, 0
    %v2766 = vsel %vm723, %v2677, 0
    %2768 = vmatprep.subr.mxu0 0.0
    %2769 = vmatpush1.xpose.msra.mxu0 %v2766
    %2770 = vmatprep.subr.mxu0 0.0
    %2771 = vmatpush1.xpose.msra.mxu0 0.0
    %2772 = vmatprep.subr.mxu0 0.0
    %2773 = vmatpush1.xpose.msra.mxu0 0.0
    %2774 = vmatprep.subr.mxu0 0.0
    %2775 = vmatpush1.xpose.msra.mxu0 0.0
    %2776 = vmatprep.subr.mxu0 0.0
    %2777 = vmatpush1.xpose.msra.mxu0 0.0
    %2778 = vmatprep.subr.mxu0 0.0
    %2779 = vmatpush1.xpose.msra.mxu0 0.0
    %2780 = vmatprep.subr.mxu0 0.0
    %2781 = vmatpush1.xpose.msra.mxu0 0.0
    %2782 = vmatprep.subr.mxu0 0.0
    %2783 = vmatpush1.xpose.msra.mxu0 0.0
    %2784 = vmatprep.subr.mxu0 0.0
    %2785 = vmatpush1.xpose.msra.mxu0 0.0
    %2786 = vmatprep.subr.mxu0 0.0
    %2787 = vmatpush1.xpose.msra.mxu0 0.0
    %2788 = vmatprep.subr.mxu0 0.0
    %2789 = vmatpush1.xpose.msra.mxu0 0.0
    %2790 = vmatprep.subr.mxu0 0.0
    %2791 = vmatpush1.xpose.msra.mxu0 0.0
    %2792 = vmatprep.subr.mxu0 0.0
    %2793 = vmatpush1.xpose.msra.mxu0 0.0
    %2794 = vmatprep.subr.mxu0 0.0
    %2795 = vmatpush1.xpose.msra.mxu0 0.0
    %2796 = vmatprep.subr.mxu0 0.0
    %2797 = vmatpush1.xpose.msra.mxu0 0.0
    %2798 = vmatprep.subr.mxu0 0.0
    %2799 = vmatpush1.xpose.msra.mxu0 0.0
    %2800 = vmatprep.subr.mxu0 0.0
    %2801 = vmatpush1.xpose.msra.mxu0 0.0
    %2802 = vmatprep.subr.mxu0 0.0
    %2803 = vmatpush1.xpose.msra.mxu0 0.0
    %2804 = vmatprep.subr.mxu0 0.0
    %2805 = vmatpush1.xpose.msra.mxu0 0.0
    %2806 = vmatprep.subr.mxu0 0.0
    %2807 = vmatpush1.xpose.msra.mxu0 0.0
    %2808 = vmatprep.subr.mxu0 0.0
    %2809 = vmatpush1.xpose.msra.mxu0 0.0
    %2810 = vmatprep.subr.mxu0 0.0
    %2811 = vmatpush1.xpose.msra.mxu0 0.0
    %2812 = vmatprep.subr.mxu0 0.0
    %2813 = vmatpush1.xpose.msra.mxu0 0.0
    %2814 = vmatprep.subr.mxu0 0.0
    %2815 = vmatpush1.xpose.msra.mxu0 0.0
    %2816 = vmatprep.subr.mxu0 0.0
    %2817 = vmatpush1.xpose.msra.mxu0 0.0
    %2818 = vmatprep.subr.mxu0 0.0
    %2819 = vmatpush1.xpose.msra.mxu0 0.0
    %2820 = vmatprep.subr.mxu0 0.0
    %2821 = vmatpush1.xpose.msra.mxu0 0.0
    %2822 = vmatprep.subr.mxu0 0.0
    %2823 = vmatpush1.xpose.msra.mxu0 0.0
    %2824 = vmatprep.subr.mxu0 0.0
    %2825 = vmatpush1.xpose.msra.mxu0 0.0
    %2826 = vmatprep.subr.mxu0 0.0
    %2827 = vmatpush1.xpose.msra.mxu0 0.0
    %2828 = vmatprep.subr.mxu0 0.0
    %2829 = vmatpush1.xpose.msra.mxu0 0.0
    %2830 = vmatprep.subr.mxu0 0.0
    %2831 = vmatpush1.xpose.msra.mxu0 0.0
    %2832 = vmatprep.mubr.f32.mxu0 0.0
    %2833 = vmatmul.mubr.f32.gmra.mrb[0].mxu0 %v2763
    %v2834 = vpop.f32.mrb[0].mxu0
    %v2835 = vadd.f32 0.0, %v2834
    %v2836 = vpop.f32.mrb[0].mxu0
    %2837 = vdwg.mxu0
    %v2838 = vmul.f32 %v2835, 0.35355338
    %v2839 = vsel %vm801, %v2838, -inf
    %2840 = vmax.xlane.f32.xlu0 %v2839
    %v2841 = vpop.xlane.xlu0 %2840
    %v2842 = vsub.f32 %v2838, %v2841
    %v2843 = vmul.f32 %v2842, 1.442695
    %v2844 = vpow.pop %v2843
    %v2845 = vsel %vm801, %v2844, 0.0
    %2846 = vadd.xlane.f32.xlu0 %v2845
    %v2847 = vpop.xlane.xlu0 %2846
    %v2848 = vrcp.pop %v2847
    %v2849 = vmul.f32 %v2844, %v2848
    %v2851 = vsel %vm813, %v2849, 0
    %v2854 = vsel %vm817, %v2759, 0
    %2856 = vmatprep.subr.mxu0 0.0
    %2857 = vmatpush1.msra.mxu0 %v2854
    %2858 = vmatprep.subr.mxu0 0.0
    %2859 = vmatpush1.msra.mxu0 0.0
    %2860 = vmatprep.subr.mxu0 0.0
    %2861 = vmatpush1.msra.mxu0 0.0
    %2862 = vmatprep.subr.mxu0 0.0
    %2863 = vmatpush1.msra.mxu0 0.0
    %2864 = vmatprep.subr.mxu0 0.0
    %2865 = vmatpush1.msra.mxu0 0.0
    %2866 = vmatprep.subr.mxu0 0.0
    %2867 = vmatpush1.msra.mxu0 0.0
    %2868 = vmatprep.subr.mxu0 0.0
    %2869 = vmatpush1.msra.mxu0 0.0
    %2870 = vmatprep.subr.mxu0 0.0
    %2871 = vmatpush1.msra.mxu0 0.0
    %2872 = vmatprep.subr.mxu0 0.0
    %2873 = vmatpush1.msra.mxu0 0.0
    %2874 = vmatprep.subr.mxu0 0.0
    %2875 = vmatpush1.msra.mxu0 0.0
    %2876 = vmatprep.subr.mxu0 0.0
    %2877 = vmatpush1.msra.mxu0 0.0
    %2878 = vmatprep.subr.mxu0 0.0
    %2879 = vmatpush1.msra.mxu0 0.0
    %2880 = vmatprep.subr.mxu0 0.0
    %2881 = vmatpush1.msra.mxu0 0.0
    %2882 = vmatprep.subr.mxu0 0.0
    %2883 = vmatpush1.msra.mxu0 0.0
    %2884 = vmatprep.subr.mxu0 0.0
    %2885 = vmatpush1.msra.mxu0 0.0
    %2886 = vmatprep.subr.mxu0 0.0
    %2887 = vmatpush1.msra.mxu0 0.0
    %2888 = vmatprep.subr.mxu0 0.0
    %2889 = vmatpush1.msra.mxu0 0.0
    %2890 = vmatprep.subr.mxu0 0.0
    %2891 = vmatpush1.msra.mxu0 0.0
    %2892 = vmatprep.subr.mxu0 0.0
    %2893 = vmatpush1.msra.mxu0 0.0
    %2894 = vmatprep.subr.mxu0 0.0
    %2895 = vmatpush1.msra.mxu0 0.0
    %2896 = vmatprep.subr.mxu0 0.0
    %2897 = vmatpush1.msra.mxu0 0.0
    %2898 = vmatprep.subr.mxu0 0.0
    %2899 = vmatpush1.msra.mxu0 0.0
    %2900 = vmatprep.subr.mxu0 0.0
    %2901 = vmatpush1.msra.mxu0 0.0
    %2902 = vmatprep.subr.mxu0 0.0
    %2903 = vmatpush1.msra.mxu0 0.0
    %2904 = vmatprep.subr.mxu0 0.0
    %2905 = vmatpush1.msra.mxu0 0.0
    %2906 = vmatprep.subr.mxu0 0.0
    %2907 = vmatpush1.msra.mxu0 0.0
    %2908 = vmatprep.subr.mxu0 0.0
    %2909 = vmatpush1.msra.mxu0 0.0
    %2910 = vmatprep.subr.mxu0 0.0
    %2911 = vmatpush1.msra.mxu0 0.0
    %2912 = vmatprep.subr.mxu0 0.0
    %2913 = vmatpush1.msra.mxu0 0.0
    %2914 = vmatprep.subr.mxu0 0.0
    %2915 = vmatpush1.msra.mxu0 0.0
    %2916 = vmatprep.subr.mxu0 0.0
    %2917 = vmatpush1.msra.mxu0 0.0
    %2918 = vmatprep.subr.mxu0 0.0
    %2919 = vmatpush1.msra.mxu0 0.0
    %2920 = vmatprep.mubr.f32.mxu0 0.0
    %2921 = vmatmul.mubr.f32.gmra.mrb[0].mxu0 %v2851
    %v2922 = vpop.f32.mrb[0].mxu0
    %v2923 = vadd.f32 0.0, %v2922
    %v2924 = vpop.f32.mrb[0].mxu0
    %2925 = vdwg.mxu0
    %s2926 = scalar_lea.vmem %s12, 24
    %v2927 = vld [vmem:[%s2926] sm:$0xff]
    %s2928 = scalar_lea.vmem %s9, 96
    %v2929 = vld [vmem:[%s2928] sm:$0xff]
    %v2930 = vld [vmem:[%s2928 + $0x8] sm:$0xff]
    %v2931 = vld [vmem:[%s2928 + $0x10] sm:$0xff]
    %s2932 = scalar_lea.vmem %s13, 4
    %v2933 = vld [vmem:[%s2932] sm:$0x1]
    %v2935 = vlaneseq
    %v2936 = vshrl.u32 %v2935, 7
    %v2937 = vsub.s32 0, %v2936
    %v2938 = vrot.slane %v2933, %v2937
    %2940 = vmatprep.subr.mxu0 0.0
    %2941 = vmatpush1.msra.mxu0 %v2929
    %2942 = vmatprep.subr.mxu0 0.0
    %2943 = vmatpush1.msra.mxu0 %v2930
    %2944 = vmatprep.subr.mxu0 0.0
    %2945 = vmatpush1.msra.mxu0 %v2931
    %2946 = vmatprep.subr.mxu0 0.0
    %2947 = vmatpush1.msra.mxu0 0.0
    %2948 = vmatprep.subr.mxu0 0.0
    %2949 = vmatpush1.msra.mxu0 0.0
    %2950 = vmatprep.subr.mxu0 0.0
    %2951 = vmatpush1.msra.mxu0 0.0
    %2952 = vmatprep.subr.mxu0 0.0
    %2953 = vmatpush1.msra.mxu0 0.0
    %2954 = vmatprep.subr.mxu0 0.0
    %2955 = vmatpush1.msra.mxu0 0.0
    %2956 = vmatprep.subr.mxu0 0.0
    %2957 = vmatpush1.msra.mxu0 0.0
    %2958 = vmatprep.subr.mxu0 0.0
    %2959 = vmatpush1.msra.mxu0 0.0
    %2960 = vmatprep.subr.mxu0 0.0
    %2961 = vmatpush1.msra.mxu0 0.0
    %2962 = vmatprep.subr.mxu0 0.0
    %2963 = vmatpush1.msra.mxu0 0.0
    %2964 = vmatprep.subr.mxu0 0.0
    %2965 = vmatpush1.msra.mxu0 0.0
    %2966 = vmatprep.subr.mxu0 0.0
    %2967 = vmatpush1.msra.mxu0 0.0
    %2968 = vmatprep.subr.mxu0 0.0
    %2969 = vmatpush1.msra.mxu0 0.0
    %2970 = vmatprep.subr.mxu0 0.0
    %2971 = vmatpush1.msra.mxu0 0.0
    %2972 = vmatprep.subr.mxu0 0.0
    %2973 = vmatpush1.msra.mxu0 0.0
    %2974 = vmatprep.subr.mxu0 0.0
    %2975 = vmatpush1.msra.mxu0 0.0
    %2976 = vmatprep.subr.mxu0 0.0
    %2977 = vmatpush1.msra.mxu0 0.0
    %2978 = vmatprep.subr.mxu0 0.0
    %2979 = vmatpush1.msra.mxu0 0.0
    %2980 = vmatprep.subr.mxu0 0.0
    %2981 = vmatpush1.msra.mxu0 0.0
    %2982 = vmatprep.subr.mxu0 0.0
    %2983 = vmatpush1.msra.mxu0 0.0
    %2984 = vmatprep.subr.mxu0 0.0
    %2985 = vmatpush1.msra.mxu0 0.0
    %2986 = vmatprep.subr.mxu0 0.0
    %2987 = vmatpush1.msra.mxu0 0.0
    %2988 = vmatprep.subr.mxu0 0.0
    %2989 = vmatpush1.msra.mxu0 0.0
    %2990 = vmatprep.subr.mxu0 0.0
    %2991 = vmatpush1.msra.mxu0 0.0
    %2992 = vmatprep.subr.mxu0 0.0
    %2993 = vmatpush1.msra.mxu0 0.0
    %2994 = vmatprep.subr.mxu0 0.0
    %2995 = vmatpush1.msra.mxu0 0.0
    %2996 = vmatprep.subr.mxu0 0.0
    %2997 = vmatpush1.msra.mxu0 0.0
    %2998 = vmatprep.subr.mxu0 0.0
    %2999 = vmatpush1.msra.mxu0 0.0
    %3000 = vmatprep.subr.mxu0 0.0
    %3001 = vmatpush1.msra.mxu0 0.0
    %3002 = vmatprep.subr.mxu0 0.0
    %3003 = vmatpush1.msra.mxu0 0.0
    %3004 = vmatprep.mubr.f32.mxu0 0.0
    %3005 = vmatmul.mubr.f32.gmra.mrb[0].mxu0 %v2526
    %v3006 = vpop.f32.mrb[0].mxu0
    %v3007 = vadd.f32 %v2938, %v3006
    %v3008 = vpop.f32.mrb[0].mxu0
    %3009 = vdwg.mxu0
    %s3010 = scalar_lea.vmem %s10, 96
    %v3011 = vld [vmem:[%s3010] sm:$0xff]
    %v3012 = vld [vmem:[%s3010 + $0x8] sm:$0xff]
    %v3013 = vld [vmem:[%s3010 + $0x10] sm:$0xff]
    %s3014 = scalar_lea.vmem %s14, 4
    %v3015 = vld [vmem:[%s3014] sm:$0x1]
    %v3017 = vlaneseq
    %v3018 = vshrl.u32 %v3017, 7
    %v3019 = vsub.s32 0, %v3018
    %v3020 = vrot.slane %v3015, %v3019
    %3022 = vmatprep.subr.mxu0 0.0
    %3023 = vmatpush1.msra.mxu0 %v3011
    %3024 = vmatprep.subr.mxu0 0.0
    %3025 = vmatpush1.msra.mxu0 %v3012
    %3026 = vmatprep.subr.mxu0 0.0
    %3027 = vmatpush1.msra.mxu0 %v3013
    %3028 = vmatprep.subr.mxu0 0.0
    %3029 = vmatpush1.msra.mxu0 0.0
    %3030 = vmatprep.subr.mxu0 0.0
    %3031 = vmatpush1.msra.mxu0 0.0
    %3032 = vmatprep.subr.mxu0 0.0
    %3033 = vmatpush1.msra.mxu0 0.0
    %3034 = vmatprep.subr.mxu0 0.0
    %3035 = vmatpush1.msra.mxu0 0.0
    %3036 = vmatprep.subr.mxu0 0.0
    %3037 = vmatpush1.msra.mxu0 0.0
    %3038 = vmatprep.subr.mxu0 0.0
    %3039 = vmatpush1.msra.mxu0 0.0
    %3040 = vmatprep.subr.mxu0 0.0
    %3041 = vmatpush1.msra.mxu0 0.0
    %3042 = vmatprep.subr.mxu0 0.0
    %3043 = vmatpush1.msra.mxu0 0.0
    %3044 = vmatprep.subr.mxu0 0.0
    %3045 = vmatpush1.msra.mxu0 0.0
    %3046 = vmatprep.subr.mxu0 0.0
    %3047 = vmatpush1.msra.mxu0 0.0
    %3048 = vmatprep.subr.mxu0 0.0
    %3049 = vmatpush1.msra.mxu0 0.0
    %3050 = vmatprep.subr.mxu0 0.0
    %3051 = vmatpush1.msra.mxu0 0.0
    %3052 = vmatprep.subr.mxu0 0.0
    %3053 = vmatpush1.msra.mxu0 0.0
    %3054 = vmatprep.subr.mxu0 0.0
    %3055 = vmatpush1.msra.mxu0 0.0
    %3056 = vmatprep.subr.mxu0 0.0
    %3057 = vmatpush1.msra.mxu0 0.0
    %3058 = vmatprep.subr.mxu0 0.0
    %3059 = vmatpush1.msra.mxu0 0.0
    %3060 = vmatprep.subr.mxu0 0.0
    %3061 = vmatpush1.msra.mxu0 0.0
    %3062 = vmatprep.subr.mxu0 0.0
    %3063 = vmatpush1.msra.mxu0 0.0
    %3064 = vmatprep.subr.mxu0 0.0
    %3065 = vmatpush1.msra.mxu0 0.0
    %3066 = vmatprep.subr.mxu0 0.0
    %3067 = vmatpush1.msra.mxu0 0.0
    %3068 = vmatprep.subr.mxu0 0.0
    %3069 = vmatpush1.msra.mxu0 0.0
    %3070 = vmatprep.subr.mxu0 0.0
    %3071 = vmatpush1.msra.mxu0 0.0
    %3072 = vmatprep.subr.mxu0 0.0
    %3073 = vmatpush1.msra.mxu0 0.0
    %3074 = vmatprep.subr.mxu0 0.0
    %3075 = vmatpush1.msra.mxu0 0.0
    %3076 = vmatprep.subr.mxu0 0.0
    %3077 = vmatpush1.msra.mxu0 0.0
    %3078 = vmatprep.subr.mxu0 0.0
    %3079 = vmatpush1.msra.mxu0 0.0
    %3080 = vmatprep.subr.mxu0 0.0
    %3081 = vmatpush1.msra.mxu0 0.0
    %3082 = vmatprep.subr.mxu0 0.0
    %3083 = vmatpush1.msra.mxu0 0.0
    %3084 = vmatprep.subr.mxu0 0.0
    %3085 = vmatpush1.msra.mxu0 0.0
    %3086 = vmatprep.mubr.f32.mxu0 0.0
    %3087 = vmatmul.mubr.f32.gmra.mrb[0].mxu0 %v2526
    %v3088 = vpop.f32.mrb[0].mxu0
    %v3089 = vadd.f32 %v3020, %v3088
    %v3090 = vpop.f32.mrb[0].mxu0
    %3091 = vdwg.mxu0
    %s3092 = scalar_lea.vmem %s11, 96
    %v3093 = vld [vmem:[%s3092] sm:$0xff]
    %v3094 = vld [vmem:[%s3092 + $0x8] sm:$0xff]
    %v3095 = vld [vmem:[%s3092 + $0x10] sm:$0xff]
    %s3096 = scalar_lea.vmem %s15, 4
    %v3097 = vld [vmem:[%s3096] sm:$0x1]
    %v3099 = vlaneseq
    %v3100 = vshrl.u32 %v3099, 7
    %v3101 = vsub.s32 0, %v3100
    %v3102 = vrot.slane %v3097, %v3101
    %3104 = vmatprep.subr.mxu0 0.0
    %3105 = vmatpush1.msra.mxu0 %v3093
    %3106 = vmatprep.subr.mxu0 0.0
    %3107 = vmatpush1.msra.mxu0 %v3094
    %3108 = vmatprep.subr.mxu0 0.0
    %3109 = vmatpush1.msra.mxu0 %v3095
    %3110 = vmatprep.subr.mxu0 0.0
    %3111 = vmatpush1.msra.mxu0 0.0
    %3112 = vmatprep.subr.mxu0 0.0
    %3113 = vmatpush1.msra.mxu0 0.0
    %3114 = vmatprep.subr.mxu0 0.0
    %3115 = vmatpush1.msra.mxu0 0.0
    %3116 = vmatprep.subr.mxu0 0.0
    %3117 = vmatpush1.msra.mxu0 0.0
    %3118 = vmatprep.subr.mxu0 0.0
    %3119 = vmatpush1.msra.mxu0 0.0
    %3120 = vmatprep.subr.mxu0 0.0
    %3121 = vmatpush1.msra.mxu0 0.0
    %3122 = vmatprep.subr.mxu0 0.0
    %3123 = vmatpush1.msra.mxu0 0.0
    %3124 = vmatprep.subr.mxu0 0.0
    %3125 = vmatpush1.msra.mxu0 0.0
    %3126 = vmatprep.subr.mxu0 0.0
    %3127 = vmatpush1.msra.mxu0 0.0
    %3128 = vmatprep.subr.mxu0 0.0
    %3129 = vmatpush1.msra.mxu0 0.0
    %3130 = vmatprep.subr.mxu0 0.0
    %3131 = vmatpush1.msra.mxu0 0.0
    %3132 = vmatprep.subr.mxu0 0.0
    %3133 = vmatpush1.msra.mxu0 0.0
    %3134 = vmatprep.subr.mxu0 0.0
    %3135 = vmatpush1.msra.mxu0 0.0
    %3136 = vmatprep.subr.mxu0 0.0
    %3137 = vmatpush1.msra.mxu0 0.0
    %3138 = vmatprep.subr.mxu0 0.0
    %3139 = vmatpush1.msra.mxu0 0.0
    %3140 = vmatprep.subr.mxu0 0.0
    %3141 = vmatpush1.msra.mxu0 0.0
    %3142 = vmatprep.subr.mxu0 0.0
    %3143 = vmatpush1.msra.mxu0 0.0
    %3144 = vmatprep.subr.mxu0 0.0
    %3145 = vmatpush1.msra.mxu0 0.0
    %3146 = vmatprep.subr.mxu0 0.0
    %3147 = vmatpush1.msra.mxu0 0.0
    %3148 = vmatprep.subr.mxu0 0.0
    %3149 = vmatpush1.msra.mxu0 0.0
    %3150 = vmatprep.subr.mxu0 0.0
    %3151 = vmatpush1.msra.mxu0 0.0
    %3152 = vmatprep.subr.mxu0 0.0
    %3153 = vmatpush1.msra.mxu0 0.0
    %3154 = vmatprep.subr.mxu0 0.0
    %3155 = vmatpush1.msra.mxu0 0.0
    %3156 = vmatprep.subr.mxu0 0.0
    %3157 = vmatpush1.msra.mxu0 0.0
    %3158 = vmatprep.subr.mxu0 0.0
    %3159 = vmatpush1.msra.mxu0 0.0
    %3160 = vmatprep.subr.mxu0 0.0
    %3161 = vmatpush1.msra.mxu0 0.0
    %3162 = vmatprep.subr.mxu0 0.0
    %3163 = vmatpush1.msra.mxu0 0.0
    %3164 = vmatprep.subr.mxu0 0.0
    %3165 = vmatpush1.msra.mxu0 0.0
    %3166 = vmatprep.subr.mxu0 0.0
    %3167 = vmatpush1.msra.mxu0 0.0
    %3168 = vmatprep.mubr.f32.mxu0 0.0
    %3169 = vmatmul.mubr.f32.gmra.mrb[0].mxu0 %v2526
    %v3170 = vpop.f32.mrb[0].mxu0
    %v3171 = vadd.f32 %v3102, %v3170
    %v3172 = vpop.f32.mrb[0].mxu0
    %3173 = vdwg.mxu0
    %v3175 = vsel %vm723, %v3007, 0
    %v3178 = vsel %vm723, %v3089, 0
    %3180 = vmatprep.subr.mxu0 0.0
    %3181 = vmatpush1.xpose.msra.mxu0 %v3178
    %3182 = vmatprep.subr.mxu0 0.0
    %3183 = vmatpush1.xpose.msra.mxu0 0.0
    %3184 = vmatprep.subr.mxu0 0.0
    %3185 = vmatpush1.xpose.msra.mxu0 0.0
    %3186 = vmatprep.subr.mxu0 0.0
    %3187 = vmatpush1.xpose.msra.mxu0 0.0
    %3188 = vmatprep.subr.mxu0 0.0
    %3189 = vmatpush1.xpose.msra.mxu0 0.0
    %3190 = vmatprep.subr.mxu0 0.0
    %3191 = vmatpush1.xpose.msra.mxu0 0.0
    %3192 = vmatprep.subr.mxu0 0.0
    %3193 = vmatpush1.xpose.msra.mxu0 0.0
    %3194 = vmatprep.subr.mxu0 0.0
    %3195 = vmatpush1.xpose.msra.mxu0 0.0
    %3196 = vmatprep.subr.mxu0 0.0
    %3197 = vmatpush1.xpose.msra.mxu0 0.0
    %3198 = vmatprep.subr.mxu0 0.0
    %3199 = vmatpush1.xpose.msra.mxu0 0.0
    %3200 = vmatprep.subr.mxu0 0.0
    %3201 = vmatpush1.xpose.msra.mxu0 0.0
    %3202 = vmatprep.subr.mxu0 0.0
    %3203 = vmatpush1.xpose.msra.mxu0 0.0
    %3204 = vmatprep.subr.mxu0 0.0
    %3205 = vmatpush1.xpose.msra.mxu0 0.0
    %3206 = vmatprep.subr.mxu0 0.0
    %3207 = vmatpush1.xpose.msra.mxu0 0.0
    %3208 = vmatprep.subr.mxu0 0.0
    %3209 = vmatpush1.xpose.msra.mxu0 0.0
    %3210 = vmatprep.subr.mxu0 0.0
    %3211 = vmatpush1.xpose.msra.mxu0 0.0
    %3212 = vmatprep.subr.mxu0 0.0
    %3213 = vmatpush1.xpose.msra.mxu0 0.0
    %3214 = vmatprep.subr.mxu0 0.0
    %3215 = vmatpush1.xpose.msra.mxu0 0.0
    %3216 = vmatprep.subr.mxu0 0.0
    %3217 = vmatpush1.xpose.msra.mxu0 0.0
    %3218 = vmatprep.subr.mxu0 0.0
    %3219 = vmatpush1.xpose.msra.mxu0 0.0
    %3220 = vmatprep.subr.mxu0 0.0
    %3221 = vmatpush1.xpose.msra.mxu0 0.0
    %3222 = vmatprep.subr.mxu0 0.0
    %3223 = vmatpush1.xpose.msra.mxu0 0.0
    %3224 = vmatprep.subr.mxu0 0.0
    %3225 = vmatpush1.xpose.msra.mxu0 0.0
    %3226 = vmatprep.subr.mxu0 0.0
    %3227 = vmatpush1.xpose.msra.mxu0 0.0
    %3228 = vmatprep.subr.mxu0 0.0
    %3229 = vmatpush1.xpose.msra.mxu0 0.0
    %3230 = vmatprep.subr.mxu0 0.0
    %3231 = vmatpush1.xpose.msra.mxu0 0.0
    %3232 = vmatprep.subr.mxu0 0.0
    %3233 = vmatpush1.xpose.msra.mxu0 0.0
    %3234 = vmatprep.subr.mxu0 0.0
    %3235 = vmatpush1.xpose.msra.mxu0 0.0
    %3236 = vmatprep.subr.mxu0 0.0
    %3237 = vmatpush1.xpose.msra.mxu0 0.0
    %3238 = vmatprep.subr.mxu0 0.0
    %3239 = vmatpush1.xpose.msra.mxu0 0.0
    %3240 = vmatprep.subr.mxu0 0.0
    %3241 = vmatpush1.xpose.msra.mxu0 0.0
    %3242 = vmatprep.subr.mxu0 0.0
    %3243 = vmatpush1.xpose.msra.mxu0 0.0
    %3244 = vmatprep.mubr.f32.mxu0 0.0
    %3245 = vmatmul.mubr.f32.gmra.mrb[0].mxu0 %v3175
    %v3246 = vpop.f32.mrb[0].mxu0
    %v3247 = vadd.f32 0.0, %v3246
    %v3248 = vpop.f32.mrb[0].mxu0
    %3249 = vdwg.mxu0
    %v3250 = vmul.f32 %v3247, 0.35355338
    %v3251 = vsel %vm801, %v3250, -inf
    %3252 = vmax.xlane.f32.xlu0 %v3251
    %v3253 = vpop.xlane.xlu0 %3252
    %v3254 = vsub.f32 %v3250, %v3253
    %v3255 = vmul.f32 %v3254, 1.442695
    %v3256 = vpow.pop %v3255
    %v3257 = vsel %vm801, %v3256, 0.0
    %3258 = vadd.xlane.f32.xlu0 %v3257
    %v3259 = vpop.xlane.xlu0 %3258
    %v3260 = vrcp.pop %v3259
    %v3261 = vmul.f32 %v3256, %v3260
    %v3263 = vsel %vm813, %v3261, 0
    %v3266 = vsel %vm817, %v3171, 0
    %3268 = vmatprep.subr.mxu0 0.0
    %3269 = vmatpush1.msra.mxu0 %v3266
    %3270 = vmatprep.subr.mxu0 0.0
    %3271 = vmatpush1.msra.mxu0 0.0
    %3272 = vmatprep.subr.mxu0 0.0
    %3273 = vmatpush1.msra.mxu0 0.0
    %3274 = vmatprep.subr.mxu0 0.0
    %3275 = vmatpush1.msra.mxu0 0.0
    %3276 = vmatprep.subr.mxu0 0.0
    %3277 = vmatpush1.msra.mxu0 0.0
    %3278 = vmatprep.subr.mxu0 0.0
    %3279 = vmatpush1.msra.mxu0 0.0
    %3280 = vmatprep.subr.mxu0 0.0
    %3281 = vmatpush1.msra.mxu0 0.0
    %3282 = vmatprep.subr.mxu0 0.0
    %3283 = vmatpush1.msra.mxu0 0.0
    %3284 = vmatprep.subr.mxu0 0.0
    %3285 = vmatpush1.msra.mxu0 0.0
    %3286 = vmatprep.subr.mxu0 0.0
    %3287 = vmatpush1.msra.mxu0 0.0
    %3288 = vmatprep.subr.mxu0 0.0
    %3289 = vmatpush1.msra.mxu0 0.0
    %3290 = vmatprep.subr.mxu0 0.0
    %3291 = vmatpush1.msra.mxu0 0.0
    %3292 = vmatprep.subr.mxu0 0.0
    %3293 = vmatpush1.msra.mxu0 0.0
    %3294 = vmatprep.subr.mxu0 0.0
    %3295 = vmatpush1.msra.mxu0 0.0
    %3296 = vmatprep.subr.mxu0 0.0
    %3297 = vmatpush1.msra.mxu0 0.0
    %3298 = vmatprep.subr.mxu0 0.0
    %3299 = vmatpush1.msra.mxu0 0.0
    %3300 = vmatprep.subr.mxu0 0.0
    %3301 = vmatpush1.msra.mxu0 0.0
    %3302 = vmatprep.subr.mxu0 0.0
    %3303 = vmatpush1.msra.mxu0 0.0
    %3304 = vmatprep.subr.mxu0 0.0
    %3305 = vmatpush1.msra.mxu0 0.0
    %3306 = vmatprep.subr.mxu0 0.0
    %3307 = vmatpush1.msra.mxu0 0.0
    %3308 = vmatprep.subr.mxu0 0.0
    %3309 = vmatpush1.msra.mxu0 0.0
    %3310 = vmatprep.subr.mxu0 0.0
    %3311 = vmatpush1.msra.mxu0 0.0
    %3312 = vmatprep.subr.mxu0 0.0
    %3313 = vmatpush1.msra.mxu0 0.0
    %3314 = vmatprep.subr.mxu0 0.0
    %3315 = vmatpush1.msra.mxu0 0.0
    %3316 = vmatprep.subr.mxu0 0.0
    %3317 = vmatpush1.msra.mxu0 0.0
    %3318 = vmatprep.subr.mxu0 0.0
    %3319 = vmatpush1.msra.mxu0 0.0
    %3320 = vmatprep.subr.mxu0 0.0
    %3321 = vmatpush1.msra.mxu0 0.0
    %3322 = vmatprep.subr.mxu0 0.0
    %3323 = vmatpush1.msra.mxu0 0.0
    %3324 = vmatprep.subr.mxu0 0.0
    %3325 = vmatpush1.msra.mxu0 0.0
    %3326 = vmatprep.subr.mxu0 0.0
    %3327 = vmatpush1.msra.mxu0 0.0
    %3328 = vmatprep.subr.mxu0 0.0
    %3329 = vmatpush1.msra.mxu0 0.0
    %3330 = vmatprep.subr.mxu0 0.0
    %3331 = vmatpush1.msra.mxu0 0.0
    %3332 = vmatprep.mubr.f32.mxu0 0.0
    %3333 = vmatmul.mubr.f32.gmra.mrb[0].mxu0 %v3263
    %v3334 = vpop.f32.mrb[0].mxu0
    %v3335 = vadd.f32 0.0, %v3334
    %v3336 = vpop.f32.mrb[0].mxu0
    %3337 = vdwg.mxu0
    %s3338 = scalar_lea.vmem %s12, 32
    %v3339 = vld [vmem:[%s3338] sm:$0xff]
    %v3341 = vsel %vm723, %v3335, 0
    %3343 = vmatprep.subr.mxu0 0.0
    %3344 = vmatpush1.msra.mxu0 %v3339
    %3345 = vmatprep.subr.mxu0 0.0
    %3346 = vmatpush1.msra.mxu0 0.0
    %3347 = vmatprep.subr.mxu0 0.0
    %3348 = vmatpush1.msra.mxu0 0.0
    %3349 = vmatprep.subr.mxu0 0.0
    %3350 = vmatpush1.msra.mxu0 0.0
    %3351 = vmatprep.subr.mxu0 0.0
    %3352 = vmatpush1.msra.mxu0 0.0
    %3353 = vmatprep.subr.mxu0 0.0
    %3354 = vmatpush1.msra.mxu0 0.0
    %3355 = vmatprep.subr.mxu0 0.0
    %3356 = vmatpush1.msra.mxu0 0.0
    %3357 = vmatprep.subr.mxu0 0.0
    %3358 = vmatpush1.msra.mxu0 0.0
    %3359 = vmatprep.subr.mxu0 0.0
    %3360 = vmatpush1.msra.mxu0 0.0
    %3361 = vmatprep.subr.mxu0 0.0
    %3362 = vmatpush1.msra.mxu0 0.0
    %3363 = vmatprep.subr.mxu0 0.0
    %3364 = vmatpush1.msra.mxu0 0.0
    %3365 = vmatprep.subr.mxu0 0.0
    %3366 = vmatpush1.msra.mxu0 0.0
    %3367 = vmatprep.subr.mxu0 0.0
    %3368 = vmatpush1.msra.mxu0 0.0
    %3369 = vmatprep.subr.mxu0 0.0
    %3370 = vmatpush1.msra.mxu0 0.0
    %3371 = vmatprep.subr.mxu0 0.0
    %3372 = vmatpush1.msra.mxu0 0.0
    %3373 = vmatprep.subr.mxu0 0.0
    %3374 = vmatpush1.msra.mxu0 0.0
    %3375 = vmatprep.subr.mxu0 0.0
    %3376 = vmatpush1.msra.mxu0 0.0
    %3377 = vmatprep.subr.mxu0 0.0
    %3378 = vmatpush1.msra.mxu0 0.0
    %3379 = vmatprep.subr.mxu0 0.0
    %3380 = vmatpush1.msra.mxu0 0.0
    %3381 = vmatprep.subr.mxu0 0.0
    %3382 = vmatpush1.msra.mxu0 0.0
    %3383 = vmatprep.subr.mxu0 0.0
    %3384 = vmatpush1.msra.mxu0 0.0
    %3385 = vmatprep.subr.mxu0 0.0
    %3386 = vmatpush1.msra.mxu0 0.0
    %3387 = vmatprep.subr.mxu0 0.0
    %3388 = vmatpush1.msra.mxu0 0.0
    %3389 = vmatprep.subr.mxu0 0.0
    %3390 = vmatpush1.msra.mxu0 0.0
    %3391 = vmatprep.subr.mxu0 0.0
    %3392 = vmatpush1.msra.mxu0 0.0
    %3393 = vmatprep.subr.mxu0 0.0
    %3394 = vmatpush1.msra.mxu0 0.0
    %3395 = vmatprep.subr.mxu0 0.0
    %3396 = vmatpush1.msra.mxu0 0.0
    %3397 = vmatprep.subr.mxu0 0.0
    %3398 = vmatpush1.msra.mxu0 0.0
    %3399 = vmatprep.subr.mxu0 0.0
    %3400 = vmatpush1.msra.mxu0 0.0
    %3401 = vmatprep.subr.mxu0 0.0
    %3402 = vmatpush1.msra.mxu0 0.0
    %3403 = vmatprep.subr.mxu0 0.0
    %3404 = vmatpush1.msra.mxu0 0.0
    %3405 = vmatprep.subr.mxu0 0.0
    %3406 = vmatpush1.msra.mxu0 0.0
    %3407 = vmatprep.mubr.f32.mxu0 0.0
    %3408 = vmatmul.mubr.f32.gmra.mrb[0].mxu0 %v3341
    %v3409 = vpop.f32.mrb[0].mxu0
    %v3410 = vadd.f32 0.0, %v3409
    %v3411 = vpop.f32.mrb[0].mxu0
    %3412 = vdwg.mxu0
    %v3414 = vsel %vm723, %v2923, 0
    %3416 = vmatprep.subr.mxu0 0.0
    %3417 = vmatpush1.msra.mxu0 %v2927
    %3418 = vmatprep.subr.mxu0 0.0
    %3419 = vmatpush1.msra.mxu0 0.0
    %3420 = vmatprep.subr.mxu0 0.0
    %3421 = vmatpush1.msra.mxu0 0.0
    %3422 = vmatprep.subr.mxu0 0.0
    %3423 = vmatpush1.msra.mxu0 0.0
    %3424 = vmatprep.subr.mxu0 0.0
    %3425 = vmatpush1.msra.mxu0 0.0
    %3426 = vmatprep.subr.mxu0 0.0
    %3427 = vmatpush1.msra.mxu0 0.0
    %3428 = vmatprep.subr.mxu0 0.0
    %3429 = vmatpush1.msra.mxu0 0.0
    %3430 = vmatprep.subr.mxu0 0.0
    %3431 = vmatpush1.msra.mxu0 0.0
    %3432 = vmatprep.subr.mxu0 0.0
    %3433 = vmatpush1.msra.mxu0 0.0
    %3434 = vmatprep.subr.mxu0 0.0
    %3435 = vmatpush1.msra.mxu0 0.0
    %3436 = vmatprep.subr.mxu0 0.0
    %3437 = vmatpush1.msra.mxu0 0.0
    %3438 = vmatprep.subr.mxu0 0.0
    %3439 = vmatpush1.msra.mxu0 0.0
    %3440 = vmatprep.subr.mxu0 0.0
    %3441 = vmatpush1.msra.mxu0 0.0
    %3442 = vmatprep.subr.mxu0 0.0
    %3443 = vmatpush1.msra.mxu0 0.0
    %3444 = vmatprep.subr.mxu0 0.0
    %3445 = vmatpush1.msra.mxu0 0.0
    %3446 = vmatprep.subr.mxu0 0.0
    %3447 = vmatpush1.msra.mxu0 0.0
    %3448 = vmatprep.subr.mxu0 0.0
    %3449 = vmatpush1.msra.mxu0 0.0
    %3450 = vmatprep.subr.mxu0 0.0
    %3451 = vmatpush1.msra.mxu0 0.0
    %3452 = vmatprep.subr.mxu0 0.0
    %3453 = vmatpush1.msra.mxu0 0.0
    %3454 = vmatprep.subr.mxu0 0.0
    %3455 = vmatpush1.msra.mxu0 0.0
    %3456 = vmatprep.subr.mxu0 0.0
    %3457 = vmatpush1.msra.mxu0 0.0
    %3458 = vmatprep.subr.mxu0 0.0
    %3459 = vmatpush1.msra.mxu0 0.0
    %3460 = vmatprep.subr.mxu0 0.0
    %3461 = vmatpush1.msra.mxu0 0.0
    %3462 = vmatprep.subr.mxu0 0.0
    %3463 = vmatpush1.msra.mxu0 0.0
    %3464 = vmatprep.subr.mxu0 0.0
    %3465 = vmatpush1.msra.mxu0 0.0
    %3466 = vmatprep.subr.mxu0 0.0
    %3467 = vmatpush1.msra.mxu0 0.0
    %3468 = vmatprep.subr.mxu0 0.0
    %3469 = vmatpush1.msra.mxu0 0.0
    %3470 = vmatprep.subr.mxu0 0.0
    %3471 = vmatpush1.msra.mxu0 0.0
    %3472 = vmatprep.subr.mxu0 0.0
    %3473 = vmatpush1.msra.mxu0 0.0
    %3474 = vmatprep.subr.mxu0 0.0
    %3475 = vmatpush1.msra.mxu0 0.0
    %3476 = vmatprep.subr.mxu0 0.0
    %3477 = vmatpush1.msra.mxu0 0.0
    %3478 = vmatprep.subr.mxu0 0.0
    %3479 = vmatpush1.msra.mxu0 0.0
    %3480 = vmatprep.mubr.f32.mxu0 0.0
    %3481 = vmatmul.mubr.f32.gmra.mrb[0].mxu0 %v3414
    %v3482 = vpop.f32.mrb[0].mxu0
    %v3483 = vadd.f32 %v3410, %v3482
    %v3484 = vpop.f32.mrb[0].mxu0
    %3485 = vdwg.mxu0
    %s3486 = scalar_lea.vmem %s9, 120
    %v3487 = vld [vmem:[%s3486] sm:$0xff]
    %v3488 = vld [vmem:[%s3486 + $0x8] sm:$0xff]
    %v3489 = vld [vmem:[%s3486 + $0x10] sm:$0xff]
    %s3490 = scalar_lea.vmem %s13, 5
    %v3491 = vld [vmem:[%s3490] sm:$0x1]
    %v3493 = vlaneseq
    %v3494 = vshrl.u32 %v3493, 7
    %v3495 = vsub.s32 0, %v3494
    %v3496 = vrot.slane %v3491, %v3495
    %3498 = vmatprep.subr.mxu0 0.0
    %3499 = vmatpush1.msra.mxu0 %v3487
    %3500 = vmatprep.subr.mxu0 0.0
    %3501 = vmatpush1.msra.mxu0 %v3488
    %3502 = vmatprep.subr.mxu0 0.0
    %3503 = vmatpush1.msra.mxu0 %v3489
    %3504 = vmatprep.subr.mxu0 0.0
    %3505 = vmatpush1.msra.mxu0 0.0
    %3506 = vmatprep.subr.mxu0 0.0
    %3507 = vmatpush1.msra.mxu0 0.0
    %3508 = vmatprep.subr.mxu0 0.0
    %3509 = vmatpush1.msra.mxu0 0.0
    %3510 = vmatprep.subr.mxu0 0.0
    %3511 = vmatpush1.msra.mxu0 0.0
    %3512 = vmatprep.subr.mxu0 0.0
    %3513 = vmatpush1.msra.mxu0 0.0
    %3514 = vmatprep.subr.mxu0 0.0
    %3515 = vmatpush1.msra.mxu0 0.0
    %3516 = vmatprep.subr.mxu0 0.0
    %3517 = vmatpush1.msra.mxu0 0.0
    %3518 = vmatprep.subr.mxu0 0.0
    %3519 = vmatpush1.msra.mxu0 0.0
    %3520 = vmatprep.subr.mxu0 0.0
    %3521 = vmatpush1.msra.mxu0 0.0
    %3522 = vmatprep.subr.mxu0 0.0
    %3523 = vmatpush1.msra.mxu0 0.0
    %3524 = vmatprep.subr.mxu0 0.0
    %3525 = vmatpush1.msra.mxu0 0.0
    %3526 = vmatprep.subr.mxu0 0.0
    %3527 = vmatpush1.msra.mxu0 0.0
    %3528 = vmatprep.subr.mxu0 0.0
    %3529 = vmatpush1.msra.mxu0 0.0
    %3530 = vmatprep.subr.mxu0 0.0
    %3531 = vmatpush1.msra.mxu0 0.0
    %3532 = vmatprep.subr.mxu0 0.0
    %3533 = vmatpush1.msra.mxu0 0.0
    %3534 = vmatprep.subr.mxu0 0.0
    %3535 = vmatpush1.msra.mxu0 0.0
    %3536 = vmatprep.subr.mxu0 0.0
    %3537 = vmatpush1.msra.mxu0 0.0
    %3538 = vmatprep.subr.mxu0 0.0
    %3539 = vmatpush1.msra.mxu0 0.0
    %3540 = vmatprep.subr.mxu0 0.0
    %3541 = vmatpush1.msra.mxu0 0.0
    %3542 = vmatprep.subr.mxu0 0.0
    %3543 = vmatpush1.msra.mxu0 0.0
    %3544 = vmatprep.subr.mxu0 0.0
    %3545 = vmatpush1.msra.mxu0 0.0
    %3546 = vmatprep.subr.mxu0 0.0
    %3547 = vmatpush1.msra.mxu0 0.0
    %3548 = vmatprep.subr.mxu0 0.0
    %3549 = vmatpush1.msra.mxu0 0.0
    %3550 = vmatprep.subr.mxu0 0.0
    %3551 = vmatpush1.msra.mxu0 0.0
    %3552 = vmatprep.subr.mxu0 0.0
    %3553 = vmatpush1.msra.mxu0 0.0
    %3554 = vmatprep.subr.mxu0 0.0
    %3555 = vmatpush1.msra.mxu0 0.0
    %3556 = vmatprep.subr.mxu0 0.0
    %3557 = vmatpush1.msra.mxu0 0.0
    %3558 = vmatprep.subr.mxu0 0.0
    %3559 = vmatpush1.msra.mxu0 0.0
    %3560 = vmatprep.subr.mxu0 0.0
    %3561 = vmatpush1.msra.mxu0 0.0
    %3562 = vmatprep.mubr.f32.mxu0 0.0
    %3563 = vmatmul.mubr.f32.gmra.mrb[0].mxu0 %v2526
    %v3564 = vpop.f32.mrb[0].mxu0
    %v3565 = vadd.f32 %v3496, %v3564
    %v3566 = vpop.f32.mrb[0].mxu0
    %3567 = vdwg.mxu0
    %s3568 = scalar_lea.vmem %s10, 120
    %v3569 = vld [vmem:[%s3568] sm:$0xff]
    %v3570 = vld [vmem:[%s3568 + $0x8] sm:$0xff]
    %v3571 = vld [vmem:[%s3568 + $0x10] sm:$0xff]
    %s3572 = scalar_lea.vmem %s14, 5
    %v3573 = vld [vmem:[%s3572] sm:$0x1]
    %v3575 = vlaneseq
    %v3576 = vshrl.u32 %v3575, 7
    %v3577 = vsub.s32 0, %v3576
    %v3578 = vrot.slane %v3573, %v3577
    %3580 = vmatprep.subr.mxu0 0.0
    %3581 = vmatpush1.msra.mxu0 %v3569
    %3582 = vmatprep.subr.mxu0 0.0
    %3583 = vmatpush1.msra.mxu0 %v3570
    %3584 = vmatprep.subr.mxu0 0.0
    %3585 = vmatpush1.msra.mxu0 %v3571
    %3586 = vmatprep.subr.mxu0 0.0
    %3587 = vmatpush1.msra.mxu0 0.0
    %3588 = vmatprep.subr.mxu0 0.0
    %3589 = vmatpush1.msra.mxu0 0.0
    %3590 = vmatprep.subr.mxu0 0.0
    %3591 = vmatpush1.msra.mxu0 0.0
    %3592 = vmatprep.subr.mxu0 0.0
    %3593 = vmatpush1.msra.mxu0 0.0
    %3594 = vmatprep.subr.mxu0 0.0
    %3595 = vmatpush1.msra.mxu0 0.0
    %3596 = vmatprep.subr.mxu0 0.0
    %3597 = vmatpush1.msra.mxu0 0.0
    %3598 = vmatprep.subr.mxu0 0.0
    %3599 = vmatpush1.msra.mxu0 0.0
    %3600 = vmatprep.subr.mxu0 0.0
    %3601 = vmatpush1.msra.mxu0 0.0
    %3602 = vmatprep.subr.mxu0 0.0
    %3603 = vmatpush1.msra.mxu0 0.0
    %3604 = vmatprep.subr.mxu0 0.0
    %3605 = vmatpush1.msra.mxu0 0.0
    %3606 = vmatprep.subr.mxu0 0.0
    %3607 = vmatpush1.msra.mxu0 0.0
    %3608 = vmatprep.subr.mxu0 0.0
    %3609 = vmatpush1.msra.mxu0 0.0
    %3610 = vmatprep.subr.mxu0 0.0
    %3611 = vmatpush1.msra.mxu0 0.0
    %3612 = vmatprep.subr.mxu0 0.0
    %3613 = vmatpush1.msra.mxu0 0.0
    %3614 = vmatprep.subr.mxu0 0.0
    %3615 = vmatpush1.msra.mxu0 0.0
    %3616 = vmatprep.subr.mxu0 0.0
    %3617 = vmatpush1.msra.mxu0 0.0
    %3618 = vmatprep.subr.mxu0 0.0
    %3619 = vmatpush1.msra.mxu0 0.0
    %3620 = vmatprep.subr.mxu0 0.0
    %3621 = vmatpush1.msra.mxu0 0.0
    %3622 = vmatprep.subr.mxu0 0.0
    %3623 = vmatpush1.msra.mxu0 0.0
    %3624 = vmatprep.subr.mxu0 0.0
    %3625 = vmatpush1.msra.mxu0 0.0
    %3626 = vmatprep.subr.mxu0 0.0
    %3627 = vmatpush1.msra.mxu0 0.0
    %3628 = vmatprep.subr.mxu0 0.0
    %3629 = vmatpush1.msra.mxu0 0.0
    %3630 = vmatprep.subr.mxu0 0.0
    %3631 = vmatpush1.msra.mxu0 0.0
    %3632 = vmatprep.subr.mxu0 0.0
    %3633 = vmatpush1.msra.mxu0 0.0
    %3634 = vmatprep.subr.mxu0 0.0
    %3635 = vmatpush1.msra.mxu0 0.0
    %3636 = vmatprep.subr.mxu0 0.0
    %3637 = vmatpush1.msra.mxu0 0.0
    %3638 = vmatprep.subr.mxu0 0.0
    %3639 = vmatpush1.msra.mxu0 0.0
    %3640 = vmatprep.subr.mxu0 0.0
    %3641 = vmatpush1.msra.mxu0 0.0
    %3642 = vmatprep.subr.mxu0 0.0
    %3643 = vmatpush1.msra.mxu0 0.0
    %3644 = vmatprep.mubr.f32.mxu0 0.0
    %3645 = vmatmul.mubr.f32.gmra.mrb[0].mxu0 %v2526
    %v3646 = vpop.f32.mrb[0].mxu0
    %v3647 = vadd.f32 %v3578, %v3646
    %v3648 = vpop.f32.mrb[0].mxu0
    %3649 = vdwg.mxu0
    %s3650 = scalar_lea.vmem %s11, 120
    %v3651 = vld [vmem:[%s3650] sm:$0xff]
    %v3652 = vld [vmem:[%s3650 + $0x8] sm:$0xff]
    %v3653 = vld [vmem:[%s3650 + $0x10] sm:$0xff]
    %s3654 = scalar_lea.vmem %s15, 5
    %v3655 = vld [vmem:[%s3654] sm:$0x1]
    %v3657 = vlaneseq
    %v3658 = vshrl.u32 %v3657, 7
    %v3659 = vsub.s32 0, %v3658
    %v3660 = vrot.slane %v3655, %v3659
    %3662 = vmatprep.subr.mxu0 0.0
    %3663 = vmatpush1.msra.mxu0 %v3651
    %3664 = vmatprep.subr.mxu0 0.0
    %3665 = vmatpush1.msra.mxu0 %v3652
    %3666 = vmatprep.subr.mxu0 0.0
    %3667 = vmatpush1.msra.mxu0 %v3653
    %3668 = vmatprep.subr.mxu0 0.0
    %3669 = vmatpush1.msra.mxu0 0.0
    %3670 = vmatprep.subr.mxu0 0.0
    %3671 = vmatpush1.msra.mxu0 0.0
    %3672 = vmatprep.subr.mxu0 0.0
    %3673 = vmatpush1.msra.mxu0 0.0
    %3674 = vmatprep.subr.mxu0 0.0
    %3675 = vmatpush1.msra.mxu0 0.0
    %3676 = vmatprep.subr.mxu0 0.0
    %3677 = vmatpush1.msra.mxu0 0.0
    %3678 = vmatprep.subr.mxu0 0.0
    %3679 = vmatpush1.msra.mxu0 0.0
    %3680 = vmatprep.subr.mxu0 0.0
    %3681 = vmatpush1.msra.mxu0 0.0
    %3682 = vmatprep.subr.mxu0 0.0
    %3683 = vmatpush1.msra.mxu0 0.0
    %3684 = vmatprep.subr.mxu0 0.0
    %3685 = vmatpush1.msra.mxu0 0.0
    %3686 = vmatprep.subr.mxu0 0.0
    %3687 = vmatpush1.msra.mxu0 0.0
    %3688 = vmatprep.subr.mxu0 0.0
    %3689 = vmatpush1.msra.mxu0 0.0
    %3690 = vmatprep.subr.mxu0 0.0
    %3691 = vmatpush1.msra.mxu0 0.0
    %3692 = vmatprep.subr.mxu0 0.0
    %3693 = vmatpush1.msra.mxu0 0.0
    %3694 = vmatprep.subr.mxu0 0.0
    %3695 = vmatpush1.msra.mxu0 0.0
    %3696 = vmatprep.subr.mxu0 0.0
    %3697 = vmatpush1.msra.mxu0 0.0
    %3698 = vmatprep.subr.mxu0 0.0
    %3699 = vmatpush1.msra.mxu0 0.0
    %3700 = vmatprep.subr.mxu0 0.0
    %3701 = vmatpush1.msra.mxu0 0.0
    %3702 = vmatprep.subr.mxu0 0.0
    %3703 = vmatpush1.msra.mxu0 0.0
    %3704 = vmatprep.subr.mxu0 0.0
    %3705 = vmatpush1.msra.mxu0 0.0
    %3706 = vmatprep.subr.mxu0 0.0
    %3707 = vmatpush1.msra.mxu0 0.0
    %3708 = vmatprep.subr.mxu0 0.0
    %3709 = vmatpush1.msra.mxu0 0.0
    %3710 = vmatprep.subr.mxu0 0.0
    %3711 = vmatpush1.msra.mxu0 0.0
    %3712 = vmatprep.subr.mxu0 0.0
    %3713 = vmatpush1.msra.mxu0 0.0
    %3714 = vmatprep.subr.mxu0 0.0
    %3715 = vmatpush1.msra.mxu0 0.0
    %3716 = vmatprep.subr.mxu0 0.0
    %3717 = vmatpush1.msra.mxu0 0.0
    %3718 = vmatprep.subr.mxu0 0.0
    %3719 = vmatpush1.msra.mxu0 0.0
    %3720 = vmatprep.subr.mxu0 0.0
    %3721 = vmatpush1.msra.mxu0 0.0
    %3722 = vmatprep.subr.mxu0 0.0
    %3723 = vmatpush1.msra.mxu0 0.0
    %3724 = vmatprep.subr.mxu0 0.0
    %3725 = vmatpush1.msra.mxu0 0.0
    %3726 = vmatprep.mubr.f32.mxu0 0.0
    %3727 = vmatmul.mubr.f32.gmra.mrb[0].mxu0 %v2526
    %v3728 = vpop.f32.mrb[0].mxu0
    %v3729 = vadd.f32 %v3660, %v3728
    %v3730 = vpop.f32.mrb[0].mxu0
    %3731 = vdwg.mxu0
    %v3733 = vsel %vm723, %v3565, 0
    %v3736 = vsel %vm723, %v3647, 0
    %3738 = vmatprep.subr.mxu0 0.0
    %3739 = vmatpush1.xpose.msra.mxu0 %v3736
    %3740 = vmatprep.subr.mxu0 0.0
    %3741 = vmatpush1.xpose.msra.mxu0 0.0
    %3742 = vmatprep.subr.mxu0 0.0
    %3743 = vmatpush1.xpose.msra.mxu0 0.0
    %3744 = vmatprep.subr.mxu0 0.0
    %3745 = vmatpush1.xpose.msra.mxu0 0.0
    %3746 = vmatprep.subr.mxu0 0.0
    %3747 = vmatpush1.xpose.msra.mxu0 0.0
    %3748 = vmatprep.subr.mxu0 0.0
    %3749 = vmatpush1.xpose.msra.mxu0 0.0
    %3750 = vmatprep.subr.mxu0 0.0
    %3751 = vmatpush1.xpose.msra.mxu0 0.0
    %3752 = vmatprep.subr.mxu0 0.0
    %3753 = vmatpush1.xpose.msra.mxu0 0.0
    %3754 = vmatprep.subr.mxu0 0.0
    %3755 = vmatpush1.xpose.msra.mxu0 0.0
    %3756 = vmatprep.subr.mxu0 0.0
    %3757 = vmatpush1.xpose.msra.mxu0 0.0
    %3758 = vmatprep.subr.mxu0 0.0
    %3759 = vmatpush1.xpose.msra.mxu0 0.0
    %3760 = vmatprep.subr.mxu0 0.0
    %3761 = vmatpush1.xpose.msra.mxu0 0.0
    %3762 = vmatprep.subr.mxu0 0.0
    %3763 = vmatpush1.xpose.msra.mxu0 0.0
    %3764 = vmatprep.subr.mxu0 0.0
    %3765 = vmatpush1.xpose.msra.mxu0 0.0
    %3766 = vmatprep.subr.mxu0 0.0
    %3767 = vmatpush1.xpose.msra.mxu0 0.0
    %3768 = vmatprep.subr.mxu0 0.0
    %3769 = vmatpush1.xpose.msra.mxu0 0.0
    %3770 = vmatprep.subr.mxu0 0.0
    %3771 = vmatpush1.xpose.msra.mxu0 0.0
    %3772 = vmatprep.subr.mxu0 0.0
    %3773 = vmatpush1.xpose.msra.mxu0 0.0
    %3774 = vmatprep.subr.mxu0 0.0
    %3775 = vmatpush1.xpose.msra.mxu0 0.0
    %3776 = vmatprep.subr.mxu0 0.0
    %3777 = vmatpush1.xpose.msra.mxu0 0.0
    %3778 = vmatprep.subr.mxu0 0.0
    %3779 = vmatpush1.xpose.msra.mxu0 0.0
    %3780 = vmatprep.subr.mxu0 0.0
    %3781 = vmatpush1.xpose.msra.mxu0 0.0
    %3782 = vmatprep.subr.mxu0 0.0
    %3783 = vmatpush1.xpose.msra.mxu0 0.0
    %3784 = vmatprep.subr.mxu0 0.0
    %3785 = vmatpush1.xpose.msra.mxu0 0.0
    %3786 = vmatprep.subr.mxu0 0.0
    %3787 = vmatpush1.xpose.msra.mxu0 0.0
    %3788 = vmatprep.subr.mxu0 0.0
    %3789 = vmatpush1.xpose.msra.mxu0 0.0
    %3790 = vmatprep.subr.mxu0 0.0
    %3791 = vmatpush1.xpose.msra.mxu0 0.0
    %3792 = vmatprep.subr.mxu0 0.0
    %3793 = vmatpush1.xpose.msra.mxu0 0.0
    %3794 = vmatprep.subr.mxu0 0.0
    %3795 = vmatpush1.xpose.msra.mxu0 0.0
    %3796 = vmatprep.subr.mxu0 0.0
    %3797 = vmatpush1.xpose.msra.mxu0 0.0
    %3798 = vmatprep.subr.mxu0 0.0
    %3799 = vmatpush1.xpose.msra.mxu0 0.0
    %3800 = vmatprep.subr.mxu0 0.0
    %3801 = vmatpush1.xpose.msra.mxu0 0.0
    %3802 = vmatprep.mubr.f32.mxu0 0.0
    %3803 = vmatmul.mubr.f32.gmra.mrb[0].mxu0 %v3733
    %v3804 = vpop.f32.mrb[0].mxu0
    %v3805 = vadd.f32 0.0, %v3804
    %v3806 = vpop.f32.mrb[0].mxu0
    %3807 = vdwg.mxu0
    %v3808 = vmul.f32 %v3805, 0.35355338
    %v3809 = vsel %vm801, %v3808, -inf
    %3810 = vmax.xlane.f32.xlu0 %v3809
    %v3811 = vpop.xlane.xlu0 %3810
    %v3812 = vsub.f32 %v3808, %v3811
    %v3813 = vmul.f32 %v3812, 1.442695
    %v3814 = vpow.pop %v3813
    %v3815 = vsel %vm801, %v3814, 0.0
    %3816 = vadd.xlane.f32.xlu0 %v3815
    %v3817 = vpop.xlane.xlu0 %3816
    %v3818 = vrcp.pop %v3817
    %v3819 = vmul.f32 %v3814, %v3818
    %v3821 = vsel %vm813, %v3819, 0
    %v3824 = vsel %vm817, %v3729, 0
    %3826 = vmatprep.subr.mxu0 0.0
    %3827 = vmatpush1.msra.mxu0 %v3824
    %3828 = vmatprep.subr.mxu0 0.0
    %3829 = vmatpush1.msra.mxu0 0.0
    %3830 = vmatprep.subr.mxu0 0.0
    %3831 = vmatpush1.msra.mxu0 0.0
    %3832 = vmatprep.subr.mxu0 0.0
    %3833 = vmatpush1.msra.mxu0 0.0
    %3834 = vmatprep.subr.mxu0 0.0
    %3835 = vmatpush1.msra.mxu0 0.0
    %3836 = vmatprep.subr.mxu0 0.0
    %3837 = vmatpush1.msra.mxu0 0.0
    %3838 = vmatprep.subr.mxu0 0.0
    %3839 = vmatpush1.msra.mxu0 0.0
    %3840 = vmatprep.subr.mxu0 0.0
    %3841 = vmatpush1.msra.mxu0 0.0
    %3842 = vmatprep.subr.mxu0 0.0
    %3843 = vmatpush1.msra.mxu0 0.0
    %3844 = vmatprep.subr.mxu0 0.0
    %3845 = vmatpush1.msra.mxu0 0.0
    %3846 = vmatprep.subr.mxu0 0.0
    %3847 = vmatpush1.msra.mxu0 0.0
    %3848 = vmatprep.subr.mxu0 0.0
    %3849 = vmatpush1.msra.mxu0 0.0
    %3850 = vmatprep.subr.mxu0 0.0
    %3851 = vmatpush1.msra.mxu0 0.0
    %3852 = vmatprep.subr.mxu0 0.0
    %3853 = vmatpush1.msra.mxu0 0.0
    %3854 = vmatprep.subr.mxu0 0.0
    %3855 = vmatpush1.msra.mxu0 0.0
    %3856 = vmatprep.subr.mxu0 0.0
    %3857 = vmatpush1.msra.mxu0 0.0
    %3858 = vmatprep.subr.mxu0 0.0
    %3859 = vmatpush1.msra.mxu0 0.0
    %3860 = vmatprep.subr.mxu0 0.0
    %3861 = vmatpush1.msra.mxu0 0.0
    %3862 = vmatprep.subr.mxu0 0.0
    %3863 = vmatpush1.msra.mxu0 0.0
    %3864 = vmatprep.subr.mxu0 0.0
    %3865 = vmatpush1.msra.mxu0 0.0
    %3866 = vmatprep.subr.mxu0 0.0
    %3867 = vmatpush1.msra.mxu0 0.0
    %3868 = vmatprep.subr.mxu0 0.0
    %3869 = vmatpush1.msra.mxu0 0.0
    %3870 = vmatprep.subr.mxu0 0.0
    %3871 = vmatpush1.msra.mxu0 0.0
    %3872 = vmatprep.subr.mxu0 0.0
    %3873 = vmatpush1.msra.mxu0 0.0
    %3874 = vmatprep.subr.mxu0 0.0
    %3875 = vmatpush1.msra.mxu0 0.0
    %3876 = vmatprep.subr.mxu0 0.0
    %3877 = vmatpush1.msra.mxu0 0.0
    %3878 = vmatprep.subr.mxu0 0.0
    %3879 = vmatpush1.msra.mxu0 0.0
    %3880 = vmatprep.subr.mxu0 0.0
    %3881 = vmatpush1.msra.mxu0 0.0
    %3882 = vmatprep.subr.mxu0 0.0
    %3883 = vmatpush1.msra.mxu0 0.0
    %3884 = vmatprep.subr.mxu0 0.0
    %3885 = vmatpush1.msra.mxu0 0.0
    %3886 = vmatprep.subr.mxu0 0.0
    %3887 = vmatpush1.msra.mxu0 0.0
    %3888 = vmatprep.subr.mxu0 0.0
    %3889 = vmatpush1.msra.mxu0 0.0
    %3890 = vmatprep.mubr.f32.mxu0 0.0
    %3891 = vmatmul.mubr.f32.gmra.mrb[0].mxu0 %v3821
    %v3892 = vpop.f32.mrb[0].mxu0
    %v3893 = vadd.f32 0.0, %v3892
    %v3894 = vpop.f32.mrb[0].mxu0
    %3895 = vdwg.mxu0
    %s3896 = scalar_lea.vmem %s12, 40
    %v3897 = vld [vmem:[%s3896] sm:$0xff]
    %v3899 = vsel %vm723, %v3893, 0
    %3901 = vmatprep.subr.mxu0 0.0
    %3902 = vmatpush1.msra.mxu0 %v3897
    %3903 = vmatprep.subr.mxu0 0.0
    %3904 = vmatpush1.msra.mxu0 0.0
    %3905 = vmatprep.subr.mxu0 0.0
    %3906 = vmatpush1.msra.mxu0 0.0
    %3907 = vmatprep.subr.mxu0 0.0
    %3908 = vmatpush1.msra.mxu0 0.0
    %3909 = vmatprep.subr.mxu0 0.0
    %3910 = vmatpush1.msra.mxu0 0.0
    %3911 = vmatprep.subr.mxu0 0.0
    %3912 = vmatpush1.msra.mxu0 0.0
    %3913 = vmatprep.subr.mxu0 0.0
    %3914 = vmatpush1.msra.mxu0 0.0
    %3915 = vmatprep.subr.mxu0 0.0
    %3916 = vmatpush1.msra.mxu0 0.0
    %3917 = vmatprep.subr.mxu0 0.0
    %3918 = vmatpush1.msra.mxu0 0.0
    %3919 = vmatprep.subr.mxu0 0.0
    %3920 = vmatpush1.msra.mxu0 0.0
    %3921 = vmatprep.subr.mxu0 0.0
    %3922 = vmatpush1.msra.mxu0 0.0
    %3923 = vmatprep.subr.mxu0 0.0
    %3924 = vmatpush1.msra.mxu0 0.0
    %3925 = vmatprep.subr.mxu0 0.0
    %3926 = vmatpush1.msra.mxu0 0.0
    %3927 = vmatprep.subr.mxu0 0.0
    %3928 = vmatpush1.msra.mxu0 0.0
    %3929 = vmatprep.subr.mxu0 0.0
    %3930 = vmatpush1.msra.mxu0 0.0
    %3931 = vmatprep.subr.mxu0 0.0
    %3932 = vmatpush1.msra.mxu0 0.0
    %3933 = vmatprep.subr.mxu0 0.0
    %3934 = vmatpush1.msra.mxu0 0.0
    %3935 = vmatprep.subr.mxu0 0.0
    %3936 = vmatpush1.msra.mxu0 0.0
    %3937 = vmatprep.subr.mxu0 0.0
    %3938 = vmatpush1.msra.mxu0 0.0
    %3939 = vmatprep.subr.mxu0 0.0
    %3940 = vmatpush1.msra.mxu0 0.0
    %3941 = vmatprep.subr.mxu0 0.0
    %3942 = vmatpush1.msra.mxu0 0.0
    %3943 = vmatprep.subr.mxu0 0.0
    %3944 = vmatpush1.msra.mxu0 0.0
    %3945 = vmatprep.subr.mxu0 0.0
    %3946 = vmatpush1.msra.mxu0 0.0
    %3947 = vmatprep.subr.mxu0 0.0
    %3948 = vmatpush1.msra.mxu0 0.0
    %3949 = vmatprep.subr.mxu0 0.0
    %3950 = vmatpush1.msra.mxu0 0.0
    %3951 = vmatprep.subr.mxu0 0.0
    %3952 = vmatpush1.msra.mxu0 0.0
    %3953 = vmatprep.subr.mxu0 0.0
    %3954 = vmatpush1.msra.mxu0 0.0
    %3955 = vmatprep.subr.mxu0 0.0
    %3956 = vmatpush1.msra.mxu0 0.0
    %3957 = vmatprep.subr.mxu0 0.0
    %3958 = vmatpush1.msra.mxu0 0.0
    %3959 = vmatprep.subr.mxu0 0.0
    %3960 = vmatpush1.msra.mxu0 0.0
    %3961 = vmatprep.subr.mxu0 0.0
    %3962 = vmatpush1.msra.mxu0 0.0
    %3963 = vmatprep.subr.mxu0 0.0
    %3964 = vmatpush1.msra.mxu0 0.0
    %3965 = vmatprep.mubr.f32.mxu0 0.0
    %3966 = vmatmul.mubr.f32.gmra.mrb[0].mxu0 %v3899
    %v3967 = vpop.f32.mrb[0].mxu0
    %v3968 = vadd.f32 0.0, %v3967
    %v3969 = vpop.f32.mrb[0].mxu0
    %3970 = vdwg.mxu0
    %v3971 = vadd.f32 %v3483, %v3968
    %v3972 = vadd.f32 %v2512, %v3971
    %s3973 = scalar_lea.vmem %s16, 1
    %v3974 = vld [vmem:[%s3973] sm:$0x1]
    %v3976 = vlaneseq
    %v3977 = vshrl.u32 %v3976, 7
    %v3978 = vsub.s32 0, %v3977
    %v3979 = vrot.slane %v3974, %v3978
    %v3981 = vadd.f32 %v3972, %v3979
    %s3982 = scalar_lea.vmem %s21, 1
    %v3983 = vld [vmem:[%s3982] sm:$0x1]
    %s3984 = scalar_lea.vmem %s22, 1
    %v3985 = vld [vmem:[%s3984] sm:$0x1]
    %v3986 = vsel %vm1947, %v3981, 0.0
    %3987 = vadd.xlane.f32.xlu0 %v3986
    %v3988 = vpop.xlane.xlu0 %3987
    %v3989 = vmul.f32 %v3988, %v1951
    %v3990 = vsub.f32 %v3981, %v3989
    %v3991 = vmul.f32 %v3990, %v3990
    %v3992 = vsel %vm1947, %v3991, 0.0
    %3993 = vadd.xlane.f32.xlu0 %v3992
    %v3994 = vpop.xlane.xlu0 %3993
    %v3995 = vmul.f32 %v3994, %v1951
    %v3996 = vadd.f32 %v3995, 1e-05
    %v3997 = vrsqrt.pop %v3996
    %v3998 = vmul.f32 %v3990, %v3997
    %v4000 = vlaneseq
    %v4001 = vshrl.u32 %v4000, 7
    %v4002 = vsub.s32 0, %v4001
    %v4003 = vrot.slane %v3983, %v4002
    %v4005 = vmul.f32 %v3998, %v4003
    %v4007 = vlaneseq
    %v4008 = vshrl.u32 %v4007, 7
    %v4009 = vsub.s32 0, %v4008
    %v4010 = vrot.slane %v3985, %v4009
    %v4012 = vadd.f32 %v4005, %v4010
    %v4013 = vpack.c.bf16 %v4012, %v4012
    %s4014 = scalar_lea.vmem %s17, 48
    %v4015 = vld [vmem:[%s4014] sm:$0xff]
    %v4016 = vld [vmem:[%s4014 + $0x8] sm:$0xff]
    %v4017 = vld [vmem:[%s4014 + $0x10] sm:$0xff]
    %v4018 = vld [vmem:[%s4014 + $0x18] sm:$0xff]
    %v4019 = vld [vmem:[%s4014 + $0x20] sm:$0xff]
    %v4020 = vld [vmem:[%s4014 + $0x28] sm:$0xff]
    %s4021 = scalar_lea.vmem %s18, 4
    %v4022 = vld [vmem:[%s4021] sm:$0xf]
    %v4024 = vlaneseq
    %v4025 = vshrl.u32 %v4024, 7
    %v4026 = vsub.s32 0, %v4025
    %v4027 = vrot.slane %v4022, %v4026
    %v4028 = vlaneseq
    %v4029 = vshrl.u32 %v4028, 7
    %v4030 = vsub.s32 1, %v4029
    %v4031 = vrot.slane %v4022, %v4030
    %v4032 = vlaneseq
    %v4033 = vshrl.u32 %v4032, 7
    %v4034 = vsub.s32 2, %v4033
    %v4035 = vrot.slane %v4022, %v4034
    %v4036 = vlaneseq
    %v4037 = vshrl.u32 %v4036, 7
    %v4038 = vsub.s32 3, %v4037
    %v4039 = vrot.slane %v4022, %v4038
    %v4050 = vunpack.c.l.b16 %v4015
    %v4051 = vunpack.c.h.b16 %v4015
    %v4052 = vunpack.c.l.b16 %v4016
    %v4053 = vunpack.c.h.b16 %v4016
    %v4054 = vunpack.c.l.b16 %v4017
    %v4055 = vunpack.c.h.b16 %v4017
    %v4056 = vunpack.c.l.b16 %v4018
    %v4057 = vunpack.c.h.b16 %v4018
    %v4058 = vunpack.c.l.b16 %v4019
    %v4059 = vunpack.c.h.b16 %v4019
    %v4060 = vunpack.c.l.b16 %v4020
    %v4061 = vunpack.c.h.b16 %v4020
    %v4062 = vpack.c.b16 %v4054, %v4050
    %v4063 = vpack.c.b16 %v4055, %v4051
    %v4064 = vpack.c.b16 %v4056, %v4052
    %v4065 = vpack.c.b16 %v4057, %v4053
    %v4066 = vpack.c.b16 %v4058, %v4058
    %v4067 = vpack.c.b16 %v4059, %v4059
    %v4068 = vpack.c.b16 %v4060, %v4060
    %v4069 = vpack.c.b16 %v4061, %v4061
    %v4075 = vsel %vm489, %v4013, 0
    %v4078 = vsel %vm223, %v4066, 0
    %v4081 = vsel %vm223, %v4067, 0
    %v4084 = vsel %vm223, %v4068, 0
    %v4087 = vsel %vm223, %v4069, 0
    %4089 = vmatprep.subr.bf16.mxu0 %v4063
    %4090 = vmatpush1.bf16.msra.mxu0 %v4062
    %4091 = vmatprep.subr.bf16.mxu0 %v4081
    %4092 = vmatpush1.bf16.msra.mxu0 %v4078
    %4093 = vmatprep.subr.bf16.mxu0 0
    %4094 = vmatpush1.bf16.msra.mxu0 0
    %4095 = vmatprep.subr.bf16.mxu0 0
    %4096 = vmatpush1.bf16.msra.mxu0 0
    %4097 = vmatprep.subr.bf16.mxu0 0
    %4098 = vmatpush1.bf16.msra.mxu0 0
    %4099 = vmatprep.subr.bf16.mxu0 0
    %4100 = vmatpush1.bf16.msra.mxu0 0
    %4101 = vmatprep.subr.bf16.mxu0 0
    %4102 = vmatpush1.bf16.msra.mxu0 0
    %4103 = vmatprep.subr.bf16.mxu0 0
    %4104 = vmatpush1.bf16.msra.mxu0 0
    %4105 = vmatprep.subr.bf16.mxu0 0
    %4106 = vmatpush1.bf16.msra.mxu0 0
    %4107 = vmatprep.subr.bf16.mxu0 0
    %4108 = vmatpush1.bf16.msra.mxu0 0
    %4109 = vmatprep.subr.bf16.mxu0 0
    %4110 = vmatpush1.bf16.msra.mxu0 0
    %4111 = vmatprep.subr.bf16.mxu0 0
    %4112 = vmatpush1.bf16.msra.mxu0 0
    %4113 = vmatprep.subr.bf16.mxu0 0
    %4114 = vmatpush1.bf16.msra.mxu0 0
    %4115 = vmatprep.subr.bf16.mxu0 0
    %4116 = vmatpush1.bf16.msra.mxu0 0
    %4117 = vmatprep.subr.bf16.mxu0 0
    %4118 = vmatpush1.bf16.msra.mxu0 0
    %4119 = vmatprep.subr.bf16.mxu0 0
    %4120 = vmatpush1.bf16.msra.mxu0 0
    %4121 = vmatprep.mubr.bf16.mxu0 0
    %4122 = vmatmul.mubr.bf16.gmra.mrb[0].mxu0 %v4075
    %v4123 = vpop.f32.mrb[0].mxu0
    %v4124 = vadd.f32 %v4027, %v4123
    %v4125 = vpop.f32.mrb[0].mxu0
    %v4126 = vadd.f32 %v4031, %v4125
    %v4127 = vpop.f32.mrb[0].mxu0
    %v4128 = vpop.f32.mrb[0].mxu0
    %4129 = vdwg.mxu0
    %4130 = vmatprep.subr.bf16.mxu0 %v4065
    %4131 = vmatpush1.bf16.msra.mxu0 %v4064
    %4132 = vmatprep.subr.bf16.mxu0 %v4087
    %4133 = vmatpush1.bf16.msra.mxu0 %v4084
    %4134 = vmatprep.subr.bf16.mxu0 0
    %4135 = vmatpush1.bf16.msra.mxu0 0
    %4136 = vmatprep.subr.bf16.mxu0 0
    %4137 = vmatpush1.bf16.msra.mxu0 0
    %4138 = vmatprep.subr.bf16.mxu0 0
    %4139 = vmatpush1.bf16.msra.mxu0 0
    %4140 = vmatprep.subr.bf16.mxu0 0
    %4141 = vmatpush1.bf16.msra.mxu0 0
    %4142 = vmatprep.subr.bf16.mxu0 0
    %4143 = vmatpush1.bf16.msra.mxu0 0
    %4144 = vmatprep.subr.bf16.mxu0 0
    %4145 = vmatpush1.bf16.msra.mxu0 0
    %4146 = vmatprep.subr.bf16.mxu0 0
    %4147 = vmatpush1.bf16.msra.mxu0 0
    %4148 = vmatprep.subr.bf16.mxu0 0
    %4149 = vmatpush1.bf16.msra.mxu0 0
    %4150 = vmatprep.subr.bf16.mxu0 0
    %4151 = vmatpush1.bf16.msra.mxu0 0
    %4152 = vmatprep.subr.bf16.mxu0 0
    %4153 = vmatpush1.bf16.msra.mxu0 0
    %4154 = vmatprep.subr.bf16.mxu0 0
    %4155 = vmatpush1.bf16.msra.mxu0 0
    %4156 = vmatprep.subr.bf16.mxu0 0
    %4157 = vmatpush1.bf16.msra.mxu0 0
    %4158 = vmatprep.subr.bf16.mxu0 0
    %4159 = vmatpush1.bf16.msra.mxu0 0
    %4160 = vmatprep.subr.bf16.mxu0 0
    %4161 = vmatpush1.bf16.msra.mxu0 0
    %4162 = vmatprep.mubr.bf16.mxu0 0
    %4163 = vmatmul.mubr.bf16.gmra.mrb[0].mxu0 %v4075
    %v4164 = vpop.f32.mrb[0].mxu0
    %v4165 = vadd.f32 %v4035, %v4164
    %v4166 = vpop.f32.mrb[0].mxu0
    %v4167 = vadd.f32 %v4039, %v4166
    %v4168 = vpop.f32.mrb[0].mxu0
    %v4169 = vpop.f32.mrb[0].mxu0
    %4170 = vdwg.mxu0
    %v4171 = vmax.f32 %v4124, 0.0
    %v4172 = vmax.f32 %v4126, 0.0
    %v4173 = vmax.f32 %v4165, 0.0
    %v4174 = vmax.f32 %v4167, 0.0
    %v4175 = vpack.c.bf16 %v4171, %v4171
    %v4176 = vpack.c.bf16 %v4172, %v4172
    %v4177 = vpack.c.bf16 %v4173, %v4173
    %v4178 = vpack.c.bf16 %v4174, %v4174
    %s4179 = scalar_lea.vmem %s19, 256
    %v4180 = vld [vmem:[%s4179] sm:$0xf]
    %v4181 = vld [vmem:[%s4179 + $0x4] sm:$0xf]
    %v4182 = vld [vmem:[%s4179 + $0x8] sm:$0xf]
    %v4183 = vld [vmem:[%s4179 + $0xc] sm:$0xf]
    %v4184 = vld [vmem:[%s4179 + $0x10] sm:$0xf]
    %v4185 = vld [vmem:[%s4179 + $0x14] sm:$0xf]
    %v4186 = vld [vmem:[%s4179 + $0x18] sm:$0xf]
    %v4187 = vld [vmem:[%s4179 + $0x1c] sm:$0xf]
    %v4188 = vld [vmem:[%s4179 + $0x20] sm:$0xf]
    %v4189 = vld [vmem:[%s4179 + $0x24] sm:$0xf]
    %v4190 = vld [vmem:[%s4179 + $0x28] sm:$0xf]
    %v4191 = vld [vmem:[%s4179 + $0x2c] sm:$0xf]
    %v4192 = vld [vmem:[%s4179 + $0x30] sm:$0xf]
    %v4193 = vld [vmem:[%s4179 + $0x34] sm:$0xf]
    %v4194 = vld [vmem:[%s4179 + $0x38] sm:$0xf]
    %v4195 = vld [vmem:[%s4179 + $0x3c] sm:$0xf]
    %v4196 = vld [vmem:[%s4179 + $0x40] sm:$0xf]
    %v4197 = vld [vmem:[%s4179 + $0x44] sm:$0xf]
    %v4198 = vld [vmem:[%s4179 + $0x48] sm:$0xf]
    %v4199 = vld [vmem:[%s4179 + $0x4c] sm:$0xf]
    %v4200 = vld [vmem:[%s4179 + $0x50] sm:$0xf]
    %v4201 = vld [vmem:[%s4179 + $0x54] sm:$0xf]
    %v4202 = vld [vmem:[%s4179 + $0x58] sm:$0xf]
    %v4203 = vld [vmem:[%s4179 + $0x5c] sm:$0xf]
    %v4204 = vld [vmem:[%s4179 + $0x60] sm:$0xf]
    %v4205 = vld [vmem:[%s4179 + $0x64] sm:$0xf]
    %v4206 = vld [vmem:[%s4179 + $0x68] sm:$0xf]
    %v4207 = vld [vmem:[%s4179 + $0x6c] sm:$0xf]
    %v4208 = vld [vmem:[%s4179 + $0x70] sm:$0xf]
    %v4209 = vld [vmem:[%s4179 + $0x74] sm:$0xf]
    %v4210 = vld [vmem:[%s4179 + $0x78] sm:$0xf]
    %v4211 = vld [vmem:[%s4179 + $0x7c] sm:$0xf]
    %v4212 = vld [vmem:[%s4179 + $0x80] sm:$0xf]
    %v4213 = vld [vmem:[%s4179 + $0x84] sm:$0xf]
    %v4214 = vld [vmem:[%s4179 + $0x88] sm:$0xf]
    %v4215 = vld [vmem:[%s4179 + $0x8c] sm:$0xf]
    %v4216 = vld [vmem:[%s4179 + $0x90] sm:$0xf]
    %v4217 = vld [vmem:[%s4179 + $0x94] sm:$0xf]
    %v4218 = vld [vmem:[%s4179 + $0x98] sm:$0xf]
    %v4219 = vld [vmem:[%s4179 + $0x9c] sm:$0xf]
    %v4220 = vld [vmem:[%s4179 + $0xa0] sm:$0xf]
    %v4221 = vld [vmem:[%s4179 + $0xa4] sm:$0xf]
    %v4222 = vld [vmem:[%s4179 + $0xa8] sm:$0xf]
    %v4223 = vld [vmem:[%s4179 + $0xac] sm:$0xf]
    %v4224 = vld [vmem:[%s4179 + $0xb0] sm:$0xf]
    %v4225 = vld [vmem:[%s4179 + $0xb4] sm:$0xf]
    %v4226 = vld [vmem:[%s4179 + $0xb8] sm:$0xf]
    %v4227 = vld [vmem:[%s4179 + $0xbc] sm:$0xf]
    %v4228 = vld [vmem:[%s4179 + $0xc0] sm:$0xf]
    %v4229 = vld [vmem:[%s4179 + $0xc4] sm:$0xf]
    %v4230 = vld [vmem:[%s4179 + $0xc8] sm:$0xf]
    %v4231 = vld [vmem:[%s4179 + $0xcc] sm:$0xf]
    %v4232 = vld [vmem:[%s4179 + $0xd0] sm:$0xf]
    %v4233 = vld [vmem:[%s4179 + $0xd4] sm:$0xf]
    %v4234 = vld [vmem:[%s4179 + $0xd8] sm:$0xf]
    %v4235 = vld [vmem:[%s4179 + $0xdc] sm:$0xf]
    %v4236 = vld [vmem:[%s4179 + $0xe0] sm:$0xf]
    %v4237 = vld [vmem:[%s4179 + $0xe4] sm:$0xf]
    %v4238 = vld [vmem:[%s4179 + $0xe8] sm:$0xf]
    %v4239 = vld [vmem:[%s4179 + $0xec] sm:$0xf]
    %v4240 = vld [vmem:[%s4179 + $0xf0] sm:$0xf]
    %v4241 = vld [vmem:[%s4179 + $0xf4] sm:$0xf]
    %v4242 = vld [vmem:[%s4179 + $0xf8] sm:$0xf]
    %v4243 = vld [vmem:[%s4179 + $0xfc] sm:$0xf]
    %s4244 = scalar_lea.vmem %s20, 1
    %v4245 = vld [vmem:[%s4244] sm:$0x1]
    %v4247 = vlaneseq
    %v4248 = vshrl.u32 %v4247, 7
    %v4249 = vsub.s32 0, %v4248
    %v4250 = vrot.slane %v4245, %v4249
    %v4316 = vunpack.c.l.b16 %v4180
    %v4317 = vunpack.c.l.b16 %v4181
    %v4318 = vunpack.c.l.b16 %v4182
    %v4319 = vunpack.c.l.b16 %v4183
    %v4320 = vunpack.c.l.b16 %v4184
    %v4321 = vunpack.c.l.b16 %v4185
    %v4322 = vunpack.c.l.b16 %v4186
    %v4323 = vunpack.c.l.b16 %v4187
    %v4324 = vunpack.c.l.b16 %v4188
    %v4325 = vunpack.c.l.b16 %v4189
    %v4326 = vunpack.c.l.b16 %v4190
    %v4327 = vunpack.c.l.b16 %v4191
    %v4328 = vunpack.c.l.b16 %v4192
    %v4329 = vunpack.c.l.b16 %v4193
    %v4330 = vunpack.c.l.b16 %v4194
    %v4331 = vunpack.c.l.b16 %v4195
    %v4332 = vunpack.c.l.b16 %v4196
    %v4333 = vunpack.c.l.b16 %v4197
    %v4334 = vunpack.c.l.b16 %v4198
    %v4335 = vunpack.c.l.b16 %v4199
    %v4336 = vunpack.c.l.b16 %v4200
    %v4337 = vunpack.c.l.b16 %v4201
    %v4338 = vunpack.c.l.b16 %v4202
    %v4339 = vunpack.c.l.b16 %v4203
    %v4340 = vunpack.c.l.b16 %v4204
    %v4341 = vunpack.c.l.b16 %v4205
    %v4342 = vunpack.c.l.b16 %v4206
    %v4343 = vunpack.c.l.b16 %v4207
    %v4344 = vunpack.c.l.b16 %v4208
    %v4345 = vunpack.c.l.b16 %v4209
    %v4346 = vunpack.c.l.b16 %v4210
    %v4347 = vunpack.c.l.b16 %v4211
    %v4348 = vunpack.c.l.b16 %v4212
    %v4349 = vunpack.c.l.b16 %v4213
    %v4350 = vunpack.c.l.b16 %v4214
    %v4351 = vunpack.c.l.b16 %v4215
    %v4352 = vunpack.c.l.b16 %v4216
    %v4353 = vunpack.c.l.b16 %v4217
    %v4354 = vunpack.c.l.b16 %v4218
    %v4355 = vunpack.c.l.b16 %v4219
    %v4356 = vunpack.c.l.b16 %v4220
    %v4357 = vunpack.c.l.b16 %v4221
    %v4358 = vunpack.c.l.b16 %v4222
    %v4359 = vunpack.c.l.b16 %v4223
    %v4360 = vunpack.c.l.b16 %v4224
    %v4361 = vunpack.c.l.b16 %v4225
    %v4362 = vunpack.c.l.b16 %v4226
    %v4363 = vunpack.c.l.b16 %v4227
    %v4364 = vunpack.c.l.b16 %v4228
    %v4365 = vunpack.c.l.b16 %v4229
    %v4366 = vunpack.c.l.b16 %v4230
    %v4367 = vunpack.c.l.b16 %v4231
    %v4368 = vunpack.c.l.b16 %v4232
    %v4369 = vunpack.c.l.b16 %v4233
    %v4370 = vunpack.c.l.b16 %v4234
    %v4371 = vunpack.c.l.b16 %v4235
    %v4372 = vunpack.c.l.b16 %v4236
    %v4373 = vunpack.c.l.b16 %v4237
    %v4374 = vunpack.c.l.b16 %v4238
    %v4375 = vunpack.c.l.b16 %v4239
    %v4376 = vunpack.c.l.b16 %v4240
    %v4377 = vunpack.c.l.b16 %v4241
    %v4378 = vunpack.c.l.b16 %v4242
    %v4379 = vunpack.c.l.b16 %v4243
    %v4380 = vpack.c.b16 %v4317, %v4316
    %v4381 = vpack.c.b16 %v4319, %v4318
    %v4382 = vpack.c.b16 %v4321, %v4320
    %v4383 = vpack.c.b16 %v4323, %v4322
    %v4384 = vpack.c.b16 %v4325, %v4324
    %v4385 = vpack.c.b16 %v4327, %v4326
    %v4386 = vpack.c.b16 %v4329, %v4328
    %v4387 = vpack.c.b16 %v4331, %v4330
    %v4388 = vpack.c.b16 %v4333, %v4332
    %v4389 = vpack.c.b16 %v4335, %v4334
    %v4390 = vpack.c.b16 %v4337, %v4336
    %v4391 = vpack.c.b16 %v4339, %v4338
    %v4392 = vpack.c.b16 %v4341, %v4340
    %v4393 = vpack.c.b16 %v4343, %v4342
    %v4394 = vpack.c.b16 %v4345, %v4344
    %v4395 = vpack.c.b16 %v4347, %v4346
    %v4396 = vpack.c.b16 %v4349, %v4348
    %v4397 = vpack.c.b16 %v4351, %v4350
    %v4398 = vpack.c.b16 %v4353, %v4352
    %v4399 = vpack.c.b16 %v4355, %v4354
    %v4400 = vpack.c.b16 %v4357, %v4356
    %v4401 = vpack.c.b16 %v4359, %v4358
    %v4402 = vpack.c.b16 %v4361, %v4360
    %v4403 = vpack.c.b16 %v4363, %v4362
    %v4404 = vpack.c.b16 %v4365, %v4364
    %v4405 = vpack.c.b16 %v4367, %v4366
    %v4406 = vpack.c.b16 %v4369, %v4368
    %v4407 = vpack.c.b16 %v4371, %v4370
    %v4408 = vpack.c.b16 %v4373, %v4372
    %v4409 = vpack.c.b16 %v4375, %v4374
    %v4410 = vpack.c.b16 %v4377, %v4376
    %v4411 = vpack.c.b16 %v4379, %v4378
    %4444 = vmatprep.subr.bf16.mxu0 0
    %4445 = vmatpush1.bf16.msra.mxu0 %v4380
    %4446 = vmatprep.subr.bf16.mxu0 0
    %4447 = vmatpush1.bf16.msra.mxu0 %v4381
    %4448 = vmatprep.subr.bf16.mxu0 0
    %4449 = vmatpush1.bf16.msra.mxu0 %v4382
    %4450 = vmatprep.subr.bf16.mxu0 0
    %4451 = vmatpush1.bf16.msra.mxu0 %v4383
    %4452 = vmatprep.subr.bf16.mxu0 0
    %4453 = vmatpush1.bf16.msra.mxu0 %v4384
    %4454 = vmatprep.subr.bf16.mxu0 0
    %4455 = vmatpush1.bf16.msra.mxu0 %v4385
    %4456 = vmatprep.subr.bf16.mxu0 0
    %4457 = vmatpush1.bf16.msra.mxu0 %v4386
    %4458 = vmatprep.subr.bf16.mxu0 0
    %4459 = vmatpush1.bf16.msra.mxu0 %v4387
    %4460 = vmatprep.subr.bf16.mxu0 0
    %4461 = vmatpush1.bf16.msra.mxu0 %v4388
    %4462 = vmatprep.subr.bf16.mxu0 0
    %4463 = vmatpush1.bf16.msra.mxu0 %v4389
    %4464 = vmatprep.subr.bf16.mxu0 0
    %4465 = vmatpush1.bf16.msra.mxu0 %v4390
    %4466 = vmatprep.subr.bf16.mxu0 0
    %4467 = vmatpush1.bf16.msra.mxu0 %v4391
    %4468 = vmatprep.subr.bf16.mxu0 0
    %4469 = vmatpush1.bf16.msra.mxu0 %v4392
    %4470 = vmatprep.subr.bf16.mxu0 0
    %4471 = vmatpush1.bf16.msra.mxu0 %v4393
    %4472 = vmatprep.subr.bf16.mxu0 0
    %4473 = vmatpush1.bf16.msra.mxu0 %v4394
    %4474 = vmatprep.subr.bf16.mxu0 0
    %4475 = vmatpush1.bf16.msra.mxu0 %v4395
    %4476 = vmatprep.mubr.bf16.mxu0 %v4176
    %4477 = vmatmul.mubr.bf16.gmra.mrb[0].mxu0 %v4175
    %v4478 = vpop.f32.mrb[0].mxu0
    %v4479 = vadd.f32 %v4250, %v4478
    %v4480 = vpop.f32.mrb[0].mxu0
    %v4481 = vpop.f32.mrb[0].mxu0
    %v4482 = vpop.f32.mrb[0].mxu0
    %4483 = vdwg.mxu0
    %4484 = vmatprep.subr.bf16.mxu0 0
    %4485 = vmatpush1.bf16.msra.mxu0 %v4396
    %4486 = vmatprep.subr.bf16.mxu0 0
    %4487 = vmatpush1.bf16.msra.mxu0 %v4397
    %4488 = vmatprep.subr.bf16.mxu0 0
    %4489 = vmatpush1.bf16.msra.mxu0 %v4398
    %4490 = vmatprep.subr.bf16.mxu0 0
    %4491 = vmatpush1.bf16.msra.mxu0 %v4399
    %4492 = vmatprep.subr.bf16.mxu0 0
    %4493 = vmatpush1.bf16.msra.mxu0 %v4400
    %4494 = vmatprep.subr.bf16.mxu0 0
    %4495 = vmatpush1.bf16.msra.mxu0 %v4401
    %4496 = vmatprep.subr.bf16.mxu0 0
    %4497 = vmatpush1.bf16.msra.mxu0 %v4402
    %4498 = vmatprep.subr.bf16.mxu0 0
    %4499 = vmatpush1.bf16.msra.mxu0 %v4403
    %4500 = vmatprep.subr.bf16.mxu0 0
    %4501 = vmatpush1.bf16.msra.mxu0 %v4404
    %4502 = vmatprep.subr.bf16.mxu0 0
    %4503 = vmatpush1.bf16.msra.mxu0 %v4405
    %4504 = vmatprep.subr.bf16.mxu0 0
    %4505 = vmatpush1.bf16.msra.mxu0 %v4406
    %4506 = vmatprep.subr.bf16.mxu0 0
    %4507 = vmatpush1.bf16.msra.mxu0 %v4407
    %4508 = vmatprep.subr.bf16.mxu0 0
    %4509 = vmatpush1.bf16.msra.mxu0 %v4408
    %4510 = vmatprep.subr.bf16.mxu0 0
    %4511 = vmatpush1.bf16.msra.mxu0 %v4409
    %4512 = vmatprep.subr.bf16.mxu0 0
    %4513 = vmatpush1.bf16.msra.mxu0 %v4410
    %4514 = vmatprep.subr.bf16.mxu0 0
    %4515 = vmatpush1.bf16.msra.mxu0 %v4411
    %4516 = vmatprep.mubr.bf16.mxu0 %v4178
    %4517 = vmatmul.mubr.bf16.gmra.mrb[0].mxu0 %v4177
    %v4518 = vpop.f32.mrb[0].mxu0
    %v4519 = vadd.f32 %v4479, %v4518
    %v4520 = vpop.f32.mrb[0].mxu0
    %v4521 = vpop.f32.mrb[0].mxu0
    %v4522 = vpop.f32.mrb[0].mxu0
    %4523 = vdwg.mxu0
    %v4524 = vadd.f32 %v4012, %v4519
    %s4525 = scalar_lea.vmem %s23, 1
    %v4526 = vld [vmem:[%s4525] sm:$0x1]
    %s4527 = scalar_lea.vmem %s24, 1
    %v4528 = vld [vmem:[%s4527] sm:$0x1]
    %v4529 = vsel %vm1947, %v4524, 0.0
    %4530 = vadd.xlane.f32.xlu0 %v4529
    %v4531 = vpop.xlane.xlu0 %4530
    %v4532 = vmul.f32 %v4531, %v1951
    %v4533 = vsub.f32 %v4524, %v4532
    %v4534 = vmul.f32 %v4533, %v4533
    %v4535 = vsel %vm1947, %v4534, 0.0
    %4536 = vadd.xlane.f32.xlu0 %v4535
    %v4537 = vpop.xlane.xlu0 %4536
    %v4538 = vmul.f32 %v4537, %v1951
    %v4539 = vadd.f32 %v4538, 1e-05
    %v4540 = vrsqrt.pop %v4539
    %v4541 = vmul.f32 %v4533, %v4540
    %v4543 = vlaneseq
    %v4544 = vshrl.u32 %v4543, 7
    %v4545 = vsub.s32 0, %v4544
    %v4546 = vrot.slane %v4526, %v4545
    %v4548 = vmul.f32 %v4541, %v4546
    %v4550 = vlaneseq
    %v4551 = vshrl.u32 %v4550, 7
    %v4552 = vsub.s32 0, %v4551
    %v4553 = vrot.slane %v4528, %v4552
    %v4555 = vadd.f32 %v4548, %v4553
    %s4556 = scalar_lea.vmem %s9, 144
    %v4557 = vld [vmem:[%s4556] sm:$0xff]
    %v4558 = vld [vmem:[%s4556 + $0x8] sm:$0xff]
    %v4559 = vld [vmem:[%s4556 + $0x10] sm:$0xff]
    %s4560 = scalar_lea.vmem %s13, 6
    %v4561 = vld [vmem:[%s4560] sm:$0x1]
    %v4563 = vlaneseq
    %v4564 = vshrl.u32 %v4563, 7
    %v4565 = vsub.s32 0, %v4564
    %v4566 = vrot.slane %v4561, %v4565
    %v4569 = vsel %vm489, %v4555, 0
    %4571 = vmatprep.subr.mxu0 0.0
    %4572 = vmatpush1.msra.mxu0 %v4557
    %4573 = vmatprep.subr.mxu0 0.0
    %4574 = vmatpush1.msra.mxu0 %v4558
    %4575 = vmatprep.subr.mxu0 0.0
    %4576 = vmatpush1.msra.mxu0 %v4559
    %4577 = vmatprep.subr.mxu0 0.0
    %4578 = vmatpush1.msra.mxu0 0.0
    %4579 = vmatprep.subr.mxu0 0.0
    %4580 = vmatpush1.msra.mxu0 0.0
    %4581 = vmatprep.subr.mxu0 0.0
    %4582 = vmatpush1.msra.mxu0 0.0
    %4583 = vmatprep.subr.mxu0 0.0
    %4584 = vmatpush1.msra.mxu0 0.0
    %4585 = vmatprep.subr.mxu0 0.0
    %4586 = vmatpush1.msra.mxu0 0.0
    %4587 = vmatprep.subr.mxu0 0.0
    %4588 = vmatpush1.msra.mxu0 0.0
    %4589 = vmatprep.subr.mxu0 0.0
    %4590 = vmatpush1.msra.mxu0 0.0
    %4591 = vmatprep.subr.mxu0 0.0
    %4592 = vmatpush1.msra.mxu0 0.0
    %4593 = vmatprep.subr.mxu0 0.0
    %4594 = vmatpush1.msra.mxu0 0.0
    %4595 = vmatprep.subr.mxu0 0.0
    %4596 = vmatpush1.msra.mxu0 0.0
    %4597 = vmatprep.subr.mxu0 0.0
    %4598 = vmatpush1.msra.mxu0 0.0
    %4599 = vmatprep.subr.mxu0 0.0
    %4600 = vmatpush1.msra.mxu0 0.0
    %4601 = vmatprep.subr.mxu0 0.0
    %4602 = vmatpush1.msra.mxu0 0.0
    %4603 = vmatprep.subr.mxu0 0.0
    %4604 = vmatpush1.msra.mxu0 0.0
    %4605 = vmatprep.subr.mxu0 0.0
    %4606 = vmatpush1.msra.mxu0 0.0
    %4607 = vmatprep.subr.mxu0 0.0
    %4608 = vmatpush1.msra.mxu0 0.0
    %4609 = vmatprep.subr.mxu0 0.0
    %4610 = vmatpush1.msra.mxu0 0.0
    %4611 = vmatprep.subr.mxu0 0.0
    %4612 = vmatpush1.msra.mxu0 0.0
    %4613 = vmatprep.subr.mxu0 0.0
    %4614 = vmatpush1.msra.mxu0 0.0
    %4615 = vmatprep.subr.mxu0 0.0
    %4616 = vmatpush1.msra.mxu0 0.0
    %4617 = vmatprep.subr.mxu0 0.0
    %4618 = vmatpush1.msra.mxu0 0.0
    %4619 = vmatprep.subr.mxu0 0.0
    %4620 = vmatpush1.msra.mxu0 0.0
    %4621 = vmatprep.subr.mxu0 0.0
    %4622 = vmatpush1.msra.mxu0 0.0
    %4623 = vmatprep.subr.mxu0 0.0
    %4624 = vmatpush1.msra.mxu0 0.0
    %4625 = vmatprep.subr.mxu0 0.0
    %4626 = vmatpush1.msra.mxu0 0.0
    %4627 = vmatprep.subr.mxu0 0.0
    %4628 = vmatpush1.msra.mxu0 0.0
    %4629 = vmatprep.subr.mxu0 0.0
    %4630 = vmatpush1.msra.mxu0 0.0
    %4631 = vmatprep.subr.mxu0 0.0
    %4632 = vmatpush1.msra.mxu0 0.0
    %4633 = vmatprep.subr.mxu0 0.0
    %4634 = vmatpush1.msra.mxu0 0.0
    %4635 = vmatprep.mubr.f32.mxu0 0.0
    %4636 = vmatmul.mubr.f32.gmra.mrb[0].mxu0 %v4569
    %v4637 = vpop.f32.mrb[0].mxu0
    %v4638 = vadd.f32 %v4566, %v4637
    %v4639 = vpop.f32.mrb[0].mxu0
    %4640 = vdwg.mxu0
    %s4641 = scalar_lea.vmem %s10, 144
    %v4642 = vld [vmem:[%s4641] sm:$0xff]
    %v4643 = vld [vmem:[%s4641 + $0x8] sm:$0xff]
    %v4644 = vld [vmem:[%s4641 + $0x10] sm:$0xff]
    %s4645 = scalar_lea.vmem %s14, 6
    %v4646 = vld [vmem:[%s4645] sm:$0x1]
    %v4648 = vlaneseq
    %v4649 = vshrl.u32 %v4648, 7
    %v4650 = vsub.s32 0, %v4649
    %v4651 = vrot.slane %v4646, %v4650
    %4653 = vmatprep.subr.mxu0 0.0
    %4654 = vmatpush1.msra.mxu0 %v4642
    %4655 = vmatprep.subr.mxu0 0.0
    %4656 = vmatpush1.msra.mxu0 %v4643
    %4657 = vmatprep.subr.mxu0 0.0
    %4658 = vmatpush1.msra.mxu0 %v4644
    %4659 = vmatprep.subr.mxu0 0.0
    %4660 = vmatpush1.msra.mxu0 0.0
    %4661 = vmatprep.subr.mxu0 0.0
    %4662 = vmatpush1.msra.mxu0 0.0
    %4663 = vmatprep.subr.mxu0 0.0
    %4664 = vmatpush1.msra.mxu0 0.0
    %4665 = vmatprep.subr.mxu0 0.0
    %4666 = vmatpush1.msra.mxu0 0.0
    %4667 = vmatprep.subr.mxu0 0.0
    %4668 = vmatpush1.msra.mxu0 0.0
    %4669 = vmatprep.subr.mxu0 0.0
    %4670 = vmatpush1.msra.mxu0 0.0
    %4671 = vmatprep.subr.mxu0 0.0
    %4672 = vmatpush1.msra.mxu0 0.0
    %4673 = vmatprep.subr.mxu0 0.0
    %4674 = vmatpush1.msra.mxu0 0.0
    %4675 = vmatprep.subr.mxu0 0.0
    %4676 = vmatpush1.msra.mxu0 0.0
    %4677 = vmatprep.subr.mxu0 0.0
    %4678 = vmatpush1.msra.mxu0 0.0
    %4679 = vmatprep.subr.mxu0 0.0
    %4680 = vmatpush1.msra.mxu0 0.0
    %4681 = vmatprep.subr.mxu0 0.0
    %4682 = vmatpush1.msra.mxu0 0.0
    %4683 = vmatprep.subr.mxu0 0.0
    %4684 = vmatpush1.msra.mxu0 0.0
    %4685 = vmatprep.subr.mxu0 0.0
    %4686 = vmatpush1.msra.mxu0 0.0
    %4687 = vmatprep.subr.mxu0 0.0
    %4688 = vmatpush1.msra.mxu0 0.0
    %4689 = vmatprep.subr.mxu0 0.0
    %4690 = vmatpush1.msra.mxu0 0.0
    %4691 = vmatprep.subr.mxu0 0.0
    %4692 = vmatpush1.msra.mxu0 0.0
    %4693 = vmatprep.subr.mxu0 0.0
    %4694 = vmatpush1.msra.mxu0 0.0
    %4695 = vmatprep.subr.mxu0 0.0
    %4696 = vmatpush1.msra.mxu0 0.0
    %4697 = vmatprep.subr.mxu0 0.0
    %4698 = vmatpush1.msra.mxu0 0.0
    %4699 = vmatprep.subr.mxu0 0.0
    %4700 = vmatpush1.msra.mxu0 0.0
    %4701 = vmatprep.subr.mxu0 0.0
    %4702 = vmatpush1.msra.mxu0 0.0
    %4703 = vmatprep.subr.mxu0 0.0
    %4704 = vmatpush1.msra.mxu0 0.0
    %4705 = vmatprep.subr.mxu0 0.0
    %4706 = vmatpush1.msra.mxu0 0.0
    %4707 = vmatprep.subr.mxu0 0.0
    %4708 = vmatpush1.msra.mxu0 0.0
    %4709 = vmatprep.subr.mxu0 0.0
    %4710 = vmatpush1.msra.mxu0 0.0
    %4711 = vmatprep.subr.mxu0 0.0
    %4712 = vmatpush1.msra.mxu0 0.0
    %4713 = vmatprep.subr.mxu0 0.0
    %4714 = vmatpush1.msra.mxu0 0.0
    %4715 = vmatprep.subr.mxu0 0.0
    %4716 = vmatpush1.msra.mxu0 0.0
    %4717 = vmatprep.mubr.f32.mxu0 0.0
    %4718 = vmatmul.mubr.f32.gmra.mrb[0].mxu0 %v4569
    %v4719 = vpop.f32.mrb[0].mxu0
    %v4720 = vadd.f32 %v4651, %v4719
    %v4721 = vpop.f32.mrb[0].mxu0
    %4722 = vdwg.mxu0
    %s4723 = scalar_lea.vmem %s11, 144
    %v4724 = vld [vmem:[%s4723] sm:$0xff]
    %v4725 = vld [vmem:[%s4723 + $0x8] sm:$0xff]
    %v4726 = vld [vmem:[%s4723 + $0x10] sm:$0xff]
    %s4727 = scalar_lea.vmem %s15, 6
    %v4728 = vld [vmem:[%s4727] sm:$0x1]
    %v4730 = vlaneseq
    %v4731 = vshrl.u32 %v4730, 7
    %v4732 = vsub.s32 0, %v4731
    %v4733 = vrot.slane %v4728, %v4732
    %4735 = vmatprep.subr.mxu0 0.0
    %4736 = vmatpush1.msra.mxu0 %v4724
    %4737 = vmatprep.subr.mxu0 0.0
    %4738 = vmatpush1.msra.mxu0 %v4725
    %4739 = vmatprep.subr.mxu0 0.0
    %4740 = vmatpush1.msra.mxu0 %v4726
    %4741 = vmatprep.subr.mxu0 0.0
    %4742 = vmatpush1.msra.mxu0 0.0
    %4743 = vmatprep.subr.mxu0 0.0
    %4744 = vmatpush1.msra.mxu0 0.0
    %4745 = vmatprep.subr.mxu0 0.0
    %4746 = vmatpush1.msra.mxu0 0.0
    %4747 = vmatprep.subr.mxu0 0.0
    %4748 = vmatpush1.msra.mxu0 0.0
    %4749 = vmatprep.subr.mxu0 0.0
    %4750 = vmatpush1.msra.mxu0 0.0
    %4751 = vmatprep.subr.mxu0 0.0
    %4752 = vmatpush1.msra.mxu0 0.0
    %4753 = vmatprep.subr.mxu0 0.0
    %4754 = vmatpush1.msra.mxu0 0.0
    %4755 = vmatprep.subr.mxu0 0.0
    %4756 = vmatpush1.msra.mxu0 0.0
    %4757 = vmatprep.subr.mxu0 0.0
    %4758 = vmatpush1.msra.mxu0 0.0
    %4759 = vmatprep.subr.mxu0 0.0
    %4760 = vmatpush1.msra.mxu0 0.0
    %4761 = vmatprep.subr.mxu0 0.0
    %4762 = vmatpush1.msra.mxu0 0.0
    %4763 = vmatprep.subr.mxu0 0.0
    %4764 = vmatpush1.msra.mxu0 0.0
    %4765 = vmatprep.subr.mxu0 0.0
    %4766 = vmatpush1.msra.mxu0 0.0
    %4767 = vmatprep.subr.mxu0 0.0
    %4768 = vmatpush1.msra.mxu0 0.0
    %4769 = vmatprep.subr.mxu0 0.0
    %4770 = vmatpush1.msra.mxu0 0.0
    %4771 = vmatprep.subr.mxu0 0.0
    %4772 = vmatpush1.msra.mxu0 0.0
    %4773 = vmatprep.subr.mxu0 0.0
    %4774 = vmatpush1.msra.mxu0 0.0
    %4775 = vmatprep.subr.mxu0 0.0
    %4776 = vmatpush1.msra.mxu0 0.0
    %4777 = vmatprep.subr.mxu0 0.0
    %4778 = vmatpush1.msra.mxu0 0.0
    %4779 = vmatprep.subr.mxu0 0.0
    %4780 = vmatpush1.msra.mxu0 0.0
    %4781 = vmatprep.subr.mxu0 0.0
    %4782 = vmatpush1.msra.mxu0 0.0
    %4783 = vmatprep.subr.mxu0 0.0
    %4784 = vmatpush1.msra.mxu0 0.0
    %4785 = vmatprep.subr.mxu0 0.0
    %4786 = vmatpush1.msra.mxu0 0.0
    %4787 = vmatprep.subr.mxu0 0.0
    %4788 = vmatpush1.msra.mxu0 0.0
    %4789 = vmatprep.subr.mxu0 0.0
    %4790 = vmatpush1.msra.mxu0 0.0
    %4791 = vmatprep.subr.mxu0 0.0
    %4792 = vmatpush1.msra.mxu0 0.0
    %4793 = vmatprep.subr.mxu0 0.0
    %4794 = vmatpush1.msra.mxu0 0.0
    %4795 = vmatprep.subr.mxu0 0.0
    %4796 = vmatpush1.msra.mxu0 0.0
    %4797 = vmatprep.subr.mxu0 0.0
    %4798 = vmatpush1.msra.mxu0 0.0
    %4799 = vmatprep.mubr.f32.mxu0 0.0
    %4800 = vmatmul.mubr.f32.gmra.mrb[0].mxu0 %v4569
    %v4801 = vpop.f32.mrb[0].mxu0
    %v4802 = vadd.f32 %v4733, %v4801
    %v4803 = vpop.f32.mrb[0].mxu0
    %4804 = vdwg.mxu0
    %v4806 = vsel %vm723, %v4638, 0
    %v4809 = vsel %vm723, %v4720, 0
    %4811 = vmatprep.subr.mxu0 0.0
    %4812 = vmatpush1.xpose.msra.mxu0 %v4809
    %4813 = vmatprep.subr.mxu0 0.0
    %4814 = vmatpush1.xpose.msra.mxu0 0.0
    %4815 = vmatprep.subr.mxu0 0.0
    %4816 = vmatpush1.xpose.msra.mxu0 0.0
    %4817 = vmatprep.subr.mxu0 0.0
    %4818 = vmatpush1.xpose.msra.mxu0 0.0
    %4819 = vmatprep.subr.mxu0 0.0
    %4820 = vmatpush1.xpose.msra.mxu0 0.0
    %4821 = vmatprep.subr.mxu0 0.0
    %4822 = vmatpush1.xpose.msra.mxu0 0.0
    %4823 = vmatprep.subr.mxu0 0.0
    %4824 = vmatpush1.xpose.msra.mxu0 0.0
    %4825 = vmatprep.subr.mxu0 0.0
    %4826 = vmatpush1.xpose.msra.mxu0 0.0
    %4827 = vmatprep.subr.mxu0 0.0
    %4828 = vmatpush1.xpose.msra.mxu0 0.0
    %4829 = vmatprep.subr.mxu0 0.0
    %4830 = vmatpush1.xpose.msra.mxu0 0.0
    %4831 = vmatprep.subr.mxu0 0.0
    %4832 = vmatpush1.xpose.msra.mxu0 0.0
    %4833 = vmatprep.subr.mxu0 0.0
    %4834 = vmatpush1.xpose.msra.mxu0 0.0
    %4835 = vmatprep.subr.mxu0 0.0
    %4836 = vmatpush1.xpose.msra.mxu0 0.0
    %4837 = vmatprep.subr.mxu0 0.0
    %4838 = vmatpush1.xpose.msra.mxu0 0.0
    %4839 = vmatprep.subr.mxu0 0.0
    %4840 = vmatpush1.xpose.msra.mxu0 0.0
    %4841 = vmatprep.subr.mxu0 0.0
    %4842 = vmatpush1.xpose.msra.mxu0 0.0
    %4843 = vmatprep.subr.mxu0 0.0
    %4844 = vmatpush1.xpose.msra.mxu0 0.0
    %4845 = vmatprep.subr.mxu0 0.0
    %4846 = vmatpush1.xpose.msra.mxu0 0.0
    %4847 = vmatprep.subr.mxu0 0.0
    %4848 = vmatpush1.xpose.msra.mxu0 0.0
    %4849 = vmatprep.subr.mxu0 0.0
    %4850 = vmatpush1.xpose.msra.mxu0 0.0
    %4851 = vmatprep.subr.mxu0 0.0
    %4852 = vmatpush1.xpose.msra.mxu0 0.0
    %4853 = vmatprep.subr.mxu0 0.0
    %4854 = vmatpush1.xpose.msra.mxu0 0.0
    %4855 = vmatprep.subr.mxu0 0.0
    %4856 = vmatpush1.xpose.msra.mxu0 0.0
    %4857 = vmatprep.subr.mxu0 0.0
    %4858 = vmatpush1.xpose.msra.mxu0 0.0
    %4859 = vmatprep.subr.mxu0 0.0
    %4860 = vmatpush1.xpose.msra.mxu0 0.0
    %4861 = vmatprep.subr.mxu0 0.0
    %4862 = vmatpush1.xpose.msra.mxu0 0.0
    %4863 = vmatprep.subr.mxu0 0.0
    %4864 = vmatpush1.xpose.msra.mxu0 0.0
    %4865 = vmatprep.subr.mxu0 0.0
    %4866 = vmatpush1.xpose.msra.mxu0 0.0
    %4867 = vmatprep.subr.mxu0 0.0
    %4868 = vmatpush1.xpose.msra.mxu0 0.0
    %4869 = vmatprep.subr.mxu0 0.0
    %4870 = vmatpush1.xpose.msra.mxu0 0.0
    %4871 = vmatprep.subr.mxu0 0.0
    %4872 = vmatpush1.xpose.msra.mxu0 0.0
    %4873 = vmatprep.subr.mxu0 0.0
    %4874 = vmatpush1.xpose.msra.mxu0 0.0
    %4875 = vmatprep.mubr.f32.mxu0 0.0
    %4876 = vmatmul.mubr.f32.gmra.mrb[0].mxu0 %v4806
    %v4877 = vpop.f32.mrb[0].mxu0
    %v4878 = vadd.f32 0.0, %v4877
    %v4879 = vpop.f32.mrb[0].mxu0
    %4880 = vdwg.mxu0
    %v4881 = vmul.f32 %v4878, 0.35355338
    %v4882 = vsel %vm801, %v4881, -inf
    %4883 = vmax.xlane.f32.xlu0 %v4882
    %v4884 = vpop.xlane.xlu0 %4883
    %v4885 = vsub.f32 %v4881, %v4884
    %v4886 = vmul.f32 %v4885, 1.442695
    %v4887 = vpow.pop %v4886
    %v4888 = vsel %vm801, %v4887, 0.0
    %4889 = vadd.xlane.f32.xlu0 %v4888
    %v4890 = vpop.xlane.xlu0 %4889
    %v4891 = vrcp.pop %v4890
    %v4892 = vmul.f32 %v4887, %v4891
    %v4894 = vsel %vm813, %v4892, 0
    %v4897 = vsel %vm817, %v4802, 0
    %4899 = vmatprep.subr.mxu0 0.0
    %4900 = vmatpush1.msra.mxu0 %v4897
    %4901 = vmatprep.subr.mxu0 0.0
    %4902 = vmatpush1.msra.mxu0 0.0
    %4903 = vmatprep.subr.mxu0 0.0
    %4904 = vmatpush1.msra.mxu0 0.0
    %4905 = vmatprep.subr.mxu0 0.0
    %4906 = vmatpush1.msra.mxu0 0.0
    %4907 = vmatprep.subr.mxu0 0.0
    %4908 = vmatpush1.msra.mxu0 0.0
    %4909 = vmatprep.subr.mxu0 0.0
    %4910 = vmatpush1.msra.mxu0 0.0
    %4911 = vmatprep.subr.mxu0 0.0
    %4912 = vmatpush1.msra.mxu0 0.0
    %4913 = vmatprep.subr.mxu0 0.0
    %4914 = vmatpush1.msra.mxu0 0.0
    %4915 = vmatprep.subr.mxu0 0.0
    %4916 = vmatpush1.msra.mxu0 0.0
    %4917 = vmatprep.subr.mxu0 0.0
    %4918 = vmatpush1.msra.mxu0 0.0
    %4919 = vmatprep.subr.mxu0 0.0
    %4920 = vmatpush1.msra.mxu0 0.0
    %4921 = vmatprep.subr.mxu0 0.0
    %4922 = vmatpush1.msra.mxu0 0.0
    %4923 = vmatprep.subr.mxu0 0.0
    %4924 = vmatpush1.msra.mxu0 0.0
    %4925 = vmatprep.subr.mxu0 0.0
    %4926 = vmatpush1.msra.mxu0 0.0
    %4927 = vmatprep.subr.mxu0 0.0
    %4928 = vmatpush1.msra.mxu0 0.0
    %4929 = vmatprep.subr.mxu0 0.0
    %4930 = vmatpush1.msra.mxu0 0.0
    %4931 = vmatprep.subr.mxu0 0.0
    %4932 = vmatpush1.msra.mxu0 0.0
    %4933 = vmatprep.subr.mxu0 0.0
    %4934 = vmatpush1.msra.mxu0 0.0
    %4935 = vmatprep.subr.mxu0 0.0
    %4936 = vmatpush1.msra.mxu0 0.0
    %4937 = vmatprep.subr.mxu0 0.0
    %4938 = vmatpush1.msra.mxu0 0.0
    %4939 = vmatprep.subr.mxu0 0.0
    %4940 = vmatpush1.msra.mxu0 0.0
    %4941 = vmatprep.subr.mxu0 0.0
    %4942 = vmatpush1.msra.mxu0 0.0
    %4943 = vmatprep.subr.mxu0 0.0
    %4944 = vmatpush1.msra.mxu0 0.0
    %4945 = vmatprep.subr.mxu0 0.0
    %4946 = vmatpush1.msra.mxu0 0.0
    %4947 = vmatprep.subr.mxu0 0.0
    %4948 = vmatpush1.msra.mxu0 0.0
    %4949 = vmatprep.subr.mxu0 0.0
    %4950 = vmatpush1.msra.mxu0 0.0
    %4951 = vmatprep.subr.mxu0 0.0
    %4952 = vmatpush1.msra.mxu0 0.0
    %4953 = vmatprep.subr.mxu0 0.0
    %4954 = vmatpush1.msra.mxu0 0.0
    %4955 = vmatprep.subr.mxu0 0.0
    %4956 = vmatpush1.msra.mxu0 0.0
    %4957 = vmatprep.subr.mxu0 0.0
    %4958 = vmatpush1.msra.mxu0 0.0
    %4959 = vmatprep.subr.mxu0 0.0
    %4960 = vmatpush1.msra.mxu0 0.0
    %4961 = vmatprep.subr.mxu0 0.0
    %4962 = vmatpush1.msra.mxu0 0.0
    %4963 = vmatprep.mubr.f32.mxu0 0.0
    %4964 = vmatmul.mubr.f32.gmra.mrb[0].mxu0 %v4894
    %v4965 = vpop.f32.mrb[0].mxu0
    %v4966 = vadd.f32 0.0, %v4965
    %v4967 = vpop.f32.mrb[0].mxu0
    %4968 = vdwg.mxu0
    %s4969 = scalar_lea.vmem %s12, 48
    %v4970 = vld [vmem:[%s4969] sm:$0xff]
    %s4971 = scalar_lea.vmem %s9, 168
    %v4972 = vld [vmem:[%s4971] sm:$0xff]
    %v4973 = vld [vmem:[%s4971 + $0x8] sm:$0xff]
    %v4974 = vld [vmem:[%s4971 + $0x10] sm:$0xff]
    %s4975 = scalar_lea.vmem %s13, 7
    %v4976 = vld [vmem:[%s4975] sm:$0x1]
    %v4978 = vlaneseq
    %v4979 = vshrl.u32 %v4978, 7
    %v4980 = vsub.s32 0, %v4979
    %v4981 = vrot.slane %v4976, %v4980
    %4983 = vmatprep.subr.mxu0 0.0
    %4984 = vmatpush1.msra.mxu0 %v4972
    %4985 = vmatprep.subr.mxu0 0.0
    %4986 = vmatpush1.msra.mxu0 %v4973
    %4987 = vmatprep.subr.mxu0 0.0
    %4988 = vmatpush1.msra.mxu0 %v4974
    %4989 = vmatprep.subr.mxu0 0.0
    %4990 = vmatpush1.msra.mxu0 0.0
    %4991 = vmatprep.subr.mxu0 0.0
    %4992 = vmatpush1.msra.mxu0 0.0
    %4993 = vmatprep.subr.mxu0 0.0
    %4994 = vmatpush1.msra.mxu0 0.0
    %4995 = vmatprep.subr.mxu0 0.0
    %4996 = vmatpush1.msra.mxu0 0.0
    %4997 = vmatprep.subr.mxu0 0.0
    %4998 = vmatpush1.msra.mxu0 0.0
    %4999 = vmatprep.subr.mxu0 0.0
    %5000 = vmatpush1.msra.mxu0 0.0
    %5001 = vmatprep.subr.mxu0 0.0
    %5002 = vmatpush1.msra.mxu0 0.0
    %5003 = vmatprep.subr.mxu0 0.0
    %5004 = vmatpush1.msra.mxu0 0.0
    %5005 = vmatprep.subr.mxu0 0.0
    %5006 = vmatpush1.msra.mxu0 0.0
    %5007 = vmatprep.subr.mxu0 0.0
    %5008 = vmatpush1.msra.mxu0 0.0
    %5009 = vmatprep.subr.mxu0 0.0
    %5010 = vmatpush1.msra.mxu0 0.0
    %5011 = vmatprep.subr.mxu0 0.0
    %5012 = vmatpush1.msra.mxu0 0.0
    %5013 = vmatprep.subr.mxu0 0.0
    %5014 = vmatpush1.msra.mxu0 0.0
    %5015 = vmatprep.subr.mxu0 0.0
    %5016 = vmatpush1.msra.mxu0 0.0
    %5017 = vmatprep.subr.mxu0 0.0
    %5018 = vmatpush1.msra.mxu0 0.0
    %5019 = vmatprep.subr.mxu0 0.0
    %5020 = vmatpush1.msra.mxu0 0.0
    %5021 = vmatprep.subr.mxu0 0.0
    %5022 = vmatpush1.msra.mxu0 0.0
    %5023 = vmatprep.subr.mxu0 0.0
    %5024 = vmatpush1.msra.mxu0 0.0
    %5025 = vmatprep.subr.mxu0 0.0
    %5026 = vmatpush1.msra.mxu0 0.0
    %5027 = vmatprep.subr.mxu0 0.0
    %5028 = vmatpush1.msra.mxu0 0.0
    %5029 = vmatprep.subr.mxu0 0.0
    %5030 = vmatpush1.msra.mxu0 0.0
    %5031 = vmatprep.subr.mxu0 0.0
    %5032 = vmatpush1.msra.mxu0 0.0
    %5033 = vmatprep.subr.mxu0 0.0
    %5034 = vmatpush1.msra.mxu0 0.0
    %5035 = vmatprep.subr.mxu0 0.0
    %5036 = vmatpush1.msra.mxu0 0.0
    %5037 = vmatprep.subr.mxu0 0.0
    %5038 = vmatpush1.msra.mxu0 0.0
    %5039 = vmatprep.subr.mxu0 0.0
    %5040 = vmatpush1.msra.mxu0 0.0
    %5041 = vmatprep.subr.mxu0 0.0
    %5042 = vmatpush1.msra.mxu0 0.0
    %5043 = vmatprep.subr.mxu0 0.0
    %5044 = vmatpush1.msra.mxu0 0.0
    %5045 = vmatprep.subr.mxu0 0.0
    %5046 = vmatpush1.msra.mxu0 0.0
    %5047 = vmatprep.mubr.f32.mxu0 0.0
    %5048 = vmatmul.mubr.f32.gmra.mrb[0].mxu0 %v4569
    %v5049 = vpop.f32.mrb[0].mxu0
    %v5050 = vadd.f32 %v4981, %v5049
    %v5051 = vpop.f32.mrb[0].mxu0
    %5052 = vdwg.mxu0
    %s5053 = scalar_lea.vmem %s10, 168
    %v5054 = vld [vmem:[%s5053] sm:$0xff]
    %v5055 = vld [vmem:[%s5053 + $0x8] sm:$0xff]
    %v5056 = vld [vmem:[%s5053 + $0x10] sm:$0xff]
    %s5057 = scalar_lea.vmem %s14, 7
    %v5058 = vld [vmem:[%s5057] sm:$0x1]
    %v5060 = vlaneseq
    %v5061 = vshrl.u32 %v5060, 7
    %v5062 = vsub.s32 0, %v5061
    %v5063 = vrot.slane %v5058, %v5062
    %5065 = vmatprep.subr.mxu0 0.0
    %5066 = vmatpush1.msra.mxu0 %v5054
    %5067 = vmatprep.subr.mxu0 0.0
    %5068 = vmatpush1.msra.mxu0 %v5055
    %5069 = vmatprep.subr.mxu0 0.0
    %5070 = vmatpush1.msra.mxu0 %v5056
    %5071 = vmatprep.subr.mxu0 0.0
    %5072 = vmatpush1.msra.mxu0 0.0
    %5073 = vmatprep.subr.mxu0 0.0
    %5074 = vmatpush1.msra.mxu0 0.0
    %5075 = vmatprep.subr.mxu0 0.0
    %5076 = vmatpush1.msra.mxu0 0.0
    %5077 = vmatprep.subr.mxu0 0.0
    %5078 = vmatpush1.msra.mxu0 0.0
    %5079 = vmatprep.subr.mxu0 0.0
    %5080 = vmatpush1.msra.mxu0 0.0
    %5081 = vmatprep.subr.mxu0 0.0
    %5082 = vmatpush1.msra.mxu0 0.0
    %5083 = vmatprep.subr.mxu0 0.0
    %5084 = vmatpush1.msra.mxu0 0.0
    %5085 = vmatprep.subr.mxu0 0.0
    %5086 = vmatpush1.msra.mxu0 0.0
    %5087 = vmatprep.subr.mxu0 0.0
    %5088 = vmatpush1.msra.mxu0 0.0
    %5089 = vmatprep.subr.mxu0 0.0
    %5090 = vmatpush1.msra.mxu0 0.0
    %5091 = vmatprep.subr.mxu0 0.0
    %5092 = vmatpush1.msra.mxu0 0.0
    %5093 = vmatprep.subr.mxu0 0.0
    %5094 = vmatpush1.msra.mxu0 0.0
    %5095 = vmatprep.subr.mxu0 0.0
    %5096 = vmatpush1.msra.mxu0 0.0
    %5097 = vmatprep.subr.mxu0 0.0
    %5098 = vmatpush1.msra.mxu0 0.0
    %5099 = vmatprep.subr.mxu0 0.0
    %5100 = vmatpush1.msra.mxu0 0.0
    %5101 = vmatprep.subr.mxu0 0.0
    %5102 = vmatpush1.msra.mxu0 0.0
    %5103 = vmatprep.subr.mxu0 0.0
    %5104 = vmatpush1.msra.mxu0 0.0
    %5105 = vmatprep.subr.mxu0 0.0
    %5106 = vmatpush1.msra.mxu0 0.0
    %5107 = vmatprep.subr.mxu0 0.0
    %5108 = vmatpush1.msra.mxu0 0.0
    %5109 = vmatprep.subr.mxu0 0.0
    %5110 = vmatpush1.msra.mxu0 0.0
    %5111 = vmatprep.subr.mxu0 0.0
    %5112 = vmatpush1.msra.mxu0 0.0
    %5113 = vmatprep.subr.mxu0 0.0
    %5114 = vmatpush1.msra.mxu0 0.0
    %5115 = vmatprep.subr.mxu0 0.0
    %5116 = vmatpush1.msra.mxu0 0.0
    %5117 = vmatprep.subr.mxu0 0.0
    %5118 = vmatpush1.msra.mxu0 0.0
    %5119 = vmatprep.subr.mxu0 0.0
    %5120 = vmatpush1.msra.mxu0 0.0
    %5121 = vmatprep.subr.mxu0 0.0
    %5122 = vmatpush1.msra.mxu0 0.0
    %5123 = vmatprep.subr.mxu0 0.0
    %5124 = vmatpush1.msra.mxu0 0.0
    %5125 = vmatprep.subr.mxu0 0.0
    %5126 = vmatpush1.msra.mxu0 0.0
    %5127 = vmatprep.subr.mxu0 0.0
    %5128 = vmatpush1.msra.mxu0 0.0
    %5129 = vmatprep.mubr.f32.mxu0 0.0
    %5130 = vmatmul.mubr.f32.gmra.mrb[0].mxu0 %v4569
    %v5131 = vpop.f32.mrb[0].mxu0
    %v5132 = vadd.f32 %v5063, %v5131
    %v5133 = vpop.f32.mrb[0].mxu0
    %5134 = vdwg.mxu0
    %s5135 = scalar_lea.vmem %s11, 168
    %v5136 = vld [vmem:[%s5135] sm:$0xff]
    %v5137 = vld [vmem:[%s5135 + $0x8] sm:$0xff]
    %v5138 = vld [vmem:[%s5135 + $0x10] sm:$0xff]
    %s5139 = scalar_lea.vmem %s15, 7
    %v5140 = vld [vmem:[%s5139] sm:$0x1]
    %v5142 = vlaneseq
    %v5143 = vshrl.u32 %v5142, 7
    %v5144 = vsub.s32 0, %v5143
    %v5145 = vrot.slane %v5140, %v5144
    %5147 = vmatprep.subr.mxu0 0.0
    %5148 = vmatpush1.msra.mxu0 %v5136
    %5149 = vmatprep.subr.mxu0 0.0
    %5150 = vmatpush1.msra.mxu0 %v5137
    %5151 = vmatprep.subr.mxu0 0.0
    %5152 = vmatpush1.msra.mxu0 %v5138
    %5153 = vmatprep.subr.mxu0 0.0
    %5154 = vmatpush1.msra.mxu0 0.0
    %5155 = vmatprep.subr.mxu0 0.0
    %5156 = vmatpush1.msra.mxu0 0.0
    %5157 = vmatprep.subr.mxu0 0.0
    %5158 = vmatpush1.msra.mxu0 0.0
    %5159 = vmatprep.subr.mxu0 0.0
    %5160 = vmatpush1.msra.mxu0 0.0
    %5161 = vmatprep.subr.mxu0 0.0
    %5162 = vmatpush1.msra.mxu0 0.0
    %5163 = vmatprep.subr.mxu0 0.0
    %5164 = vmatpush1.msra.mxu0 0.0
    %5165 = vmatprep.subr.mxu0 0.0
    %5166 = vmatpush1.msra.mxu0 0.0
    %5167 = vmatprep.subr.mxu0 0.0
    %5168 = vmatpush1.msra.mxu0 0.0
    %5169 = vmatprep.subr.mxu0 0.0
    %5170 = vmatpush1.msra.mxu0 0.0
    %5171 = vmatprep.subr.mxu0 0.0
    %5172 = vmatpush1.msra.mxu0 0.0
    %5173 = vmatprep.subr.mxu0 0.0
    %5174 = vmatpush1.msra.mxu0 0.0
    %5175 = vmatprep.subr.mxu0 0.0
    %5176 = vmatpush1.msra.mxu0 0.0
    %5177 = vmatprep.subr.mxu0 0.0
    %5178 = vmatpush1.msra.mxu0 0.0
    %5179 = vmatprep.subr.mxu0 0.0
    %5180 = vmatpush1.msra.mxu0 0.0
    %5181 = vmatprep.subr.mxu0 0.0
    %5182 = vmatpush1.msra.mxu0 0.0
    %5183 = vmatprep.subr.mxu0 0.0
    %5184 = vmatpush1.msra.mxu0 0.0
    %5185 = vmatprep.subr.mxu0 0.0
    %5186 = vmatpush1.msra.mxu0 0.0
    %5187 = vmatprep.subr.mxu0 0.0
    %5188 = vmatpush1.msra.mxu0 0.0
    %5189 = vmatprep.subr.mxu0 0.0
    %5190 = vmatpush1.msra.mxu0 0.0
    %5191 = vmatprep.subr.mxu0 0.0
    %5192 = vmatpush1.msra.mxu0 0.0
    %5193 = vmatprep.subr.mxu0 0.0
    %5194 = vmatpush1.msra.mxu0 0.0
    %5195 = vmatprep.subr.mxu0 0.0
    %5196 = vmatpush1.msra.mxu0 0.0
    %5197 = vmatprep.subr.mxu0 0.0
    %5198 = vmatpush1.msra.mxu0 0.0
    %5199 = vmatprep.subr.mxu0 0.0
    %5200 = vmatpush1.msra.mxu0 0.0
    %5201 = vmatprep.subr.mxu0 0.0
    %5202 = vmatpush1.msra.mxu0 0.0
    %5203 = vmatprep.subr.mxu0 0.0
    %5204 = vmatpush1.msra.mxu0 0.0
    %5205 = vmatprep.subr.mxu0 0.0
    %5206 = vmatpush1.msra.mxu0 0.0
    %5207 = vmatprep.subr.mxu0 0.0
    %5208 = vmatpush1.msra.mxu0 0.0
    %5209 = vmatprep.subr.mxu0 0.0
    %5210 = vmatpush1.msra.mxu0 0.0
    %5211 = vmatprep.mubr.f32.mxu0 0.0
    %5212 = vmatmul.mubr.f32.gmra.mrb[0].mxu0 %v4569
    %v5213 = vpop.f32.mrb[0].mxu0
    %v5214 = vadd.f32 %v5145, %v5213
    %v5215 = vpop.f32.mrb[0].mxu0
    %5216 = vdwg.mxu0
    %v5218 = vsel %vm723, %v5050, 0
    %v5221 = vsel %vm723, %v5132, 0
    %5223 = vmatprep.subr.mxu0 0.0
    %5224 = vmatpush1.xpose.msra.mxu0 %v5221
    %5225 = vmatprep.subr.mxu0 0.0
    %5226 = vmatpush1.xpose.msra.mxu0 0.0
    %5227 = vmatprep.subr.mxu0 0.0
    %5228 = vmatpush1.xpose.msra.mxu0 0.0
    %5229 = vmatprep.subr.mxu0 0.0
    %5230 = vmatpush1.xpose.msra.mxu0 0.0
    %5231 = vmatprep.subr.mxu0 0.0
    %5232 = vmatpush1.xpose.msra.mxu0 0.0
    %5233 = vmatprep.subr.mxu0 0.0
    %5234 = vmatpush1.xpose.msra.mxu0 0.0
    %5235 = vmatprep.subr.mxu0 0.0
    %5236 = vmatpush1.xpose.msra.mxu0 0.0
    %5237 = vmatprep.subr.mxu0 0.0
    %5238 = vmatpush1.xpose.msra.mxu0 0.0
    %5239 = vmatprep.subr.mxu0 0.0
    %5240 = vmatpush1.xpose.msra.mxu0 0.0
    %5241 = vmatprep.subr.mxu0 0.0
    %5242 = vmatpush1.xpose.msra.mxu0 0.0
    %5243 = vmatprep.subr.mxu0 0.0
    %5244 = vmatpush1.xpose.msra.mxu0 0.0
    %5245 = vmatprep.subr.mxu0 0.0
    %5246 = vmatpush1.xpose.msra.mxu0 0.0
    %5247 = vmatprep.subr.mxu0 0.0
    %5248 = vmatpush1.xpose.msra.mxu0 0.0
    %5249 = vmatprep.subr.mxu0 0.0
    %5250 = vmatpush1.xpose.msra.mxu0 0.0
    %5251 = vmatprep.subr.mxu0 0.0
    %5252 = vmatpush1.xpose.msra.mxu0 0.0
    %5253 = vmatprep.subr.mxu0 0.0
    %5254 = vmatpush1.xpose.msra.mxu0 0.0
    %5255 = vmatprep.subr.mxu0 0.0
    %5256 = vmatpush1.xpose.msra.mxu0 0.0
    %5257 = vmatprep.subr.mxu0 0.0
    %5258 = vmatpush1.xpose.msra.mxu0 0.0
    %5259 = vmatprep.subr.mxu0 0.0
    %5260 = vmatpush1.xpose.msra.mxu0 0.0
    %5261 = vmatprep.subr.mxu0 0.0
    %5262 = vmatpush1.xpose.msra.mxu0 0.0
    %5263 = vmatprep.subr.mxu0 0.0
    %5264 = vmatpush1.xpose.msra.mxu0 0.0
    %5265 = vmatprep.subr.mxu0 0.0
    %5266 = vmatpush1.xpose.msra.mxu0 0.0
    %5267 = vmatprep.subr.mxu0 0.0
    %5268 = vmatpush1.xpose.msra.mxu0 0.0
    %5269 = vmatprep.subr.mxu0 0.0
    %5270 = vmatpush1.xpose.msra.mxu0 0.0
    %5271 = vmatprep.subr.mxu0 0.0
    %5272 = vmatpush1.xpose.msra.mxu0 0.0
    %5273 = vmatprep.subr.mxu0 0.0
    %5274 = vmatpush1.xpose.msra.mxu0 0.0
    %5275 = vmatprep.subr.mxu0 0.0
    %5276 = vmatpush1.xpose.msra.mxu0 0.0
    %5277 = vmatprep.subr.mxu0 0.0
    %5278 = vmatpush1.xpose.msra.mxu0 0.0
    %5279 = vmatprep.subr.mxu0 0.0
    %5280 = vmatpush1.xpose.msra.mxu0 0.0
    %5281 = vmatprep.subr.mxu0 0.0
    %5282 = vmatpush1.xpose.msra.mxu0 0.0
    %5283 = vmatprep.subr.mxu0 0.0
    %5284 = vmatpush1.xpose.msra.mxu0 0.0
    %5285 = vmatprep.subr.mxu0 0.0
    %5286 = vmatpush1.xpose.msra.mxu0 0.0
    %5287 = vmatprep.mubr.f32.mxu0 0.0
    %5288 = vmatmul.mubr.f32.gmra.mrb[0].mxu0 %v5218
    %v5289 = vpop.f32.mrb[0].mxu0
    %v5290 = vadd.f32 0.0, %v5289
    %v5291 = vpop.f32.mrb[0].mxu0
    %5292 = vdwg.mxu0
    %v5293 = vmul.f32 %v5290, 0.35355338
    %v5294 = vsel %vm801, %v5293, -inf
    %5295 = vmax.xlane.f32.xlu0 %v5294
    %v5296 = vpop.xlane.xlu0 %5295
    %v5297 = vsub.f32 %v5293, %v5296
    %v5298 = vmul.f32 %v5297, 1.442695
    %v5299 = vpow.pop %v5298
    %v5300 = vsel %vm801, %v5299, 0.0
    %5301 = vadd.xlane.f32.xlu0 %v5300
    %v5302 = vpop.xlane.xlu0 %5301
    %v5303 = vrcp.pop %v5302
    %v5304 = vmul.f32 %v5299, %v5303
    %v5306 = vsel %vm813, %v5304, 0
    %v5309 = vsel %vm817, %v5214, 0
    %5311 = vmatprep.subr.mxu0 0.0
    %5312 = vmatpush1.msra.mxu0 %v5309
    %5313 = vmatprep.subr.mxu0 0.0
    %5314 = vmatpush1.msra.mxu0 0.0
    %5315 = vmatprep.subr.mxu0 0.0
    %5316 = vmatpush1.msra.mxu0 0.0
    %5317 = vmatprep.subr.mxu0 0.0
    %5318 = vmatpush1.msra.mxu0 0.0
    %5319 = vmatprep.subr.mxu0 0.0
    %5320 = vmatpush1.msra.mxu0 0.0
    %5321 = vmatprep.subr.mxu0 0.0
    %5322 = vmatpush1.msra.mxu0 0.0
    %5323 = vmatprep.subr.mxu0 0.0
    %5324 = vmatpush1.msra.mxu0 0.0
    %5325 = vmatprep.subr.mxu0 0.0
    %5326 = vmatpush1.msra.mxu0 0.0
    %5327 = vmatprep.subr.mxu0 0.0
    %5328 = vmatpush1.msra.mxu0 0.0
    %5329 = vmatprep.subr.mxu0 0.0
    %5330 = vmatpush1.msra.mxu0 0.0
    %5331 = vmatprep.subr.mxu0 0.0
    %5332 = vmatpush1.msra.mxu0 0.0
    %5333 = vmatprep.subr.mxu0 0.0
    %5334 = vmatpush1.msra.mxu0 0.0
    %5335 = vmatprep.subr.mxu0 0.0
    %5336 = vmatpush1.msra.mxu0 0.0
    %5337 = vmatprep.subr.mxu0 0.0
    %5338 = vmatpush1.msra.mxu0 0.0
    %5339 = vmatprep.subr.mxu0 0.0
    %5340 = vmatpush1.msra.mxu0 0.0
    %5341 = vmatprep.subr.mxu0 0.0
    %5342 = vmatpush1.msra.mxu0 0.0
    %5343 = vmatprep.subr.mxu0 0.0
    %5344 = vmatpush1.msra.mxu0 0.0
    %5345 = vmatprep.subr.mxu0 0.0
    %5346 = vmatpush1.msra.mxu0 0.0
    %5347 = vmatprep.subr.mxu0 0.0
    %5348 = vmatpush1.msra.mxu0 0.0
    %5349 = vmatprep.subr.mxu0 0.0
    %5350 = vmatpush1.msra.mxu0 0.0
    %5351 = vmatprep.subr.mxu0 0.0
    %5352 = vmatpush1.msra.mxu0 0.0
    %5353 = vmatprep.subr.mxu0 0.0
    %5354 = vmatpush1.msra.mxu0 0.0
    %5355 = vmatprep.subr.mxu0 0.0
    %5356 = vmatpush1.msra.mxu0 0.0
    %5357 = vmatprep.subr.mxu0 0.0
    %5358 = vmatpush1.msra.mxu0 0.0
    %5359 = vmatprep.subr.mxu0 0.0
    %5360 = vmatpush1.msra.mxu0 0.0
    %5361 = vmatprep.subr.mxu0 0.0
    %5362 = vmatpush1.msra.mxu0 0.0
    %5363 = vmatprep.subr.mxu0 0.0
    %5364 = vmatpush1.msra.mxu0 0.0
    %5365 = vmatprep.subr.mxu0 0.0
    %5366 = vmatpush1.msra.mxu0 0.0
    %5367 = vmatprep.subr.mxu0 0.0
    %5368 = vmatpush1.msra.mxu0 0.0
    %5369 = vmatprep.subr.mxu0 0.0
    %5370 = vmatpush1.msra.mxu0 0.0
    %5371 = vmatprep.subr.mxu0 0.0
    %5372 = vmatpush1.msra.mxu0 0.0
    %5373 = vmatprep.subr.mxu0 0.0
    %5374 = vmatpush1.msra.mxu0 0.0
    %5375 = vmatprep.mubr.f32.mxu0 0.0
    %5376 = vmatmul.mubr.f32.gmra.mrb[0].mxu0 %v5306
    %v5377 = vpop.f32.mrb[0].mxu0
    %v5378 = vadd.f32 0.0, %v5377
    %v5379 = vpop.f32.mrb[0].mxu0
    %5380 = vdwg.mxu0
    %s5381 = scalar_lea.vmem %s12, 56
    %v5382 = vld [vmem:[%s5381] sm:$0xff]
    %v5384 = vsel %vm723, %v5378, 0
    %5386 = vmatprep.subr.mxu0 0.0
    %5387 = vmatpush1.msra.mxu0 %v5382
    %5388 = vmatprep.subr.mxu0 0.0
    %5389 = vmatpush1.msra.mxu0 0.0
    %5390 = vmatprep.subr.mxu0 0.0
    %5391 = vmatpush1.msra.mxu0 0.0
    %5392 = vmatprep.subr.mxu0 0.0
    %5393 = vmatpush1.msra.mxu0 0.0
    %5394 = vmatprep.subr.mxu0 0.0
    %5395 = vmatpush1.msra.mxu0 0.0
    %5396 = vmatprep.subr.mxu0 0.0
    %5397 = vmatpush1.msra.mxu0 0.0
    %5398 = vmatprep.subr.mxu0 0.0
    %5399 = vmatpush1.msra.mxu0 0.0
    %5400 = vmatprep.subr.mxu0 0.0
    %5401 = vmatpush1.msra.mxu0 0.0
    %5402 = vmatprep.subr.mxu0 0.0
    %5403 = vmatpush1.msra.mxu0 0.0
    %5404 = vmatprep.subr.mxu0 0.0
    %5405 = vmatpush1.msra.mxu0 0.0
    %5406 = vmatprep.subr.mxu0 0.0
    %5407 = vmatpush1.msra.mxu0 0.0
    %5408 = vmatprep.subr.mxu0 0.0
    %5409 = vmatpush1.msra.mxu0 0.0
    %5410 = vmatprep.subr.mxu0 0.0
    %5411 = vmatpush1.msra.mxu0 0.0
    %5412 = vmatprep.subr.mxu0 0.0
    %5413 = vmatpush1.msra.mxu0 0.0
    %5414 = vmatprep.subr.mxu0 0.0
    %5415 = vmatpush1.msra.mxu0 0.0
    %5416 = vmatprep.subr.mxu0 0.0
    %5417 = vmatpush1.msra.mxu0 0.0
    %5418 = vmatprep.subr.mxu0 0.0
    %5419 = vmatpush1.msra.mxu0 0.0
    %5420 = vmatprep.subr.mxu0 0.0
    %5421 = vmatpush1.msra.mxu0 0.0
    %5422 = vmatprep.subr.mxu0 0.0
    %5423 = vmatpush1.msra.mxu0 0.0
    %5424 = vmatprep.subr.mxu0 0.0
    %5425 = vmatpush1.msra.mxu0 0.0
    %5426 = vmatprep.subr.mxu0 0.0
    %5427 = vmatpush1.msra.mxu0 0.0
    %5428 = vmatprep.subr.mxu0 0.0
    %5429 = vmatpush1.msra.mxu0 0.0
    %5430 = vmatprep.subr.mxu0 0.0
    %5431 = vmatpush1.msra.mxu0 0.0
    %5432 = vmatprep.subr.mxu0 0.0
    %5433 = vmatpush1.msra.mxu0 0.0
    %5434 = vmatprep.subr.mxu0 0.0
    %5435 = vmatpush1.msra.mxu0 0.0
    %5436 = vmatprep.subr.mxu0 0.0
    %5437 = vmatpush1.msra.mxu0 0.0
    %5438 = vmatprep.subr.mxu0 0.0
    %5439 = vmatpush1.msra.mxu0 0.0
    %5440 = vmatprep.subr.mxu0 0.0
    %5441 = vmatpush1.msra.mxu0 0.0
    %5442 = vmatprep.subr.mxu0 0.0
    %5443 = vmatpush1.msra.mxu0 0.0
    %5444 = vmatprep.subr.mxu0 0.0
    %5445 = vmatpush1.msra.mxu0 0.0
    %5446 = vmatprep.subr.mxu0 0.0
    %5447 = vmatpush1.msra.mxu0 0.0
    %5448 = vmatprep.subr.mxu0 0.0
    %5449 = vmatpush1.msra.mxu0 0.0
    %5450 = vmatprep.mubr.f32.mxu0 0.0
    %5451 = vmatmul.mubr.f32.gmra.mrb[0].mxu0 %v5384
    %v5452 = vpop.f32.mrb[0].mxu0
    %v5453 = vadd.f32 0.0, %v5452
    %v5454 = vpop.f32.mrb[0].mxu0
    %5455 = vdwg.mxu0
    %v5457 = vsel %vm723, %v4966, 0
    %5459 = vmatprep.subr.mxu0 0.0
    %5460 = vmatpush1.msra.mxu0 %v4970
    %5461 = vmatprep.subr.mxu0 0.0
    %5462 = vmatpush1.msra.mxu0 0.0
    %5463 = vmatprep.subr.mxu0 0.0
    %5464 = vmatpush1.msra.mxu0 0.0
    %5465 = vmatprep.subr.mxu0 0.0
    %5466 = vmatpush1.msra.mxu0 0.0
    %5467 = vmatprep.subr.mxu0 0.0
    %5468 = vmatpush1.msra.mxu0 0.0
    %5469 = vmatprep.subr.mxu0 0.0
    %5470 = vmatpush1.msra.mxu0 0.0
    %5471 = vmatprep.subr.mxu0 0.0
    %5472 = vmatpush1.msra.mxu0 0.0
    %5473 = vmatprep.subr.mxu0 0.0
    %5474 = vmatpush1.msra.mxu0 0.0
    %5475 = vmatprep.subr.mxu0 0.0
    %5476 = vmatpush1.msra.mxu0 0.0
    %5477 = vmatprep.subr.mxu0 0.0
    %5478 = vmatpush1.msra.mxu0 0.0
    %5479 = vmatprep.subr.mxu0 0.0
    %5480 = vmatpush1.msra.mxu0 0.0
    %5481 = vmatprep.subr.mxu0 0.0
    %5482 = vmatpush1.msra.mxu0 0.0
    %5483 = vmatprep.subr.mxu0 0.0
    %5484 = vmatpush1.msra.mxu0 0.0
    %5485 = vmatprep.subr.mxu0 0.0
    %5486 = vmatpush1.msra.mxu0 0.0
    %5487 = vmatprep.subr.mxu0 0.0
    %5488 = vmatpush1.msra.mxu0 0.0
    %5489 = vmatprep.subr.mxu0 0.0
    %5490 = vmatpush1.msra.mxu0 0.0
    %5491 = vmatprep.subr.mxu0 0.0
    %5492 = vmatpush1.msra.mxu0 0.0
    %5493 = vmatprep.subr.mxu0 0.0
    %5494 = vmatpush1.msra.mxu0 0.0
    %5495 = vmatprep.subr.mxu0 0.0
    %5496 = vmatpush1.msra.mxu0 0.0
    %5497 = vmatprep.subr.mxu0 0.0
    %5498 = vmatpush1.msra.mxu0 0.0
    %5499 = vmatprep.subr.mxu0 0.0
    %5500 = vmatpush1.msra.mxu0 0.0
    %5501 = vmatprep.subr.mxu0 0.0
    %5502 = vmatpush1.msra.mxu0 0.0
    %5503 = vmatprep.subr.mxu0 0.0
    %5504 = vmatpush1.msra.mxu0 0.0
    %5505 = vmatprep.subr.mxu0 0.0
    %5506 = vmatpush1.msra.mxu0 0.0
    %5507 = vmatprep.subr.mxu0 0.0
    %5508 = vmatpush1.msra.mxu0 0.0
    %5509 = vmatprep.subr.mxu0 0.0
    %5510 = vmatpush1.msra.mxu0 0.0
    %5511 = vmatprep.subr.mxu0 0.0
    %5512 = vmatpush1.msra.mxu0 0.0
    %5513 = vmatprep.subr.mxu0 0.0
    %5514 = vmatpush1.msra.mxu0 0.0
    %5515 = vmatprep.subr.mxu0 0.0
    %5516 = vmatpush1.msra.mxu0 0.0
    %5517 = vmatprep.subr.mxu0 0.0
    %5518 = vmatpush1.msra.mxu0 0.0
    %5519 = vmatprep.subr.mxu0 0.0
    %5520 = vmatpush1.msra.mxu0 0.0
    %5521 = vmatprep.subr.mxu0 0.0
    %5522 = vmatpush1.msra.mxu0 0.0
    %5523 = vmatprep.mubr.f32.mxu0 0.0
    %5524 = vmatmul.mubr.f32.gmra.mrb[0].mxu0 %v5457
    %v5525 = vpop.f32.mrb[0].mxu0
    %v5526 = vadd.f32 %v5453, %v5525
    %v5527 = vpop.f32.mrb[0].mxu0
    %5528 = vdwg.mxu0
    %s5529 = scalar_lea.vmem %s9, 192
    %v5530 = vld [vmem:[%s5529] sm:$0xff]
    %v5531 = vld [vmem:[%s5529 + $0x8] sm:$0xff]
    %v5532 = vld [vmem:[%s5529 + $0x10] sm:$0xff]
    %s5533 = scalar_lea.vmem %s13, 8
    %v5534 = vld [vmem:[%s5533] sm:$0x1]
    %v5536 = vlaneseq
    %v5537 = vshrl.u32 %v5536, 7
    %v5538 = vsub.s32 0, %v5537
    %v5539 = vrot.slane %v5534, %v5538
    %5541 = vmatprep.subr.mxu0 0.0
    %5542 = vmatpush1.msra.mxu0 %v5530
    %5543 = vmatprep.subr.mxu0 0.0
    %5544 = vmatpush1.msra.mxu0 %v5531
    %5545 = vmatprep.subr.mxu0 0.0
    %5546 = vmatpush1.msra.mxu0 %v5532
    %5547 = vmatprep.subr.mxu0 0.0
    %5548 = vmatpush1.msra.mxu0 0.0
    %5549 = vmatprep.subr.mxu0 0.0
    %5550 = vmatpush1.msra.mxu0 0.0
    %5551 = vmatprep.subr.mxu0 0.0
    %5552 = vmatpush1.msra.mxu0 0.0
    %5553 = vmatprep.subr.mxu0 0.0
    %5554 = vmatpush1.msra.mxu0 0.0
    %5555 = vmatprep.subr.mxu0 0.0
    %5556 = vmatpush1.msra.mxu0 0.0
    %5557 = vmatprep.subr.mxu0 0.0
    %5558 = vmatpush1.msra.mxu0 0.0
    %5559 = vmatprep.subr.mxu0 0.0
    %5560 = vmatpush1.msra.mxu0 0.0
    %5561 = vmatprep.subr.mxu0 0.0
    %5562 = vmatpush1.msra.mxu0 0.0
    %5563 = vmatprep.subr.mxu0 0.0
    %5564 = vmatpush1.msra.mxu0 0.0
    %5565 = vmatprep.subr.mxu0 0.0
    %5566 = vmatpush1.msra.mxu0 0.0
    %5567 = vmatprep.subr.mxu0 0.0
    %5568 = vmatpush1.msra.mxu0 0.0
    %5569 = vmatprep.subr.mxu0 0.0
    %5570 = vmatpush1.msra.mxu0 0.0
    %5571 = vmatprep.subr.mxu0 0.0
    %5572 = vmatpush1.msra.mxu0 0.0
    %5573 = vmatprep.subr.mxu0 0.0
    %5574 = vmatpush1.msra.mxu0 0.0
    %5575 = vmatprep.subr.mxu0 0.0
    %5576 = vmatpush1.msra.mxu0 0.0
    %5577 = vmatprep.subr.mxu0 0.0
    %5578 = vmatpush1.msra.mxu0 0.0
    %5579 = vmatprep.subr.mxu0 0.0
    %5580 = vmatpush1.msra.mxu0 0.0
    %5581 = vmatprep.subr.mxu0 0.0
    %5582 = vmatpush1.msra.mxu0 0.0
    %5583 = vmatprep.subr.mxu0 0.0
    %5584 = vmatpush1.msra.mxu0 0.0
    %5585 = vmatprep.subr.mxu0 0.0
    %5586 = vmatpush1.msra.mxu0 0.0
    %5587 = vmatprep.subr.mxu0 0.0
    %5588 = vmatpush1.msra.mxu0 0.0
    %5589 = vmatprep.subr.mxu0 0.0
    %5590 = vmatpush1.msra.mxu0 0.0
    %5591 = vmatprep.subr.mxu0 0.0
    %5592 = vmatpush1.msra.mxu0 0.0
    %5593 = vmatprep.subr.mxu0 0.0
    %5594 = vmatpush1.msra.mxu0 0.0
    %5595 = vmatprep.subr.mxu0 0.0
    %5596 = vmatpush1.msra.mxu0 0.0
    %5597 = vmatprep.subr.mxu0 0.0
    %5598 = vmatpush1.msra.mxu0 0.0
    %5599 = vmatprep.subr.mxu0 0.0
    %5600 = vmatpush1.msra.mxu0 0.0
    %5601 = vmatprep.subr.mxu0 0.0
    %5602 = vmatpush1.msra.mxu0 0.0
    %5603 = vmatprep.subr.mxu0 0.0
    %5604 = vmatpush1.msra.mxu0 0.0
    %5605 = vmatprep.mubr.f32.mxu0 0.0
    %5606 = vmatmul.mubr.f32.gmra.mrb[0].mxu0 %v4569
    %v5607 = vpop.f32.mrb[0].mxu0
    %v5608 = vadd.f32 %v5539, %v5607
    %v5609 = vpop.f32.mrb[0].mxu0
    %5610 = vdwg.mxu0
    %s5611 = scalar_lea.vmem %s10, 192
    %v5612 = vld [vmem:[%s5611] sm:$0xff]
    %v5613 = vld [vmem:[%s5611 + $0x8] sm:$0xff]
    %v5614 = vld [vmem:[%s5611 + $0x10] sm:$0xff]
    %s5615 = scalar_lea.vmem %s14, 8
    %v5616 = vld [vmem:[%s5615] sm:$0x1]
    %v5618 = vlaneseq
    %v5619 = vshrl.u32 %v5618, 7
    %v5620 = vsub.s32 0, %v5619
    %v5621 = vrot.slane %v5616, %v5620
    %5623 = vmatprep.subr.mxu0 0.0
    %5624 = vmatpush1.msra.mxu0 %v5612
    %5625 = vmatprep.subr.mxu0 0.0
    %5626 = vmatpush1.msra.mxu0 %v5613
    %5627 = vmatprep.subr.mxu0 0.0
    %5628 = vmatpush1.msra.mxu0 %v5614
    %5629 = vmatprep.subr.mxu0 0.0
    %5630 = vmatpush1.msra.mxu0 0.0
    %5631 = vmatprep.subr.mxu0 0.0
    %5632 = vmatpush1.msra.mxu0 0.0
    %5633 = vmatprep.subr.mxu0 0.0
    %5634 = vmatpush1.msra.mxu0 0.0
    %5635 = vmatprep.subr.mxu0 0.0
    %5636 = vmatpush1.msra.mxu0 0.0
    %5637 = vmatprep.subr.mxu0 0.0
    %5638 = vmatpush1.msra.mxu0 0.0
    %5639 = vmatprep.subr.mxu0 0.0
    %5640 = vmatpush1.msra.mxu0 0.0
    %5641 = vmatprep.subr.mxu0 0.0
    %5642 = vmatpush1.msra.mxu0 0.0
    %5643 = vmatprep.subr.mxu0 0.0
    %5644 = vmatpush1.msra.mxu0 0.0
    %5645 = vmatprep.subr.mxu0 0.0
    %5646 = vmatpush1.msra.mxu0 0.0
    %5647 = vmatprep.subr.mxu0 0.0
    %5648 = vmatpush1.msra.mxu0 0.0
    %5649 = vmatprep.subr.mxu0 0.0
    %5650 = vmatpush1.msra.mxu0 0.0
    %5651 = vmatprep.subr.mxu0 0.0
    %5652 = vmatpush1.msra.mxu0 0.0
    %5653 = vmatprep.subr.mxu0 0.0
    %5654 = vmatpush1.msra.mxu0 0.0
    %5655 = vmatprep.subr.mxu0 0.0
    %5656 = vmatpush1.msra.mxu0 0.0
    %5657 = vmatprep.subr.mxu0 0.0
    %5658 = vmatpush1.msra.mxu0 0.0
    %5659 = vmatprep.subr.mxu0 0.0
    %5660 = vmatpush1.msra.mxu0 0.0
    %5661 = vmatprep.subr.mxu0 0.0
    %5662 = vmatpush1.msra.mxu0 0.0
    %5663 = vmatprep.subr.mxu0 0.0
    %5664 = vmatpush1.msra.mxu0 0.0
    %5665 = vmatprep.subr.mxu0 0.0
    %5666 = vmatpush1.msra.mxu0 0.0
    %5667 = vmatprep.subr.mxu0 0.0
    %5668 = vmatpush1.msra.mxu0 0.0
    %5669 = vmatprep.subr.mxu0 0.0
    %5670 = vmatpush1.msra.mxu0 0.0
    %5671 = vmatprep.subr.mxu0 0.0
    %5672 = vmatpush1.msra.mxu0 0.0
    %5673 = vmatprep.subr.mxu0 0.0
    %5674 = vmatpush1.msra.mxu0 0.0
    %5675 = vmatprep.subr.mxu0 0.0
    %5676 = vmatpush1.msra.mxu0 0.0
    %5677 = vmatprep.subr.mxu0 0.0
    %5678 = vmatpush1.msra.mxu0 0.0
    %5679 = vmatprep.subr.mxu0 0.0
    %5680 = vmatpush1.msra.mxu0 0.0
    %5681 = vmatprep.subr.mxu0 0.0
    %5682 = vmatpush1.msra.mxu0 0.0
    %5683 = vmatprep.subr.mxu0 0.0
    %5684 = vmatpush1.msra.mxu0 0.0
    %5685 = vmatprep.subr.mxu0 0.0
    %5686 = vmatpush1.msra.mxu0 0.0
    %5687 = vmatprep.mubr.f32.mxu0 0.0
    %5688 = vmatmul.mubr.f32.gmra.mrb[0].mxu0 %v4569
    %v5689 = vpop.f32.mrb[0].mxu0
    %v5690 = vadd.f32 %v5621, %v5689
    %v5691 = vpop.f32.mrb[0].mxu0
    %5692 = vdwg.mxu0
    %s5693 = scalar_lea.vmem %s11, 192
    %v5694 = vld [vmem:[%s5693] sm:$0xff]
    %v5695 = vld [vmem:[%s5693 + $0x8] sm:$0xff]
    %v5696 = vld [vmem:[%s5693 + $0x10] sm:$0xff]
    %s5697 = scalar_lea.vmem %s15, 8
    %v5698 = vld [vmem:[%s5697] sm:$0x1]
    %v5700 = vlaneseq
    %v5701 = vshrl.u32 %v5700, 7
    %v5702 = vsub.s32 0, %v5701
    %v5703 = vrot.slane %v5698, %v5702
    %5705 = vmatprep.subr.mxu0 0.0
    %5706 = vmatpush1.msra.mxu0 %v5694
    %5707 = vmatprep.subr.mxu0 0.0
    %5708 = vmatpush1.msra.mxu0 %v5695
    %5709 = vmatprep.subr.mxu0 0.0
    %5710 = vmatpush1.msra.mxu0 %v5696
    %5711 = vmatprep.subr.mxu0 0.0
    %5712 = vmatpush1.msra.mxu0 0.0
    %5713 = vmatprep.subr.mxu0 0.0
    %5714 = vmatpush1.msra.mxu0 0.0
    %5715 = vmatprep.subr.mxu0 0.0
    %5716 = vmatpush1.msra.mxu0 0.0
    %5717 = vmatprep.subr.mxu0 0.0
    %5718 = vmatpush1.msra.mxu0 0.0
    %5719 = vmatprep.subr.mxu0 0.0
    %5720 = vmatpush1.msra.mxu0 0.0
    %5721 = vmatprep.subr.mxu0 0.0
    %5722 = vmatpush1.msra.mxu0 0.0
    %5723 = vmatprep.subr.mxu0 0.0
    %5724 = vmatpush1.msra.mxu0 0.0
    %5725 = vmatprep.subr.mxu0 0.0
    %5726 = vmatpush1.msra.mxu0 0.0
    %5727 = vmatprep.subr.mxu0 0.0
    %5728 = vmatpush1.msra.mxu0 0.0
    %5729 = vmatprep.subr.mxu0 0.0
    %5730 = vmatpush1.msra.mxu0 0.0
    %5731 = vmatprep.subr.mxu0 0.0
    %5732 = vmatpush1.msra.mxu0 0.0
    %5733 = vmatprep.subr.mxu0 0.0
    %5734 = vmatpush1.msra.mxu0 0.0
    %5735 = vmatprep.subr.mxu0 0.0
    %5736 = vmatpush1.msra.mxu0 0.0
    %5737 = vmatprep.subr.mxu0 0.0
    %5738 = vmatpush1.msra.mxu0 0.0
    %5739 = vmatprep.subr.mxu0 0.0
    %5740 = vmatpush1.msra.mxu0 0.0
    %5741 = vmatprep.subr.mxu0 0.0
    %5742 = vmatpush1.msra.mxu0 0.0
    %5743 = vmatprep.subr.mxu0 0.0
    %5744 = vmatpush1.msra.mxu0 0.0
    %5745 = vmatprep.subr.mxu0 0.0
    %5746 = vmatpush1.msra.mxu0 0.0
    %5747 = vmatprep.subr.mxu0 0.0
    %5748 = vmatpush1.msra.mxu0 0.0
    %5749 = vmatprep.subr.mxu0 0.0
    %5750 = vmatpush1.msra.mxu0 0.0
    %5751 = vmatprep.subr.mxu0 0.0
    %5752 = vmatpush1.msra.mxu0 0.0
    %5753 = vmatprep.subr.mxu0 0.0
    %5754 = vmatpush1.msra.mxu0 0.0
    %5755 = vmatprep.subr.mxu0 0.0
    %5756 = vmatpush1.msra.mxu0 0.0
    %5757 = vmatprep.subr.mxu0 0.0
    %5758 = vmatpush1.msra.mxu0 0.0
    %5759 = vmatprep.subr.mxu0 0.0
    %5760 = vmatpush1.msra.mxu0 0.0
    %5761 = vmatprep.subr.mxu0 0.0
    %5762 = vmatpush1.msra.mxu0 0.0
    %5763 = vmatprep.subr.mxu0 0.0
    %5764 = vmatpush1.msra.mxu0 0.0
    %5765 = vmatprep.subr.mxu0 0.0
    %5766 = vmatpush1.msra.mxu0 0.0
    %5767 = vmatprep.subr.mxu0 0.0
    %5768 = vmatpush1.msra.mxu0 0.0
    %5769 = vmatprep.mubr.f32.mxu0 0.0
    %5770 = vmatmul.mubr.f32.gmra.mrb[0].mxu0 %v4569
    %v5771 = vpop.f32.mrb[0].mxu0
    %v5772 = vadd.f32 %v5703, %v5771
    %v5773 = vpop.f32.mrb[0].mxu0
    %5774 = vdwg.mxu0
    %v5776 = vsel %vm723, %v5608, 0
    %v5779 = vsel %vm723, %v5690, 0
    %5781 = vmatprep.subr.mxu0 0.0
    %5782 = vmatpush1.xpose.msra.mxu0 %v5779
    %5783 = vmatprep.subr.mxu0 0.0
    %5784 = vmatpush1.xpose.msra.mxu0 0.0
    %5785 = vmatprep.subr.mxu0 0.0
    %5786 = vmatpush1.xpose.msra.mxu0 0.0
    %5787 = vmatprep.subr.mxu0 0.0
    %5788 = vmatpush1.xpose.msra.mxu0 0.0
    %5789 = vmatprep.subr.mxu0 0.0
    %5790 = vmatpush1.xpose.msra.mxu0 0.0
    %5791 = vmatprep.subr.mxu0 0.0
    %5792 = vmatpush1.xpose.msra.mxu0 0.0
    %5793 = vmatprep.subr.mxu0 0.0
    %5794 = vmatpush1.xpose.msra.mxu0 0.0
    %5795 = vmatprep.subr.mxu0 0.0
    %5796 = vmatpush1.xpose.msra.mxu0 0.0
    %5797 = vmatprep.subr.mxu0 0.0
    %5798 = vmatpush1.xpose.msra.mxu0 0.0
    %5799 = vmatprep.subr.mxu0 0.0
    %5800 = vmatpush1.xpose.msra.mxu0 0.0
    %5801 = vmatprep.subr.mxu0 0.0
    %5802 = vmatpush1.xpose.msra.mxu0 0.0
    %5803 = vmatprep.subr.mxu0 0.0
    %5804 = vmatpush1.xpose.msra.mxu0 0.0
    %5805 = vmatprep.subr.mxu0 0.0
    %5806 = vmatpush1.xpose.msra.mxu0 0.0
    %5807 = vmatprep.subr.mxu0 0.0
    %5808 = vmatpush1.xpose.msra.mxu0 0.0
    %5809 = vmatprep.subr.mxu0 0.0
    %5810 = vmatpush1.xpose.msra.mxu0 0.0
    %5811 = vmatprep.subr.mxu0 0.0
    %5812 = vmatpush1.xpose.msra.mxu0 0.0
    %5813 = vmatprep.subr.mxu0 0.0
    %5814 = vmatpush1.xpose.msra.mxu0 0.0
    %5815 = vmatprep.subr.mxu0 0.0
    %5816 = vmatpush1.xpose.msra.mxu0 0.0
    %5817 = vmatprep.subr.mxu0 0.0
    %5818 = vmatpush1.xpose.msra.mxu0 0.0
    %5819 = vmatprep.subr.mxu0 0.0
    %5820 = vmatpush1.xpose.msra.mxu0 0.0
    %5821 = vmatprep.subr.mxu0 0.0
    %5822 = vmatpush1.xpose.msra.mxu0 0.0
    %5823 = vmatprep.subr.mxu0 0.0
    %5824 = vmatpush1.xpose.msra.mxu0 0.0
    %5825 = vmatprep.subr.mxu0 0.0
    %5826 = vmatpush1.xpose.msra.mxu0 0.0
    %5827 = vmatprep.subr.mxu0 0.0
    %5828 = vmatpush1.xpose.msra.mxu0 0.0
    %5829 = vmatprep.subr.mxu0 0.0
    %5830 = vmatpush1.xpose.msra.mxu0 0.0
    %5831 = vmatprep.subr.mxu0 0.0
    %5832 = vmatpush1.xpose.msra.mxu0 0.0
    %5833 = vmatprep.subr.mxu0 0.0
    %5834 = vmatpush1.xpose.msra.mxu0 0.0
    %5835 = vmatprep.subr.mxu0 0.0
    %5836 = vmatpush1.xpose.msra.mxu0 0.0
    %5837 = vmatprep.subr.mxu0 0.0
    %5838 = vmatpush1.xpose.msra.mxu0 0.0
    %5839 = vmatprep.subr.mxu0 0.0
    %5840 = vmatpush1.xpose.msra.mxu0 0.0
    %5841 = vmatprep.subr.mxu0 0.0
    %5842 = vmatpush1.xpose.msra.mxu0 0.0
    %5843 = vmatprep.subr.mxu0 0.0
    %5844 = vmatpush1.xpose.msra.mxu0 0.0
    %5845 = vmatprep.mubr.f32.mxu0 0.0
    %5846 = vmatmul.mubr.f32.gmra.mrb[0].mxu0 %v5776
    %v5847 = vpop.f32.mrb[0].mxu0
    %v5848 = vadd.f32 0.0, %v5847
    %v5849 = vpop.f32.mrb[0].mxu0
    %5850 = vdwg.mxu0
    %v5851 = vmul.f32 %v5848, 0.35355338
    %v5852 = vsel %vm801, %v5851, -inf
    %5853 = vmax.xlane.f32.xlu0 %v5852
    %v5854 = vpop.xlane.xlu0 %5853
    %v5855 = vsub.f32 %v5851, %v5854
    %v5856 = vmul.f32 %v5855, 1.442695
    %v5857 = vpow.pop %v5856
    %v5858 = vsel %vm801, %v5857, 0.0
    %5859 = vadd.xlane.f32.xlu0 %v5858
    %v5860 = vpop.xlane.xlu0 %5859
    %v5861 = vrcp.pop %v5860
    %v5862 = vmul.f32 %v5857, %v5861
    %v5864 = vsel %vm813, %v5862, 0
    %v5867 = vsel %vm817, %v5772, 0
    %5869 = vmatprep.subr.mxu0 0.0
    %5870 = vmatpush1.msra.mxu0 %v5867
    %5871 = vmatprep.subr.mxu0 0.0
    %5872 = vmatpush1.msra.mxu0 0.0
    %5873 = vmatprep.subr.mxu0 0.0
    %5874 = vmatpush1.msra.mxu0 0.0
    %5875 = vmatprep.subr.mxu0 0.0
    %5876 = vmatpush1.msra.mxu0 0.0
    %5877 = vmatprep.subr.mxu0 0.0
    %5878 = vmatpush1.msra.mxu0 0.0
    %5879 = vmatprep.subr.mxu0 0.0
    %5880 = vmatpush1.msra.mxu0 0.0
    %5881 = vmatprep.subr.mxu0 0.0
    %5882 = vmatpush1.msra.mxu0 0.0
    %5883 = vmatprep.subr.mxu0 0.0
    %5884 = vmatpush1.msra.mxu0 0.0
    %5885 = vmatprep.subr.mxu0 0.0
    %5886 = vmatpush1.msra.mxu0 0.0
    %5887 = vmatprep.subr.mxu0 0.0
    %5888 = vmatpush1.msra.mxu0 0.0
    %5889 = vmatprep.subr.mxu0 0.0
    %5890 = vmatpush1.msra.mxu0 0.0
    %5891 = vmatprep.subr.mxu0 0.0
    %5892 = vmatpush1.msra.mxu0 0.0
    %5893 = vmatprep.subr.mxu0 0.0
    %5894 = vmatpush1.msra.mxu0 0.0
    %5895 = vmatprep.subr.mxu0 0.0
    %5896 = vmatpush1.msra.mxu0 0.0
    %5897 = vmatprep.subr.mxu0 0.0
    %5898 = vmatpush1.msra.mxu0 0.0
    %5899 = vmatprep.subr.mxu0 0.0
    %5900 = vmatpush1.msra.mxu0 0.0
    %5901 = vmatprep.subr.mxu0 0.0
    %5902 = vmatpush1.msra.mxu0 0.0
    %5903 = vmatprep.subr.mxu0 0.0
    %5904 = vmatpush1.msra.mxu0 0.0
    %5905 = vmatprep.subr.mxu0 0.0
    %5906 = vmatpush1.msra.mxu0 0.0
    %5907 = vmatprep.subr.mxu0 0.0
    %5908 = vmatpush1.msra.mxu0 0.0
    %5909 = vmatprep.subr.mxu0 0.0
    %5910 = vmatpush1.msra.mxu0 0.0
    %5911 = vmatprep.subr.mxu0 0.0
    %5912 = vmatpush1.msra.mxu0 0.0
    %5913 = vmatprep.subr.mxu0 0.0
    %5914 = vmatpush1.msra.mxu0 0.0
    %5915 = vmatprep.subr.mxu0 0.0
    %5916 = vmatpush1.msra.mxu0 0.0
    %5917 = vmatprep.subr.mxu0 0.0
    %5918 = vmatpush1.msra.mxu0 0.0
    %5919 = vmatprep.subr.mxu0 0.0
    %5920 = vmatpush1.msra.mxu0 0.0
    %5921 = vmatprep.subr.mxu0 0.0
    %5922 = vmatpush1.msra.mxu0 0.0
    %5923 = vmatprep.subr.mxu0 0.0
    %5924 = vmatpush1.msra.mxu0 0.0
    %5925 = vmatprep.subr.mxu0 0.0
    %5926 = vmatpush1.msra.mxu0 0.0
    %5927 = vmatprep.subr.mxu0 0.0
    %5928 = vmatpush1.msra.mxu0 0.0
    %5929 = vmatprep.subr.mxu0 0.0
    %5930 = vmatpush1.msra.mxu0 0.0
    %5931 = vmatprep.subr.mxu0 0.0
    %5932 = vmatpush1.msra.mxu0 0.0
    %5933 = vmatprep.mubr.f32.mxu0 0.0
    %5934 = vmatmul.mubr.f32.gmra.mrb[0].mxu0 %v5864
    %v5935 = vpop.f32.mrb[0].mxu0
    %v5936 = vadd.f32 0.0, %v5935
    %v5937 = vpop.f32.mrb[0].mxu0
    %5938 = vdwg.mxu0
    %s5939 = scalar_lea.vmem %s12, 64
    %v5940 = vld [vmem:[%s5939] sm:$0xff]
    %v5942 = vsel %vm723, %v5936, 0
    %5944 = vmatprep.subr.mxu0 0.0
    %5945 = vmatpush1.msra.mxu0 %v5940
    %5946 = vmatprep.subr.mxu0 0.0
    %5947 = vmatpush1.msra.mxu0 0.0
    %5948 = vmatprep.subr.mxu0 0.0
    %5949 = vmatpush1.msra.mxu0 0.0
    %5950 = vmatprep.subr.mxu0 0.0
    %5951 = vmatpush1.msra.mxu0 0.0
    %5952 = vmatprep.subr.mxu0 0.0
    %5953 = vmatpush1.msra.mxu0 0.0
    %5954 = vmatprep.subr.mxu0 0.0
    %5955 = vmatpush1.msra.mxu0 0.0
    %5956 = vmatprep.subr.mxu0 0.0
    %5957 = vmatpush1.msra.mxu0 0.0
    %5958 = vmatprep.subr.mxu0 0.0
    %5959 = vmatpush1.msra.mxu0 0.0
    %5960 = vmatprep.subr.mxu0 0.0
    %5961 = vmatpush1.msra.mxu0 0.0
    %5962 = vmatprep.subr.mxu0 0.0
    %5963 = vmatpush1.msra.mxu0 0.0
    %5964 = vmatprep.subr.mxu0 0.0
    %5965 = vmatpush1.msra.mxu0 0.0
    %5966 = vmatprep.subr.mxu0 0.0
    %5967 = vmatpush1.msra.mxu0 0.0
    %5968 = vmatprep.subr.mxu0 0.0
    %5969 = vmatpush1.msra.mxu0 0.0
    %5970 = vmatprep.subr.mxu0 0.0
    %5971 = vmatpush1.msra.mxu0 0.0
    %5972 = vmatprep.subr.mxu0 0.0
    %5973 = vmatpush1.msra.mxu0 0.0
    %5974 = vmatprep.subr.mxu0 0.0
    %5975 = vmatpush1.msra.mxu0 0.0
    %5976 = vmatprep.subr.mxu0 0.0
    %5977 = vmatpush1.msra.mxu0 0.0
    %5978 = vmatprep.subr.mxu0 0.0
    %5979 = vmatpush1.msra.mxu0 0.0
    %5980 = vmatprep.subr.mxu0 0.0
    %5981 = vmatpush1.msra.mxu0 0.0
    %5982 = vmatprep.subr.mxu0 0.0
    %5983 = vmatpush1.msra.mxu0 0.0
    %5984 = vmatprep.subr.mxu0 0.0
    %5985 = vmatpush1.msra.mxu0 0.0
    %5986 = vmatprep.subr.mxu0 0.0
    %5987 = vmatpush1.msra.mxu0 0.0
    %5988 = vmatprep.subr.mxu0 0.0
    %5989 = vmatpush1.msra.mxu0 0.0
    %5990 = vmatprep.subr.mxu0 0.0
    %5991 = vmatpush1.msra.mxu0 0.0
    %5992 = vmatprep.subr.mxu0 0.0
    %5993 = vmatpush1.msra.mxu0 0.0
    %5994 = vmatprep.subr.mxu0 0.0
    %5995 = vmatpush1.msra.mxu0 0.0
    %5996 = vmatprep.subr.mxu0 0.0
    %5997 = vmatpush1.msra.mxu0 0.0
    %5998 = vmatprep.subr.mxu0 0.0
    %5999 = vmatpush1.msra.mxu0 0.0
    %6000 = vmatprep.subr.mxu0 0.0
    %6001 = vmatpush1.msra.mxu0 0.0
    %6002 = vmatprep.subr.mxu0 0.0
    %6003 = vmatpush1.msra.mxu0 0.0
    %6004 = vmatprep.subr.mxu0 0.0
    %6005 = vmatpush1.msra.mxu0 0.0
    %6006 = vmatprep.subr.mxu0 0.0
    %6007 = vmatpush1.msra.mxu0 0.0
    %6008 = vmatprep.mubr.f32.mxu0 0.0
    %6009 = vmatmul.mubr.f32.gmra.mrb[0].mxu0 %v5942
    %v6010 = vpop.f32.mrb[0].mxu0
    %v6011 = vadd.f32 0.0, %v6010
    %v6012 = vpop.f32.mrb[0].mxu0
    %6013 = vdwg.mxu0
    %v6014 = vadd.f32 %v5526, %v6011
    %v6015 = vadd.f32 %v4555, %v6014
    %s6016 = scalar_lea.vmem %s16, 2
    %v6017 = vld [vmem:[%s6016] sm:$0x1]
    %v6019 = vlaneseq
    %v6020 = vshrl.u32 %v6019, 7
    %v6021 = vsub.s32 0, %v6020
    %v6022 = vrot.slane %v6017, %v6021
    %v6024 = vadd.f32 %v6015, %v6022
    %s6025 = scalar_lea.vmem %s21, 2
    %v6026 = vld [vmem:[%s6025] sm:$0x1]
    %s6027 = scalar_lea.vmem %s22, 2
    %v6028 = vld [vmem:[%s6027] sm:$0x1]
    %v6029 = vsel %vm1947, %v6024, 0.0
    %6030 = vadd.xlane.f32.xlu0 %v6029
    %v6031 = vpop.xlane.xlu0 %6030
    %v6032 = vmul.f32 %v6031, %v1951
    %v6033 = vsub.f32 %v6024, %v6032
    %v6034 = vmul.f32 %v6033, %v6033
    %v6035 = vsel %vm1947, %v6034, 0.0
    %6036 = vadd.xlane.f32.xlu0 %v6035
    %v6037 = vpop.xlane.xlu0 %6036
    %v6038 = vmul.f32 %v6037, %v1951
    %v6039 = vadd.f32 %v6038, 1e-05
    %v6040 = vrsqrt.pop %v6039
    %v6041 = vmul.f32 %v6033, %v6040
    %v6043 = vlaneseq
    %v6044 = vshrl.u32 %v6043, 7
    %v6045 = vsub.s32 0, %v6044
    %v6046 = vrot.slane %v6026, %v6045
    %v6048 = vmul.f32 %v6041, %v6046
    %v6050 = vlaneseq
    %v6051 = vshrl.u32 %v6050, 7
    %v6052 = vsub.s32 0, %v6051
    %v6053 = vrot.slane %v6028, %v6052
    %v6055 = vadd.f32 %v6048, %v6053
    %v6056 = vpack.c.bf16 %v6055, %v6055
    %s6057 = scalar_lea.vmem %s17, 96
    %v6058 = vld [vmem:[%s6057] sm:$0xff]
    %v6059 = vld [vmem:[%s6057 + $0x8] sm:$0xff]
    %v6060 = vld [vmem:[%s6057 + $0x10] sm:$0xff]
    %v6061 = vld [vmem:[%s6057 + $0x18] sm:$0xff]
    %v6062 = vld [vmem:[%s6057 + $0x20] sm:$0xff]
    %v6063 = vld [vmem:[%s6057 + $0x28] sm:$0xff]
    %s6064 = scalar_lea.vmem %s18, 8
    %v6065 = vld [vmem:[%s6064] sm:$0xf]
    %v6067 = vlaneseq
    %v6068 = vshrl.u32 %v6067, 7
    %v6069 = vsub.s32 0, %v6068
    %v6070 = vrot.slane %v6065, %v6069
    %v6071 = vlaneseq
    %v6072 = vshrl.u32 %v6071, 7
    %v6073 = vsub.s32 1, %v6072
    %v6074 = vrot.slane %v6065, %v6073
    %v6075 = vlaneseq
    %v6076 = vshrl.u32 %v6075, 7
    %v6077 = vsub.s32 2, %v6076
    %v6078 = vrot.slane %v6065, %v6077
    %v6079 = vlaneseq
    %v6080 = vshrl.u32 %v6079, 7
    %v6081 = vsub.s32 3, %v6080
    %v6082 = vrot.slane %v6065, %v6081
    %v6093 = vunpack.c.l.b16 %v6058
    %v6094 = vunpack.c.h.b16 %v6058
    %v6095 = vunpack.c.l.b16 %v6059
    %v6096 = vunpack.c.h.b16 %v6059
    %v6097 = vunpack.c.l.b16 %v6060
    %v6098 = vunpack.c.h.b16 %v6060
    %v6099 = vunpack.c.l.b16 %v6061
    %v6100 = vunpack.c.h.b16 %v6061
    %v6101 = vunpack.c.l.b16 %v6062
    %v6102 = vunpack.c.h.b16 %v6062
    %v6103 = vunpack.c.l.b16 %v6063
    %v6104 = vunpack.c.h.b16 %v6063
    %v6105 = vpack.c.b16 %v6097, %v6093
    %v6106 = vpack.c.b16 %v6098, %v6094
    %v6107 = vpack.c.b16 %v6099, %v6095
    %v6108 = vpack.c.b16 %v6100, %v6096
    %v6109 = vpack.c.b16 %v6101, %v6101
    %v6110 = vpack.c.b16 %v6102, %v6102
    %v6111 = vpack.c.b16 %v6103, %v6103
    %v6112 = vpack.c.b16 %v6104, %v6104
    %v6118 = vsel %vm489, %v6056, 0
    %v6121 = vsel %vm223, %v6109, 0
    %v6124 = vsel %vm223, %v6110, 0
    %v6127 = vsel %vm223, %v6111, 0
    %v6130 = vsel %vm223, %v6112, 0
    %6132 = vmatprep.subr.bf16.mxu0 %v6106
    %6133 = vmatpush1.bf16.msra.mxu0 %v6105
    %6134 = vmatprep.subr.bf16.mxu0 %v6124
    %6135 = vmatpush1.bf16.msra.mxu0 %v6121
    %6136 = vmatprep.subr.bf16.mxu0 0
    %6137 = vmatpush1.bf16.msra.mxu0 0
    %6138 = vmatprep.subr.bf16.mxu0 0
    %6139 = vmatpush1.bf16.msra.mxu0 0
    %6140 = vmatprep.subr.bf16.mxu0 0
    %6141 = vmatpush1.bf16.msra.mxu0 0
    %6142 = vmatprep.subr.bf16.mxu0 0
    %6143 = vmatpush1.bf16.msra.mxu0 0
    %6144 = vmatprep.subr.bf16.mxu0 0
    %6145 = vmatpush1.bf16.msra.mxu0 0
    %6146 = vmatprep.subr.bf16.mxu0 0
    %6147 = vmatpush1.bf16.msra.mxu0 0
    %6148 = vmatprep.subr.bf16.mxu0 0
    %6149 = vmatpush1.bf16.msra.mxu0 0
    %6150 = vmatprep.subr.bf16.mxu0 0
    %6151 = vmatpush1.bf16.msra.mxu0 0
    %6152 = vmatprep.subr.bf16.mxu0 0
    %6153 = vmatpush1.bf16.msra.mxu0 0
    %6154 = vmatprep.subr.bf16.mxu0 0
    %6155 = vmatpush1.bf16.msra.mxu0 0
    %6156 = vmatprep.subr.bf16.mxu0 0
    %6157 = vmatpush1.bf16.msra.mxu0 0
    %6158 = vmatprep.subr.bf16.mxu0 0
    %6159 = vmatpush1.bf16.msra.mxu0 0
    %6160 = vmatprep.subr.bf16.mxu0 0
    %6161 = vmatpush1.bf16.msra.mxu0 0
    %6162 = vmatprep.subr.bf16.mxu0 0
    %6163 = vmatpush1.bf16.msra.mxu0 0
    %6164 = vmatprep.mubr.bf16.mxu0 0
    %6165 = vmatmul.mubr.bf16.gmra.mrb[0].mxu0 %v6118
    %v6166 = vpop.f32.mrb[0].mxu0
    %v6167 = vadd.f32 %v6070, %v6166
    %v6168 = vpop.f32.mrb[0].mxu0
    %v6169 = vadd.f32 %v6074, %v6168
    %v6170 = vpop.f32.mrb[0].mxu0
    %v6171 = vpop.f32.mrb[0].mxu0
    %6172 = vdwg.mxu0
    %6173 = vmatprep.subr.bf16.mxu0 %v6108
    %6174 = vmatpush1.bf16.msra.mxu0 %v6107
    %6175 = vmatprep.subr.bf16.mxu0 %v6130
    %6176 = vmatpush1.bf16.msra.mxu0 %v6127
    %6177 = vmatprep.subr.bf16.mxu0 0
    %6178 = vmatpush1.bf16.msra.mxu0 0
    %6179 = vmatprep.subr.bf16.mxu0 0
    %6180 = vmatpush1.bf16.msra.mxu0 0
    %6181 = vmatprep.subr.bf16.mxu0 0
    %6182 = vmatpush1.bf16.msra.mxu0 0
    %6183 = vmatprep.subr.bf16.mxu0 0
    %6184 = vmatpush1.bf16.msra.mxu0 0
    %6185 = vmatprep.subr.bf16.mxu0 0
    %6186 = vmatpush1.bf16.msra.mxu0 0
    %6187 = vmatprep.subr.bf16.mxu0 0
    %6188 = vmatpush1.bf16.msra.mxu0 0
    %6189 = vmatprep.subr.bf16.mxu0 0
    %6190 = vmatpush1.bf16.msra.mxu0 0
    %6191 = vmatprep.subr.bf16.mxu0 0
    %6192 = vmatpush1.bf16.msra.mxu0 0
    %6193 = vmatprep.subr.bf16.mxu0 0
    %6194 = vmatpush1.bf16.msra.mxu0 0
    %6195 = vmatprep.subr.bf16.mxu0 0
    %6196 = vmatpush1.bf16.msra.mxu0 0
    %6197 = vmatprep.subr.bf16.mxu0 0
    %6198 = vmatpush1.bf16.msra.mxu0 0
    %6199 = vmatprep.subr.bf16.mxu0 0
    %6200 = vmatpush1.bf16.msra.mxu0 0
    %6201 = vmatprep.subr.bf16.mxu0 0
    %6202 = vmatpush1.bf16.msra.mxu0 0
    %6203 = vmatprep.subr.bf16.mxu0 0
    %6204 = vmatpush1.bf16.msra.mxu0 0
    %6205 = vmatprep.mubr.bf16.mxu0 0
    %6206 = vmatmul.mubr.bf16.gmra.mrb[0].mxu0 %v6118
    %v6207 = vpop.f32.mrb[0].mxu0
    %v6208 = vadd.f32 %v6078, %v6207
    %v6209 = vpop.f32.mrb[0].mxu0
    %v6210 = vadd.f32 %v6082, %v6209
    %v6211 = vpop.f32.mrb[0].mxu0
    %v6212 = vpop.f32.mrb[0].mxu0
    %6213 = vdwg.mxu0
    %v6214 = vmax.f32 %v6167, 0.0
    %v6215 = vmax.f32 %v6169, 0.0
    %v6216 = vmax.f32 %v6208, 0.0
    %v6217 = vmax.f32 %v6210, 0.0
    %v6218 = vpack.c.bf16 %v6214, %v6214
    %v6219 = vpack.c.bf16 %v6215, %v6215
    %v6220 = vpack.c.bf16 %v6216, %v6216
    %v6221 = vpack.c.bf16 %v6217, %v6217
    %s6222 = scalar_lea.vmem %s19, 512
    %v6223 = vld [vmem:[%s6222] sm:$0xf]
    %v6224 = vld [vmem:[%s6222 + $0x4] sm:$0xf]
    %v6225 = vld [vmem:[%s6222 + $0x8] sm:$0xf]
    %v6226 = vld [vmem:[%s6222 + $0xc] sm:$0xf]
    %v6227 = vld [vmem:[%s6222 + $0x10] sm:$0xf]
    %v6228 = vld [vmem:[%s6222 + $0x14] sm:$0xf]
    %v6229 = vld [vmem:[%s6222 + $0x18] sm:$0xf]
    %v6230 = vld [vmem:[%s6222 + $0x1c] sm:$0xf]
    %v6231 = vld [vmem:[%s6222 + $0x20] sm:$0xf]
    %v6232 = vld [vmem:[%s6222 + $0x24] sm:$0xf]
    %v6233 = vld [vmem:[%s6222 + $0x28] sm:$0xf]
    %v6234 = vld [vmem:[%s6222 + $0x2c] sm:$0xf]
    %v6235 = vld [vmem:[%s6222 + $0x30] sm:$0xf]
    %v6236 = vld [vmem:[%s6222 + $0x34] sm:$0xf]
    %v6237 = vld [vmem:[%s6222 + $0x38] sm:$0xf]
    %v6238 = vld [vmem:[%s6222 + $0x3c] sm:$0xf]
    %v6239 = vld [vmem:[%s6222 + $0x40] sm:$0xf]
    %v6240 = vld [vmem:[%s6222 + $0x44] sm:$0xf]
    %v6241 = vld [vmem:[%s6222 + $0x48] sm:$0xf]
    %v6242 = vld [vmem:[%s6222 + $0x4c] sm:$0xf]
    %v6243 = vld [vmem:[%s6222 + $0x50] sm:$0xf]
    %v6244 = vld [vmem:[%s6222 + $0x54] sm:$0xf]
    %v6245 = vld [vmem:[%s6222 + $0x58] sm:$0xf]
    %v6246 = vld [vmem:[%s6222 + $0x5c] sm:$0xf]
    %v6247 = vld [vmem:[%s6222 + $0x60] sm:$0xf]
    %v6248 = vld [vmem:[%s6222 + $0x64] sm:$0xf]
    %v6249 = vld [vmem:[%s6222 + $0x68] sm:$0xf]
    %v6250 = vld [vmem:[%s6222 + $0x6c] sm:$0xf]
    %v6251 = vld [vmem:[%s6222 + $0x70] sm:$0xf]
    %v6252 = vld [vmem:[%s6222 + $0x74] sm:$0xf]
    %v6253 = vld [vmem:[%s6222 + $0x78] sm:$0xf]
    %v6254 = vld [vmem:[%s6222 + $0x7c] sm:$0xf]
    %v6255 = vld [vmem:[%s6222 + $0x80] sm:$0xf]
    %v6256 = vld [vmem:[%s6222 + $0x84] sm:$0xf]
    %v6257 = vld [vmem:[%s6222 + $0x88] sm:$0xf]
    %v6258 = vld [vmem:[%s6222 + $0x8c] sm:$0xf]
    %v6259 = vld [vmem:[%s6222 + $0x90] sm:$0xf]
    %v6260 = vld [vmem:[%s6222 + $0x94] sm:$0xf]
    %v6261 = vld [vmem:[%s6222 + $0x98] sm:$0xf]
    %v6262 = vld [vmem:[%s6222 + $0x9c] sm:$0xf]
    %v6263 = vld [vmem:[%s6222 + $0xa0] sm:$0xf]
    %v6264 = vld [vmem:[%s6222 + $0xa4] sm:$0xf]
    %v6265 = vld [vmem:[%s6222 + $0xa8] sm:$0xf]
    %v6266 = vld [vmem:[%s6222 + $0xac] sm:$0xf]
    %v6267 = vld [vmem:[%s6222 + $0xb0] sm:$0xf]
    %v6268 = vld [vmem:[%s6222 + $0xb4] sm:$0xf]
    %v6269 = vld [vmem:[%s6222 + $0xb8] sm:$0xf]
    %v6270 = vld [vmem:[%s6222 + $0xbc] sm:$0xf]
    %v6271 = vld [vmem:[%s6222 + $0xc0] sm:$0xf]
    %v6272 = vld [vmem:[%s6222 + $0xc4] sm:$0xf]
    %v6273 = vld [vmem:[%s6222 + $0xc8] sm:$0xf]
    %v6274 = vld [vmem:[%s6222 + $0xcc] sm:$0xf]
    %v6275 = vld [vmem:[%s6222 + $0xd0] sm:$0xf]
    %v6276 = vld [vmem:[%s6222 + $0xd4] sm:$0xf]
    %v6277 = vld [vmem:[%s6222 + $0xd8] sm:$0xf]
    %v6278 = vld [vmem:[%s6222 + $0xdc] sm:$0xf]
    %v6279 = vld [vmem:[%s6222 + $0xe0] sm:$0xf]
    %v6280 = vld [vmem:[%s6222 + $0xe4] sm:$0xf]
    %v6281 = vld [vmem:[%s6222 + $0xe8] sm:$0xf]
    %v6282 = vld [vmem:[%s6222 + $0xec] sm:$0xf]
    %v6283 = vld [vmem:[%s6222 + $0xf0] sm:$0xf]
    %v6284 = vld [vmem:[%s6222 + $0xf4] sm:$0xf]
    %v6285 = vld [vmem:[%s6222 + $0xf8] sm:$0xf]
    %v6286 = vld [vmem:[%s6222 + $0xfc] sm:$0xf]
    %s6287 = scalar_lea.vmem %s20, 2
    %v6288 = vld [vmem:[%s6287] sm:$0x1]
    %v6290 = vlaneseq
    %v6291 = vshrl.u32 %v6290, 7
    %v6292 = vsub.s32 0, %v6291
    %v6293 = vrot.slane %v6288, %v6292
    %v6359 = vunpack.c.l.b16 %v6223
    %v6360 = vunpack.c.l.b16 %v6224
    %v6361 = vunpack.c.l.b16 %v6225
    %v6362 = vunpack.c.l.b16 %v6226
    %v6363 = vunpack.c.l.b16 %v6227
    %v6364 = vunpack.c.l.b16 %v6228
    %v6365 = vunpack.c.l.b16 %v6229
    %v6366 = vunpack.c.l.b16 %v6230
    %v6367 = vunpack.c.l.b16 %v6231
    %v6368 = vunpack.c.l.b16 %v6232
    %v6369 = vunpack.c.l.b16 %v6233
    %v6370 = vunpack.c.l.b16 %v6234
    %v6371 = vunpack.c.l.b16 %v6235
    %v6372 = vunpack.c.l.b16 %v6236
    %v6373 = vunpack.c.l.b16 %v6237
    %v6374 = vunpack.c.l.b16 %v6238
    %v6375 = vunpack.c.l.b16 %v6239
    %v6376 = vunpack.c.l.b16 %v6240
    %v6377 = vunpack.c.l.b16 %v6241
    %v6378 = vunpack.c.l.b16 %v6242
    %v6379 = vunpack.c.l.b16 %v6243
    %v6380 = vunpack.c.l.b16 %v6244
    %v6381 = vunpack.c.l.b16 %v6245
    %v6382 = vunpack.c.l.b16 %v6246
    %v6383 = vunpack.c.l.b16 %v6247
    %v6384 = vunpack.c.l.b16 %v6248
    %v6385 = vunpack.c.l.b16 %v6249
    %v6386 = vunpack.c.l.b16 %v6250
    %v6387 = vunpack.c.l.b16 %v6251
    %v6388 = vunpack.c.l.b16 %v6252
    %v6389 = vunpack.c.l.b16 %v6253
    %v6390 = vunpack.c.l.b16 %v6254
    %v6391 = vunpack.c.l.b16 %v6255
    %v6392 = vunpack.c.l.b16 %v6256
    %v6393 = vunpack.c.l.b16 %v6257
    %v6394 = vunpack.c.l.b16 %v6258
    %v6395 = vunpack.c.l.b16 %v6259
    %v6396 = vunpack.c.l.b16 %v6260
    %v6397 = vunpack.c.l.b16 %v6261
    %v6398 = vunpack.c.l.b16 %v6262
    %v6399 = vunpack.c.l.b16 %v6263
    %v6400 = vunpack.c.l.b16 %v6264
    %v6401 = vunpack.c.l.b16 %v6265
    %v6402 = vunpack.c.l.b16 %v6266
    %v6403 = vunpack.c.l.b16 %v6267
    %v6404 = vunpack.c.l.b16 %v6268
    %v6405 = vunpack.c.l.b16 %v6269
    %v6406 = vunpack.c.l.b16 %v6270
    %v6407 = vunpack.c.l.b16 %v6271
    %v6408 = vunpack.c.l.b16 %v6272
    %v6409 = vunpack.c.l.b16 %v6273
    %v6410 = vunpack.c.l.b16 %v6274
    %v6411 = vunpack.c.l.b16 %v6275
    %v6412 = vunpack.c.l.b16 %v6276
    %v6413 = vunpack.c.l.b16 %v6277
    %v6414 = vunpack.c.l.b16 %v6278
    %v6415 = vunpack.c.l.b16 %v6279
    %v6416 = vunpack.c.l.b16 %v6280
    %v6417 = vunpack.c.l.b16 %v6281
    %v6418 = vunpack.c.l.b16 %v6282
    %v6419 = vunpack.c.l.b16 %v6283
    %v6420 = vunpack.c.l.b16 %v6284
    %v6421 = vunpack.c.l.b16 %v6285
    %v6422 = vunpack.c.l.b16 %v6286
    %v6423 = vpack.c.b16 %v6360, %v6359
    %v6424 = vpack.c.b16 %v6362, %v6361
    %v6425 = vpack.c.b16 %v6364, %v6363
    %v6426 = vpack.c.b16 %v6366, %v6365
    %v6427 = vpack.c.b16 %v6368, %v6367
    %v6428 = vpack.c.b16 %v6370, %v6369
    %v6429 = vpack.c.b16 %v6372, %v6371
    %v6430 = vpack.c.b16 %v6374, %v6373
    %v6431 = vpack.c.b16 %v6376, %v6375
    %v6432 = vpack.c.b16 %v6378, %v6377
    %v6433 = vpack.c.b16 %v6380, %v6379
    %v6434 = vpack.c.b16 %v6382, %v6381
    %v6435 = vpack.c.b16 %v6384, %v6383
    %v6436 = vpack.c.b16 %v6386, %v6385
    %v6437 = vpack.c.b16 %v6388, %v6387
    %v6438 = vpack.c.b16 %v6390, %v6389
    %v6439 = vpack.c.b16 %v6392, %v6391
    %v6440 = vpack.c.b16 %v6394, %v6393
    %v6441 = vpack.c.b16 %v6396, %v6395
    %v6442 = vpack.c.b16 %v6398, %v6397
    %v6443 = vpack.c.b16 %v6400, %v6399
    %v6444 = vpack.c.b16 %v6402, %v6401
    %v6445 = vpack.c.b16 %v6404, %v6403
    %v6446 = vpack.c.b16 %v6406, %v6405
    %v6447 = vpack.c.b16 %v6408, %v6407
    %v6448 = vpack.c.b16 %v6410, %v6409
    %v6449 = vpack.c.b16 %v6412, %v6411
    %v6450 = vpack.c.b16 %v6414, %v6413
    %v6451 = vpack.c.b16 %v6416, %v6415
    %v6452 = vpack.c.b16 %v6418, %v6417
    %v6453 = vpack.c.b16 %v6420, %v6419
    %v6454 = vpack.c.b16 %v6422, %v6421
    %6487 = vmatprep.subr.bf16.mxu0 0
    %6488 = vmatpush1.bf16.msra.mxu0 %v6423
    %6489 = vmatprep.subr.bf16.mxu0 0
    %6490 = vmatpush1.bf16.msra.mxu0 %v6424
    %6491 = vmatprep.subr.bf16.mxu0 0
    %6492 = vmatpush1.bf16.msra.mxu0 %v6425
    %6493 = vmatprep.subr.bf16.mxu0 0
    %6494 = vmatpush1.bf16.msra.mxu0 %v6426
    %6495 = vmatprep.subr.bf16.mxu0 0
    %6496 = vmatpush1.bf16.msra.mxu0 %v6427
    %6497 = vmatprep.subr.bf16.mxu0 0
    %6498 = vmatpush1.bf16.msra.mxu0 %v6428
    %6499 = vmatprep.subr.bf16.mxu0 0
    %6500 = vmatpush1.bf16.msra.mxu0 %v6429
    %6501 = vmatprep.subr.bf16.mxu0 0
    %6502 = vmatpush1.bf16.msra.mxu0 %v6430
    %6503 = vmatprep.subr.bf16.mxu0 0
    %6504 = vmatpush1.bf16.msra.mxu0 %v6431
    %6505 = vmatprep.subr.bf16.mxu0 0
    %6506 = vmatpush1.bf16.msra.mxu0 %v6432
    %6507 = vmatprep.subr.bf16.mxu0 0
    %6508 = vmatpush1.bf16.msra.mxu0 %v6433
    %6509 = vmatprep.subr.bf16.mxu0 0
    %6510 = vmatpush1.bf16.msra.mxu0 %v6434
    %6511 = vmatprep.subr.bf16.mxu0 0
    %6512 = vmatpush1.bf16.msra.mxu0 %v6435
    %6513 = vmatprep.subr.bf16.mxu0 0
    %6514 = vmatpush1.bf16.msra.mxu0 %v6436
    %6515 = vmatprep.subr.bf16.mxu0 0
    %6516 = vmatpush1.bf16.msra.mxu0 %v6437
    %6517 = vmatprep.subr.bf16.mxu0 0
    %6518 = vmatpush1.bf16.msra.mxu0 %v6438
    %6519 = vmatprep.mubr.bf16.mxu0 %v6219
    %6520 = vmatmul.mubr.bf16.gmra.mrb[0].mxu0 %v6218
    %v6521 = vpop.f32.mrb[0].mxu0
    %v6522 = vadd.f32 %v6293, %v6521
    %v6523 = vpop.f32.mrb[0].mxu0
    %v6524 = vpop.f32.mrb[0].mxu0
    %v6525 = vpop.f32.mrb[0].mxu0
    %6526 = vdwg.mxu0
    %6527 = vmatprep.subr.bf16.mxu0 0
    %6528 = vmatpush1.bf16.msra.mxu0 %v6439
    %6529 = vmatprep.subr.bf16.mxu0 0
    %6530 = vmatpush1.bf16.msra.mxu0 %v6440
    %6531 = vmatprep.subr.bf16.mxu0 0
    %6532 = vmatpush1.bf16.msra.mxu0 %v6441
    %6533 = vmatprep.subr.bf16.mxu0 0
    %6534 = vmatpush1.bf16.msra.mxu0 %v6442
    %6535 = vmatprep.subr.bf16.mxu0 0
    %6536 = vmatpush1.bf16.msra.mxu0 %v6443
    %6537 = vmatprep.subr.bf16.mxu0 0
    %6538 = vmatpush1.bf16.msra.mxu0 %v6444
    %6539 = vmatprep.subr.bf16.mxu0 0
    %6540 = vmatpush1.bf16.msra.mxu0 %v6445
    %6541 = vmatprep.subr.bf16.mxu0 0
    %6542 = vmatpush1.bf16.msra.mxu0 %v6446
    %6543 = vmatprep.subr.bf16.mxu0 0
    %6544 = vmatpush1.bf16.msra.mxu0 %v6447
    %6545 = vmatprep.subr.bf16.mxu0 0
    %6546 = vmatpush1.bf16.msra.mxu0 %v6448
    %6547 = vmatprep.subr.bf16.mxu0 0
    %6548 = vmatpush1.bf16.msra.mxu0 %v6449
    %6549 = vmatprep.subr.bf16.mxu0 0
    %6550 = vmatpush1.bf16.msra.mxu0 %v6450
    %6551 = vmatprep.subr.bf16.mxu0 0
    %6552 = vmatpush1.bf16.msra.mxu0 %v6451
    %6553 = vmatprep.subr.bf16.mxu0 0
    %6554 = vmatpush1.bf16.msra.mxu0 %v6452
    %6555 = vmatprep.subr.bf16.mxu0 0
    %6556 = vmatpush1.bf16.msra.mxu0 %v6453
    %6557 = vmatprep.subr.bf16.mxu0 0
    %6558 = vmatpush1.bf16.msra.mxu0 %v6454
    %6559 = vmatprep.mubr.bf16.mxu0 %v6221
    %6560 = vmatmul.mubr.bf16.gmra.mrb[0].mxu0 %v6220
    %v6561 = vpop.f32.mrb[0].mxu0
    %v6562 = vadd.f32 %v6522, %v6561
    %v6563 = vpop.f32.mrb[0].mxu0
    %v6564 = vpop.f32.mrb[0].mxu0
    %v6565 = vpop.f32.mrb[0].mxu0
    %6566 = vdwg.mxu0
    %v6567 = vadd.f32 %v6055, %v6562
    %s6568 = scalar_lea.vmem %s23, 2
    %v6569 = vld [vmem:[%s6568] sm:$0x1]
    %s6570 = scalar_lea.vmem %s24, 2
    %v6571 = vld [vmem:[%s6570] sm:$0x1]
    %v6572 = vsel %vm1947, %v6567, 0.0
    %6573 = vadd.xlane.f32.xlu0 %v6572
    %v6574 = vpop.xlane.xlu0 %6573
    %v6575 = vmul.f32 %v6574, %v1951
    %v6576 = vsub.f32 %v6567, %v6575
    %v6577 = vmul.f32 %v6576, %v6576
    %v6578 = vsel %vm1947, %v6577, 0.0
    %6579 = vadd.xlane.f32.xlu0 %v6578
    %v6580 = vpop.xlane.xlu0 %6579
    %v6581 = vmul.f32 %v6580, %v1951
    %v6582 = vadd.f32 %v6581, 1e-05
    %v6583 = vrsqrt.pop %v6582
    %v6584 = vmul.f32 %v6576, %v6583
    %v6586 = vlaneseq
    %v6587 = vshrl.u32 %v6586, 7
    %v6588 = vsub.s32 0, %v6587
    %v6589 = vrot.slane %v6569, %v6588
    %v6591 = vmul.f32 %v6584, %v6589
    %v6593 = vlaneseq
    %v6594 = vshrl.u32 %v6593, 7
    %v6595 = vsub.s32 0, %v6594
    %v6596 = vrot.slane %v6571, %v6595
    %v6598 = vadd.f32 %v6591, %v6596
    %s6599 = scalar_lea.vmem %s9, 216
    %v6600 = vld [vmem:[%s6599] sm:$0xff]
    %v6601 = vld [vmem:[%s6599 + $0x8] sm:$0xff]
    %v6602 = vld [vmem:[%s6599 + $0x10] sm:$0xff]
    %s6603 = scalar_lea.vmem %s13, 9
    %v6604 = vld [vmem:[%s6603] sm:$0x1]
    %v6606 = vlaneseq
    %v6607 = vshrl.u32 %v6606, 7
    %v6608 = vsub.s32 0, %v6607
    %v6609 = vrot.slane %v6604, %v6608
    %v6612 = vsel %vm489, %v6598, 0
    %6614 = vmatprep.subr.mxu0 0.0
    %6615 = vmatpush1.msra.mxu0 %v6600
    %6616 = vmatprep.subr.mxu0 0.0
    %6617 = vmatpush1.msra.mxu0 %v6601
    %6618 = vmatprep.subr.mxu0 0.0
    %6619 = vmatpush1.msra.mxu0 %v6602
    %6620 = vmatprep.subr.mxu0 0.0
    %6621 = vmatpush1.msra.mxu0 0.0
    %6622 = vmatprep.subr.mxu0 0.0
    %6623 = vmatpush1.msra.mxu0 0.0
    %6624 = vmatprep.subr.mxu0 0.0
    %6625 = vmatpush1.msra.mxu0 0.0
    %6626 = vmatprep.subr.mxu0 0.0
    %6627 = vmatpush1.msra.mxu0 0.0
    %6628 = vmatprep.subr.mxu0 0.0
    %6629 = vmatpush1.msra.mxu0 0.0
    %6630 = vmatprep.subr.mxu0 0.0
    %6631 = vmatpush1.msra.mxu0 0.0
    %6632 = vmatprep.subr.mxu0 0.0
    %6633 = vmatpush1.msra.mxu0 0.0
    %6634 = vmatprep.subr.mxu0 0.0
    %6635 = vmatpush1.msra.mxu0 0.0
    %6636 = vmatprep.subr.mxu0 0.0
    %6637 = vmatpush1.msra.mxu0 0.0
    %6638 = vmatprep.subr.mxu0 0.0
    %6639 = vmatpush1.msra.mxu0 0.0
    %6640 = vmatprep.subr.mxu0 0.0
    %6641 = vmatpush1.msra.mxu0 0.0
    %6642 = vmatprep.subr.mxu0 0.0
    %6643 = vmatpush1.msra.mxu0 0.0
    %6644 = vmatprep.subr.mxu0 0.0
    %6645 = vmatpush1.msra.mxu0 0.0
    %6646 = vmatprep.subr.mxu0 0.0
    %6647 = vmatpush1.msra.mxu0 0.0
    %6648 = vmatprep.subr.mxu0 0.0
    %6649 = vmatpush1.msra.mxu0 0.0
    %6650 = vmatprep.subr.mxu0 0.0
    %6651 = vmatpush1.msra.mxu0 0.0
    %6652 = vmatprep.subr.mxu0 0.0
    %6653 = vmatpush1.msra.mxu0 0.0
    %6654 = vmatprep.subr.mxu0 0.0
    %6655 = vmatpush1.msra.mxu0 0.0
    %6656 = vmatprep.subr.mxu0 0.0
    %6657 = vmatpush1.msra.mxu0 0.0
    %6658 = vmatprep.subr.mxu0 0.0
    %6659 = vmatpush1.msra.mxu0 0.0
    %6660 = vmatprep.subr.mxu0 0.0
    %6661 = vmatpush1.msra.mxu0 0.0
    %6662 = vmatprep.subr.mxu0 0.0
    %6663 = vmatpush1.msra.mxu0 0.0
    %6664 = vmatprep.subr.mxu0 0.0
    %6665 = vmatpush1.msra.mxu0 0.0
    %6666 = vmatprep.subr.mxu0 0.0
    %6667 = vmatpush1.msra.mxu0 0.0
    %6668 = vmatprep.subr.mxu0 0.0
    %6669 = vmatpush1.msra.mxu0 0.0
    %6670 = vmatprep.subr.mxu0 0.0
    %6671 = vmatpush1.msra.mxu0 0.0
    %6672 = vmatprep.subr.mxu0 0.0
    %6673 = vmatpush1.msra.mxu0 0.0
    %6674 = vmatprep.subr.mxu0 0.0
    %6675 = vmatpush1.msra.mxu0 0.0
    %6676 = vmatprep.subr.mxu0 0.0
    %6677 = vmatpush1.msra.mxu0 0.0
    %6678 = vmatprep.mubr.f32.mxu0 0.0
    %6679 = vmatmul.mubr.f32.gmra.mrb[0].mxu0 %v6612
    %v6680 = vpop.f32.mrb[0].mxu0
    %v6681 = vadd.f32 %v6609, %v6680
    %v6682 = vpop.f32.mrb[0].mxu0
    %6683 = vdwg.mxu0
    %s6684 = scalar_lea.vmem %s10, 216
    %v6685 = vld [vmem:[%s6684] sm:$0xff]
    %v6686 = vld [vmem:[%s6684 + $0x8] sm:$0xff]
    %v6687 = vld [vmem:[%s6684 + $0x10] sm:$0xff]
    %s6688 = scalar_lea.vmem %s14, 9
    %v6689 = vld [vmem:[%s6688] sm:$0x1]
    %v6691 = vlaneseq
    %v6692 = vshrl.u32 %v6691, 7
    %v6693 = vsub.s32 0, %v6692
    %v6694 = vrot.slane %v6689, %v6693
    %6696 = vmatprep.subr.mxu0 0.0
    %6697 = vmatpush1.msra.mxu0 %v6685
    %6698 = vmatprep.subr.mxu0 0.0
    %6699 = vmatpush1.msra.mxu0 %v6686
    %6700 = vmatprep.subr.mxu0 0.0
    %6701 = vmatpush1.msra.mxu0 %v6687
    %6702 = vmatprep.subr.mxu0 0.0
    %6703 = vmatpush1.msra.mxu0 0.0
    %6704 = vmatprep.subr.mxu0 0.0
    %6705 = vmatpush1.msra.mxu0 0.0
    %6706 = vmatprep.subr.mxu0 0.0
    %6707 = vmatpush1.msra.mxu0 0.0
    %6708 = vmatprep.subr.mxu0 0.0
    %6709 = vmatpush1.msra.mxu0 0.0
    %6710 = vmatprep.subr.mxu0 0.0
    %6711 = vmatpush1.msra.mxu0 0.0
    %6712 = vmatprep.subr.mxu0 0.0
    %6713 = vmatpush1.msra.mxu0 0.0
    %6714 = vmatprep.subr.mxu0 0.0
    %6715 = vmatpush1.msra.mxu0 0.0
    %6716 = vmatprep.subr.mxu0 0.0
    %6717 = vmatpush1.msra.mxu0 0.0
    %6718 = vmatprep.subr.mxu0 0.0
    %6719 = vmatpush1.msra.mxu0 0.0
    %6720 = vmatprep.subr.mxu0 0.0
    %6721 = vmatpush1.msra.mxu0 0.0
    %6722 = vmatprep.subr.mxu0 0.0
    %6723 = vmatpush1.msra.mxu0 0.0
    %6724 = vmatprep.subr.mxu0 0.0
    %6725 = vmatpush1.msra.mxu0 0.0
    %6726 = vmatprep.subr.mxu0 0.0
    %6727 = vmatpush1.msra.mxu0 0.0
    %6728 = vmatprep.subr.mxu0 0.0
    %6729 = vmatpush1.msra.mxu0 0.0
    %6730 = vmatprep.subr.mxu0 0.0
    %6731 = vmatpush1.msra.mxu0 0.0
    %6732 = vmatprep.subr.mxu0 0.0
    %6733 = vmatpush1.msra.mxu0 0.0
    %6734 = vmatprep.subr.mxu0 0.0
    %6735 = vmatpush1.msra.mxu0 0.0
    %6736 = vmatprep.subr.mxu0 0.0
    %6737 = vmatpush1.msra.mxu0 0.0
    %6738 = vmatprep.subr.mxu0 0.0
    %6739 = vmatpush1.msra.mxu0 0.0
    %6740 = vmatprep.subr.mxu0 0.0
    %6741 = vmatpush1.msra.mxu0 0.0
    %6742 = vmatprep.subr.mxu0 0.0
    %6743 = vmatpush1.msra.mxu0 0.0
    %6744 = vmatprep.subr.mxu0 0.0
    %6745 = vmatpush1.msra.mxu0 0.0
    %6746 = vmatprep.subr.mxu0 0.0
    %6747 = vmatpush1.msra.mxu0 0.0
    %6748 = vmatprep.subr.mxu0 0.0
    %6749 = vmatpush1.msra.mxu0 0.0
    %6750 = vmatprep.subr.mxu0 0.0
    %6751 = vmatpush1.msra.mxu0 0.0
    %6752 = vmatprep.subr.mxu0 0.0
    %6753 = vmatpush1.msra.mxu0 0.0
    %6754 = vmatprep.subr.mxu0 0.0
    %6755 = vmatpush1.msra.mxu0 0.0
    %6756 = vmatprep.subr.mxu0 0.0
    %6757 = vmatpush1.msra.mxu0 0.0
    %6758 = vmatprep.subr.mxu0 0.0
    %6759 = vmatpush1.msra.mxu0 0.0
    %6760 = vmatprep.mubr.f32.mxu0 0.0
    %6761 = vmatmul.mubr.f32.gmra.mrb[0].mxu0 %v6612
    %v6762 = vpop.f32.mrb[0].mxu0
    %v6763 = vadd.f32 %v6694, %v6762
    %v6764 = vpop.f32.mrb[0].mxu0
    %6765 = vdwg.mxu0
    %s6766 = scalar_lea.vmem %s11, 216
    %v6767 = vld [vmem:[%s6766] sm:$0xff]
    %v6768 = vld [vmem:[%s6766 + $0x8] sm:$0xff]
    %v6769 = vld [vmem:[%s6766 + $0x10] sm:$0xff]
    %s6770 = scalar_lea.vmem %s15, 9
    %v6771 = vld [vmem:[%s6770] sm:$0x1]
    %v6773 = vlaneseq
    %v6774 = vshrl.u32 %v6773, 7
    %v6775 = vsub.s32 0, %v6774
    %v6776 = vrot.slane %v6771, %v6775
    %6778 = vmatprep.subr.mxu0 0.0
    %6779 = vmatpush1.msra.mxu0 %v6767
    %6780 = vmatprep.subr.mxu0 0.0
    %6781 = vmatpush1.msra.mxu0 %v6768
    %6782 = vmatprep.subr.mxu0 0.0
    %6783 = vmatpush1.msra.mxu0 %v6769
    %6784 = vmatprep.subr.mxu0 0.0
    %6785 = vmatpush1.msra.mxu0 0.0
    %6786 = vmatprep.subr.mxu0 0.0
    %6787 = vmatpush1.msra.mxu0 0.0
    %6788 = vmatprep.subr.mxu0 0.0
    %6789 = vmatpush1.msra.mxu0 0.0
    %6790 = vmatprep.subr.mxu0 0.0
    %6791 = vmatpush1.msra.mxu0 0.0
    %6792 = vmatprep.subr.mxu0 0.0
    %6793 = vmatpush1.msra.mxu0 0.0
    %6794 = vmatprep.subr.mxu0 0.0
    %6795 = vmatpush1.msra.mxu0 0.0
    %6796 = vmatprep.subr.mxu0 0.0
    %6797 = vmatpush1.msra.mxu0 0.0
    %6798 = vmatprep.subr.mxu0 0.0
    %6799 = vmatpush1.msra.mxu0 0.0
    %6800 = vmatprep.subr.mxu0 0.0
    %6801 = vmatpush1.msra.mxu0 0.0
    %6802 = vmatprep.subr.mxu0 0.0
    %6803 = vmatpush1.msra.mxu0 0.0
    %6804 = vmatprep.subr.mxu0 0.0
    %6805 = vmatpush1.msra.mxu0 0.0
    %6806 = vmatprep.subr.mxu0 0.0
    %6807 = vmatpush1.msra.mxu0 0.0
    %6808 = vmatprep.subr.mxu0 0.0
    %6809 = vmatpush1.msra.mxu0 0.0
    %6810 = vmatprep.subr.mxu0 0.0
    %6811 = vmatpush1.msra.mxu0 0.0
    %6812 = vmatprep.subr.mxu0 0.0
    %6813 = vmatpush1.msra.mxu0 0.0
    %6814 = vmatprep.subr.mxu0 0.0
    %6815 = vmatpush1.msra.mxu0 0.0
    %6816 = vmatprep.subr.mxu0 0.0
    %6817 = vmatpush1.msra.mxu0 0.0
    %6818 = vmatprep.subr.mxu0 0.0
    %6819 = vmatpush1.msra.mxu0 0.0
    %6820 = vmatprep.subr.mxu0 0.0
    %6821 = vmatpush1.msra.mxu0 0.0
    %6822 = vmatprep.subr.mxu0 0.0
    %6823 = vmatpush1.msra.mxu0 0.0
    %6824 = vmatprep.subr.mxu0 0.0
    %6825 = vmatpush1.msra.mxu0 0.0
    %6826 = vmatprep.subr.mxu0 0.0
    %6827 = vmatpush1.msra.mxu0 0.0
    %6828 = vmatprep.subr.mxu0 0.0
    %6829 = vmatpush1.msra.mxu0 0.0
    %6830 = vmatprep.subr.mxu0 0.0
    %6831 = vmatpush1.msra.mxu0 0.0
    %6832 = vmatprep.subr.mxu0 0.0
    %6833 = vmatpush1.msra.mxu0 0.0
    %6834 = vmatprep.subr.mxu0 0.0
    %6835 = vmatpush1.msra.mxu0 0.0
    %6836 = vmatprep.subr.mxu0 0.0
    %6837 = vmatpush1.msra.mxu0 0.0
    %6838 = vmatprep.subr.mxu0 0.0
    %6839 = vmatpush1.msra.mxu0 0.0
    %6840 = vmatprep.subr.mxu0 0.0
    %6841 = vmatpush1.msra.mxu0 0.0
    %6842 = vmatprep.mubr.f32.mxu0 0.0
    %6843 = vmatmul.mubr.f32.gmra.mrb[0].mxu0 %v6612
    %v6844 = vpop.f32.mrb[0].mxu0
    %v6845 = vadd.f32 %v6776, %v6844
    %v6846 = vpop.f32.mrb[0].mxu0
    %6847 = vdwg.mxu0
    %v6849 = vsel %vm723, %v6681, 0
    %v6852 = vsel %vm723, %v6763, 0
    %6854 = vmatprep.subr.mxu0 0.0
    %6855 = vmatpush1.xpose.msra.mxu0 %v6852
    %6856 = vmatprep.subr.mxu0 0.0
    %6857 = vmatpush1.xpose.msra.mxu0 0.0
    %6858 = vmatprep.subr.mxu0 0.0
    %6859 = vmatpush1.xpose.msra.mxu0 0.0
    %6860 = vmatprep.subr.mxu0 0.0
    %6861 = vmatpush1.xpose.msra.mxu0 0.0
    %6862 = vmatprep.subr.mxu0 0.0
    %6863 = vmatpush1.xpose.msra.mxu0 0.0
    %6864 = vmatprep.subr.mxu0 0.0
    %6865 = vmatpush1.xpose.msra.mxu0 0.0
    %6866 = vmatprep.subr.mxu0 0.0
    %6867 = vmatpush1.xpose.msra.mxu0 0.0
    %6868 = vmatprep.subr.mxu0 0.0
    %6869 = vmatpush1.xpose.msra.mxu0 0.0
    %6870 = vmatprep.subr.mxu0 0.0
    %6871 = vmatpush1.xpose.msra.mxu0 0.0
    %6872 = vmatprep.subr.mxu0 0.0
    %6873 = vmatpush1.xpose.msra.mxu0 0.0
    %6874 = vmatprep.subr.mxu0 0.0
    %6875 = vmatpush1.xpose.msra.mxu0 0.0
    %6876 = vmatprep.subr.mxu0 0.0
    %6877 = vmatpush1.xpose.msra.mxu0 0.0
    %6878 = vmatprep.subr.mxu0 0.0
    %6879 = vmatpush1.xpose.msra.mxu0 0.0
    %6880 = vmatprep.subr.mxu0 0.0
    %6881 = vmatpush1.xpose.msra.mxu0 0.0
    %6882 = vmatprep.subr.mxu0 0.0
    %6883 = vmatpush1.xpose.msra.mxu0 0.0
    %6884 = vmatprep.subr.mxu0 0.0
    %6885 = vmatpush1.xpose.msra.mxu0 0.0
    %6886 = vmatprep.subr.mxu0 0.0
    %6887 = vmatpush1.xpose.msra.mxu0 0.0
    %6888 = vmatprep.subr.mxu0 0.0
    %6889 = vmatpush1.xpose.msra.mxu0 0.0
    %6890 = vmatprep.subr.mxu0 0.0
    %6891 = vmatpush1.xpose.msra.mxu0 0.0
    %6892 = vmatprep.subr.mxu0 0.0
    %6893 = vmatpush1.xpose.msra.mxu0 0.0
    %6894 = vmatprep.subr.mxu0 0.0
    %6895 = vmatpush1.xpose.msra.mxu0 0.0
    %6896 = vmatprep.subr.mxu0 0.0
    %6897 = vmatpush1.xpose.msra.mxu0 0.0
    %6898 = vmatprep.subr.mxu0 0.0
    %6899 = vmatpush1.xpose.msra.mxu0 0.0
    %6900 = vmatprep.subr.mxu0 0.0
    %6901 = vmatpush1.xpose.msra.mxu0 0.0
    %6902 = vmatprep.subr.mxu0 0.0
    %6903 = vmatpush1.xpose.msra.mxu0 0.0
    %6904 = vmatprep.subr.mxu0 0.0
    %6905 = vmatpush1.xpose.msra.mxu0 0.0
    %6906 = vmatprep.subr.mxu0 0.0
    %6907 = vmatpush1.xpose.msra.mxu0 0.0
    %6908 = vmatprep.subr.mxu0 0.0
    %6909 = vmatpush1.xpose.msra.mxu0 0.0
    %6910 = vmatprep.subr.mxu0 0.0
    %6911 = vmatpush1.xpose.msra.mxu0 0.0
    %6912 = vmatprep.subr.mxu0 0.0
    %6913 = vmatpush1.xpose.msra.mxu0 0.0
    %6914 = vmatprep.subr.mxu0 0.0
    %6915 = vmatpush1.xpose.msra.mxu0 0.0
    %6916 = vmatprep.subr.mxu0 0.0
    %6917 = vmatpush1.xpose.msra.mxu0 0.0
    %6918 = vmatprep.mubr.f32.mxu0 0.0
    %6919 = vmatmul.mubr.f32.gmra.mrb[0].mxu0 %v6849
    %v6920 = vpop.f32.mrb[0].mxu0
    %v6921 = vadd.f32 0.0, %v6920
    %v6922 = vpop.f32.mrb[0].mxu0
    %6923 = vdwg.mxu0
    %v6924 = vmul.f32 %v6921, 0.35355338
    %v6925 = vsel %vm801, %v6924, -inf
    %6926 = vmax.xlane.f32.xlu0 %v6925
    %v6927 = vpop.xlane.xlu0 %6926
    %v6928 = vsub.f32 %v6924, %v6927
    %v6929 = vmul.f32 %v6928, 1.442695
    %v6930 = vpow.pop %v6929
    %v6931 = vsel %vm801, %v6930, 0.0
    %6932 = vadd.xlane.f32.xlu0 %v6931
    %v6933 = vpop.xlane.xlu0 %6932
    %v6934 = vrcp.pop %v6933
    %v6935 = vmul.f32 %v6930, %v6934
    %v6937 = vsel %vm813, %v6935, 0
    %v6940 = vsel %vm817, %v6845, 0
    %6942 = vmatprep.subr.mxu0 0.0
    %6943 = vmatpush1.msra.mxu0 %v6940
    %6944 = vmatprep.subr.mxu0 0.0
    %6945 = vmatpush1.msra.mxu0 0.0
    %6946 = vmatprep.subr.mxu0 0.0
    %6947 = vmatpush1.msra.mxu0 0.0
    %6948 = vmatprep.subr.mxu0 0.0
    %6949 = vmatpush1.msra.mxu0 0.0
    %6950 = vmatprep.subr.mxu0 0.0
    %6951 = vmatpush1.msra.mxu0 0.0
    %6952 = vmatprep.subr.mxu0 0.0
    %6953 = vmatpush1.msra.mxu0 0.0
    %6954 = vmatprep.subr.mxu0 0.0
    %6955 = vmatpush1.msra.mxu0 0.0
    %6956 = vmatprep.subr.mxu0 0.0
    %6957 = vmatpush1.msra.mxu0 0.0
    %6958 = vmatprep.subr.mxu0 0.0
    %6959 = vmatpush1.msra.mxu0 0.0
    %6960 = vmatprep.subr.mxu0 0.0
    %6961 = vmatpush1.msra.mxu0 0.0
    %6962 = vmatprep.subr.mxu0 0.0
    %6963 = vmatpush1.msra.mxu0 0.0
    %6964 = vmatprep.subr.mxu0 0.0
    %6965 = vmatpush1.msra.mxu0 0.0
    %6966 = vmatprep.subr.mxu0 0.0
    %6967 = vmatpush1.msra.mxu0 0.0
    %6968 = vmatprep.subr.mxu0 0.0
    %6969 = vmatpush1.msra.mxu0 0.0
    %6970 = vmatprep.subr.mxu0 0.0
    %6971 = vmatpush1.msra.mxu0 0.0
    %6972 = vmatprep.subr.mxu0 0.0
    %6973 = vmatpush1.msra.mxu0 0.0
    %6974 = vmatprep.subr.mxu0 0.0
    %6975 = vmatpush1.msra.mxu0 0.0
    %6976 = vmatprep.subr.mxu0 0.0
    %6977 = vmatpush1.msra.mxu0 0.0
    %6978 = vmatprep.subr.mxu0 0.0
    %6979 = vmatpush1.msra.mxu0 0.0
    %6980 = vmatprep.subr.mxu0 0.0
    %6981 = vmatpush1.msra.mxu0 0.0
    %6982 = vmatprep.subr.mxu0 0.0
    %6983 = vmatpush1.msra.mxu0 0.0
    %6984 = vmatprep.subr.mxu0 0.0
    %6985 = vmatpush1.msra.mxu0 0.0
    %6986 = vmatprep.subr.mxu0 0.0
    %6987 = vmatpush1.msra.mxu0 0.0
    %6988 = vmatprep.subr.mxu0 0.0
    %6989 = vmatpush1.msra.mxu0 0.0
    %6990 = vmatprep.subr.mxu0 0.0
    %6991 = vmatpush1.msra.mxu0 0.0
    %6992 = vmatprep.subr.mxu0 0.0
    %6993 = vmatpush1.msra.mxu0 0.0
    %6994 = vmatprep.subr.mxu0 0.0
    %6995 = vmatpush1.msra.mxu0 0.0
    %6996 = vmatprep.subr.mxu0 0.0
    %6997 = vmatpush1.msra.mxu0 0.0
    %6998 = vmatprep.subr.mxu0 0.0
    %6999 = vmatpush1.msra.mxu0 0.0
    %7000 = vmatprep.subr.mxu0 0.0
    %7001 = vmatpush1.msra.mxu0 0.0
    %7002 = vmatprep.subr.mxu0 0.0
    %7003 = vmatpush1.msra.mxu0 0.0
    %7004 = vmatprep.subr.mxu0 0.0
    %7005 = vmatpush1.msra.mxu0 0.0
    %7006 = vmatprep.mubr.f32.mxu0 0.0
    %7007 = vmatmul.mubr.f32.gmra.mrb[0].mxu0 %v6937
    %v7008 = vpop.f32.mrb[0].mxu0
    %v7009 = vadd.f32 0.0, %v7008
    %v7010 = vpop.f32.mrb[0].mxu0
    %7011 = vdwg.mxu0
    %s7012 = scalar_lea.vmem %s12, 72
    %v7013 = vld [vmem:[%s7012] sm:$0xff]
    %s7014 = scalar_lea.vmem %s9, 240
    %v7015 = vld [vmem:[%s7014] sm:$0xff]
    %v7016 = vld [vmem:[%s7014 + $0x8] sm:$0xff]
    %v7017 = vld [vmem:[%s7014 + $0x10] sm:$0xff]
    %s7018 = scalar_lea.vmem %s13, 10
    %v7019 = vld [vmem:[%s7018] sm:$0x1]
    %v7021 = vlaneseq
    %v7022 = vshrl.u32 %v7021, 7
    %v7023 = vsub.s32 0, %v7022
    %v7024 = vrot.slane %v7019, %v7023
    %7026 = vmatprep.subr.mxu0 0.0
    %7027 = vmatpush1.msra.mxu0 %v7015
    %7028 = vmatprep.subr.mxu0 0.0
    %7029 = vmatpush1.msra.mxu0 %v7016
    %7030 = vmatprep.subr.mxu0 0.0
    %7031 = vmatpush1.msra.mxu0 %v7017
    %7032 = vmatprep.subr.mxu0 0.0
    %7033 = vmatpush1.msra.mxu0 0.0
    %7034 = vmatprep.subr.mxu0 0.0
    %7035 = vmatpush1.msra.mxu0 0.0
    %7036 = vmatprep.subr.mxu0 0.0
    %7037 = vmatpush1.msra.mxu0 0.0
    %7038 = vmatprep.subr.mxu0 0.0
    %7039 = vmatpush1.msra.mxu0 0.0
    %7040 = vmatprep.subr.mxu0 0.0
    %7041 = vmatpush1.msra.mxu0 0.0
    %7042 = vmatprep.subr.mxu0 0.0
    %7043 = vmatpush1.msra.mxu0 0.0
    %7044 = vmatprep.subr.mxu0 0.0
    %7045 = vmatpush1.msra.mxu0 0.0
    %7046 = vmatprep.subr.mxu0 0.0
    %7047 = vmatpush1.msra.mxu0 0.0
    %7048 = vmatprep.subr.mxu0 0.0
    %7049 = vmatpush1.msra.mxu0 0.0
    %7050 = vmatprep.subr.mxu0 0.0
    %7051 = vmatpush1.msra.mxu0 0.0
    %7052 = vmatprep.subr.mxu0 0.0
    %7053 = vmatpush1.msra.mxu0 0.0
    %7054 = vmatprep.subr.mxu0 0.0
    %7055 = vmatpush1.msra.mxu0 0.0
    %7056 = vmatprep.subr.mxu0 0.0
    %7057 = vmatpush1.msra.mxu0 0.0
    %7058 = vmatprep.subr.mxu0 0.0
    %7059 = vmatpush1.msra.mxu0 0.0
    %7060 = vmatprep.subr.mxu0 0.0
    %7061 = vmatpush1.msra.mxu0 0.0
    %7062 = vmatprep.subr.mxu0 0.0
    %7063 = vmatpush1.msra.mxu0 0.0
    %7064 = vmatprep.subr.mxu0 0.0
    %7065 = vmatpush1.msra.mxu0 0.0
    %7066 = vmatprep.subr.mxu0 0.0
    %7067 = vmatpush1.msra.mxu0 0.0
    %7068 = vmatprep.subr.mxu0 0.0
    %7069 = vmatpush1.msra.mxu0 0.0
    %7070 = vmatprep.subr.mxu0 0.0
    %7071 = vmatpush1.msra.mxu0 0.0
    %7072 = vmatprep.subr.mxu0 0.0
    %7073 = vmatpush1.msra.mxu0 0.0
    %7074 = vmatprep.subr.mxu0 0.0
    %7075 = vmatpush1.msra.mxu0 0.0
    %7076 = vmatprep.subr.mxu0 0.0
    %7077 = vmatpush1.msra.mxu0 0.0
    %7078 = vmatprep.subr.mxu0 0.0
    %7079 = vmatpush1.msra.mxu0 0.0
    %7080 = vmatprep.subr.mxu0 0.0
    %7081 = vmatpush1.msra.mxu0 0.0
    %7082 = vmatprep.subr.mxu0 0.0
    %7083 = vmatpush1.msra.mxu0 0.0
    %7084 = vmatprep.subr.mxu0 0.0
    %7085 = vmatpush1.msra.mxu0 0.0
    %7086 = vmatprep.subr.mxu0 0.0
    %7087 = vmatpush1.msra.mxu0 0.0
    %7088 = vmatprep.subr.mxu0 0.0
    %7089 = vmatpush1.msra.mxu0 0.0
    %7090 = vmatprep.mubr.f32.mxu0 0.0
    %7091 = vmatmul.mubr.f32.gmra.mrb[0].mxu0 %v6612
    %v7092 = vpop.f32.mrb[0].mxu0
    %v7093 = vadd.f32 %v7024, %v7092
    %v7094 = vpop.f32.mrb[0].mxu0
    %7095 = vdwg.mxu0
    %s7096 = scalar_lea.vmem %s10, 240
    %v7097 = vld [vmem:[%s7096] sm:$0xff]
    %v7098 = vld [vmem:[%s7096 + $0x8] sm:$0xff]
    %v7099 = vld [vmem:[%s7096 + $0x10] sm:$0xff]
    %s7100 = scalar_lea.vmem %s14, 10
    %v7101 = vld [vmem:[%s7100] sm:$0x1]
    %v7103 = vlaneseq
    %v7104 = vshrl.u32 %v7103, 7
    %v7105 = vsub.s32 0, %v7104
    %v7106 = vrot.slane %v7101, %v7105
    %7108 = vmatprep.subr.mxu0 0.0
    %7109 = vmatpush1.msra.mxu0 %v7097
    %7110 = vmatprep.subr.mxu0 0.0
    %7111 = vmatpush1.msra.mxu0 %v7098
    %7112 = vmatprep.subr.mxu0 0.0
    %7113 = vmatpush1.msra.mxu0 %v7099
    %7114 = vmatprep.subr.mxu0 0.0
    %7115 = vmatpush1.msra.mxu0 0.0
    %7116 = vmatprep.subr.mxu0 0.0
    %7117 = vmatpush1.msra.mxu0 0.0
    %7118 = vmatprep.subr.mxu0 0.0
    %7119 = vmatpush1.msra.mxu0 0.0
    %7120 = vmatprep.subr.mxu0 0.0
    %7121 = vmatpush1.msra.mxu0 0.0
    %7122 = vmatprep.subr.mxu0 0.0
    %7123 = vmatpush1.msra.mxu0 0.0
    %7124 = vmatprep.subr.mxu0 0.0
    %7125 = vmatpush1.msra.mxu0 0.0
    %7126 = vmatprep.subr.mxu0 0.0
    %7127 = vmatpush1.msra.mxu0 0.0
    %7128 = vmatprep.subr.mxu0 0.0
    %7129 = vmatpush1.msra.mxu0 0.0
    %7130 = vmatprep.subr.mxu0 0.0
    %7131 = vmatpush1.msra.mxu0 0.0
    %7132 = vmatprep.subr.mxu0 0.0
    %7133 = vmatpush1.msra.mxu0 0.0
    %7134 = vmatprep.subr.mxu0 0.0
    %7135 = vmatpush1.msra.mxu0 0.0
    %7136 = vmatprep.subr.mxu0 0.0
    %7137 = vmatpush1.msra.mxu0 0.0
    %7138 = vmatprep.subr.mxu0 0.0
    %7139 = vmatpush1.msra.mxu0 0.0
    %7140 = vmatprep.subr.mxu0 0.0
    %7141 = vmatpush1.msra.mxu0 0.0
    %7142 = vmatprep.subr.mxu0 0.0
    %7143 = vmatpush1.msra.mxu0 0.0
    %7144 = vmatprep.subr.mxu0 0.0
    %7145 = vmatpush1.msra.mxu0 0.0
    %7146 = vmatprep.subr.mxu0 0.0
    %7147 = vmatpush1.msra.mxu0 0.0
    %7148 = vmatprep.subr.mxu0 0.0
    %7149 = vmatpush1.msra.mxu0 0.0
    %7150 = vmatprep.subr.mxu0 0.0
    %7151 = vmatpush1.msra.mxu0 0.0
    %7152 = vmatprep.subr.mxu0 0.0
    %7153 = vmatpush1.msra.mxu0 0.0
    %7154 = vmatprep.subr.mxu0 0.0
    %7155 = vmatpush1.msra.mxu0 0.0
    %7156 = vmatprep.subr.mxu0 0.0
    %7157 = vmatpush1.msra.mxu0 0.0
    %7158 = vmatprep.subr.mxu0 0.0
    %7159 = vmatpush1.msra.mxu0 0.0
    %7160 = vmatprep.subr.mxu0 0.0
    %7161 = vmatpush1.msra.mxu0 0.0
    %7162 = vmatprep.subr.mxu0 0.0
    %7163 = vmatpush1.msra.mxu0 0.0
    %7164 = vmatprep.subr.mxu0 0.0
    %7165 = vmatpush1.msra.mxu0 0.0
    %7166 = vmatprep.subr.mxu0 0.0
    %7167 = vmatpush1.msra.mxu0 0.0
    %7168 = vmatprep.subr.mxu0 0.0
    %7169 = vmatpush1.msra.mxu0 0.0
    %7170 = vmatprep.subr.mxu0 0.0
    %7171 = vmatpush1.msra.mxu0 0.0
    %7172 = vmatprep.mubr.f32.mxu0 0.0
    %7173 = vmatmul.mubr.f32.gmra.mrb[0].mxu0 %v6612
    %v7174 = vpop.f32.mrb[0].mxu0
    %v7175 = vadd.f32 %v7106, %v7174
    %v7176 = vpop.f32.mrb[0].mxu0
    %7177 = vdwg.mxu0
    %s7178 = scalar_lea.vmem %s11, 240
    %v7179 = vld [vmem:[%s7178] sm:$0xff]
    %v7180 = vld [vmem:[%s7178 + $0x8] sm:$0xff]
    %v7181 = vld [vmem:[%s7178 + $0x10] sm:$0xff]
    %s7182 = scalar_lea.vmem %s15, 10
    %v7183 = vld [vmem:[%s7182] sm:$0x1]
    %v7185 = vlaneseq
    %v7186 = vshrl.u32 %v7185, 7
    %v7187 = vsub.s32 0, %v7186
    %v7188 = vrot.slane %v7183, %v7187
    %7190 = vmatprep.subr.mxu0 0.0
    %7191 = vmatpush1.msra.mxu0 %v7179
    %7192 = vmatprep.subr.mxu0 0.0
    %7193 = vmatpush1.msra.mxu0 %v7180
    %7194 = vmatprep.subr.mxu0 0.0
    %7195 = vmatpush1.msra.mxu0 %v7181
    %7196 = vmatprep.subr.mxu0 0.0
    %7197 = vmatpush1.msra.mxu0 0.0
    %7198 = vmatprep.subr.mxu0 0.0
    %7199 = vmatpush1.msra.mxu0 0.0
    %7200 = vmatprep.subr.mxu0 0.0
    %7201 = vmatpush1.msra.mxu0 0.0
    %7202 = vmatprep.subr.mxu0 0.0
    %7203 = vmatpush1.msra.mxu0 0.0
    %7204 = vmatprep.subr.mxu0 0.0
    %7205 = vmatpush1.msra.mxu0 0.0
    %7206 = vmatprep.subr.mxu0 0.0
    %7207 = vmatpush1.msra.mxu0 0.0
    %7208 = vmatprep.subr.mxu0 0.0
    %7209 = vmatpush1.msra.mxu0 0.0
    %7210 = vmatprep.subr.mxu0 0.0
    %7211 = vmatpush1.msra.mxu0 0.0
    %7212 = vmatprep.subr.mxu0 0.0
    %7213 = vmatpush1.msra.mxu0 0.0
    %7214 = vmatprep.subr.mxu0 0.0
    %7215 = vmatpush1.msra.mxu0 0.0
    %7216 = vmatprep.subr.mxu0 0.0
    %7217 = vmatpush1.msra.mxu0 0.0
    %7218 = vmatprep.subr.mxu0 0.0
    %7219 = vmatpush1.msra.mxu0 0.0
    %7220 = vmatprep.subr.mxu0 0.0
    %7221 = vmatpush1.msra.mxu0 0.0
    %7222 = vmatprep.subr.mxu0 0.0
    %7223 = vmatpush1.msra.mxu0 0.0
    %7224 = vmatprep.subr.mxu0 0.0
    %7225 = vmatpush1.msra.mxu0 0.0
    %7226 = vmatprep.subr.mxu0 0.0
    %7227 = vmatpush1.msra.mxu0 0.0
    %7228 = vmatprep.subr.mxu0 0.0
    %7229 = vmatpush1.msra.mxu0 0.0
    %7230 = vmatprep.subr.mxu0 0.0
    %7231 = vmatpush1.msra.mxu0 0.0
    %7232 = vmatprep.subr.mxu0 0.0
    %7233 = vmatpush1.msra.mxu0 0.0
    %7234 = vmatprep.subr.mxu0 0.0
    %7235 = vmatpush1.msra.mxu0 0.0
    %7236 = vmatprep.subr.mxu0 0.0
    %7237 = vmatpush1.msra.mxu0 0.0
    %7238 = vmatprep.subr.mxu0 0.0
    %7239 = vmatpush1.msra.mxu0 0.0
    %7240 = vmatprep.subr.mxu0 0.0
    %7241 = vmatpush1.msra.mxu0 0.0
    %7242 = vmatprep.subr.mxu0 0.0
    %7243 = vmatpush1.msra.mxu0 0.0
    %7244 = vmatprep.subr.mxu0 0.0
    %7245 = vmatpush1.msra.mxu0 0.0
    %7246 = vmatprep.subr.mxu0 0.0
    %7247 = vmatpush1.msra.mxu0 0.0
    %7248 = vmatprep.subr.mxu0 0.0
    %7249 = vmatpush1.msra.mxu0 0.0
    %7250 = vmatprep.subr.mxu0 0.0
    %7251 = vmatpush1.msra.mxu0 0.0
    %7252 = vmatprep.subr.mxu0 0.0
    %7253 = vmatpush1.msra.mxu0 0.0
    %7254 = vmatprep.mubr.f32.mxu0 0.0
    %7255 = vmatmul.mubr.f32.gmra.mrb[0].mxu0 %v6612
    %v7256 = vpop.f32.mrb[0].mxu0
    %v7257 = vadd.f32 %v7188, %v7256
    %v7258 = vpop.f32.mrb[0].mxu0
    %7259 = vdwg.mxu0
    %v7261 = vsel %vm723, %v7093, 0
    %v7264 = vsel %vm723, %v7175, 0
    %7266 = vmatprep.subr.mxu0 0.0
    %7267 = vmatpush1.xpose.msra.mxu0 %v7264
    %7268 = vmatprep.subr.mxu0 0.0
    %7269 = vmatpush1.xpose.msra.mxu0 0.0
    %7270 = vmatprep.subr.mxu0 0.0
    %7271 = vmatpush1.xpose.msra.mxu0 0.0
    %7272 = vmatprep.subr.mxu0 0.0
    %7273 = vmatpush1.xpose.msra.mxu0 0.0
    %7274 = vmatprep.subr.mxu0 0.0
    %7275 = vmatpush1.xpose.msra.mxu0 0.0
    %7276 = vmatprep.subr.mxu0 0.0
    %7277 = vmatpush1.xpose.msra.mxu0 0.0
    %7278 = vmatprep.subr.mxu0 0.0
    %7279 = vmatpush1.xpose.msra.mxu0 0.0
    %7280 = vmatprep.subr.mxu0 0.0
    %7281 = vmatpush1.xpose.msra.mxu0 0.0
    %7282 = vmatprep.subr.mxu0 0.0
    %7283 = vmatpush1.xpose.msra.mxu0 0.0
    %7284 = vmatprep.subr.mxu0 0.0
    %7285 = vmatpush1.xpose.msra.mxu0 0.0
    %7286 = vmatprep.subr.mxu0 0.0
    %7287 = vmatpush1.xpose.msra.mxu0 0.0
    %7288 = vmatprep.subr.mxu0 0.0
    %7289 = vmatpush1.xpose.msra.mxu0 0.0
    %7290 = vmatprep.subr.mxu0 0.0
    %7291 = vmatpush1.xpose.msra.mxu0 0.0
    %7292 = vmatprep.subr.mxu0 0.0
    %7293 = vmatpush1.xpose.msra.mxu0 0.0
    %7294 = vmatprep.subr.mxu0 0.0
    %7295 = vmatpush1.xpose.msra.mxu0 0.0
    %7296 = vmatprep.subr.mxu0 0.0
    %7297 = vmatpush1.xpose.msra.mxu0 0.0
    %7298 = vmatprep.subr.mxu0 0.0
    %7299 = vmatpush1.xpose.msra.mxu0 0.0
    %7300 = vmatprep.subr.mxu0 0.0
    %7301 = vmatpush1.xpose.msra.mxu0 0.0
    %7302 = vmatprep.subr.mxu0 0.0
    %7303 = vmatpush1.xpose.msra.mxu0 0.0
    %7304 = vmatprep.subr.mxu0 0.0
    %7305 = vmatpush1.xpose.msra.mxu0 0.0
    %7306 = vmatprep.subr.mxu0 0.0
    %7307 = vmatpush1.xpose.msra.mxu0 0.0
    %7308 = vmatprep.subr.mxu0 0.0
    %7309 = vmatpush1.xpose.msra.mxu0 0.0
    %7310 = vmatprep.subr.mxu0 0.0
    %7311 = vmatpush1.xpose.msra.mxu0 0.0
    %7312 = vmatprep.subr.mxu0 0.0
    %7313 = vmatpush1.xpose.msra.mxu0 0.0
    %7314 = vmatprep.subr.mxu0 0.0
    %7315 = vmatpush1.xpose.msra.mxu0 0.0
    %7316 = vmatprep.subr.mxu0 0.0
    %7317 = vmatpush1.xpose.msra.mxu0 0.0
    %7318 = vmatprep.subr.mxu0 0.0
    %7319 = vmatpush1.xpose.msra.mxu0 0.0
    %7320 = vmatprep.subr.mxu0 0.0
    %7321 = vmatpush1.xpose.msra.mxu0 0.0
    %7322 = vmatprep.subr.mxu0 0.0
    %7323 = vmatpush1.xpose.msra.mxu0 0.0
    %7324 = vmatprep.subr.mxu0 0.0
    %7325 = vmatpush1.xpose.msra.mxu0 0.0
    %7326 = vmatprep.subr.mxu0 0.0
    %7327 = vmatpush1.xpose.msra.mxu0 0.0
    %7328 = vmatprep.subr.mxu0 0.0
    %7329 = vmatpush1.xpose.msra.mxu0 0.0
    %7330 = vmatprep.mubr.f32.mxu0 0.0
    %7331 = vmatmul.mubr.f32.gmra.mrb[0].mxu0 %v7261
    %v7332 = vpop.f32.mrb[0].mxu0
    %v7333 = vadd.f32 0.0, %v7332
    %v7334 = vpop.f32.mrb[0].mxu0
    %7335 = vdwg.mxu0
    %v7336 = vmul.f32 %v7333, 0.35355338
    %v7337 = vsel %vm801, %v7336, -inf
    %7338 = vmax.xlane.f32.xlu0 %v7337
    %v7339 = vpop.xlane.xlu0 %7338
    %v7340 = vsub.f32 %v7336, %v7339
    %v7341 = vmul.f32 %v7340, 1.442695
    %v7342 = vpow.pop %v7341
    %v7343 = vsel %vm801, %v7342, 0.0
    %7344 = vadd.xlane.f32.xlu0 %v7343
    %v7345 = vpop.xlane.xlu0 %7344
    %v7346 = vrcp.pop %v7345
    %v7347 = vmul.f32 %v7342, %v7346
    %v7349 = vsel %vm813, %v7347, 0
    %v7352 = vsel %vm817, %v7257, 0
    %7354 = vmatprep.subr.mxu0 0.0
    %7355 = vmatpush1.msra.mxu0 %v7352
    %7356 = vmatprep.subr.mxu0 0.0
    %7357 = vmatpush1.msra.mxu0 0.0
    %7358 = vmatprep.subr.mxu0 0.0
    %7359 = vmatpush1.msra.mxu0 0.0
    %7360 = vmatprep.subr.mxu0 0.0
    %7361 = vmatpush1.msra.mxu0 0.0
    %7362 = vmatprep.subr.mxu0 0.0
    %7363 = vmatpush1.msra.mxu0 0.0
    %7364 = vmatprep.subr.mxu0 0.0
    %7365 = vmatpush1.msra.mxu0 0.0
    %7366 = vmatprep.subr.mxu0 0.0
    %7367 = vmatpush1.msra.mxu0 0.0
    %7368 = vmatprep.subr.mxu0 0.0
    %7369 = vmatpush1.msra.mxu0 0.0
    %7370 = vmatprep.subr.mxu0 0.0
    %7371 = vmatpush1.msra.mxu0 0.0
    %7372 = vmatprep.subr.mxu0 0.0
    %7373 = vmatpush1.msra.mxu0 0.0
    %7374 = vmatprep.subr.mxu0 0.0
    %7375 = vmatpush1.msra.mxu0 0.0
    %7376 = vmatprep.subr.mxu0 0.0
    %7377 = vmatpush1.msra.mxu0 0.0
    %7378 = vmatprep.subr.mxu0 0.0
    %7379 = vmatpush1.msra.mxu0 0.0
    %7380 = vmatprep.subr.mxu0 0.0
    %7381 = vmatpush1.msra.mxu0 0.0
    %7382 = vmatprep.subr.mxu0 0.0
    %7383 = vmatpush1.msra.mxu0 0.0
    %7384 = vmatprep.subr.mxu0 0.0
    %7385 = vmatpush1.msra.mxu0 0.0
    %7386 = vmatprep.subr.mxu0 0.0
    %7387 = vmatpush1.msra.mxu0 0.0
    %7388 = vmatprep.subr.mxu0 0.0
    %7389 = vmatpush1.msra.mxu0 0.0
    %7390 = vmatprep.subr.mxu0 0.0
    %7391 = vmatpush1.msra.mxu0 0.0
    %7392 = vmatprep.subr.mxu0 0.0
    %7393 = vmatpush1.msra.mxu0 0.0
    %7394 = vmatprep.subr.mxu0 0.0
    %7395 = vmatpush1.msra.mxu0 0.0
    %7396 = vmatprep.subr.mxu0 0.0
    %7397 = vmatpush1.msra.mxu0 0.0
    %7398 = vmatprep.subr.mxu0 0.0
    %7399 = vmatpush1.msra.mxu0 0.0
    %7400 = vmatprep.subr.mxu0 0.0
    %7401 = vmatpush1.msra.mxu0 0.0
    %7402 = vmatprep.subr.mxu0 0.0
    %7403 = vmatpush1.msra.mxu0 0.0
    %7404 = vmatprep.subr.mxu0 0.0
    %7405 = vmatpush1.msra.mxu0 0.0
    %7406 = vmatprep.subr.mxu0 0.0
    %7407 = vmatpush1.msra.mxu0 0.0
    %7408 = vmatprep.subr.mxu0 0.0
    %7409 = vmatpush1.msra.mxu0 0.0
    %7410 = vmatprep.subr.mxu0 0.0
    %7411 = vmatpush1.msra.mxu0 0.0
    %7412 = vmatprep.subr.mxu0 0.0
    %7413 = vmatpush1.msra.mxu0 0.0
    %7414 = vmatprep.subr.mxu0 0.0
    %7415 = vmatpush1.msra.mxu0 0.0
    %7416 = vmatprep.subr.mxu0 0.0
    %7417 = vmatpush1.msra.mxu0 0.0
    %7418 = vmatprep.mubr.f32.mxu0 0.0
    %7419 = vmatmul.mubr.f32.gmra.mrb[0].mxu0 %v7349
    %v7420 = vpop.f32.mrb[0].mxu0
    %v7421 = vadd.f32 0.0, %v7420
    %v7422 = vpop.f32.mrb[0].mxu0
    %7423 = vdwg.mxu0
    %s7424 = scalar_lea.vmem %s12, 80
    %v7425 = vld [vmem:[%s7424] sm:$0xff]
    %v7427 = vsel %vm723, %v7421, 0
    %7429 = vmatprep.subr.mxu0 0.0
    %7430 = vmatpush1.msra.mxu0 %v7425
    %7431 = vmatprep.subr.mxu0 0.0
    %7432 = vmatpush1.msra.mxu0 0.0
    %7433 = vmatprep.subr.mxu0 0.0
    %7434 = vmatpush1.msra.mxu0 0.0
    %7435 = vmatprep.subr.mxu0 0.0
    %7436 = vmatpush1.msra.mxu0 0.0
    %7437 = vmatprep.subr.mxu0 0.0
    %7438 = vmatpush1.msra.mxu0 0.0
    %7439 = vmatprep.subr.mxu0 0.0
    %7440 = vmatpush1.msra.mxu0 0.0
    %7441 = vmatprep.subr.mxu0 0.0
    %7442 = vmatpush1.msra.mxu0 0.0
    %7443 = vmatprep.subr.mxu0 0.0
    %7444 = vmatpush1.msra.mxu0 0.0
    %7445 = vmatprep.subr.mxu0 0.0
    %7446 = vmatpush1.msra.mxu0 0.0
    %7447 = vmatprep.subr.mxu0 0.0
    %7448 = vmatpush1.msra.mxu0 0.0
    %7449 = vmatprep.subr.mxu0 0.0
    %7450 = vmatpush1.msra.mxu0 0.0
    %7451 = vmatprep.subr.mxu0 0.0
    %7452 = vmatpush1.msra.mxu0 0.0
    %7453 = vmatprep.subr.mxu0 0.0
    %7454 = vmatpush1.msra.mxu0 0.0
    %7455 = vmatprep.subr.mxu0 0.0
    %7456 = vmatpush1.msra.mxu0 0.0
    %7457 = vmatprep.subr.mxu0 0.0
    %7458 = vmatpush1.msra.mxu0 0.0
    %7459 = vmatprep.subr.mxu0 0.0
    %7460 = vmatpush1.msra.mxu0 0.0
    %7461 = vmatprep.subr.mxu0 0.0
    %7462 = vmatpush1.msra.mxu0 0.0
    %7463 = vmatprep.subr.mxu0 0.0
    %7464 = vmatpush1.msra.mxu0 0.0
    %7465 = vmatprep.subr.mxu0 0.0
    %7466 = vmatpush1.msra.mxu0 0.0
    %7467 = vmatprep.subr.mxu0 0.0
    %7468 = vmatpush1.msra.mxu0 0.0
    %7469 = vmatprep.subr.mxu0 0.0
    %7470 = vmatpush1.msra.mxu0 0.0
    %7471 = vmatprep.subr.mxu0 0.0
    %7472 = vmatpush1.msra.mxu0 0.0
    %7473 = vmatprep.subr.mxu0 0.0
    %7474 = vmatpush1.msra.mxu0 0.0
    %7475 = vmatprep.subr.mxu0 0.0
    %7476 = vmatpush1.msra.mxu0 0.0
    %7477 = vmatprep.subr.mxu0 0.0
    %7478 = vmatpush1.msra.mxu0 0.0
    %7479 = vmatprep.subr.mxu0 0.0
    %7480 = vmatpush1.msra.mxu0 0.0
    %7481 = vmatprep.subr.mxu0 0.0
    %7482 = vmatpush1.msra.mxu0 0.0
    %7483 = vmatprep.subr.mxu0 0.0
    %7484 = vmatpush1.msra.mxu0 0.0
    %7485 = vmatprep.subr.mxu0 0.0
    %7486 = vmatpush1.msra.mxu0 0.0
    %7487 = vmatprep.subr.mxu0 0.0
    %7488 = vmatpush1.msra.mxu0 0.0
    %7489 = vmatprep.subr.mxu0 0.0
    %7490 = vmatpush1.msra.mxu0 0.0
    %7491 = vmatprep.subr.mxu0 0.0
    %7492 = vmatpush1.msra.mxu0 0.0
    %7493 = vmatprep.mubr.f32.mxu0 0.0
    %7494 = vmatmul.mubr.f32.gmra.mrb[0].mxu0 %v7427
    %v7495 = vpop.f32.mrb[0].mxu0
    %v7496 = vadd.f32 0.0, %v7495
    %v7497 = vpop.f32.mrb[0].mxu0
    %7498 = vdwg.mxu0
    %v7500 = vsel %vm723, %v7009, 0
    %7502 = vmatprep.subr.mxu0 0.0
    %7503 = vmatpush1.msra.mxu0 %v7013
    %7504 = vmatprep.subr.mxu0 0.0
    %7505 = vmatpush1.msra.mxu0 0.0
    %7506 = vmatprep.subr.mxu0 0.0
    %7507 = vmatpush1.msra.mxu0 0.0
    %7508 = vmatprep.subr.mxu0 0.0
    %7509 = vmatpush1.msra.mxu0 0.0
    %7510 = vmatprep.subr.mxu0 0.0
    %7511 = vmatpush1.msra.mxu0 0.0
    %7512 = vmatprep.subr.mxu0 0.0
    %7513 = vmatpush1.msra.mxu0 0.0
    %7514 = vmatprep.subr.mxu0 0.0
    %7515 = vmatpush1.msra.mxu0 0.0
    %7516 = vmatprep.subr.mxu0 0.0
    %7517 = vmatpush1.msra.mxu0 0.0
    %7518 = vmatprep.subr.mxu0 0.0
    %7519 = vmatpush1.msra.mxu0 0.0
    %7520 = vmatprep.subr.mxu0 0.0
    %7521 = vmatpush1.msra.mxu0 0.0
    %7522 = vmatprep.subr.mxu0 0.0
    %7523 = vmatpush1.msra.mxu0 0.0
    %7524 = vmatprep.subr.mxu0 0.0
    %7525 = vmatpush1.msra.mxu0 0.0
    %7526 = vmatprep.subr.mxu0 0.0
    %7527 = vmatpush1.msra.mxu0 0.0
    %7528 = vmatprep.subr.mxu0 0.0
    %7529 = vmatpush1.msra.mxu0 0.0
    %7530 = vmatprep.subr.mxu0 0.0
    %7531 = vmatpush1.msra.mxu0 0.0
    %7532 = vmatprep.subr.mxu0 0.0
    %7533 = vmatpush1.msra.mxu0 0.0
    %7534 = vmatprep.subr.mxu0 0.0
    %7535 = vmatpush1.msra.mxu0 0.0
    %7536 = vmatprep.subr.mxu0 0.0
    %7537 = vmatpush1.msra.mxu0 0.0
    %7538 = vmatprep.subr.mxu0 0.0
    %7539 = vmatpush1.msra.mxu0 0.0
    %7540 = vmatprep.subr.mxu0 0.0
    %7541 = vmatpush1.msra.mxu0 0.0
    %7542 = vmatprep.subr.mxu0 0.0
    %7543 = vmatpush1.msra.mxu0 0.0
    %7544 = vmatprep.subr.mxu0 0.0
    %7545 = vmatpush1.msra.mxu0 0.0
    %7546 = vmatprep.subr.mxu0 0.0
    %7547 = vmatpush1.msra.mxu0 0.0
    %7548 = vmatprep.subr.mxu0 0.0
    %7549 = vmatpush1.msra.mxu0 0.0
    %7550 = vmatprep.subr.mxu0 0.0
    %7551 = vmatpush1.msra.mxu0 0.0
    %7552 = vmatprep.subr.mxu0 0.0
    %7553 = vmatpush1.msra.mxu0 0.0
    %7554 = vmatprep.subr.mxu0 0.0
    %7555 = vmatpush1.msra.mxu0 0.0
    %7556 = vmatprep.subr.mxu0 0.0
    %7557 = vmatpush1.msra.mxu0 0.0
    %7558 = vmatprep.subr.mxu0 0.0
    %7559 = vmatpush1.msra.mxu0 0.0
    %7560 = vmatprep.subr.mxu0 0.0
    %7561 = vmatpush1.msra.mxu0 0.0
    %7562 = vmatprep.subr.mxu0 0.0
    %7563 = vmatpush1.msra.mxu0 0.0
    %7564 = vmatprep.subr.mxu0 0.0
    %7565 = vmatpush1.msra.mxu0 0.0
    %7566 = vmatprep.mubr.f32.mxu0 0.0
    %7567 = vmatmul.mubr.f32.gmra.mrb[0].mxu0 %v7500
    %v7568 = vpop.f32.mrb[0].mxu0
    %v7569 = vadd.f32 %v7496, %v7568
    %v7570 = vpop.f32.mrb[0].mxu0
    %7571 = vdwg.mxu0
    %s7572 = scalar_lea.vmem %s9, 264
    %v7573 = vld [vmem:[%s7572] sm:$0xff]
    %v7574 = vld [vmem:[%s7572 + $0x8] sm:$0xff]
    %v7575 = vld [vmem:[%s7572 + $0x10] sm:$0xff]
    %s7576 = scalar_lea.vmem %s13, 11
    %v7577 = vld [vmem:[%s7576] sm:$0x1]
    %v7579 = vlaneseq
    %v7580 = vshrl.u32 %v7579, 7
    %v7581 = vsub.s32 0, %v7580
    %v7582 = vrot.slane %v7577, %v7581
    %7584 = vmatprep.subr.mxu0 0.0
    %7585 = vmatpush1.msra.mxu0 %v7573
    %7586 = vmatprep.subr.mxu0 0.0
    %7587 = vmatpush1.msra.mxu0 %v7574
    %7588 = vmatprep.subr.mxu0 0.0
    %7589 = vmatpush1.msra.mxu0 %v7575
    %7590 = vmatprep.subr.mxu0 0.0
    %7591 = vmatpush1.msra.mxu0 0.0
    %7592 = vmatprep.subr.mxu0 0.0
    %7593 = vmatpush1.msra.mxu0 0.0
    %7594 = vmatprep.subr.mxu0 0.0
    %7595 = vmatpush1.msra.mxu0 0.0
    %7596 = vmatprep.subr.mxu0 0.0
    %7597 = vmatpush1.msra.mxu0 0.0
    %7598 = vmatprep.subr.mxu0 0.0
    %7599 = vmatpush1.msra.mxu0 0.0
    %7600 = vmatprep.subr.mxu0 0.0
    %7601 = vmatpush1.msra.mxu0 0.0
    %7602 = vmatprep.subr.mxu0 0.0
    %7603 = vmatpush1.msra.mxu0 0.0
    %7604 = vmatprep.subr.mxu0 0.0
    %7605 = vmatpush1.msra.mxu0 0.0
    %7606 = vmatprep.subr.mxu0 0.0
    %7607 = vmatpush1.msra.mxu0 0.0
    %7608 = vmatprep.subr.mxu0 0.0
    %7609 = vmatpush1.msra.mxu0 0.0
    %7610 = vmatprep.subr.mxu0 0.0
    %7611 = vmatpush1.msra.mxu0 0.0
    %7612 = vmatprep.subr.mxu0 0.0
    %7613 = vmatpush1.msra.mxu0 0.0
    %7614 = vmatprep.subr.mxu0 0.0
    %7615 = vmatpush1.msra.mxu0 0.0
    %7616 = vmatprep.subr.mxu0 0.0
    %7617 = vmatpush1.msra.mxu0 0.0
    %7618 = vmatprep.subr.mxu0 0.0
    %7619 = vmatpush1.msra.mxu0 0.0
    %7620 = vmatprep.subr.mxu0 0.0
    %7621 = vmatpush1.msra.mxu0 0.0
    %7622 = vmatprep.subr.mxu0 0.0
    %7623 = vmatpush1.msra.mxu0 0.0
    %7624 = vmatprep.subr.mxu0 0.0
    %7625 = vmatpush1.msra.mxu0 0.0
    %7626 = vmatprep.subr.mxu0 0.0
    %7627 = vmatpush1.msra.mxu0 0.0
    %7628 = vmatprep.subr.mxu0 0.0
    %7629 = vmatpush1.msra.mxu0 0.0
    %7630 = vmatprep.subr.mxu0 0.0
    %7631 = vmatpush1.msra.mxu0 0.0
    %7632 = vmatprep.subr.mxu0 0.0
    %7633 = vmatpush1.msra.mxu0 0.0
    %7634 = vmatprep.subr.mxu0 0.0
    %7635 = vmatpush1.msra.mxu0 0.0
    %7636 = vmatprep.subr.mxu0 0.0
    %7637 = vmatpush1.msra.mxu0 0.0
    %7638 = vmatprep.subr.mxu0 0.0
    %7639 = vmatpush1.msra.mxu0 0.0
    %7640 = vmatprep.subr.mxu0 0.0
    %7641 = vmatpush1.msra.mxu0 0.0
    %7642 = vmatprep.subr.mxu0 0.0
    %7643 = vmatpush1.msra.mxu0 0.0
    %7644 = vmatprep.subr.mxu0 0.0
    %7645 = vmatpush1.msra.mxu0 0.0
    %7646 = vmatprep.subr.mxu0 0.0
    %7647 = vmatpush1.msra.mxu0 0.0
    %7648 = vmatprep.mubr.f32.mxu0 0.0
    %7649 = vmatmul.mubr.f32.gmra.mrb[0].mxu0 %v6612
    %v7650 = vpop.f32.mrb[0].mxu0
    %v7651 = vadd.f32 %v7582, %v7650
    %v7652 = vpop.f32.mrb[0].mxu0
    %7653 = vdwg.mxu0
    %s7654 = scalar_lea.vmem %s10, 264
    %v7655 = vld [vmem:[%s7654] sm:$0xff]
    %v7656 = vld [vmem:[%s7654 + $0x8] sm:$0xff]
    %v7657 = vld [vmem:[%s7654 + $0x10] sm:$0xff]
    %s7658 = scalar_lea.vmem %s14, 11
    %v7659 = vld [vmem:[%s7658] sm:$0x1]
    %v7661 = vlaneseq
    %v7662 = vshrl.u32 %v7661, 7
    %v7663 = vsub.s32 0, %v7662
    %v7664 = vrot.slane %v7659, %v7663
    %7666 = vmatprep.subr.mxu0 0.0
    %7667 = vmatpush1.msra.mxu0 %v7655
    %7668 = vmatprep.subr.mxu0 0.0
    %7669 = vmatpush1.msra.mxu0 %v7656
    %7670 = vmatprep.subr.mxu0 0.0
    %7671 = vmatpush1.msra.mxu0 %v7657
    %7672 = vmatprep.subr.mxu0 0.0
    %7673 = vmatpush1.msra.mxu0 0.0
    %7674 = vmatprep.subr.mxu0 0.0
    %7675 = vmatpush1.msra.mxu0 0.0
    %7676 = vmatprep.subr.mxu0 0.0
    %7677 = vmatpush1.msra.mxu0 0.0
    %7678 = vmatprep.subr.mxu0 0.0
    %7679 = vmatpush1.msra.mxu0 0.0
    %7680 = vmatprep.subr.mxu0 0.0
    %7681 = vmatpush1.msra.mxu0 0.0
    %7682 = vmatprep.subr.mxu0 0.0
    %7683 = vmatpush1.msra.mxu0 0.0
    %7684 = vmatprep.subr.mxu0 0.0
    %7685 = vmatpush1.msra.mxu0 0.0
    %7686 = vmatprep.subr.mxu0 0.0
    %7687 = vmatpush1.msra.mxu0 0.0
    %7688 = vmatprep.subr.mxu0 0.0
    %7689 = vmatpush1.msra.mxu0 0.0
    %7690 = vmatprep.subr.mxu0 0.0
    %7691 = vmatpush1.msra.mxu0 0.0
    %7692 = vmatprep.subr.mxu0 0.0
    %7693 = vmatpush1.msra.mxu0 0.0
    %7694 = vmatprep.subr.mxu0 0.0
    %7695 = vmatpush1.msra.mxu0 0.0
    %7696 = vmatprep.subr.mxu0 0.0
    %7697 = vmatpush1.msra.mxu0 0.0
    %7698 = vmatprep.subr.mxu0 0.0
    %7699 = vmatpush1.msra.mxu0 0.0
    %7700 = vmatprep.subr.mxu0 0.0
    %7701 = vmatpush1.msra.mxu0 0.0
    %7702 = vmatprep.subr.mxu0 0.0
    %7703 = vmatpush1.msra.mxu0 0.0
    %7704 = vmatprep.subr.mxu0 0.0
    %7705 = vmatpush1.msra.mxu0 0.0
    %7706 = vmatprep.subr.mxu0 0.0
    %7707 = vmatpush1.msra.mxu0 0.0
    %7708 = vmatprep.subr.mxu0 0.0
    %7709 = vmatpush1.msra.mxu0 0.0
    %7710 = vmatprep.subr.mxu0 0.0
    %7711 = vmatpush1.msra.mxu0 0.0
    %7712 = vmatprep.subr.mxu0 0.0
    %7713 = vmatpush1.msra.mxu0 0.0
    %7714 = vmatprep.subr.mxu0 0.0
    %7715 = vmatpush1.msra.mxu0 0.0
    %7716 = vmatprep.subr.mxu0 0.0
    %7717 = vmatpush1.msra.mxu0 0.0
    %7718 = vmatprep.subr.mxu0 0.0
    %7719 = vmatpush1.msra.mxu0 0.0
    %7720 = vmatprep.subr.mxu0 0.0
    %7721 = vmatpush1.msra.mxu0 0.0
    %7722 = vmatprep.subr.mxu0 0.0
    %7723 = vmatpush1.msra.mxu0 0.0
    %7724 = vmatprep.subr.mxu0 0.0
    %7725 = vmatpush1.msra.mxu0 0.0
    %7726 = vmatprep.subr.mxu0 0.0
    %7727 = vmatpush1.msra.mxu0 0.0
    %7728 = vmatprep.subr.mxu0 0.0
    %7729 = vmatpush1.msra.mxu0 0.0
    %7730 = vmatprep.mubr.f32.mxu0 0.0
    %7731 = vmatmul.mubr.f32.gmra.mrb[0].mxu0 %v6612
    %v7732 = vpop.f32.mrb[0].mxu0
    %v7733 = vadd.f32 %v7664, %v7732
    %v7734 = vpop.f32.mrb[0].mxu0
    %7735 = vdwg.mxu0
    %s7736 = scalar_lea.vmem %s11, 264
    %v7737 = vld [vmem:[%s7736] sm:$0xff]
    %v7738 = vld [vmem:[%s7736 + $0x8] sm:$0xff]
    %v7739 = vld [vmem:[%s7736 + $0x10] sm:$0xff]
    %s7740 = scalar_lea.vmem %s15, 11
    %v7741 = vld [vmem:[%s7740] sm:$0x1]
    %v7743 = vlaneseq
    %v7744 = vshrl.u32 %v7743, 7
    %v7745 = vsub.s32 0, %v7744
    %v7746 = vrot.slane %v7741, %v7745
    %7748 = vmatprep.subr.mxu0 0.0
    %7749 = vmatpush1.msra.mxu0 %v7737
    %7750 = vmatprep.subr.mxu0 0.0
    %7751 = vmatpush1.msra.mxu0 %v7738
    %7752 = vmatprep.subr.mxu0 0.0
    %7753 = vmatpush1.msra.mxu0 %v7739
    %7754 = vmatprep.subr.mxu0 0.0
    %7755 = vmatpush1.msra.mxu0 0.0
    %7756 = vmatprep.subr.mxu0 0.0
    %7757 = vmatpush1.msra.mxu0 0.0
    %7758 = vmatprep.subr.mxu0 0.0
    %7759 = vmatpush1.msra.mxu0 0.0
    %7760 = vmatprep.subr.mxu0 0.0
    %7761 = vmatpush1.msra.mxu0 0.0
    %7762 = vmatprep.subr.mxu0 0.0
    %7763 = vmatpush1.msra.mxu0 0.0
    %7764 = vmatprep.subr.mxu0 0.0
    %7765 = vmatpush1.msra.mxu0 0.0
    %7766 = vmatprep.subr.mxu0 0.0
    %7767 = vmatpush1.msra.mxu0 0.0
    %7768 = vmatprep.subr.mxu0 0.0
    %7769 = vmatpush1.msra.mxu0 0.0
    %7770 = vmatprep.subr.mxu0 0.0
    %7771 = vmatpush1.msra.mxu0 0.0
    %7772 = vmatprep.subr.mxu0 0.0
    %7773 = vmatpush1.msra.mxu0 0.0
    %7774 = vmatprep.subr.mxu0 0.0
    %7775 = vmatpush1.msra.mxu0 0.0
    %7776 = vmatprep.subr.mxu0 0.0
    %7777 = vmatpush1.msra.mxu0 0.0
    %7778 = vmatprep.subr.mxu0 0.0
    %7779 = vmatpush1.msra.mxu0 0.0
    %7780 = vmatprep.subr.mxu0 0.0
    %7781 = vmatpush1.msra.mxu0 0.0
    %7782 = vmatprep.subr.mxu0 0.0
    %7783 = vmatpush1.msra.mxu0 0.0
    %7784 = vmatprep.subr.mxu0 0.0
    %7785 = vmatpush1.msra.mxu0 0.0
    %7786 = vmatprep.subr.mxu0 0.0
    %7787 = vmatpush1.msra.mxu0 0.0
    %7788 = vmatprep.subr.mxu0 0.0
    %7789 = vmatpush1.msra.mxu0 0.0
    %7790 = vmatprep.subr.mxu0 0.0
    %7791 = vmatpush1.msra.mxu0 0.0
    %7792 = vmatprep.subr.mxu0 0.0
    %7793 = vmatpush1.msra.mxu0 0.0
    %7794 = vmatprep.subr.mxu0 0.0
    %7795 = vmatpush1.msra.mxu0 0.0
    %7796 = vmatprep.subr.mxu0 0.0
    %7797 = vmatpush1.msra.mxu0 0.0
    %7798 = vmatprep.subr.mxu0 0.0
    %7799 = vmatpush1.msra.mxu0 0.0
    %7800 = vmatprep.subr.mxu0 0.0
    %7801 = vmatpush1.msra.mxu0 0.0
    %7802 = vmatprep.subr.mxu0 0.0
    %7803 = vmatpush1.msra.mxu0 0.0
    %7804 = vmatprep.subr.mxu0 0.0
    %7805 = vmatpush1.msra.mxu0 0.0
    %7806 = vmatprep.subr.mxu0 0.0
    %7807 = vmatpush1.msra.mxu0 0.0
    %7808 = vmatprep.subr.mxu0 0.0
    %7809 = vmatpush1.msra.mxu0 0.0
    %7810 = vmatprep.subr.mxu0 0.0
    %7811 = vmatpush1.msra.mxu0 0.0
    %7812 = vmatprep.mubr.f32.mxu0 0.0
    %7813 = vmatmul.mubr.f32.gmra.mrb[0].mxu0 %v6612
    %v7814 = vpop.f32.mrb[0].mxu0
    %v7815 = vadd.f32 %v7746, %v7814
    %v7816 = vpop.f32.mrb[0].mxu0
    %7817 = vdwg.mxu0
    %v7819 = vsel %vm723, %v7651, 0
    %v7822 = vsel %vm723, %v7733, 0
    %7824 = vmatprep.subr.mxu0 0.0
    %7825 = vmatpush1.xpose.msra.mxu0 %v7822
    %7826 = vmatprep.subr.mxu0 0.0
    %7827 = vmatpush1.xpose.msra.mxu0 0.0
    %7828 = vmatprep.subr.mxu0 0.0
    %7829 = vmatpush1.xpose.msra.mxu0 0.0
    %7830 = vmatprep.subr.mxu0 0.0
    %7831 = vmatpush1.xpose.msra.mxu0 0.0
    %7832 = vmatprep.subr.mxu0 0.0
    %7833 = vmatpush1.xpose.msra.mxu0 0.0
    %7834 = vmatprep.subr.mxu0 0.0
    %7835 = vmatpush1.xpose.msra.mxu0 0.0
    %7836 = vmatprep.subr.mxu0 0.0
    %7837 = vmatpush1.xpose.msra.mxu0 0.0
    %7838 = vmatprep.subr.mxu0 0.0
    %7839 = vmatpush1.xpose.msra.mxu0 0.0
    %7840 = vmatprep.subr.mxu0 0.0
    %7841 = vmatpush1.xpose.msra.mxu0 0.0
    %7842 = vmatprep.subr.mxu0 0.0
    %7843 = vmatpush1.xpose.msra.mxu0 0.0
    %7844 = vmatprep.subr.mxu0 0.0
    %7845 = vmatpush1.xpose.msra.mxu0 0.0
    %7846 = vmatprep.subr.mxu0 0.0
    %7847 = vmatpush1.xpose.msra.mxu0 0.0
    %7848 = vmatprep.subr.mxu0 0.0
    %7849 = vmatpush1.xpose.msra.mxu0 0.0
    %7850 = vmatprep.subr.mxu0 0.0
    %7851 = vmatpush1.xpose.msra.mxu0 0.0
    %7852 = vmatprep.subr.mxu0 0.0
    %7853 = vmatpush1.xpose.msra.mxu0 0.0
    %7854 = vmatprep.subr.mxu0 0.0
    %7855 = vmatpush1.xpose.msra.mxu0 0.0
    %7856 = vmatprep.subr.mxu0 0.0
    %7857 = vmatpush1.xpose.msra.mxu0 0.0
    %7858 = vmatprep.subr.mxu0 0.0
    %7859 = vmatpush1.xpose.msra.mxu0 0.0
    %7860 = vmatprep.subr.mxu0 0.0
    %7861 = vmatpush1.xpose.msra.mxu0 0.0
    %7862 = vmatprep.subr.mxu0 0.0
    %7863 = vmatpush1.xpose.msra.mxu0 0.0
    %7864 = vmatprep.subr.mxu0 0.0
    %7865 = vmatpush1.xpose.msra.mxu0 0.0
    %7866 = vmatprep.subr.mxu0 0.0
    %7867 = vmatpush1.xpose.msra.mxu0 0.0
    %7868 = vmatprep.subr.mxu0 0.0
    %7869 = vmatpush1.xpose.msra.mxu0 0.0
    %7870 = vmatprep.subr.mxu0 0.0
    %7871 = vmatpush1.xpose.msra.mxu0 0.0
    %7872 = vmatprep.subr.mxu0 0.0
    %7873 = vmatpush1.xpose.msra.mxu0 0.0
    %7874 = vmatprep.subr.mxu0 0.0
    %7875 = vmatpush1.xpose.msra.mxu0 0.0
    %7876 = vmatprep.subr.mxu0 0.0
    %7877 = vmatpush1.xpose.msra.mxu0 0.0
    %7878 = vmatprep.subr.mxu0 0.0
    %7879 = vmatpush1.xpose.msra.mxu0 0.0
    %7880 = vmatprep.subr.mxu0 0.0
    %7881 = vmatpush1.xpose.msra.mxu0 0.0
    %7882 = vmatprep.subr.mxu0 0.0
    %7883 = vmatpush1.xpose.msra.mxu0 0.0
    %7884 = vmatprep.subr.mxu0 0.0
    %7885 = vmatpush1.xpose.msra.mxu0 0.0
    %7886 = vmatprep.subr.mxu0 0.0
    %7887 = vmatpush1.xpose.msra.mxu0 0.0
    %7888 = vmatprep.mubr.f32.mxu0 0.0
    %7889 = vmatmul.mubr.f32.gmra.mrb[0].mxu0 %v7819
    %v7890 = vpop.f32.mrb[0].mxu0
    %v7891 = vadd.f32 0.0, %v7890
    %v7892 = vpop.f32.mrb[0].mxu0
    %7893 = vdwg.mxu0
    %v7894 = vmul.f32 %v7891, 0.35355338
    %v7895 = vsel %vm801, %v7894, -inf
    %7896 = vmax.xlane.f32.xlu0 %v7895
    %v7897 = vpop.xlane.xlu0 %7896
    %v7898 = vsub.f32 %v7894, %v7897
    %v7899 = vmul.f32 %v7898, 1.442695
    %v7900 = vpow.pop %v7899
    %v7901 = vsel %vm801, %v7900, 0.0
    %7902 = vadd.xlane.f32.xlu0 %v7901
    %v7903 = vpop.xlane.xlu0 %7902
    %v7904 = vrcp.pop %v7903
    %v7905 = vmul.f32 %v7900, %v7904
    %v7907 = vsel %vm813, %v7905, 0
    %v7910 = vsel %vm817, %v7815, 0
    %7912 = vmatprep.subr.mxu0 0.0
    %7913 = vmatpush1.msra.mxu0 %v7910
    %7914 = vmatprep.subr.mxu0 0.0
    %7915 = vmatpush1.msra.mxu0 0.0
    %7916 = vmatprep.subr.mxu0 0.0
    %7917 = vmatpush1.msra.mxu0 0.0
    %7918 = vmatprep.subr.mxu0 0.0
    %7919 = vmatpush1.msra.mxu0 0.0
    %7920 = vmatprep.subr.mxu0 0.0
    %7921 = vmatpush1.msra.mxu0 0.0
    %7922 = vmatprep.subr.mxu0 0.0
    %7923 = vmatpush1.msra.mxu0 0.0
    %7924 = vmatprep.subr.mxu0 0.0
    %7925 = vmatpush1.msra.mxu0 0.0
    %7926 = vmatprep.subr.mxu0 0.0
    %7927 = vmatpush1.msra.mxu0 0.0
    %7928 = vmatprep.subr.mxu0 0.0
    %7929 = vmatpush1.msra.mxu0 0.0
    %7930 = vmatprep.subr.mxu0 0.0
    %7931 = vmatpush1.msra.mxu0 0.0
    %7932 = vmatprep.subr.mxu0 0.0
    %7933 = vmatpush1.msra.mxu0 0.0
    %7934 = vmatprep.subr.mxu0 0.0
    %7935 = vmatpush1.msra.mxu0 0.0
    %7936 = vmatprep.subr.mxu0 0.0
    %7937 = vmatpush1.msra.mxu0 0.0
    %7938 = vmatprep.subr.mxu0 0.0
    %7939 = vmatpush1.msra.mxu0 0.0
    %7940 = vmatprep.subr.mxu0 0.0
    %7941 = vmatpush1.msra.mxu0 0.0
    %7942 = vmatprep.subr.mxu0 0.0
    %7943 = vmatpush1.msra.mxu0 0.0
    %7944 = vmatprep.subr.mxu0 0.0
    %7945 = vmatpush1.msra.mxu0 0.0
    %7946 = vmatprep.subr.mxu0 0.0
    %7947 = vmatpush1.msra.mxu0 0.0
    %7948 = vmatprep.subr.mxu0 0.0
    %7949 = vmatpush1.msra.mxu0 0.0
    %7950 = vmatprep.subr.mxu0 0.0
    %7951 = vmatpush1.msra.mxu0 0.0
    %7952 = vmatprep.subr.mxu0 0.0
    %7953 = vmatpush1.msra.mxu0 0.0
    %7954 = vmatprep.subr.mxu0 0.0
    %7955 = vmatpush1.msra.mxu0 0.0
    %7956 = vmatprep.subr.mxu0 0.0
    %7957 = vmatpush1.msra.mxu0 0.0
    %7958 = vmatprep.subr.mxu0 0.0
    %7959 = vmatpush1.msra.mxu0 0.0
    %7960 = vmatprep.subr.mxu0 0.0
    %7961 = vmatpush1.msra.mxu0 0.0
    %7962 = vmatprep.subr.mxu0 0.0
    %7963 = vmatpush1.msra.mxu0 0.0
    %7964 = vmatprep.subr.mxu0 0.0
    %7965 = vmatpush1.msra.mxu0 0.0
    %7966 = vmatprep.subr.mxu0 0.0
    %7967 = vmatpush1.msra.mxu0 0.0
    %7968 = vmatprep.subr.mxu0 0.0
    %7969 = vmatpush1.msra.mxu0 0.0
    %7970 = vmatprep.subr.mxu0 0.0
    %7971 = vmatpush1.msra.mxu0 0.0
    %7972 = vmatprep.subr.mxu0 0.0
    %7973 = vmatpush1.msra.mxu0 0.0
    %7974 = vmatprep.subr.mxu0 0.0
    %7975 = vmatpush1.msra.mxu0 0.0
    %7976 = vmatprep.mubr.f32.mxu0 0.0
    %7977 = vmatmul.mubr.f32.gmra.mrb[0].mxu0 %v7907
    %v7978 = vpop.f32.mrb[0].mxu0
    %v7979 = vadd.f32 0.0, %v7978
    %v7980 = vpop.f32.mrb[0].mxu0
    %7981 = vdwg.mxu0
    %s7982 = scalar_lea.vmem %s12, 88
    %v7983 = vld [vmem:[%s7982] sm:$0xff]
    %v7985 = vsel %vm723, %v7979, 0
    %7987 = vmatprep.subr.mxu0 0.0
    %7988 = vmatpush1.msra.mxu0 %v7983
    %7989 = vmatprep.subr.mxu0 0.0
    %7990 = vmatpush1.msra.mxu0 0.0
    %7991 = vmatprep.subr.mxu0 0.0
    %7992 = vmatpush1.msra.mxu0 0.0
    %7993 = vmatprep.subr.mxu0 0.0
    %7994 = vmatpush1.msra.mxu0 0.0
    %7995 = vmatprep.subr.mxu0 0.0
    %7996 = vmatpush1.msra.mxu0 0.0
    %7997 = vmatprep.subr.mxu0 0.0
    %7998 = vmatpush1.msra.mxu0 0.0
    %7999 = vmatprep.subr.mxu0 0.0
    %8000 = vmatpush1.msra.mxu0 0.0
    %8001 = vmatprep.subr.mxu0 0.0
    %8002 = vmatpush1.msra.mxu0 0.0
    %8003 = vmatprep.subr.mxu0 0.0
    %8004 = vmatpush1.msra.mxu0 0.0
    %8005 = vmatprep.subr.mxu0 0.0
    %8006 = vmatpush1.msra.mxu0 0.0
    %8007 = vmatprep.subr.mxu0 0.0
    %8008 = vmatpush1.msra.mxu0 0.0
    %8009 = vmatprep.subr.mxu0 0.0
    %8010 = vmatpush1.msra.mxu0 0.0
    %8011 = vmatprep.subr.mxu0 0.0
    %8012 = vmatpush1.msra.mxu0 0.0
    %8013 = vmatprep.subr.mxu0 0.0
    %8014 = vmatpush1.msra.mxu0 0.0
    %8015 = vmatprep.subr.mxu0 0.0
    %8016 = vmatpush1.msra.mxu0 0.0
    %8017 = vmatprep.subr.mxu0 0.0
    %8018 = vmatpush1.msra.mxu0 0.0
    %8019 = vmatprep.subr.mxu0 0.0
    %8020 = vmatpush1.msra.mxu0 0.0
    %8021 = vmatprep.subr.mxu0 0.0
    %8022 = vmatpush1.msra.mxu0 0.0
    %8023 = vmatprep.subr.mxu0 0.0
    %8024 = vmatpush1.msra.mxu0 0.0
    %8025 = vmatprep.subr.mxu0 0.0
    %8026 = vmatpush1.msra.mxu0 0.0
    %8027 = vmatprep.subr.mxu0 0.0
    %8028 = vmatpush1.msra.mxu0 0.0
    %8029 = vmatprep.subr.mxu0 0.0
    %8030 = vmatpush1.msra.mxu0 0.0
    %8031 = vmatprep.subr.mxu0 0.0
    %8032 = vmatpush1.msra.mxu0 0.0
    %8033 = vmatprep.subr.mxu0 0.0
    %8034 = vmatpush1.msra.mxu0 0.0
    %8035 = vmatprep.subr.mxu0 0.0
    %8036 = vmatpush1.msra.mxu0 0.0
    %8037 = vmatprep.subr.mxu0 0.0
    %8038 = vmatpush1.msra.mxu0 0.0
    %8039 = vmatprep.subr.mxu0 0.0
    %8040 = vmatpush1.msra.mxu0 0.0
    %8041 = vmatprep.subr.mxu0 0.0
    %8042 = vmatpush1.msra.mxu0 0.0
    %8043 = vmatprep.subr.mxu0 0.0
    %8044 = vmatpush1.msra.mxu0 0.0
    %8045 = vmatprep.subr.mxu0 0.0
    %8046 = vmatpush1.msra.mxu0 0.0
    %8047 = vmatprep.subr.mxu0 0.0
    %8048 = vmatpush1.msra.mxu0 0.0
    %8049 = vmatprep.subr.mxu0 0.0
    %8050 = vmatpush1.msra.mxu0 0.0
    %8051 = vmatprep.mubr.f32.mxu0 0.0
    %8052 = vmatmul.mubr.f32.gmra.mrb[0].mxu0 %v7985
    %v8053 = vpop.f32.mrb[0].mxu0
    %v8054 = vadd.f32 0.0, %v8053
    %v8055 = vpop.f32.mrb[0].mxu0
    %8056 = vdwg.mxu0
    %v8057 = vadd.f32 %v7569, %v8054
    %v8058 = vadd.f32 %v6598, %v8057
    %s8059 = scalar_lea.vmem %s16, 3
    %v8060 = vld [vmem:[%s8059] sm:$0x1]
    %v8062 = vlaneseq
    %v8063 = vshrl.u32 %v8062, 7
    %v8064 = vsub.s32 0, %v8063
    %v8065 = vrot.slane %v8060, %v8064
    %v8067 = vadd.f32 %v8058, %v8065
    %s8068 = scalar_lea.vmem %s21, 3
    %v8069 = vld [vmem:[%s8068] sm:$0x1]
    %s8070 = scalar_lea.vmem %s22, 3
    %v8071 = vld [vmem:[%s8070] sm:$0x1]
    %v8072 = vsel %vm1947, %v8067, 0.0
    %8073 = vadd.xlane.f32.xlu0 %v8072
    %v8074 = vpop.xlane.xlu0 %8073
    %v8075 = vmul.f32 %v8074, %v1951
    %v8076 = vsub.f32 %v8067, %v8075
    %v8077 = vmul.f32 %v8076, %v8076
    %v8078 = vsel %vm1947, %v8077, 0.0
    %8079 = vadd.xlane.f32.xlu0 %v8078
    %v8080 = vpop.xlane.xlu0 %8079
    %v8081 = vmul.f32 %v8080, %v1951
    %v8082 = vadd.f32 %v8081, 1e-05
    %v8083 = vrsqrt.pop %v8082
    %v8084 = vmul.f32 %v8076, %v8083
    %v8086 = vlaneseq
    %v8087 = vshrl.u32 %v8086, 7
    %v8088 = vsub.s32 0, %v8087
    %v8089 = vrot.slane %v8069, %v8088
    %v8091 = vmul.f32 %v8084, %v8089
    %v8093 = vlaneseq
    %v8094 = vshrl.u32 %v8093, 7
    %v8095 = vsub.s32 0, %v8094
    %v8096 = vrot.slane %v8071, %v8095
    %v8098 = vadd.f32 %v8091, %v8096
    %v8099 = vpack.c.bf16 %v8098, %v8098
    %s8100 = scalar_lea.vmem %s17, 144
    %v8101 = vld [vmem:[%s8100] sm:$0xff]
    %v8102 = vld [vmem:[%s8100 + $0x8] sm:$0xff]
    %v8103 = vld [vmem:[%s8100 + $0x10] sm:$0xff]
    %v8104 = vld [vmem:[%s8100 + $0x18] sm:$0xff]
    %v8105 = vld [vmem:[%s8100 + $0x20] sm:$0xff]
    %v8106 = vld [vmem:[%s8100 + $0x28] sm:$0xff]
    %s8107 = scalar_lea.vmem %s18, 12
    %v8108 = vld [vmem:[%s8107] sm:$0xf]
    %v8110 = vlaneseq
    %v8111 = vshrl.u32 %v8110, 7
    %v8112 = vsub.s32 0, %v8111
    %v8113 = vrot.slane %v8108, %v8112
    %v8114 = vlaneseq
    %v8115 = vshrl.u32 %v8114, 7
    %v8116 = vsub.s32 1, %v8115
    %v8117 = vrot.slane %v8108, %v8116
    %v8118 = vlaneseq
    %v8119 = vshrl.u32 %v8118, 7
    %v8120 = vsub.s32 2, %v8119
    %v8121 = vrot.slane %v8108, %v8120
    %v8122 = vlaneseq
    %v8123 = vshrl.u32 %v8122, 7
    %v8124 = vsub.s32 3, %v8123
    %v8125 = vrot.slane %v8108, %v8124
    %v8136 = vunpack.c.l.b16 %v8101
    %v8137 = vunpack.c.h.b16 %v8101
    %v8138 = vunpack.c.l.b16 %v8102
    %v8139 = vunpack.c.h.b16 %v8102
    %v8140 = vunpack.c.l.b16 %v8103
    %v8141 = vunpack.c.h.b16 %v8103
    %v8142 = vunpack.c.l.b16 %v8104
    %v8143 = vunpack.c.h.b16 %v8104
    %v8144 = vunpack.c.l.b16 %v8105
    %v8145 = vunpack.c.h.b16 %v8105
    %v8146 = vunpack.c.l.b16 %v8106
    %v8147 = vunpack.c.h.b16 %v8106
    %v8148 = vpack.c.b16 %v8140, %v8136
    %v8149 = vpack.c.b16 %v8141, %v8137
    %v8150 = vpack.c.b16 %v8142, %v8138
    %v8151 = vpack.c.b16 %v8143, %v8139
    %v8152 = vpack.c.b16 %v8144, %v8144
    %v8153 = vpack.c.b16 %v8145, %v8145
    %v8154 = vpack.c.b16 %v8146, %v8146
    %v8155 = vpack.c.b16 %v8147, %v8147
    %v8161 = vsel %vm489, %v8099, 0
    %v8164 = vsel %vm223, %v8152, 0
    %v8167 = vsel %vm223, %v8153, 0
    %v8170 = vsel %vm223, %v8154, 0
    %v8173 = vsel %vm223, %v8155, 0
    %8175 = vmatprep.subr.bf16.mxu0 %v8149
    %8176 = vmatpush1.bf16.msra.mxu0 %v8148
    %8177 = vmatprep.subr.bf16.mxu0 %v8167
    %8178 = vmatpush1.bf16.msra.mxu0 %v8164
    %8179 = vmatprep.subr.bf16.mxu0 0
    %8180 = vmatpush1.bf16.msra.mxu0 0
    %8181 = vmatprep.subr.bf16.mxu0 0
    %8182 = vmatpush1.bf16.msra.mxu0 0
    %8183 = vmatprep.subr.bf16.mxu0 0
    %8184 = vmatpush1.bf16.msra.mxu0 0
    %8185 = vmatprep.subr.bf16.mxu0 0
    %8186 = vmatpush1.bf16.msra.mxu0 0
    %8187 = vmatprep.subr.bf16.mxu0 0
    %8188 = vmatpush1.bf16.msra.mxu0 0
    %8189 = vmatprep.subr.bf16.mxu0 0
    %8190 = vmatpush1.bf16.msra.mxu0 0
    %8191 = vmatprep.subr.bf16.mxu0 0
    %8192 = vmatpush1.bf16.msra.mxu0 0
    %8193 = vmatprep.subr.bf16.mxu0 0
    %8194 = vmatpush1.bf16.msra.mxu0 0
    %8195 = vmatprep.subr.bf16.mxu0 0
    %8196 = vmatpush1.bf16.msra.mxu0 0
    %8197 = vmatprep.subr.bf16.mxu0 0
    %8198 = vmatpush1.bf16.msra.mxu0 0
    %8199 = vmatprep.subr.bf16.mxu0 0
    %8200 = vmatpush1.bf16.msra.mxu0 0
    %8201 = vmatprep.subr.bf16.mxu0 0
    %8202 = vmatpush1.bf16.msra.mxu0 0
    %8203 = vmatprep.subr.bf16.mxu0 0
    %8204 = vmatpush1.bf16.msra.mxu0 0
    %8205 = vmatprep.subr.bf16.mxu0 0
    %8206 = vmatpush1.bf16.msra.mxu0 0
    %8207 = vmatprep.mubr.bf16.mxu0 0
    %8208 = vmatmul.mubr.bf16.gmra.mrb[0].mxu0 %v8161
    %v8209 = vpop.f32.mrb[0].mxu0
    %v8210 = vadd.f32 %v8113, %v8209
    %v8211 = vpop.f32.mrb[0].mxu0
    %v8212 = vadd.f32 %v8117, %v8211
    %v8213 = vpop.f32.mrb[0].mxu0
    %v8214 = vpop.f32.mrb[0].mxu0
    %8215 = vdwg.mxu0
    %8216 = vmatprep.subr.bf16.mxu0 %v8151
    %8217 = vmatpush1.bf16.msra.mxu0 %v8150
    %8218 = vmatprep.subr.bf16.mxu0 %v8173
    %8219 = vmatpush1.bf16.msra.mxu0 %v8170
    %8220 = vmatprep.subr.bf16.mxu0 0
    %8221 = vmatpush1.bf16.msra.mxu0 0
    %8222 = vmatprep.subr.bf16.mxu0 0
    %8223 = vmatpush1.bf16.msra.mxu0 0
    %8224 = vmatprep.subr.bf16.mxu0 0
    %8225 = vmatpush1.bf16.msra.mxu0 0
    %8226 = vmatprep.subr.bf16.mxu0 0
    %8227 = vmatpush1.bf16.msra.mxu0 0
    %8228 = vmatprep.subr.bf16.mxu0 0
    %8229 = vmatpush1.bf16.msra.mxu0 0
    %8230 = vmatprep.subr.bf16.mxu0 0
    %8231 = vmatpush1.bf16.msra.mxu0 0
    %8232 = vmatprep.subr.bf16.mxu0 0
    %8233 = vmatpush1.bf16.msra.mxu0 0
    %8234 = vmatprep.subr.bf16.mxu0 0
    %8235 = vmatpush1.bf16.msra.mxu0 0
    %8236 = vmatprep.subr.bf16.mxu0 0
    %8237 = vmatpush1.bf16.msra.mxu0 0
    %8238 = vmatprep.subr.bf16.mxu0 0
    %8239 = vmatpush1.bf16.msra.mxu0 0
    %8240 = vmatprep.subr.bf16.mxu0 0
    %8241 = vmatpush1.bf16.msra.mxu0 0
    %8242 = vmatprep.subr.bf16.mxu0 0
    %8243 = vmatpush1.bf16.msra.mxu0 0
    %8244 = vmatprep.subr.bf16.mxu0 0
    %8245 = vmatpush1.bf16.msra.mxu0 0
    %8246 = vmatprep.subr.bf16.mxu0 0
    %8247 = vmatpush1.bf16.msra.mxu0 0
    %8248 = vmatprep.mubr.bf16.mxu0 0
    %8249 = vmatmul.mubr.bf16.gmra.mrb[0].mxu0 %v8161
    %v8250 = vpop.f32.mrb[0].mxu0
    %v8251 = vadd.f32 %v8121, %v8250
    %v8252 = vpop.f32.mrb[0].mxu0
    %v8253 = vadd.f32 %v8125, %v8252
    %v8254 = vpop.f32.mrb[0].mxu0
    %v8255 = vpop.f32.mrb[0].mxu0
    %8256 = vdwg.mxu0
    %v8257 = vmax.f32 %v8210, 0.0
    %v8258 = vmax.f32 %v8212, 0.0
    %v8259 = vmax.f32 %v8251, 0.0
    %v8260 = vmax.f32 %v8253, 0.0
    %v8261 = vpack.c.bf16 %v8257, %v8257
    %v8262 = vpack.c.bf16 %v8258, %v8258
    %v8263 = vpack.c.bf16 %v8259, %v8259
    %v8264 = vpack.c.bf16 %v8260, %v8260
    %s8265 = scalar_lea.vmem %s19, 768
    %v8266 = vld [vmem:[%s8265] sm:$0xf]
    %v8267 = vld [vmem:[%s8265 + $0x4] sm:$0xf]
    %v8268 = vld [vmem:[%s8265 + $0x8] sm:$0xf]
    %v8269 = vld [vmem:[%s8265 + $0xc] sm:$0xf]
    %v8270 = vld [vmem:[%s8265 + $0x10] sm:$0xf]
    %v8271 = vld [vmem:[%s8265 + $0x14] sm:$0xf]
    %v8272 = vld [vmem:[%s8265 + $0x18] sm:$0xf]
    %v8273 = vld [vmem:[%s8265 + $0x1c] sm:$0xf]
    %v8274 = vld [vmem:[%s8265 + $0x20] sm:$0xf]
    %v8275 = vld [vmem:[%s8265 + $0x24] sm:$0xf]
    %v8276 = vld [vmem:[%s8265 + $0x28] sm:$0xf]
    %v8277 = vld [vmem:[%s8265 + $0x2c] sm:$0xf]
    %v8278 = vld [vmem:[%s8265 + $0x30] sm:$0xf]
    %v8279 = vld [vmem:[%s8265 + $0x34] sm:$0xf]
    %v8280 = vld [vmem:[%s8265 + $0x38] sm:$0xf]
    %v8281 = vld [vmem:[%s8265 + $0x3c] sm:$0xf]
    %v8282 = vld [vmem:[%s8265 + $0x40] sm:$0xf]
    %v8283 = vld [vmem:[%s8265 + $0x44] sm:$0xf]
    %v8284 = vld [vmem:[%s8265 + $0x48] sm:$0xf]
    %v8285 = vld [vmem:[%s8265 + $0x4c] sm:$0xf]
    %v8286 = vld [vmem:[%s8265 + $0x50] sm:$0xf]
    %v8287 = vld [vmem:[%s8265 + $0x54] sm:$0xf]
    %v8288 = vld [vmem:[%s8265 + $0x58] sm:$0xf]
    %v8289 = vld [vmem:[%s8265 + $0x5c] sm:$0xf]
    %v8290 = vld [vmem:[%s8265 + $0x60] sm:$0xf]
    %v8291 = vld [vmem:[%s8265 + $0x64] sm:$0xf]
    %v8292 = vld [vmem:[%s8265 + $0x68] sm:$0xf]
    %v8293 = vld [vmem:[%s8265 + $0x6c] sm:$0xf]
    %v8294 = vld [vmem:[%s8265 + $0x70] sm:$0xf]
    %v8295 = vld [vmem:[%s8265 + $0x74] sm:$0xf]
    %v8296 = vld [vmem:[%s8265 + $0x78] sm:$0xf]
    %v8297 = vld [vmem:[%s8265 + $0x7c] sm:$0xf]
    %v8298 = vld [vmem:[%s8265 + $0x80] sm:$0xf]
    %v8299 = vld [vmem:[%s8265 + $0x84] sm:$0xf]
    %v8300 = vld [vmem:[%s8265 + $0x88] sm:$0xf]
    %v8301 = vld [vmem:[%s8265 + $0x8c] sm:$0xf]
    %v8302 = vld [vmem:[%s8265 + $0x90] sm:$0xf]
    %v8303 = vld [vmem:[%s8265 + $0x94] sm:$0xf]
    %v8304 = vld [vmem:[%s8265 + $0x98] sm:$0xf]
    %v8305 = vld [vmem:[%s8265 + $0x9c] sm:$0xf]
    %v8306 = vld [vmem:[%s8265 + $0xa0] sm:$0xf]
    %v8307 = vld [vmem:[%s8265 + $0xa4] sm:$0xf]
    %v8308 = vld [vmem:[%s8265 + $0xa8] sm:$0xf]
    %v8309 = vld [vmem:[%s8265 + $0xac] sm:$0xf]
    %v8310 = vld [vmem:[%s8265 + $0xb0] sm:$0xf]
    %v8311 = vld [vmem:[%s8265 + $0xb4] sm:$0xf]
    %v8312 = vld [vmem:[%s8265 + $0xb8] sm:$0xf]
    %v8313 = vld [vmem:[%s8265 + $0xbc] sm:$0xf]
    %v8314 = vld [vmem:[%s8265 + $0xc0] sm:$0xf]
    %v8315 = vld [vmem:[%s8265 + $0xc4] sm:$0xf]
    %v8316 = vld [vmem:[%s8265 + $0xc8] sm:$0xf]
    %v8317 = vld [vmem:[%s8265 + $0xcc] sm:$0xf]
    %v8318 = vld [vmem:[%s8265 + $0xd0] sm:$0xf]
    %v8319 = vld [vmem:[%s8265 + $0xd4] sm:$0xf]
    %v8320 = vld [vmem:[%s8265 + $0xd8] sm:$0xf]
    %v8321 = vld [vmem:[%s8265 + $0xdc] sm:$0xf]
    %v8322 = vld [vmem:[%s8265 + $0xe0] sm:$0xf]
    %v8323 = vld [vmem:[%s8265 + $0xe4] sm:$0xf]
    %v8324 = vld [vmem:[%s8265 + $0xe8] sm:$0xf]
    %v8325 = vld [vmem:[%s8265 + $0xec] sm:$0xf]
    %v8326 = vld [vmem:[%s8265 + $0xf0] sm:$0xf]
    %v8327 = vld [vmem:[%s8265 + $0xf4] sm:$0xf]
    %v8328 = vld [vmem:[%s8265 + $0xf8] sm:$0xf]
    %v8329 = vld [vmem:[%s8265 + $0xfc] sm:$0xf]
    %s8330 = scalar_lea.vmem %s20, 3
    %v8331 = vld [vmem:[%s8330] sm:$0x1]
    %v8333 = vlaneseq
    %v8334 = vshrl.u32 %v8333, 7
    %v8335 = vsub.s32 0, %v8334
    %v8336 = vrot.slane %v8331, %v8335
    %v8402 = vunpack.c.l.b16 %v8266
    %v8403 = vunpack.c.l.b16 %v8267
    %v8404 = vunpack.c.l.b16 %v8268
    %v8405 = vunpack.c.l.b16 %v8269
    %v8406 = vunpack.c.l.b16 %v8270
    %v8407 = vunpack.c.l.b16 %v8271
    %v8408 = vunpack.c.l.b16 %v8272
    %v8409 = vunpack.c.l.b16 %v8273
    %v8410 = vunpack.c.l.b16 %v8274
    %v8411 = vunpack.c.l.b16 %v8275
    %v8412 = vunpack.c.l.b16 %v8276
    %v8413 = vunpack.c.l.b16 %v8277
    %v8414 = vunpack.c.l.b16 %v8278
    %v8415 = vunpack.c.l.b16 %v8279
    %v8416 = vunpack.c.l.b16 %v8280
    %v8417 = vunpack.c.l.b16 %v8281
    %v8418 = vunpack.c.l.b16 %v8282
    %v8419 = vunpack.c.l.b16 %v8283
    %v8420 = vunpack.c.l.b16 %v8284
    %v8421 = vunpack.c.l.b16 %v8285
    %v8422 = vunpack.c.l.b16 %v8286
    %v8423 = vunpack.c.l.b16 %v8287
    %v8424 = vunpack.c.l.b16 %v8288
    %v8425 = vunpack.c.l.b16 %v8289
    %v8426 = vunpack.c.l.b16 %v8290
    %v8427 = vunpack.c.l.b16 %v8291
    %v8428 = vunpack.c.l.b16 %v8292
    %v8429 = vunpack.c.l.b16 %v8293
    %v8430 = vunpack.c.l.b16 %v8294
    %v8431 = vunpack.c.l.b16 %v8295
    %v8432 = vunpack.c.l.b16 %v8296
    %v8433 = vunpack.c.l.b16 %v8297
    %v8434 = vunpack.c.l.b16 %v8298
    %v8435 = vunpack.c.l.b16 %v8299
    %v8436 = vunpack.c.l.b16 %v8300
    %v8437 = vunpack.c.l.b16 %v8301
    %v8438 = vunpack.c.l.b16 %v8302
    %v8439 = vunpack.c.l.b16 %v8303
    %v8440 = vunpack.c.l.b16 %v8304
    %v8441 = vunpack.c.l.b16 %v8305
    %v8442 = vunpack.c.l.b16 %v8306
    %v8443 = vunpack.c.l.b16 %v8307
    %v8444 = vunpack.c.l.b16 %v8308
    %v8445 = vunpack.c.l.b16 %v8309
    %v8446 = vunpack.c.l.b16 %v8310
    %v8447 = vunpack.c.l.b16 %v8311
    %v8448 = vunpack.c.l.b16 %v8312
    %v8449 = vunpack.c.l.b16 %v8313
    %v8450 = vunpack.c.l.b16 %v8314
    %v8451 = vunpack.c.l.b16 %v8315
    %v8452 = vunpack.c.l.b16 %v8316
    %v8453 = vunpack.c.l.b16 %v8317
    %v8454 = vunpack.c.l.b16 %v8318
    %v8455 = vunpack.c.l.b16 %v8319
    %v8456 = vunpack.c.l.b16 %v8320
    %v8457 = vunpack.c.l.b16 %v8321
    %v8458 = vunpack.c.l.b16 %v8322
    %v8459 = vunpack.c.l.b16 %v8323
    %v8460 = vunpack.c.l.b16 %v8324
    %v8461 = vunpack.c.l.b16 %v8325
    %v8462 = vunpack.c.l.b16 %v8326
    %v8463 = vunpack.c.l.b16 %v8327
    %v8464 = vunpack.c.l.b16 %v8328
    %v8465 = vunpack.c.l.b16 %v8329
    %v8466 = vpack.c.b16 %v8403, %v8402
    %v8467 = vpack.c.b16 %v8405, %v8404
    %v8468 = vpack.c.b16 %v8407, %v8406
    %v8469 = vpack.c.b16 %v8409, %v8408
    %v8470 = vpack.c.b16 %v8411, %v8410
    %v8471 = vpack.c.b16 %v8413, %v8412
    %v8472 = vpack.c.b16 %v8415, %v8414
    %v8473 = vpack.c.b16 %v8417, %v8416
    %v8474 = vpack.c.b16 %v8419, %v8418
    %v8475 = vpack.c.b16 %v8421, %v8420
    %v8476 = vpack.c.b16 %v8423, %v8422
    %v8477 = vpack.c.b16 %v8425, %v8424
    %v8478 = vpack.c.b16 %v8427, %v8426
    %v8479 = vpack.c.b16 %v8429, %v8428
    %v8480 = vpack.c.b16 %v8431, %v8430
    %v8481 = vpack.c.b16 %v8433, %v8432
    %v8482 = vpack.c.b16 %v8435, %v8434
    %v8483 = vpack.c.b16 %v8437, %v8436
    %v8484 = vpack.c.b16 %v8439, %v8438
    %v8485 = vpack.c.b16 %v8441, %v8440
    %v8486 = vpack.c.b16 %v8443, %v8442
    %v8487 = vpack.c.b16 %v8445, %v8444
    %v8488 = vpack.c.b16 %v8447, %v8446
    %v8489 = vpack.c.b16 %v8449, %v8448
    %v8490 = vpack.c.b16 %v8451, %v8450
    %v8491 = vpack.c.b16 %v8453, %v8452
    %v8492 = vpack.c.b16 %v8455, %v8454
    %v8493 = vpack.c.b16 %v8457, %v8456
    %v8494 = vpack.c.b16 %v8459, %v8458
    %v8495 = vpack.c.b16 %v8461, %v8460
    %v8496 = vpack.c.b16 %v8463, %v8462
    %v8497 = vpack.c.b16 %v8465, %v8464
    %8530 = vmatprep.subr.bf16.mxu0 0
    %8531 = vmatpush1.bf16.msra.mxu0 %v8466
    %8532 = vmatprep.subr.bf16.mxu0 0
    %8533 = vmatpush1.bf16.msra.mxu0 %v8467
    %8534 = vmatprep.subr.bf16.mxu0 0
    %8535 = vmatpush1.bf16.msra.mxu0 %v8468
    %8536 = vmatprep.subr.bf16.mxu0 0
    %8537 = vmatpush1.bf16.msra.mxu0 %v8469
    %8538 = vmatprep.subr.bf16.mxu0 0
    %8539 = vmatpush1.bf16.msra.mxu0 %v8470
    %8540 = vmatprep.subr.bf16.mxu0 0
    %8541 = vmatpush1.bf16.msra.mxu0 %v8471
    %8542 = vmatprep.subr.bf16.mxu0 0
    %8543 = vmatpush1.bf16.msra.mxu0 %v8472
    %8544 = vmatprep.subr.bf16.mxu0 0
    %8545 = vmatpush1.bf16.msra.mxu0 %v8473
    %8546 = vmatprep.subr.bf16.mxu0 0
    %8547 = vmatpush1.bf16.msra.mxu0 %v8474
    %8548 = vmatprep.subr.bf16.mxu0 0
    %8549 = vmatpush1.bf16.msra.mxu0 %v8475
    %8550 = vmatprep.subr.bf16.mxu0 0
    %8551 = vmatpush1.bf16.msra.mxu0 %v8476
    %8552 = vmatprep.subr.bf16.mxu0 0
    %8553 = vmatpush1.bf16.msra.mxu0 %v8477
    %8554 = vmatprep.subr.bf16.mxu0 0
    %8555 = vmatpush1.bf16.msra.mxu0 %v8478
    %8556 = vmatprep.subr.bf16.mxu0 0
    %8557 = vmatpush1.bf16.msra.mxu0 %v8479
    %8558 = vmatprep.subr.bf16.mxu0 0
    %8559 = vmatpush1.bf16.msra.mxu0 %v8480
    %8560 = vmatprep.subr.bf16.mxu0 0
    %8561 = vmatpush1.bf16.msra.mxu0 %v8481
    %8562 = vmatprep.mubr.bf16.mxu0 %v8262
    %8563 = vmatmul.mubr.bf16.gmra.mrb[0].mxu0 %v8261
    %v8564 = vpop.f32.mrb[0].mxu0
    %v8565 = vadd.f32 %v8336, %v8564
    %v8566 = vpop.f32.mrb[0].mxu0
    %v8567 = vpop.f32.mrb[0].mxu0
    %v8568 = vpop.f32.mrb[0].mxu0
    %8569 = vdwg.mxu0
    %8570 = vmatprep.subr.bf16.mxu0 0
    %8571 = vmatpush1.bf16.msra.mxu0 %v8482
    %8572 = vmatprep.subr.bf16.mxu0 0
    %8573 = vmatpush1.bf16.msra.mxu0 %v8483
    %8574 = vmatprep.subr.bf16.mxu0 0
    %8575 = vmatpush1.bf16.msra.mxu0 %v8484
    %8576 = vmatprep.subr.bf16.mxu0 0
    %8577 = vmatpush1.bf16.msra.mxu0 %v8485
    %8578 = vmatprep.subr.bf16.mxu0 0
    %8579 = vmatpush1.bf16.msra.mxu0 %v8486
    %8580 = vmatprep.subr.bf16.mxu0 0
    %8581 = vmatpush1.bf16.msra.mxu0 %v8487
    %8582 = vmatprep.subr.bf16.mxu0 0
    %8583 = vmatpush1.bf16.msra.mxu0 %v8488
    %8584 = vmatprep.subr.bf16.mxu0 0
    %8585 = vmatpush1.bf16.msra.mxu0 %v8489
    %8586 = vmatprep.subr.bf16.mxu0 0
    %8587 = vmatpush1.bf16.msra.mxu0 %v8490
    %8588 = vmatprep.subr.bf16.mxu0 0
    %8589 = vmatpush1.bf16.msra.mxu0 %v8491
    %8590 = vmatprep.subr.bf16.mxu0 0
    %8591 = vmatpush1.bf16.msra.mxu0 %v8492
    %8592 = vmatprep.subr.bf16.mxu0 0
    %8593 = vmatpush1.bf16.msra.mxu0 %v8493
    %8594 = vmatprep.subr.bf16.mxu0 0
    %8595 = vmatpush1.bf16.msra.mxu0 %v8494
    %8596 = vmatprep.subr.bf16.mxu0 0
    %8597 = vmatpush1.bf16.msra.mxu0 %v8495
    %8598 = vmatprep.subr.bf16.mxu0 0
    %8599 = vmatpush1.bf16.msra.mxu0 %v8496
    %8600 = vmatprep.subr.bf16.mxu0 0
    %8601 = vmatpush1.bf16.msra.mxu0 %v8497
    %8602 = vmatprep.mubr.bf16.mxu0 %v8264
    %8603 = vmatmul.mubr.bf16.gmra.mrb[0].mxu0 %v8263
    %v8604 = vpop.f32.mrb[0].mxu0
    %v8605 = vadd.f32 %v8565, %v8604
    %v8606 = vpop.f32.mrb[0].mxu0
    %v8607 = vpop.f32.mrb[0].mxu0
    %v8608 = vpop.f32.mrb[0].mxu0
    %8609 = vdwg.mxu0
    %v8610 = vadd.f32 %v8098, %v8605
    %s8611 = scalar_lea.vmem %s23, 3
    %v8612 = vld [vmem:[%s8611] sm:$0x1]
    %s8613 = scalar_lea.vmem %s24, 3
    %v8614 = vld [vmem:[%s8613] sm:$0x1]
    %v8615 = vsel %vm1947, %v8610, 0.0
    %8616 = vadd.xlane.f32.xlu0 %v8615
    %v8617 = vpop.xlane.xlu0 %8616
    %v8618 = vmul.f32 %v8617, %v1951
    %v8619 = vsub.f32 %v8610, %v8618
    %v8620 = vmul.f32 %v8619, %v8619
    %v8621 = vsel %vm1947, %v8620, 0.0
    %8622 = vadd.xlane.f32.xlu0 %v8621
    %v8623 = vpop.xlane.xlu0 %8622
    %v8624 = vmul.f32 %v8623, %v1951
    %v8625 = vadd.f32 %v8624, 1e-05
    %v8626 = vrsqrt.pop %v8625
    %v8627 = vmul.f32 %v8619, %v8626
    %v8629 = vlaneseq
    %v8630 = vshrl.u32 %v8629, 7
    %v8631 = vsub.s32 0, %v8630
    %v8632 = vrot.slane %v8612, %v8631
    %v8634 = vmul.f32 %v8627, %v8632
    %v8636 = vlaneseq
    %v8637 = vshrl.u32 %v8636, 7
    %v8638 = vsub.s32 0, %v8637
    %v8639 = vrot.slane %v8614, %v8638
    %v8641 = vadd.f32 %v8634, %v8639
    %v8642 = vld [vmem:[%s25] sm:$0xff]
    %v8643 = vld [vmem:[%s25 + $0x8] sm:$0xff]
    %v8644 = vld [vmem:[%s25 + $0x10] sm:$0xff]
    %v8645 = vld [vmem:[%s26] sm:$0x1]
    %v8647 = vlaneseq
    %v8648 = vshrl.u32 %v8647, 7
    %v8649 = vsub.s32 0, %v8648
    %v8650 = vrot.slane %v8645, %v8649
    %v8653 = vsel %vm489, %v8641, 0
    %8655 = vmatprep.subr.mxu0 0.0
    %8656 = vmatpush1.msra.mxu0 %v8642
    %8657 = vmatprep.subr.mxu0 0.0
    %8658 = vmatpush1.msra.mxu0 %v8643
    %8659 = vmatprep.subr.mxu0 0.0
    %8660 = vmatpush1.msra.mxu0 %v8644
    %8661 = vmatprep.subr.mxu0 0.0
    %8662 = vmatpush1.msra.mxu0 0.0
    %8663 = vmatprep.subr.mxu0 0.0
    %8664 = vmatpush1.msra.mxu0 0.0
    %8665 = vmatprep.subr.mxu0 0.0
    %8666 = vmatpush1.msra.mxu0 0.0
    %8667 = vmatprep.subr.mxu0 0.0
    %8668 = vmatpush1.msra.mxu0 0.0
    %8669 = vmatprep.subr.mxu0 0.0
    %8670 = vmatpush1.msra.mxu0 0.0
    %8671 = vmatprep.subr.mxu0 0.0
    %8672 = vmatpush1.msra.mxu0 0.0
    %8673 = vmatprep.subr.mxu0 0.0
    %8674 = vmatpush1.msra.mxu0 0.0
    %8675 = vmatprep.subr.mxu0 0.0
    %8676 = vmatpush1.msra.mxu0 0.0
    %8677 = vmatprep.subr.mxu0 0.0
    %8678 = vmatpush1.msra.mxu0 0.0
    %8679 = vmatprep.subr.mxu0 0.0
    %8680 = vmatpush1.msra.mxu0 0.0
    %8681 = vmatprep.subr.mxu0 0.0
    %8682 = vmatpush1.msra.mxu0 0.0
    %8683 = vmatprep.subr.mxu0 0.0
    %8684 = vmatpush1.msra.mxu0 0.0
    %8685 = vmatprep.subr.mxu0 0.0
    %8686 = vmatpush1.msra.mxu0 0.0
    %8687 = vmatprep.subr.mxu0 0.0
    %8688 = vmatpush1.msra.mxu0 0.0
    %8689 = vmatprep.subr.mxu0 0.0
    %8690 = vmatpush1.msra.mxu0 0.0
    %8691 = vmatprep.subr.mxu0 0.0
    %8692 = vmatpush1.msra.mxu0 0.0
    %8693 = vmatprep.subr.mxu0 0.0
    %8694 = vmatpush1.msra.mxu0 0.0
    %8695 = vmatprep.subr.mxu0 0.0
    %8696 = vmatpush1.msra.mxu0 0.0
    %8697 = vmatprep.subr.mxu0 0.0
    %8698 = vmatpush1.msra.mxu0 0.0
    %8699 = vmatprep.subr.mxu0 0.0
    %8700 = vmatpush1.msra.mxu0 0.0
    %8701 = vmatprep.subr.mxu0 0.0
    %8702 = vmatpush1.msra.mxu0 0.0
    %8703 = vmatprep.subr.mxu0 0.0
    %8704 = vmatpush1.msra.mxu0 0.0
    %8705 = vmatprep.subr.mxu0 0.0
    %8706 = vmatpush1.msra.mxu0 0.0
    %8707 = vmatprep.subr.mxu0 0.0
    %8708 = vmatpush1.msra.mxu0 0.0
    %8709 = vmatprep.subr.mxu0 0.0
    %8710 = vmatpush1.msra.mxu0 0.0
    %8711 = vmatprep.subr.mxu0 0.0
    %8712 = vmatpush1.msra.mxu0 0.0
    %8713 = vmatprep.subr.mxu0 0.0
    %8714 = vmatpush1.msra.mxu0 0.0
    %8715 = vmatprep.subr.mxu0 0.0
    %8716 = vmatpush1.msra.mxu0 0.0
    %8717 = vmatprep.subr.mxu0 0.0
    %8718 = vmatpush1.msra.mxu0 0.0
    %8719 = vmatprep.mubr.f32.mxu0 0.0
    %8720 = vmatmul.mubr.f32.gmra.mrb[0].mxu0 %v8653
    %v8721 = vpop.f32.mrb[0].mxu0
    %v8722 = vadd.f32 %v8650, %v8721
    %v8723 = vpop.f32.mrb[0].mxu0
    %8724 = vdwg.mxu0
    %vm8725 = vcmask 91136
    %8726 = vst.msk [vmem:[#allocation2] sm:$0x3] %vm8725, %v8722
    // Predicated region
    $region110: #{forward.1} parent=1 // pred_check
      _
    $region111: #{forward.1} parent=1 // pred_check_branch
      %8728 = sbr.rel (0) target = $region113
    $region112: #{forward.1} parent=1 // pred_region
      %s8730 = ssub.s32 32, 32
      %8731 = vsyncadd [#allocation3], %s8730
      %s8733 = sshll.u32 [#allocation2], 4
      %s8734 = int_to_ptr.vmem [resolvable:$true] %s8733
      %8736 = dma.vmem_to_hbm [thread:$0]  %s8734, 32, %s27, [#allocation3]
    $region113: #{forward.1} parent=1 // pred_fallthru
      _
    // Predicated region
    $region114: #{forward.1} parent=1 // pred_check
      _
    $region115: #{forward.1} parent=1 // pred_check_branch
      %8738 = sbr.rel (0) target = $region117
    $region116: #{forward.1} parent=1 // pred_region
      %8739 = dma.done [#allocation3], 32
    $region117: #{forward.1} parent=1 // pred_fallthru
      _
    %8740 = vsyncpa [#allocation3], 1

</llo_original>
